<compile_context>
chip_gen: v7x
topology: tpu7x:2x2x1
jax: 0.10.0
libtpu: 0.0.40
codegen_flags: <defaults>
</compile_context>

<pallas_src>
import jax
import jax.numpy as jnp
from jax.experimental import pallas as pl
from jax.experimental.pallas import tpu as pltpu

HIDDEN = 64                      # fixed by the module (block1/block2 output 64 channels)
REF_PREC = jax.lax.Precision.HIGHEST


def _pick_matmul_precision():
    """Prefer bf16_3x (HIGH): ~f32 accuracy at roughly half the MXU passes of
    HIGHEST.  Some Mosaic builds only plumb DEFAULT/HIGHEST through tpu.matmul,
    so probe with a tiny compile and fall back to HIGHEST (known-good)."""
    def _probe(a_ref, b_ref, o_ref):
        o_ref[...] = jnp.dot(a_ref[...], b_ref[...],
                             precision=jax.lax.Precision.HIGH,
                             preferred_element_type=jnp.float32)
    try:
        f = pl.pallas_call(_probe, out_shape=jax.ShapeDtypeStruct((8, 128), jnp.float32))
        a = jax.ShapeDtypeStruct((8, 128), jnp.float32)
        b = jax.ShapeDtypeStruct((128, 128), jnp.float32)
        jax.jit(f).lower(a, b).compile()
        return jax.lax.Precision.HIGH
    except Exception:
        return jax.lax.Precision.HIGHEST


PREC = _pick_matmul_precision()


# ---------------------------------------------------------------------------
# Fused kernel: whole STGCN forward for one batch element
# ---------------------------------------------------------------------------
def _stgcn_fused_kernel(adj_big_ref, x_ref,
                        w1a_ref, b1a_ref, w1b_ref, b1b_ref,
                        w2a_ref, b2a_ref, w2b_ref, b2b_ref,
                        wf_ref, bf_ref, out_ref):
    """Activation layout: (N*L, C) f32, time-major rows (row = l*N + n)."""
    NL = adj_big_ref.shape[0]    # N * L
    N = out_ref.shape[1]         # num_nodes

    # Hoisted time-boundary masks (time step of row r is r // N), shared by all tconvs.
    row = jax.lax.broadcasted_iota(jnp.int32, (NL, 1), 0)
    first_t = row < N            # l == 0     -> left zero-pad of the (1,3) conv
    last_t = row >= NL - N       # l == L-1   -> right zero-pad of the (1,3) conv

    def matmul(a, b):
        return jnp.dot(a, b, precision=PREC, preferred_element_type=jnp.float32)

    def tconv(h, w_ref, b_ref):
        # Conv2d(kernel=(1,3), padding=(0,1)) along time as ONE matmul: +/-1 time
        # shifts are sublane-aligned rolls by N rows (XLU slot, no copies), the three
        # taps are lane-concatenated and hit the MXU against a (3*C, H) weight.
        h_prev = jnp.where(first_t, 0.0, pltpu.roll(h, shift=N, axis=0))
        h_next = jnp.where(last_t, 0.0, pltpu.roll(h, shift=NL - N, axis=0))
        hc = jnp.concatenate([h_prev, h, h_next], axis=-1)          # (NL, 3*C)
        return matmul(hc, w_ref[...]) + b_ref[...]

    adj_big = adj_big_ref[...]   # (NL, NL) == kron(I_L, adj.T)

    # block 1: the first temporal conv's 3 taps were pre-concatenated in the wrapper.
    h = jnp.maximum(matmul(x_ref[0], w1a_ref[...]) + b1a_ref[...], 0.0)
    h = matmul(adj_big, h)       # spatial graph mix over ALL time steps at once
    h = tconv(h, w1b_ref, b1b_ref)

    # block 2
    h = jnp.maximum(tconv(h, w2a_ref, b2a_ref), 0.0)
    h = matmul(adj_big, h)
    h = tconv(h, w2b_ref, b2b_ref)

    # final 1x1 conv applied to the last time step only (= last N rows, static slice)
    out_ref[0] = matmul(h[NL - N:, :], wf_ref[...]) + bf_ref[...]


# ---------------------------------------------------------------------------
# Wrapper
# ---------------------------------------------------------------------------
def build_adj_big(adj, L):
    """kron(I_L, adj.T): block-diagonal adjacency so the per-time-step spatial mix
    becomes one matmul over all time steps.  Hoisted out of the per-call path."""
    return jnp.kron(jnp.eye(L, dtype=adj.dtype), adj.T)             # (N*L, N*L)


def stgcn_forward(x_nchw, adj_big, p):
    """x_nchw: (B, C_in, N, L) as in PyTorch; adj_big: kron(I_L, adj.T).
    Returns (B, C_out, N, 1)."""
    B, Cin, N, L = x_nchw.shape
    H = p["b1_t2_w"].shape[2]
    Cout = p["final_w"].shape[1]
    NL = N * L

    assert N % 8 == 0, "num_nodes must be a multiple of 8 (sublane-aligned time rolls)"
    assert adj_big.shape == (NL, NL)

    # (B, C, N, L) -> time-major (B, L, N, C); flattened row index = l*N + n.
    x_t = jnp.transpose(x_nchw, (0, 3, 2, 1))
    # Pre-build the first temporal conv's 3 shifted taps in XLA (Cin is tiny, so the
    # in-kernel rolls/masks were pure latency): (B, NL, 3*Cin).
    z = jnp.zeros_like(x_t[:, :1])
    x_cat = jnp.concatenate(
        [jnp.concatenate([z, x_t[:, :-1]], axis=1),   # tap 0: x[l-1]
         x_t,                                         # tap 1: x[l]
         jnp.concatenate([x_t[:, 1:], z], axis=1)],   # tap 2: x[l+1]
        axis=-1).reshape(B, NL, 3 * Cin)

    # Tap-stacked weights so each temporal conv is a single matmul.
    w1a = p["b1_t1_w"].reshape(3 * Cin, H)
    w1b = p["b1_t2_w"].reshape(3 * H, H)
    w2a = p["b2_t1_w"].reshape(3 * H, H)
    w2b = p["b2_t2_w"].reshape(3 * H, H)

    out = pl.pallas_call(
        _stgcn_fused_kernel,
        out_shape=jax.ShapeDtypeStruct((B, N, Cout), jnp.float32),
        grid_spec=pltpu.PrefetchScalarGridSpec(
            num_scalar_prefetch=0,
            grid=(B,),
            in_specs=[
                pl.BlockSpec((NL, NL), lambda b: (0, 0)),            # adj_big
                pl.BlockSpec((1, NL, 3 * Cin), lambda b: (b, 0, 0)),  # x (3-tap concat)
                pl.BlockSpec((3 * Cin, H), lambda b: (0, 0)),        # block1.temporal1 w
                pl.BlockSpec((1, H), lambda b: (0, 0)),              # block1.temporal1 b
                pl.BlockSpec((3 * H, H), lambda b: (0, 0)),          # block1.temporal2 w
                pl.BlockSpec((1, H), lambda b: (0, 0)),              # block1.temporal2 b
                pl.BlockSpec((3 * H, H), lambda b: (0, 0)),          # block2.temporal1 w
                pl.BlockSpec((1, H), lambda b: (0, 0)),              # block2.temporal1 b
                pl.BlockSpec((3 * H, H), lambda b: (0, 0)),          # block2.temporal2 w
                pl.BlockSpec((1, H), lambda b: (0, 0)),              # block2.temporal2 b
                pl.BlockSpec((H, Cout), lambda b: (0, 0)),           # final 1x1 conv w
                pl.BlockSpec((1, Cout), lambda b: (0, 0)),           # final 1x1 conv b
            ],
            out_specs=pl.BlockSpec((1, N, Cout), lambda b: (b, 0, 0)),
        ),
        compiler_params=pltpu.CompilerParams(dimension_semantics=("parallel",)),
    )(adj_big, x_cat,
      w1a, p["b1_t1_b"], w1b, p["b1_t2_b"],
      w2a, p["b2_t1_b"], w2b, p["b2_t2_b"],
      p["final_w"], p["final_b"])

    return jnp.transpose(out, (0, 2, 1))[:, :, :, None]             # (B, C_out, N, 1)


# ---------------------------------------------------------------------------
# Deterministic parameter init (synthetic, mirrors the module's shapes)
# ---------------------------------------------------------------------------
def init_params(key, in_channels, out_channels, hidden=HIDDEN):
    ks = jax.random.split(key, 10)

    def nrm(k, shape, scale=0.1):
        return jax.random.normal(k, shape, jnp.float32) * scale

    # temporal conv weights stored as (3 taps, Cin, Cout) == torch (Cout, Cin, 1, 3) transposed
    return {
        "b1_t1_w": nrm(ks[0], (3, in_channels, hidden)),
        "b1_t1_b": nrm(ks[1], (1, hidden)),
        "b1_t2_w": nrm(ks[2], (3, hidden, hidden)),
        "b1_t2_b": nrm(ks[3], (1, hidden)),
        "b2_t1_w": nrm(ks[4], (3, hidden, hidden)),
        "b2_t1_b": nrm(ks[5], (1, hidden)),
        "b2_t2_w": nrm(ks[6], (3, hidden, hidden)),
        "b2_t2_b": nrm(ks[7], (1, hidden)),
        "final_w": nrm(ks[8], (hidden, out_channels)),   # 1x1 conv weight
        "final_b": nrm(ks[9], (1, out_channels)),
    }


# ---------------------------------------------------------------------------
# Pure-JAX reference (mirrors the PyTorch forward exactly)
# ---------------------------------------------------------------------------
def _ref_tconv(x, w, b):
    L = x.shape[2]
    xp = jnp.pad(x, ((0, 0), (0, 0), (1, 1), (0, 0)))
    y = (jnp.einsum("bnlc,cd->bnld", xp[:, :, 0:L, :], w[0], precision=REF_PREC)
         + jnp.einsum("bnlc,cd->bnld", xp[:, :, 1:L + 1, :], w[1], precision=REF_PREC)
         + jnp.einsum("bnlc,cd->bnld", xp[:, :, 2:L + 2, :], w[2], precision=REF_PREC))
    return y + b[0]


def _ref_block(x, adj, w1, b1, w2, b2):
    h = jax.nn.relu(_ref_tconv(x, w1, b1))
    h = jnp.einsum("bnlc,nm->bmlc", h, adj, precision=REF_PREC)   # torch.einsum('bcnl,nm->bcml')
    return _ref_tconv(h, w2, b2)


def stgcn_reference(x_nchw, adj, p):
    x = jnp.transpose(x_nchw, (0, 2, 3, 1))
    h = _ref_block(x, adj, p["b1_t1_w"], p["b1_t1_b"], p["b1_t2_w"], p["b1_t2_b"])
    h = _ref_block(h, adj, p["b2_t1_w"], p["b2_t1_b"], p["b2_t2_w"], p["b2_t2_b"])
    y = jnp.einsum("bnlc,cd->bnld", h, p["final_w"], precision=REF_PREC) + p["final_b"][0]
    y = y[:, :, -1:, :]                              # (B, N, 1, C_out)
    return jnp.transpose(y, (0, 3, 1, 2))            # (B, C_out, N, 1)


if __name__ == "__main__":
    B, N, L = 2, 16, 8            # batch, num_nodes, seq_len
    in_channels, out_channels = 4, 3

    key = jax.random.PRNGKey(0)
    kx, ka, kp = jax.random.split(key, 3)
    x = jax.random.normal(kx, (B, in_channels, N, L), jnp.float32)   # PyTorch NCHW input
    adj = jax.random.normal(ka, (N, N), jnp.float32) * 0.2
    params = init_params(kp, in_channels, out_channels)

    adj_big = build_adj_big(adj, L)       # hoisted out of the per-call path (adj static)

    fwd = jax.jit(stgcn_forward)
    out = jax.block_until_ready(fwd(x, adj_big, params))

    assert out.shape == (B, out_channels, N, 1), out.shape

    ref = stgcn_reference(x, adj, params)
    if not jnp.allclose(out, ref, atol=1e-3, rtol=1e-3):
        raise AssertionError(
            f"mismatch vs reference, max abs diff = {float(jnp.max(jnp.abs(out - ref)))}")

    print("KERNEL_OK")
</pallas_src>

<mosaic_0001>
module attributes {stable_mosaic.version = 11 : i64} {
  func.func @_stgcn_fused_kernel(%arg0: i32, %arg1: memref<128x128xf32, #tpu.memory_space<vmem>>, %arg2: memref<1x128x12xf32, #tpu.memory_space<vmem>>, %arg3: memref<12x64xf32, #tpu.memory_space<vmem>>, %arg4: memref<1x64xf32, #tpu.memory_space<vmem>>, %arg5: memref<192x64xf32, #tpu.memory_space<vmem>>, %arg6: memref<1x64xf32, #tpu.memory_space<vmem>>, %arg7: memref<192x64xf32, #tpu.memory_space<vmem>>, %arg8: memref<1x64xf32, #tpu.memory_space<vmem>>, %arg9: memref<192x64xf32, #tpu.memory_space<vmem>>, %arg10: memref<1x64xf32, #tpu.memory_space<vmem>>, %arg11: memref<64x3xf32, #tpu.memory_space<vmem>>, %arg12: memref<1x3xf32, #tpu.memory_space<vmem>>, %arg13: memref<1x16x3xf32, #tpu.memory_space<vmem>>) attributes {dimension_semantics = [#tpu.dimension_semantics<parallel>], iteration_bounds = array<i64: 2>, scalar_prefetch = 0 : i64, scratch_operands = 0 : i64, tpu.core_type = #tpu.core_type<tc>, window_params = [{pipeline_mode = #tpu.pipeline_mode<synchronous>, transform_indices = @transform_0, window_bounds = array<i64: 128, 128>}, {transform_indices = @transform_1, window_bounds = array<i64: 1, 128, 12>}, {pipeline_mode = #tpu.pipeline_mode<synchronous>, transform_indices = @transform_2, window_bounds = array<i64: 12, 64>}, {pipeline_mode = #tpu.pipeline_mode<synchronous>, transform_indices = @transform_3, window_bounds = array<i64: 1, 64>}, {pipeline_mode = #tpu.pipeline_mode<synchronous>, transform_indices = @transform_4, window_bounds = array<i64: 192, 64>}, {pipeline_mode = #tpu.pipeline_mode<synchronous>, transform_indices = @transform_5, window_bounds = array<i64: 1, 64>}, {pipeline_mode = #tpu.pipeline_mode<synchronous>, transform_indices = @transform_6, window_bounds = array<i64: 192, 64>}, {pipeline_mode = #tpu.pipeline_mode<synchronous>, transform_indices = @transform_7, window_bounds = array<i64: 1, 64>}, {pipeline_mode = #tpu.pipeline_mode<synchronous>, transform_indices = @transform_8, window_bounds = array<i64: 192, 64>}, {pipeline_mode = #tpu.pipeline_mode<synchronous>, transform_indices = @transform_9, window_bounds = array<i64: 1, 64>}, {pipeline_mode = #tpu.pipeline_mode<synchronous>, transform_indices = @transform_10, window_bounds = array<i64: 64, 3>}, {pipeline_mode = #tpu.pipeline_mode<synchronous>, transform_indices = @transform_11, window_bounds = array<i64: 1, 3>}, {transform_indices = @transform_12, window_bounds = array<i64: 1, 16, 3>}]} {
    %0 = tpu.iota {dimensions = array<i32: 0>} : vector<128x1xi32>
    %c16_i32 = arith.constant 16 : i32
    %1 = vector.broadcast %c16_i32 : i32 to vector<128x1xi32>
    %2 = arith.cmpi slt, %0, %1 : vector<128x1xi32>
    %c112_i32 = arith.constant 112 : i32
    %3 = vector.broadcast %c112_i32 : i32 to vector<128x1xi32>
    %4 = arith.cmpi sge, %0, %3 : vector<128x1xi32>
    %c0 = arith.constant 0 : index
    %c0_0 = arith.constant 0 : index
    %5 = vector.load %arg1[%c0, %c0_0] : memref<128x128xf32, #tpu.memory_space<vmem>>, vector<128x128xf32>
    %c0_1 = arith.constant 0 : index
    %c0_2 = arith.constant 0 : index
    %c0_3 = arith.constant 0 : index
    %6 = vector.load %arg2[%c0_1, %c0_2, %c0_3] : memref<1x128x12xf32, #tpu.memory_space<vmem>>, vector<1x128x12xf32>
    %7 = vector.shape_cast %6 : vector<1x128x12xf32> to vector<128x12xf32>
    %c0_4 = arith.constant 0 : index
    %c0_5 = arith.constant 0 : index
    %8 = vector.load %arg3[%c0_4, %c0_5] : memref<12x64xf32, #tpu.memory_space<vmem>>, vector<12x64xf32>
    %cst = arith.constant dense<0.000000e+00> : vector<128x64xf32>
    %9 = tpu.matmul %7, %8, %cst {dimension_numbers = #tpu.dot_dimension_numbers<[1], [0], [0], [1], [0, 0, 1, 1], [], []>, precision = #tpu.contract_precision<fp32>} : vector<128x12xf32>, vector<12x64xf32>, vector<128x64xf32> -> vector<128x64xf32>
    %c0_6 = arith.constant 0 : index
    %c0_7 = arith.constant 0 : index
    %10 = vector.load %arg4[%c0_6, %c0_7] : memref<1x64xf32, #tpu.memory_space<vmem>>, vector<1x64xf32>
    %11 = vector.broadcast %10 : vector<1x64xf32> to vector<128x64xf32>
    %12 = arith.addf %9, %11 : vector<128x64xf32>
    %cst_8 = arith.constant 0.000000e+00 : f32
    %13 = vector.broadcast %cst_8 : f32 to vector<128x64xf32>
    %14 = arith.maximumf %12, %13 : vector<128x64xf32>
    %cst_9 = arith.constant dense<0.000000e+00> : vector<128x64xf32>
    %15 = tpu.matmul %5, %14, %cst_9 {dimension_numbers = #tpu.dot_dimension_numbers<[1], [0], [0], [1], [0, 0, 1, 1], [], []>, precision = #tpu.contract_precision<fp32>} : vector<128x128xf32>, vector<128x64xf32>, vector<128x64xf32> -> vector<128x64xf32>
    %c16_i32_10 = arith.constant 16 : i32
    %16 = tpu.dynamic_rotate %15 by %c16_i32_10 dim 0 : vector<128x64xf32>, i32 -> vector<128x64xf32>
    %cst_11 = arith.constant 0.000000e+00 : f32
    %17 = vector.shape_cast %2 : vector<128x1xi1> to vector<128x1xi1>
    %18 = vector.broadcast %17 : vector<128x1xi1> to vector<128x64xi1>
    %19 = vector.broadcast %cst_11 : f32 to vector<128x64xf32>
    %20 = arith.select %18, %19, %16 : vector<128x64xi1>, vector<128x64xf32>
    %c112_i32_12 = arith.constant 112 : i32
    %21 = tpu.dynamic_rotate %15 by %c112_i32_12 dim 0 : vector<128x64xf32>, i32 -> vector<128x64xf32>
    %cst_13 = arith.constant 0.000000e+00 : f32
    %22 = vector.shape_cast %4 : vector<128x1xi1> to vector<128x1xi1>
    %23 = vector.broadcast %22 : vector<128x1xi1> to vector<128x64xi1>
    %24 = vector.broadcast %cst_13 : f32 to vector<128x64xf32>
    %25 = arith.select %23, %24, %21 : vector<128x64xi1>, vector<128x64xf32>
    %26 = tpu.concatenate %20, %15, %25 in 1 : vector<128x64xf32>, vector<128x64xf32>, vector<128x64xf32> -> vector<128x192xf32>
    %c0_14 = arith.constant 0 : index
    %c0_15 = arith.constant 0 : index
    %27 = vector.load %arg5[%c0_14, %c0_15] : memref<192x64xf32, #tpu.memory_space<vmem>>, vector<192x64xf32>
    %cst_16 = arith.constant dense<0.000000e+00> : vector<128x64xf32>
    %28 = tpu.matmul %26, %27, %cst_16 {dimension_numbers = #tpu.dot_dimension_numbers<[1], [0], [0], [1], [0, 0, 1, 1], [], []>, precision = #tpu.contract_precision<fp32>} : vector<128x192xf32>, vector<192x64xf32>, vector<128x64xf32> -> vector<128x64xf32>
    %c0_17 = arith.constant 0 : index
    %c0_18 = arith.constant 0 : index
    %29 = vector.load %arg6[%c0_17, %c0_18] : memref<1x64xf32, #tpu.memory_space<vmem>>, vector<1x64xf32>
    %30 = vector.broadcast %29 : vector<1x64xf32> to vector<128x64xf32>
    %31 = arith.addf %28, %30 : vector<128x64xf32>
    %c16_i32_19 = arith.constant 16 : i32
    %32 = tpu.dynamic_rotate %31 by %c16_i32_19 dim 0 : vector<128x64xf32>, i32 -> vector<128x64xf32>
    %cst_20 = arith.constant 0.000000e+00 : f32
    %33 = vector.shape_cast %2 : vector<128x1xi1> to vector<128x1xi1>
    %34 = vector.broadcast %33 : vector<128x1xi1> to vector<128x64xi1>
    %35 = vector.broadcast %cst_20 : f32 to vector<128x64xf32>
    %36 = arith.select %34, %35, %32 : vector<128x64xi1>, vector<128x64xf32>
    %c112_i32_21 = arith.constant 112 : i32
    %37 = tpu.dynamic_rotate %31 by %c112_i32_21 dim 0 : vector<128x64xf32>, i32 -> vector<128x64xf32>
    %cst_22 = arith.constant 0.000000e+00 : f32
    %38 = vector.shape_cast %4 : vector<128x1xi1> to vector<128x1xi1>
    %39 = vector.broadcast %38 : vector<128x1xi1> to vector<128x64xi1>
    %40 = vector.broadcast %cst_22 : f32 to vector<128x64xf32>
    %41 = arith.select %39, %40, %37 : vector<128x64xi1>, vector<128x64xf32>
    %42 = tpu.concatenate %36, %31, %41 in 1 : vector<128x64xf32>, vector<128x64xf32>, vector<128x64xf32> -> vector<128x192xf32>
    %c0_23 = arith.constant 0 : index
    %c0_24 = arith.constant 0 : index
    %43 = vector.load %arg7[%c0_23, %c0_24] : memref<192x64xf32, #tpu.memory_space<vmem>>, vector<192x64xf32>
    %cst_25 = arith.constant dense<0.000000e+00> : vector<128x64xf32>
    %44 = tpu.matmul %42, %43, %cst_25 {dimension_numbers = #tpu.dot_dimension_numbers<[1], [0], [0], [1], [0, 0, 1, 1], [], []>, precision = #tpu.contract_precision<fp32>} : vector<128x192xf32>, vector<192x64xf32>, vector<128x64xf32> -> vector<128x64xf32>
    %c0_26 = arith.constant 0 : index
    %c0_27 = arith.constant 0 : index
    %45 = vector.load %arg8[%c0_26, %c0_27] : memref<1x64xf32, #tpu.memory_space<vmem>>, vector<1x64xf32>
    %46 = vector.broadcast %45 : vector<1x64xf32> to vector<128x64xf32>
    %47 = arith.addf %44, %46 : vector<128x64xf32>
    %cst_28 = arith.constant 0.000000e+00 : f32
    %48 = vector.broadcast %cst_28 : f32 to vector<128x64xf32>
    %49 = arith.maximumf %47, %48 : vector<128x64xf32>
    %cst_29 = arith.constant dense<0.000000e+00> : vector<128x64xf32>
    %50 = tpu.matmul %5, %49, %cst_29 {dimension_numbers = #tpu.dot_dimension_numbers<[1], [0], [0], [1], [0, 0, 1, 1], [], []>, precision = #tpu.contract_precision<fp32>} : vector<128x128xf32>, vector<128x64xf32>, vector<128x64xf32> -> vector<128x64xf32>
    %c16_i32_30 = arith.constant 16 : i32
    %51 = tpu.dynamic_rotate %50 by %c16_i32_30 dim 0 : vector<128x64xf32>, i32 -> vector<128x64xf32>
    %cst_31 = arith.constant 0.000000e+00 : f32
    %52 = vector.shape_cast %2 : vector<128x1xi1> to vector<128x1xi1>
    %53 = vector.broadcast %52 : vector<128x1xi1> to vector<128x64xi1>
    %54 = vector.broadcast %cst_31 : f32 to vector<128x64xf32>
    %55 = arith.select %53, %54, %51 : vector<128x64xi1>, vector<128x64xf32>
    %c112_i32_32 = arith.constant 112 : i32
    %56 = tpu.dynamic_rotate %50 by %c112_i32_32 dim 0 : vector<128x64xf32>, i32 -> vector<128x64xf32>
    %cst_33 = arith.constant 0.000000e+00 : f32
    %57 = vector.shape_cast %4 : vector<128x1xi1> to vector<128x1xi1>
    %58 = vector.broadcast %57 : vector<128x1xi1> to vector<128x64xi1>
    %59 = vector.broadcast %cst_33 : f32 to vector<128x64xf32>
    %60 = arith.select %58, %59, %56 : vector<128x64xi1>, vector<128x64xf32>
    %61 = tpu.concatenate %55, %50, %60 in 1 : vector<128x64xf32>, vector<128x64xf32>, vector<128x64xf32> -> vector<128x192xf32>
    %c0_34 = arith.constant 0 : index
    %c0_35 = arith.constant 0 : index
    %62 = vector.load %arg9[%c0_34, %c0_35] : memref<192x64xf32, #tpu.memory_space<vmem>>, vector<192x64xf32>
    %cst_36 = arith.constant dense<0.000000e+00> : vector<128x64xf32>
    %63 = tpu.matmul %61, %62, %cst_36 {dimension_numbers = #tpu.dot_dimension_numbers<[1], [0], [0], [1], [0, 0, 1, 1], [], []>, precision = #tpu.contract_precision<fp32>} : vector<128x192xf32>, vector<192x64xf32>, vector<128x64xf32> -> vector<128x64xf32>
    %c0_37 = arith.constant 0 : index
    %c0_38 = arith.constant 0 : index
    %64 = vector.load %arg10[%c0_37, %c0_38] : memref<1x64xf32, #tpu.memory_space<vmem>>, vector<1x64xf32>
    %65 = vector.broadcast %64 : vector<1x64xf32> to vector<128x64xf32>
    %66 = arith.addf %63, %65 : vector<128x64xf32>
    %67 = vector.extract_strided_slice %66 {offsets = [112, 0], sizes = [16, 64], strides = [1, 1]} : vector<128x64xf32> to vector<16x64xf32>
    %c0_39 = arith.constant 0 : index
    %c0_40 = arith.constant 0 : index
    %68 = vector.load %arg11[%c0_39, %c0_40] : memref<64x3xf32, #tpu.memory_space<vmem>>, vector<64x3xf32>
    %cst_41 = arith.constant dense<0.000000e+00> : vector<16x3xf32>
    %69 = tpu.matmul %67, %68, %cst_41 {dimension_numbers = #tpu.dot_dimension_numbers<[1], [0], [0], [1], [0, 0, 1, 1], [], []>, precision = #tpu.contract_precision<fp32>} : vector<16x64xf32>, vector<64x3xf32>, vector<16x3xf32> -> vector<16x3xf32>
    %c0_42 = arith.constant 0 : index
    %c0_43 = arith.constant 0 : index
    %70 = vector.load %arg12[%c0_42, %c0_43] : memref<1x3xf32, #tpu.memory_space<vmem>>, vector<1x3xf32>
    %71 = vector.broadcast %70 : vector<1x3xf32> to vector<16x3xf32>
    %72 = arith.addf %69, %71 : vector<16x3xf32>
    %c0_44 = arith.constant 0 : index
    %c0_45 = arith.constant 0 : index
    %c0_46 = arith.constant 0 : index
    %73 = vector.load %arg13[%c0_44, %c0_45, %c0_46] : memref<1x16x3xf32, #tpu.memory_space<vmem>>, vector<1x16x3xf32>
    %74 = vector.shape_cast %73 : vector<1x16x3xf32> to vector<16x3xf32>
    %75 = vector.shape_cast %72 : vector<16x3xf32> to vector<1x16x3xf32>
    tpu.vector_store %arg13[%c0_44, %c0_45, %c0_46], %75 {strides = array<i32>} : memref<1x16x3xf32, #tpu.memory_space<vmem>>, vector<1x16x3xf32>,
    return
  }
  func.func @transform_0(%arg0: i32) -> (i32, i32) {
    %c0_i32 = arith.constant 0 : i32
    %c0_i32_0 = arith.constant 0 : i32
    %c0_i32_1 = arith.constant 0 : i32
    return %c0_i32, %c0_i32_0 : i32, i32
  }
  func.func @transform_1(%arg0: i32) -> (i32, i32, i32) {
    %c0_i32 = arith.constant 0 : i32
    %c0_i32_0 = arith.constant 0 : i32
    %c0_i32_1 = arith.constant 0 : i32
    return %arg0, %c0_i32, %c0_i32_0 : i32, i32, i32
  }
  func.func @transform_2(%arg0: i32) -> (i32, i32) {
    %c0_i32 = arith.constant 0 : i32
    %c0_i32_0 = arith.constant 0 : i32
    %c0_i32_1 = arith.constant 0 : i32
    return %c0_i32, %c0_i32_0 : i32, i32
  }
  func.func @transform_3(%arg0: i32) -> (i32, i32) {
    %c0_i32 = arith.constant 0 : i32
    %c0_i32_0 = arith.constant 0 : i32
    %c0_i32_1 = arith.constant 0 : i32
    return %c0_i32, %c0_i32_0 : i32, i32
  }
  func.func @transform_4(%arg0: i32) -> (i32, i32) {
    %c0_i32 = arith.constant 0 : i32
    %c0_i32_0 = arith.constant 0 : i32
    %c0_i32_1 = arith.constant 0 : i32
    return %c0_i32, %c0_i32_0 : i32, i32
  }
  func.func @transform_5(%arg0: i32) -> (i32, i32) {
    %c0_i32 = arith.constant 0 : i32
    %c0_i32_0 = arith.constant 0 : i32
    %c0_i32_1 = arith.constant 0 : i32
    return %c0_i32, %c0_i32_0 : i32, i32
  }
  func.func @transform_6(%arg0: i32) -> (i32, i32) {
    %c0_i32 = arith.constant 0 : i32
    %c0_i32_0 = arith.constant 0 : i32
    %c0_i32_1 = arith.constant 0 : i32
    return %c0_i32, %c0_i32_0 : i32, i32
  }
  func.func @transform_7(%arg0: i32) -> (i32, i32) {
    %c0_i32 = arith.constant 0 : i32
    %c0_i32_0 = arith.constant 0 : i32
    %c0_i32_1 = arith.constant 0 : i32
    return %c0_i32, %c0_i32_0 : i32, i32
  }
  func.func @transform_8(%arg0: i32) -> (i32, i32) {
    %c0_i32 = arith.constant 0 : i32
    %c0_i32_0 = arith.constant 0 : i32
    %c0_i32_1 = arith.constant 0 : i32
    return %c0_i32, %c0_i32_0 : i32, i32
  }
  func.func @transform_9(%arg0: i32) -> (i32, i32) {
    %c0_i32 = arith.constant 0 : i32
    %c0_i32_0 = arith.constant 0 : i32
    %c0_i32_1 = arith.constant 0 : i32
    return %c0_i32, %c0_i32_0 : i32, i32
  }
  func.func @transform_10(%arg0: i32) -> (i32, i32) {
    %c0_i32 = arith.constant 0 : i32
    %c0_i32_0 = arith.constant 0 : i32
    %c0_i32_1 = arith.constant 0 : i32
    return %c0_i32, %c0_i32_0 : i32, i32
  }
  func.func @transform_11(%arg0: i32) -> (i32, i32) {
    %c0_i32 = arith.constant 0 : i32
    %c0_i32_0 = arith.constant 0 : i32
    %c0_i32_1 = arith.constant 0 : i32
    return %c0_i32, %c0_i32_0 : i32, i32
  }
  func.func @transform_12(%arg0: i32) -> (i32, i32, i32) {
    %c0_i32 = arith.constant 0 : i32
    %c0_i32_0 = arith.constant 0 : i32
    %c0_i32_1 = arith.constant 0 : i32
    return %arg0, %c0_i32, %c0_i32_0 : i32, i32, i32
  }
}

</mosaic_0001>

<llo_original>
// kernel: stgcn_forward.1
$region0: #{stgcn_forward.1}
  #allocation0 [shape = 'u32[]', space=smem, size = 0x4, offset = 0x4, fixed_abs, tag = 'smem constant byte address 0x4 - core index']
  #allocation1 [shape = 'u32[144,128]{1,0:T(1,128)}', space=vmem, size = 0x12000, scoped, tag = 'internal scratch']
  %s0 = inlined_call_operand.vmem [shape: f32[128,128], index: 0, kind: input, shape index: {}]
  %s1 = inlined_call_operand.vmem [shape: f32[2,128,12], index: 1, kind: input, shape index: {}]
  %s2 = inlined_call_operand.vmem [shape: f32[12,64], index: 2, kind: input, shape index: {}]
  %s3 = inlined_call_operand.vmem [shape: f32[1,64], index: 3, kind: input, shape index: {}]
  %s4 = inlined_call_operand.vmem [shape: f32[192,64], index: 4, kind: input, shape index: {}]
  %s5 = inlined_call_operand.vmem [shape: f32[1,64], index: 5, kind: input, shape index: {}]
  %s6 = inlined_call_operand.vmem [shape: f32[192,64], index: 6, kind: input, shape index: {}]
  %s7 = inlined_call_operand.vmem [shape: f32[1,64], index: 7, kind: input, shape index: {}]
  %s8 = inlined_call_operand.vmem [shape: f32[192,64], index: 8, kind: input, shape index: {}]
  %s9 = inlined_call_operand.vmem [shape: f32[1,64], index: 9, kind: input, shape index: {}]
  %s10 = inlined_call_operand.vmem [shape: f32[64,3], index: 10, kind: input, shape index: {}]
  %s11 = inlined_call_operand.vmem [shape: f32[1,3], index: 11, kind: input, shape index: {}]
  %s12 = inlined_call_operand.vmem [shape: f32[2,16,3], index: 12, kind: output, shape index: {}]
  %s13 = sld [smem:[#allocation0]]
  $region81: #{stgcn_forward.1} parent=0
    _
  %s15 = ssub.s32 1, %s13
  %s16 = scalar_select 0, %s15, %s13
  loop: start=0, step=1, limit=4
  $region2: #{stgcn_forward.1} parent=0 // loop_pre_header
    _
  $region3: #{stgcn_forward.1} parent=0 // loop_header
    %s18 = sphi 0, %s22
    %p19 = scmp.ge.s32.totalorder %s18, 4
    %s26 = sphi 0, %s26
    %s28 = sphi 0, %s26
    %s29 = sphi 0, %s28
    %s43 = sphi 0, %s29
    %s49 = sphi 0, %s51
    %s52 = sphi 0, %s49
    %s53 = sphi 0, %s52
    %s69 = sphi 0, %s53
    %s73 = sphi 0, %s73
    %s75 = sphi 0, %s73
    %s76 = sphi 0, %s75
    %s90 = sphi 0, %s76
    %s94 = sphi 0, %s94
    %s96 = sphi 0, %s94
    %s97 = sphi 0, %s96
    %s111 = sphi 0, %s97
    %s115 = sphi 0, %s115
    %s117 = sphi 0, %s115
    %s118 = sphi 0, %s117
    %s132 = sphi 0, %s118
    %s136 = sphi 0, %s136
    %s138 = sphi 0, %s136
    %s139 = sphi 0, %s138
    %s153 = sphi 0, %s139
    %s157 = sphi 0, %s157
    %s159 = sphi 0, %s157
    %s160 = sphi 0, %s159
    %s174 = sphi 0, %s160
    %s178 = sphi 0, %s178
    %s180 = sphi 0, %s178
    %s181 = sphi 0, %s180
    %s195 = sphi 0, %s181
    %s199 = sphi 0, %s199
    %s201 = sphi 0, %s199
    %s202 = sphi 0, %s201
    %s216 = sphi 0, %s202
    %s220 = sphi 0, %s220
    %s222 = sphi 0, %s220
    %s223 = sphi 0, %s222
    %s237 = sphi 0, %s223
    %s241 = sphi 0, %s241
    %s243 = sphi 0, %s241
    %s244 = sphi 0, %s243
    %s258 = sphi 0, %s244
    %s262 = sphi 0, %s262
    %s264 = sphi 0, %s262
    %s265 = sphi 0, %s264
    %s279 = sphi 0, %s265
    %s285 = sphi 0, %s287
    %s288 = sphi 0, %s285
    %s289 = sphi 0, %s288
    %s305 = sphi 0, %s289
  $region4: #{stgcn_forward.1} parent=0 // loop_header_branch
    %21 = sbr.rel (%p19) target = $region8
  $region5: #{stgcn_forward.1} parent=0 // loop_body
    %s23 = ssub.s32 %s18, 1
    %s24 = ssub.s32 %s18, 2
    %s25 = sadd.s32 %s18, 1
    %s27 = sadd.s32 %s26, 1
    %p30 = scmp.eq.s32.totalorder %s18, 1
    %p31 = scmp.ne.s32.totalorder %s26, %s28
    %p32 = scmp.eq.s32.totalorder %s18, 0
    %p33 = por %p31, %p32
    %p34 = scmp.ne.s32.totalorder %s26, %s28
    %p35 = scmp.eq.s32.totalorder %s23, 1
    %p36 = por %p34, %p35
    %p37 = scmp.ne.s32.totalorder %s28, %s29
    %p38 = scmp.eq.s32.totalorder %s23, 0
    %p39 = por %p37, %p38
    %p40 = scmp.ne.s32.totalorder %s28, %s29
    %p41 = scmp.eq.s32.totalorder %s24, 1
    %p42 = por %p40, %p41
    %p44 = scmp.ne.s32.totalorder %s29, %s43
    %p45 = scmp.eq.s32.totalorder %s24, 0
    %p46 = por %p44, %p45
    %s47 = ssub.s32 %s18, %s25
    %p48 = scmp.eq.s32.totalorder %s47, 0
    %s50 = sadd.s32 %s49, 1
    %s51 = scalar_select %p48, %s49, %s50
    %p54 = pneg %p48
    %p55 = scmp.eq.s32.totalorder %s18, 1
    %p56 = por %p54, %p55
    %p57 = scmp.ne.s32.totalorder %s49, %s52
    %p58 = scmp.eq.s32.totalorder %s18, 0
    %p59 = por %p57, %p58
    %p60 = scmp.ne.s32.totalorder %s49, %s52
    %p61 = scmp.eq.s32.totalorder %s23, 1
    %p62 = por %p60, %p61
    %p63 = scmp.ne.s32.totalorder %s52, %s53
    %p64 = scmp.eq.s32.totalorder %s23, 0
    %p65 = por %p63, %p64
    %p66 = scmp.ne.s32.totalorder %s52, %s53
    %p67 = scmp.eq.s32.totalorder %s24, 1
    %p68 = por %p66, %p67
    %p70 = scmp.ne.s32.totalorder %s53, %s69
    %p71 = scmp.eq.s32.totalorder %s24, 0
    %p72 = por %p70, %p71
    %s74 = sadd.s32 %s73, 1
    %p77 = scmp.eq.s32.totalorder %s18, 1
    %p78 = scmp.ne.s32.totalorder %s73, %s75
    %p79 = scmp.eq.s32.totalorder %s18, 0
    %p80 = por %p78, %p79
    %p81 = scmp.ne.s32.totalorder %s73, %s75
    %p82 = scmp.eq.s32.totalorder %s23, 1
    %p83 = por %p81, %p82
    %p84 = scmp.ne.s32.totalorder %s75, %s76
    %p85 = scmp.eq.s32.totalorder %s23, 0
    %p86 = por %p84, %p85
    %p87 = scmp.ne.s32.totalorder %s75, %s76
    %p88 = scmp.eq.s32.totalorder %s24, 1
    %p89 = por %p87, %p88
    %p91 = scmp.ne.s32.totalorder %s76, %s90
    %p92 = scmp.eq.s32.totalorder %s24, 0
    %p93 = por %p91, %p92
    %s95 = sadd.s32 %s94, 1
    %p98 = scmp.eq.s32.totalorder %s18, 1
    %p99 = scmp.ne.s32.totalorder %s94, %s96
    %p100 = scmp.eq.s32.totalorder %s18, 0
    %p101 = por %p99, %p100
    %p102 = scmp.ne.s32.totalorder %s94, %s96
    %p103 = scmp.eq.s32.totalorder %s23, 1
    %p104 = por %p102, %p103
    %p105 = scmp.ne.s32.totalorder %s96, %s97
    %p106 = scmp.eq.s32.totalorder %s23, 0
    %p107 = por %p105, %p106
    %p108 = scmp.ne.s32.totalorder %s96, %s97
    %p109 = scmp.eq.s32.totalorder %s24, 1
    %p110 = por %p108, %p109
    %p112 = scmp.ne.s32.totalorder %s97, %s111
    %p113 = scmp.eq.s32.totalorder %s24, 0
    %p114 = por %p112, %p113
    %s116 = sadd.s32 %s115, 1
    %p119 = scmp.eq.s32.totalorder %s18, 1
    %p120 = scmp.ne.s32.totalorder %s115, %s117
    %p121 = scmp.eq.s32.totalorder %s18, 0
    %p122 = por %p120, %p121
    %p123 = scmp.ne.s32.totalorder %s115, %s117
    %p124 = scmp.eq.s32.totalorder %s23, 1
    %p125 = por %p123, %p124
    %p126 = scmp.ne.s32.totalorder %s117, %s118
    %p127 = scmp.eq.s32.totalorder %s23, 0
    %p128 = por %p126, %p127
    %p129 = scmp.ne.s32.totalorder %s117, %s118
    %p130 = scmp.eq.s32.totalorder %s24, 1
    %p131 = por %p129, %p130
    %p133 = scmp.ne.s32.totalorder %s118, %s132
    %p134 = scmp.eq.s32.totalorder %s24, 0
    %p135 = por %p133, %p134
    %s137 = sadd.s32 %s136, 1
    %p140 = scmp.eq.s32.totalorder %s18, 1
    %p141 = scmp.ne.s32.totalorder %s136, %s138
    %p142 = scmp.eq.s32.totalorder %s18, 0
    %p143 = por %p141, %p142
    %p144 = scmp.ne.s32.totalorder %s136, %s138
    %p145 = scmp.eq.s32.totalorder %s23, 1
    %p146 = por %p144, %p145
    %p147 = scmp.ne.s32.totalorder %s138, %s139
    %p148 = scmp.eq.s32.totalorder %s23, 0
    %p149 = por %p147, %p148
    %p150 = scmp.ne.s32.totalorder %s138, %s139
    %p151 = scmp.eq.s32.totalorder %s24, 1
    %p152 = por %p150, %p151
    %p154 = scmp.ne.s32.totalorder %s139, %s153
    %p155 = scmp.eq.s32.totalorder %s24, 0
    %p156 = por %p154, %p155
    %s158 = sadd.s32 %s157, 1
    %p161 = scmp.eq.s32.totalorder %s18, 1
    %p162 = scmp.ne.s32.totalorder %s157, %s159
    %p163 = scmp.eq.s32.totalorder %s18, 0
    %p164 = por %p162, %p163
    %p165 = scmp.ne.s32.totalorder %s157, %s159
    %p166 = scmp.eq.s32.totalorder %s23, 1
    %p167 = por %p165, %p166
    %p168 = scmp.ne.s32.totalorder %s159, %s160
    %p169 = scmp.eq.s32.totalorder %s23, 0
    %p170 = por %p168, %p169
    %p171 = scmp.ne.s32.totalorder %s159, %s160
    %p172 = scmp.eq.s32.totalorder %s24, 1
    %p173 = por %p171, %p172
    %p175 = scmp.ne.s32.totalorder %s160, %s174
    %p176 = scmp.eq.s32.totalorder %s24, 0
    %p177 = por %p175, %p176
    %s179 = sadd.s32 %s178, 1
    %p182 = scmp.eq.s32.totalorder %s18, 1
    %p183 = scmp.ne.s32.totalorder %s178, %s180
    %p184 = scmp.eq.s32.totalorder %s18, 0
    %p185 = por %p183, %p184
    %p186 = scmp.ne.s32.totalorder %s178, %s180
    %p187 = scmp.eq.s32.totalorder %s23, 1
    %p188 = por %p186, %p187
    %p189 = scmp.ne.s32.totalorder %s180, %s181
    %p190 = scmp.eq.s32.totalorder %s23, 0
    %p191 = por %p189, %p190
    %p192 = scmp.ne.s32.totalorder %s180, %s181
    %p193 = scmp.eq.s32.totalorder %s24, 1
    %p194 = por %p192, %p193
    %p196 = scmp.ne.s32.totalorder %s181, %s195
    %p197 = scmp.eq.s32.totalorder %s24, 0
    %p198 = por %p196, %p197
    %s200 = sadd.s32 %s199, 1
    %p203 = scmp.eq.s32.totalorder %s18, 1
    %p204 = scmp.ne.s32.totalorder %s199, %s201
    %p205 = scmp.eq.s32.totalorder %s18, 0
    %p206 = por %p204, %p205
    %p207 = scmp.ne.s32.totalorder %s199, %s201
    %p208 = scmp.eq.s32.totalorder %s23, 1
    %p209 = por %p207, %p208
    %p210 = scmp.ne.s32.totalorder %s201, %s202
    %p211 = scmp.eq.s32.totalorder %s23, 0
    %p212 = por %p210, %p211
    %p213 = scmp.ne.s32.totalorder %s201, %s202
    %p214 = scmp.eq.s32.totalorder %s24, 1
    %p215 = por %p213, %p214
    %p217 = scmp.ne.s32.totalorder %s202, %s216
    %p218 = scmp.eq.s32.totalorder %s24, 0
    %p219 = por %p217, %p218
    %s221 = sadd.s32 %s220, 1
    %p224 = scmp.eq.s32.totalorder %s18, 1
    %p225 = scmp.ne.s32.totalorder %s220, %s222
    %p226 = scmp.eq.s32.totalorder %s18, 0
    %p227 = por %p225, %p226
    %p228 = scmp.ne.s32.totalorder %s220, %s222
    %p229 = scmp.eq.s32.totalorder %s23, 1
    %p230 = por %p228, %p229
    %p231 = scmp.ne.s32.totalorder %s222, %s223
    %p232 = scmp.eq.s32.totalorder %s23, 0
    %p233 = por %p231, %p232
    %p234 = scmp.ne.s32.totalorder %s222, %s223
    %p235 = scmp.eq.s32.totalorder %s24, 1
    %p236 = por %p234, %p235
    %p238 = scmp.ne.s32.totalorder %s223, %s237
    %p239 = scmp.eq.s32.totalorder %s24, 0
    %p240 = por %p238, %p239
    %s242 = sadd.s32 %s241, 1
    %p245 = scmp.eq.s32.totalorder %s18, 1
    %p246 = scmp.ne.s32.totalorder %s241, %s243
    %p247 = scmp.eq.s32.totalorder %s18, 0
    %p248 = por %p246, %p247
    %p249 = scmp.ne.s32.totalorder %s241, %s243
    %p250 = scmp.eq.s32.totalorder %s23, 1
    %p251 = por %p249, %p250
    %p252 = scmp.ne.s32.totalorder %s243, %s244
    %p253 = scmp.eq.s32.totalorder %s23, 0
    %p254 = por %p252, %p253
    %p255 = scmp.ne.s32.totalorder %s243, %s244
    %p256 = scmp.eq.s32.totalorder %s24, 1
    %p257 = por %p255, %p256
    %p259 = scmp.ne.s32.totalorder %s244, %s258
    %p260 = scmp.eq.s32.totalorder %s24, 0
    %p261 = por %p259, %p260
    %s263 = sadd.s32 %s262, 1
    %p266 = scmp.eq.s32.totalorder %s18, 1
    %p267 = scmp.ne.s32.totalorder %s262, %s264
    %p268 = scmp.eq.s32.totalorder %s18, 0
    %p269 = por %p267, %p268
    %p270 = scmp.ne.s32.totalorder %s262, %s264
    %p271 = scmp.eq.s32.totalorder %s23, 1
    %p272 = por %p270, %p271
    %p273 = scmp.ne.s32.totalorder %s264, %s265
    %p274 = scmp.eq.s32.totalorder %s23, 0
    %p275 = por %p273, %p274
    %p276 = scmp.ne.s32.totalorder %s264, %s265
    %p277 = scmp.eq.s32.totalorder %s24, 1
    %p278 = por %p276, %p277
    %p280 = scmp.ne.s32.totalorder %s265, %s279
    %p281 = scmp.eq.s32.totalorder %s24, 0
    %p282 = por %p280, %p281
    %s283 = ssub.s32 %s18, %s25
    %p284 = scmp.eq.s32.totalorder %s283, 0
    %s286 = sadd.s32 %s285, 1
    %s287 = scalar_select %p284, %s285, %s286
    %p290 = pneg %p284
    %p291 = scmp.eq.s32.totalorder %s18, 1
    %p292 = por %p290, %p291
    %p293 = scmp.ne.s32.totalorder %s285, %s288
    %p294 = scmp.eq.s32.totalorder %s18, 0
    %p295 = por %p293, %p294
    %p296 = scmp.ne.s32.totalorder %s285, %s288
    %p297 = scmp.eq.s32.totalorder %s23, 1
    %p298 = por %p296, %p297
    %p299 = scmp.ne.s32.totalorder %s288, %s289
    %p300 = scmp.eq.s32.totalorder %s23, 0
    %p301 = por %p299, %p300
    %p302 = scmp.ne.s32.totalorder %s288, %s289
    %p303 = scmp.eq.s32.totalorder %s24, 1
    %p304 = por %p302, %p303
    %p306 = scmp.ne.s32.totalorder %s289, %s305
    %p307 = scmp.eq.s32.totalorder %s24, 0
    %p308 = por %p306, %p307
    %p309 = scmp.le.s32.totalorder 1, %s18
    %p310 = scmp.lt.s32.totalorder %s18, 3
    %p311 = pnand %p309, %p310
    %p312 = pneg %p311
    // Predicated region
    $region9: #{stgcn_forward.1} parent=5 // pred_check
      _
    $region10: #{stgcn_forward.1} parent=5 // pred_check_branch
      %314 = sbr.rel (%p311) target = $region12
    $region11: #{stgcn_forward.1} parent=5 // pred_region
      %s315 = ssub.s32 %s18, 1
      // Predicated region
      $region13: #{stgcn_forward.1} parent=11 // pred_check
        %p316 = pneg %p39
      $region14: #{stgcn_forward.1} parent=11 // pred_check_branch
        %318 = sbr.rel (%p316) target = $region16
      $region15: #{stgcn_forward.1} parent=11 // pred_region
        _
      $region16: #{stgcn_forward.1} parent=11 // pred_fallthru
        _
      // Predicated region
      $region17: #{stgcn_forward.1} parent=11 // pred_check
        %p319 = pneg %p86
      $region18: #{stgcn_forward.1} parent=11 // pred_check_branch
        %321 = sbr.rel (%p319) target = $region20
      $region19: #{stgcn_forward.1} parent=11 // pred_region
        _
      $region20: #{stgcn_forward.1} parent=11 // pred_fallthru
        _
      // Predicated region
      $region21: #{stgcn_forward.1} parent=11 // pred_check
        %p322 = pneg %p107
      $region22: #{stgcn_forward.1} parent=11 // pred_check_branch
        %324 = sbr.rel (%p322) target = $region24
      $region23: #{stgcn_forward.1} parent=11 // pred_region
        _
      $region24: #{stgcn_forward.1} parent=11 // pred_fallthru
        _
      // Predicated region
      $region25: #{stgcn_forward.1} parent=11 // pred_check
        %p325 = pneg %p128
      $region26: #{stgcn_forward.1} parent=11 // pred_check_branch
        %327 = sbr.rel (%p325) target = $region28
      $region27: #{stgcn_forward.1} parent=11 // pred_region
        _
      $region28: #{stgcn_forward.1} parent=11 // pred_fallthru
        _
      // Predicated region
      $region29: #{stgcn_forward.1} parent=11 // pred_check
        %p328 = pneg %p149
      $region30: #{stgcn_forward.1} parent=11 // pred_check_branch
        %330 = sbr.rel (%p328) target = $region32
      $region31: #{stgcn_forward.1} parent=11 // pred_region
        _
      $region32: #{stgcn_forward.1} parent=11 // pred_fallthru
        _
      // Predicated region
      $region33: #{stgcn_forward.1} parent=11 // pred_check
        %p331 = pneg %p170
      $region34: #{stgcn_forward.1} parent=11 // pred_check_branch
        %333 = sbr.rel (%p331) target = $region36
      $region35: #{stgcn_forward.1} parent=11 // pred_region
        _
      $region36: #{stgcn_forward.1} parent=11 // pred_fallthru
        _
      // Predicated region
      $region37: #{stgcn_forward.1} parent=11 // pred_check
        %p334 = pneg %p191
      $region38: #{stgcn_forward.1} parent=11 // pred_check_branch
        %336 = sbr.rel (%p334) target = $region40
      $region39: #{stgcn_forward.1} parent=11 // pred_region
        _
      $region40: #{stgcn_forward.1} parent=11 // pred_fallthru
        _
      // Predicated region
      $region41: #{stgcn_forward.1} parent=11 // pred_check
        %p337 = pneg %p212
      $region42: #{stgcn_forward.1} parent=11 // pred_check_branch
        %339 = sbr.rel (%p337) target = $region44
      $region43: #{stgcn_forward.1} parent=11 // pred_region
        _
      $region44: #{stgcn_forward.1} parent=11 // pred_fallthru
        _
      // Predicated region
      $region45: #{stgcn_forward.1} parent=11 // pred_check
        %p340 = pneg %p233
      $region46: #{stgcn_forward.1} parent=11 // pred_check_branch
        %342 = sbr.rel (%p340) target = $region48
      $region47: #{stgcn_forward.1} parent=11 // pred_region
        _
      $region48: #{stgcn_forward.1} parent=11 // pred_fallthru
        _
      // Predicated region
      $region49: #{stgcn_forward.1} parent=11 // pred_check
        %p343 = pneg %p254
      $region50: #{stgcn_forward.1} parent=11 // pred_check_branch
        %345 = sbr.rel (%p343) target = $region52
      $region51: #{stgcn_forward.1} parent=11 // pred_region
        _
      $region52: #{stgcn_forward.1} parent=11 // pred_fallthru
        _
      // Predicated region
      $region53: #{stgcn_forward.1} parent=11 // pred_check
        %p346 = pneg %p275
      $region54: #{stgcn_forward.1} parent=11 // pred_check_branch
        %348 = sbr.rel (%p346) target = $region56
      $region55: #{stgcn_forward.1} parent=11 // pred_region
        _
      $region56: #{stgcn_forward.1} parent=11 // pred_fallthru
        _
    $region12: #{stgcn_forward.1} parent=5 // pred_fallthru
      _
    %p349 = scmp.lt.s32.totalorder %s18, 2
    // Predicated region
    $region57: #{stgcn_forward.1} parent=5 // pred_check
      %p350 = pneg %p349
    $region58: #{stgcn_forward.1} parent=5 // pred_check_branch
      %352 = sbr.rel (%p350) target = $region60
    $region59: #{stgcn_forward.1} parent=5 // pred_region
      // Predicated region
      $region61: #{stgcn_forward.1} parent=59 // pred_check
        %p353 = pneg %p59
      $region62: #{stgcn_forward.1} parent=59 // pred_check_branch
        %355 = sbr.rel (%p353) target = $region64
      $region63: #{stgcn_forward.1} parent=59 // pred_region
        %p356 = scmp.lt.s32.totalorder %s18, 1
        %s357 = scalar_select %p356, %s18, 1
        %s358 = smul.addr %s357, 16
        %s359 = smul.addr %s358, 8
        %s360 = scalar_lea.vmem %s1, %s359
      $region64: #{stgcn_forward.1} parent=59 // pred_fallthru
        _
    $region60: #{stgcn_forward.1} parent=5 // pred_fallthru
      _
    %p361 = scmp.le.s32.totalorder 1, %s18
    %p362 = scmp.lt.s32.totalorder %s18, 3
    %p363 = pnand %p361, %p362
    %p364 = pneg %p363
    // Predicated region
    $region65: #{stgcn_forward.1} parent=5 // pred_check
      _
    $region66: #{stgcn_forward.1} parent=5 // pred_check_branch
      %366 = sbr.rel (%p363) target = $region68
    $region67: #{stgcn_forward.1} parent=5 // pred_region
      %s367 = ssub.s32 %s18, 1
      %p368 = pneg %p39
      %p369 = pneg %p36
      %p370 = scmp.lt.s32.totalorder %s23, 1
      %s371 = scalar_select %p370, %s23, 1
      %s372 = smul.addr %s371, 16
      %s373 = smul.addr %s372, 8
      %s374 = scalar_lea.vmem %s1, %s373
      %p375 = pneg %p65
      %p376 = pneg %p62
      %p377 = pneg %p86
      %p378 = pneg %p83
      %p379 = pneg %p107
      %p380 = pneg %p104
      %p381 = pneg %p128
      %p382 = pneg %p125
      %p383 = pneg %p149
      %p384 = pneg %p146
      %p385 = pneg %p170
      %p386 = pneg %p167
      %p387 = pneg %p191
      %p388 = pneg %p188
      %p389 = pneg %p212
      %p390 = pneg %p209
      %p391 = pneg %p233
      %p392 = pneg %p230
      %p393 = pneg %p254
      %p394 = pneg %p251
      %p395 = pneg %p275
      %p396 = pneg %p272
      %p397 = pneg %p301
      %p398 = pneg %p298
      %p399 = scmp.lt.s32.totalorder %s23, 1
      %s400 = scalar_select %p399, %s23, 1
      %s401 = smul.addr %s400, 2
      %s402 = smul.addr %s401, 8
      %s403 = scalar_lea.vmem %s12, %s402
      %p404 = scmp.lt.s32.totalorder %s23, 1
      %s405 = scalar_select %p404, %s23, 1
      %s406 = smul.addr %s405, 16
      %s407 = smul.addr %s406, 8
      %s408 = scalar_lea.vmem %s1, %s407
      %p409 = scmp.lt.s32.totalorder %s23, 1
      %s410 = scalar_select %p409, %s23, 1
      %s411 = smul.addr %s410, 2
      %s412 = smul.addr %s411, 8
      %s413 = scalar_lea.vmem %s12, %s412
      %v414 = vlaneseq
      %v415 = vshrl.u32 %v414, 7
      %v416 = vadd.s32 %v415, 8
      %v417 = vadd.s32 %v415, 16
      %v418 = vadd.s32 %v415, 24
      %v419 = vadd.s32 %v415, 32
      %v420 = vadd.s32 %v415, 40
      %v421 = vadd.s32 %v415, 48
      %v422 = vadd.s32 %v415, 56
      %v423 = vadd.s32 %v415, 64
      %v424 = vadd.s32 %v415, 72
      %v425 = vadd.s32 %v415, 80
      %v426 = vadd.s32 %v415, 88
      %v427 = vadd.s32 %v415, 96
      %v428 = vadd.s32 %v415, 104
      %v429 = vadd.s32 %v415, 112
      %v430 = vadd.s32 %v415, 120
      %vm431 = vcmp.lt.s32.totalorder %v415, 16
      %vm432 = vcmp.lt.s32.totalorder %v416, 16
      %vm433 = vcmp.lt.s32.totalorder %v417, 16
      %vm434 = vcmp.lt.s32.totalorder %v418, 16
      %vm435 = vcmp.lt.s32.totalorder %v419, 16
      %vm436 = vcmp.lt.s32.totalorder %v420, 16
      %vm437 = vcmp.lt.s32.totalorder %v421, 16
      %vm438 = vcmp.lt.s32.totalorder %v422, 16
      %vm439 = vcmp.lt.s32.totalorder %v423, 16
      %vm440 = vcmp.lt.s32.totalorder %v424, 16
      %vm441 = vcmp.lt.s32.totalorder %v425, 16
      %vm442 = vcmp.lt.s32.totalorder %v426, 16
      %vm443 = vcmp.lt.s32.totalorder %v427, 16
      %vm444 = vcmp.lt.s32.totalorder %v428, 16
      %vm445 = vcmp.lt.s32.totalorder %v429, 16
      %vm446 = vcmp.lt.s32.totalorder %v430, 16
      %vm447 = vcmp.ge.s32.totalorder %v415, 112
      %vm448 = vcmp.ge.s32.totalorder %v416, 112
      %vm449 = vcmp.ge.s32.totalorder %v417, 112
      %vm450 = vcmp.ge.s32.totalorder %v418, 112
      %vm451 = vcmp.ge.s32.totalorder %v419, 112
      %vm452 = vcmp.ge.s32.totalorder %v420, 112
      %vm453 = vcmp.ge.s32.totalorder %v421, 112
      %vm454 = vcmp.ge.s32.totalorder %v422, 112
      %vm455 = vcmp.ge.s32.totalorder %v423, 112
      %vm456 = vcmp.ge.s32.totalorder %v424, 112
      %vm457 = vcmp.ge.s32.totalorder %v425, 112
      %vm458 = vcmp.ge.s32.totalorder %v426, 112
      %vm459 = vcmp.ge.s32.totalorder %v427, 112
      %vm460 = vcmp.ge.s32.totalorder %v428, 112
      %vm461 = vcmp.ge.s32.totalorder %v429, 112
      %vm462 = vcmp.ge.s32.totalorder %v430, 112
      %v463 = vld [vmem:[%s0] sm:$0xff]
      %v464 = vld [vmem:[%s0 + $0x8] sm:$0xff]
      %v465 = vld [vmem:[%s0 + $0x10] sm:$0xff]
      %v466 = vld [vmem:[%s0 + $0x18] sm:$0xff]
      %v467 = vld [vmem:[%s0 + $0x20] sm:$0xff]
      %v468 = vld [vmem:[%s0 + $0x28] sm:$0xff]
      %v469 = vld [vmem:[%s0 + $0x30] sm:$0xff]
      %v470 = vld [vmem:[%s0 + $0x38] sm:$0xff]
      %v471 = vld [vmem:[%s0 + $0x40] sm:$0xff]
      %v472 = vld [vmem:[%s0 + $0x48] sm:$0xff]
      %v473 = vld [vmem:[%s0 + $0x50] sm:$0xff]
      %v474 = vld [vmem:[%s0 + $0x58] sm:$0xff]
      %v475 = vld [vmem:[%s0 + $0x60] sm:$0xff]
      %v476 = vld [vmem:[%s0 + $0x68] sm:$0xff]
      %v477 = vld [vmem:[%s0 + $0x70] sm:$0xff]
      %v478 = vld [vmem:[%s0 + $0x78] sm:$0xff]
      %v479 = vld [vmem:[%s408] sm:$0xff]
      %v480 = vld [vmem:[%s408 + $0x8] sm:$0xff]
      %v481 = vld [vmem:[%s408 + $0x10] sm:$0xff]
      %v482 = vld [vmem:[%s408 + $0x18] sm:$0xff]
      %v483 = vld [vmem:[%s408 + $0x20] sm:$0xff]
      %v484 = vld [vmem:[%s408 + $0x28] sm:$0xff]
      %v485 = vld [vmem:[%s408 + $0x30] sm:$0xff]
      %v486 = vld [vmem:[%s408 + $0x38] sm:$0xff]
      %v487 = vld [vmem:[%s408 + $0x40] sm:$0xff]
      %v488 = vld [vmem:[%s408 + $0x48] sm:$0xff]
      %v489 = vld [vmem:[%s408 + $0x50] sm:$0xff]
      %v490 = vld [vmem:[%s408 + $0x58] sm:$0xff]
      %v491 = vld [vmem:[%s408 + $0x60] sm:$0xff]
      %v492 = vld [vmem:[%s408 + $0x68] sm:$0xff]
      %v493 = vld [vmem:[%s408 + $0x70] sm:$0xff]
      %v494 = vld [vmem:[%s408 + $0x78] sm:$0xff]
      %v495 = vld [vmem:[%s2] sm:$0xff]
      %v496 = vld [vmem:[%s2 + $0x8] sm:$0xf]
      %v497 = vld [vmem:[%s3] sm:$0x1]
      %v499 = vlaneseq
      %v500 = vshrl.u32 %v499, 7
      %v501 = vsub.s32 0, %v500
      %v502 = vrot.slane %v497, %v501
      %vm504 = vcmask 97280
      %v506 = vsel %vm504, %v479, 0
      %v509 = vsel %vm504, %v480, 0
      %v512 = vsel %vm504, %v481, 0
      %v515 = vsel %vm504, %v482, 0
      %v518 = vsel %vm504, %v483, 0
      %v521 = vsel %vm504, %v484, 0
      %v524 = vsel %vm504, %v485, 0
      %v527 = vsel %vm504, %v486, 0
      %v530 = vsel %vm504, %v487, 0
      %v533 = vsel %vm504, %v488, 0
      %v536 = vsel %vm504, %v489, 0
      %v539 = vsel %vm504, %v490, 0
      %v542 = vsel %vm504, %v491, 0
      %v545 = vsel %vm504, %v492, 0
      %v548 = vsel %vm504, %v493, 0
      %v551 = vsel %vm504, %v494, 0
      %vm553 = vcmask 1043456
      %v555 = vsel %vm553, %v496, 0
      %557 = vmatprep.subr.mxu0 0.0
      %v558 = vand.u32 %v495, 4294901760
      %559 = vmatpush1.msra.mxu0 %v558
      %560 = vmatprep.subr.mxu0 0.0
      %v561 = vand.u32 %v555, 4294901760
      %562 = vmatpush1.msra.mxu0 %v561
      %563 = vmatprep.subr.mxu0 0.0
      %564 = vmatpush1.msra.mxu0 0.0
      %565 = vmatprep.subr.mxu0 0.0
      %566 = vmatpush1.msra.mxu0 0.0
      %567 = vmatprep.subr.mxu0 0.0
      %568 = vmatpush1.msra.mxu0 0.0
      %569 = vmatprep.subr.mxu0 0.0
      %570 = vmatpush1.msra.mxu0 0.0
      %571 = vmatprep.subr.mxu0 0.0
      %572 = vmatpush1.msra.mxu0 0.0
      %573 = vmatprep.subr.mxu0 0.0
      %574 = vmatpush1.msra.mxu0 0.0
      %575 = vmatprep.subr.mxu0 0.0
      %576 = vmatpush1.msra.mxu0 0.0
      %577 = vmatprep.subr.mxu0 0.0
      %578 = vmatpush1.msra.mxu0 0.0
      %579 = vmatprep.subr.mxu0 0.0
      %580 = vmatpush1.msra.mxu0 0.0
      %581 = vmatprep.subr.mxu0 0.0
      %582 = vmatpush1.msra.mxu0 0.0
      %583 = vmatprep.subr.mxu0 0.0
      %584 = vmatpush1.msra.mxu0 0.0
      %585 = vmatprep.subr.mxu0 0.0
      %586 = vmatpush1.msra.mxu0 0.0
      %587 = vmatprep.subr.mxu0 0.0
      %588 = vmatpush1.msra.mxu0 0.0
      %589 = vmatprep.subr.mxu0 0.0
      %590 = vmatpush1.msra.mxu0 0.0
      %591 = vmatprep.subr.mxu0 0.0
      %592 = vmatpush1.msra.mxu0 0.0
      %593 = vmatprep.subr.mxu0 0.0
      %594 = vmatpush1.msra.mxu0 0.0
      %595 = vmatprep.subr.mxu0 0.0
      %596 = vmatpush1.msra.mxu0 0.0
      %597 = vmatprep.subr.mxu0 0.0
      %598 = vmatpush1.msra.mxu0 0.0
      %599 = vmatprep.subr.mxu0 0.0
      %600 = vmatpush1.msra.mxu0 0.0
      %601 = vmatprep.subr.mxu0 0.0
      %602 = vmatpush1.msra.mxu0 0.0
      %603 = vmatprep.subr.mxu0 0.0
      %604 = vmatpush1.msra.mxu0 0.0
      %605 = vmatprep.subr.mxu0 0.0
      %606 = vmatpush1.msra.mxu0 0.0
      %607 = vmatprep.subr.mxu0 0.0
      %608 = vmatpush1.msra.mxu0 0.0
      %609 = vmatprep.subr.mxu0 0.0
      %610 = vmatpush1.msra.mxu0 0.0
      %611 = vmatprep.subr.mxu0 0.0
      %612 = vmatpush1.msra.mxu0 0.0
      %613 = vmatprep.subr.mxu0 0.0
      %614 = vmatpush1.msra.mxu0 0.0
      %615 = vmatprep.subr.mxu0 0.0
      %616 = vmatpush1.msra.mxu0 0.0
      %617 = vmatprep.subr.mxu0 0.0
      %618 = vmatpush1.msra.mxu0 0.0
      %619 = vmatprep.subr.mxu0 0.0
      %620 = vmatpush1.msra.mxu0 0.0
      %621 = vmatprep.subr.mxu0 0.0
      %622 = vmatpush1.msra.mxu0 0.0
      %623 = vmatprep.mubr.f32.mxu0 0.0
      %v624 = vand.u32 %v506, 4294901760
      %v625 = vsub.f32 %v506, %v624
      %v626 = vand.u32 %v625, 4294901760
      %v627 = vsub.f32 %v625, %v626
      %v628 = vand.u32 %v627, 4294901760
      %629 = vmatmul.mubr.f32.gmra.mrb[0].mxu0 %v628
      %v630 = vpop.f32.mrb[0].mxu0
      %v631 = vadd.f32 %v502, %v630
      %v632 = vpop.f32.mrb[0].mxu0
      %633 = vmatprep.mubr.f32.mxu0 0.0
      %v634 = vand.u32 %v509, 4294901760
      %v635 = vsub.f32 %v509, %v634
      %v636 = vand.u32 %v635, 4294901760
      %v637 = vsub.f32 %v635, %v636
      %v638 = vand.u32 %v637, 4294901760
      %639 = vmatmul.mubr.f32.gmra.mrb[0].mxu0 %v638
      %v640 = vpop.f32.mrb[0].mxu0
      %v641 = vadd.f32 %v502, %v640
      %v642 = vpop.f32.mrb[0].mxu0
      %643 = vmatprep.mubr.f32.mxu0 0.0
      %v644 = vand.u32 %v512, 4294901760
      %v645 = vsub.f32 %v512, %v644
      %v646 = vand.u32 %v645, 4294901760
      %v647 = vsub.f32 %v645, %v646
      %v648 = vand.u32 %v647, 4294901760
      %649 = vmatmul.mubr.f32.gmra.mrb[0].mxu0 %v648
      %v650 = vpop.f32.mrb[0].mxu0
      %v651 = vadd.f32 %v502, %v650
      %v652 = vpop.f32.mrb[0].mxu0
      %653 = vmatprep.mubr.f32.mxu0 0.0
      %v654 = vand.u32 %v515, 4294901760
      %v655 = vsub.f32 %v515, %v654
      %v656 = vand.u32 %v655, 4294901760
      %v657 = vsub.f32 %v655, %v656
      %v658 = vand.u32 %v657, 4294901760
      %659 = vmatmul.mubr.f32.gmra.mrb[0].mxu0 %v658
      %v660 = vpop.f32.mrb[0].mxu0
      %v661 = vadd.f32 %v502, %v660
      %v662 = vpop.f32.mrb[0].mxu0
      %663 = vmatprep.mubr.f32.mxu0 0.0
      %v664 = vand.u32 %v518, 4294901760
      %v665 = vsub.f32 %v518, %v664
      %v666 = vand.u32 %v665, 4294901760
      %v667 = vsub.f32 %v665, %v666
      %v668 = vand.u32 %v667, 4294901760
      %669 = vmatmul.mubr.f32.gmra.mrb[0].mxu0 %v668
      %v670 = vpop.f32.mrb[0].mxu0
      %v671 = vadd.f32 %v502, %v670
      %v672 = vpop.f32.mrb[0].mxu0
      %673 = vmatprep.mubr.f32.mxu0 0.0
      %v674 = vand.u32 %v521, 4294901760
      %v675 = vsub.f32 %v521, %v674
      %v676 = vand.u32 %v675, 4294901760
      %v677 = vsub.f32 %v675, %v676
      %v678 = vand.u32 %v677, 4294901760
      %679 = vmatmul.mubr.f32.gmra.mrb[0].mxu0 %v678
      %v680 = vpop.f32.mrb[0].mxu0
      %v681 = vadd.f32 %v502, %v680
      %v682 = vpop.f32.mrb[0].mxu0
      %683 = vmatprep.mubr.f32.mxu0 0.0
      %v684 = vand.u32 %v524, 4294901760
      %v685 = vsub.f32 %v524, %v684
      %v686 = vand.u32 %v685, 4294901760
      %v687 = vsub.f32 %v685, %v686
      %v688 = vand.u32 %v687, 4294901760
      %689 = vmatmul.mubr.f32.gmra.mrb[0].mxu0 %v688
      %v690 = vpop.f32.mrb[0].mxu0
      %v691 = vadd.f32 %v502, %v690
      %v692 = vpop.f32.mrb[0].mxu0
      %693 = vmatprep.mubr.f32.mxu0 0.0
      %v694 = vand.u32 %v527, 4294901760
      %v695 = vsub.f32 %v527, %v694
      %v696 = vand.u32 %v695, 4294901760
      %v697 = vsub.f32 %v695, %v696
      %v698 = vand.u32 %v697, 4294901760
      %699 = vmatmul.mubr.f32.gmra.mrb[0].mxu0 %v698
      %v700 = vpop.f32.mrb[0].mxu0
      %v701 = vadd.f32 %v502, %v700
      %v702 = vpop.f32.mrb[0].mxu0
      %703 = vmatprep.mubr.f32.mxu0 0.0
      %v704 = vand.u32 %v530, 4294901760
      %v705 = vsub.f32 %v530, %v704
      %v706 = vand.u32 %v705, 4294901760
      %v707 = vsub.f32 %v705, %v706
      %v708 = vand.u32 %v707, 4294901760
      %709 = vmatmul.mubr.f32.gmra.mrb[0].mxu0 %v708
      %v710 = vpop.f32.mrb[0].mxu0
      %v711 = vadd.f32 %v502, %v710
      %v712 = vpop.f32.mrb[0].mxu0
      %713 = vmatprep.mubr.f32.mxu0 0.0
      %v714 = vand.u32 %v533, 4294901760
      %v715 = vsub.f32 %v533, %v714
      %v716 = vand.u32 %v715, 4294901760
      %v717 = vsub.f32 %v715, %v716
      %v718 = vand.u32 %v717, 4294901760
      %719 = vmatmul.mubr.f32.gmra.mrb[0].mxu0 %v718
      %v720 = vpop.f32.mrb[0].mxu0
      %v721 = vadd.f32 %v502, %v720
      %v722 = vpop.f32.mrb[0].mxu0
      %723 = vmatprep.mubr.f32.mxu0 0.0
      %v724 = vand.u32 %v536, 4294901760
      %v725 = vsub.f32 %v536, %v724
      %v726 = vand.u32 %v725, 4294901760
      %v727 = vsub.f32 %v725, %v726
      %v728 = vand.u32 %v727, 4294901760
      %729 = vmatmul.mubr.f32.gmra.mrb[0].mxu0 %v728
      %v730 = vpop.f32.mrb[0].mxu0
      %v731 = vadd.f32 %v502, %v730
      %v732 = vpop.f32.mrb[0].mxu0
      %733 = vmatprep.mubr.f32.mxu0 0.0
      %v734 = vand.u32 %v539, 4294901760
      %v735 = vsub.f32 %v539, %v734
      %v736 = vand.u32 %v735, 4294901760
      %v737 = vsub.f32 %v735, %v736
      %v738 = vand.u32 %v737, 4294901760
      %739 = vmatmul.mubr.f32.gmra.mrb[0].mxu0 %v738
      %v740 = vpop.f32.mrb[0].mxu0
      %v741 = vadd.f32 %v502, %v740
      %v742 = vpop.f32.mrb[0].mxu0
      %743 = vmatprep.mubr.f32.mxu0 0.0
      %v744 = vand.u32 %v542, 4294901760
      %v745 = vsub.f32 %v542, %v744
      %v746 = vand.u32 %v745, 4294901760
      %v747 = vsub.f32 %v745, %v746
      %v748 = vand.u32 %v747, 4294901760
      %749 = vmatmul.mubr.f32.gmra.mrb[0].mxu0 %v748
      %v750 = vpop.f32.mrb[0].mxu0
      %v751 = vadd.f32 %v502, %v750
      %v752 = vpop.f32.mrb[0].mxu0
      %753 = vmatprep.mubr.f32.mxu0 0.0
      %v754 = vand.u32 %v545, 4294901760
      %v755 = vsub.f32 %v545, %v754
      %v756 = vand.u32 %v755, 4294901760
      %v757 = vsub.f32 %v755, %v756
      %v758 = vand.u32 %v757, 4294901760
      %759 = vmatmul.mubr.f32.gmra.mrb[0].mxu0 %v758
      %v760 = vpop.f32.mrb[0].mxu0
      %v761 = vadd.f32 %v502, %v760
      %v762 = vpop.f32.mrb[0].mxu0
      %763 = vmatprep.mubr.f32.mxu0 0.0
      %v764 = vand.u32 %v548, 4294901760
      %v765 = vsub.f32 %v548, %v764
      %v766 = vand.u32 %v765, 4294901760
      %v767 = vsub.f32 %v765, %v766
      %v768 = vand.u32 %v767, 4294901760
      %769 = vmatmul.mubr.f32.gmra.mrb[0].mxu0 %v768
      %v770 = vpop.f32.mrb[0].mxu0
      %v771 = vadd.f32 %v502, %v770
      %v772 = vpop.f32.mrb[0].mxu0
      %773 = vmatprep.mubr.f32.mxu0 0.0
      %v774 = vand.u32 %v551, 4294901760
      %v775 = vsub.f32 %v551, %v774
      %v776 = vand.u32 %v775, 4294901760
      %v777 = vsub.f32 %v775, %v776
      %v778 = vand.u32 %v777, 4294901760
      %779 = vmatmul.mubr.f32.gmra.mrb[0].mxu0 %v778
      %v780 = vpop.f32.mrb[0].mxu0
      %v781 = vadd.f32 %v502, %v780
      %v782 = vpop.f32.mrb[0].mxu0
      %783 = vdwg.mxu0
      %784 = vmatprep.subr.mxu0 0.0
      %v785 = vand.u32 %v495, 4294901760
      %v786 = vsub.f32 %v495, %v785
      %v787 = vand.u32 %v786, 4294901760
      %v788 = vsub.f32 %v786, %v787
      %v789 = vand.u32 %v788, 4294901760
      %790 = vmatpush1.msra.mxu0 %v789
      %791 = vmatprep.subr.mxu0 0.0
      %v792 = vand.u32 %v555, 4294901760
      %v793 = vsub.f32 %v555, %v792
      %v794 = vand.u32 %v793, 4294901760
      %v795 = vsub.f32 %v793, %v794
      %v796 = vand.u32 %v795, 4294901760
      %797 = vmatpush1.msra.mxu0 %v796
      %798 = vmatprep.subr.mxu0 0.0
      %799 = vmatpush1.msra.mxu0 0.0
      %800 = vmatprep.subr.mxu0 0.0
      %801 = vmatpush1.msra.mxu0 0.0
      %802 = vmatprep.subr.mxu0 0.0
      %803 = vmatpush1.msra.mxu0 0.0
      %804 = vmatprep.subr.mxu0 0.0
      %805 = vmatpush1.msra.mxu0 0.0
      %806 = vmatprep.subr.mxu0 0.0
      %807 = vmatpush1.msra.mxu0 0.0
      %808 = vmatprep.subr.mxu0 0.0
      %809 = vmatpush1.msra.mxu0 0.0
      %810 = vmatprep.subr.mxu0 0.0
      %811 = vmatpush1.msra.mxu0 0.0
      %812 = vmatprep.subr.mxu0 0.0
      %813 = vmatpush1.msra.mxu0 0.0
      %814 = vmatprep.subr.mxu0 0.0
      %815 = vmatpush1.msra.mxu0 0.0
      %816 = vmatprep.subr.mxu0 0.0
      %817 = vmatpush1.msra.mxu0 0.0
      %818 = vmatprep.subr.mxu0 0.0
      %819 = vmatpush1.msra.mxu0 0.0
      %820 = vmatprep.subr.mxu0 0.0
      %821 = vmatpush1.msra.mxu0 0.0
      %822 = vmatprep.subr.mxu0 0.0
      %823 = vmatpush1.msra.mxu0 0.0
      %824 = vmatprep.subr.mxu0 0.0
      %825 = vmatpush1.msra.mxu0 0.0
      %826 = vmatprep.subr.mxu0 0.0
      %827 = vmatpush1.msra.mxu0 0.0
      %828 = vmatprep.subr.mxu0 0.0
      %829 = vmatpush1.msra.mxu0 0.0
      %830 = vmatprep.subr.mxu0 0.0
      %831 = vmatpush1.msra.mxu0 0.0
      %832 = vmatprep.subr.mxu0 0.0
      %833 = vmatpush1.msra.mxu0 0.0
      %834 = vmatprep.subr.mxu0 0.0
      %835 = vmatpush1.msra.mxu0 0.0
      %836 = vmatprep.subr.mxu0 0.0
      %837 = vmatpush1.msra.mxu0 0.0
      %838 = vmatprep.subr.mxu0 0.0
      %839 = vmatpush1.msra.mxu0 0.0
      %840 = vmatprep.subr.mxu0 0.0
      %841 = vmatpush1.msra.mxu0 0.0
      %842 = vmatprep.subr.mxu0 0.0
      %843 = vmatpush1.msra.mxu0 0.0
      %844 = vmatprep.subr.mxu0 0.0
      %845 = vmatpush1.msra.mxu0 0.0
      %846 = vmatprep.subr.mxu0 0.0
      %847 = vmatpush1.msra.mxu0 0.0
      %848 = vmatprep.subr.mxu0 0.0
      %849 = vmatpush1.msra.mxu0 0.0
      %850 = vmatprep.subr.mxu0 0.0
      %851 = vmatpush1.msra.mxu0 0.0
      %852 = vmatprep.subr.mxu0 0.0
      %853 = vmatpush1.msra.mxu0 0.0
      %854 = vmatprep.subr.mxu0 0.0
      %855 = vmatpush1.msra.mxu0 0.0
      %856 = vmatprep.subr.mxu0 0.0
      %857 = vmatpush1.msra.mxu0 0.0
      %858 = vmatprep.mubr.f32.mxu0 0.0
      %v859 = vand.u32 %v506, 4294901760
      %860 = vmatmul.mubr.f32.gmra.mrb[0].mxu0 %v859
      %v861 = vpop.f32.mrb[0].mxu0
      %v862 = vadd.f32 %v631, %v861
      %v863 = vpop.f32.mrb[0].mxu0
      %864 = vmatprep.mubr.f32.mxu0 0.0
      %v865 = vand.u32 %v509, 4294901760
      %866 = vmatmul.mubr.f32.gmra.mrb[0].mxu0 %v865
      %v867 = vpop.f32.mrb[0].mxu0
      %v868 = vadd.f32 %v641, %v867
      %v869 = vpop.f32.mrb[0].mxu0
      %870 = vmatprep.mubr.f32.mxu0 0.0
      %v871 = vand.u32 %v512, 4294901760
      %872 = vmatmul.mubr.f32.gmra.mrb[0].mxu0 %v871
      %v873 = vpop.f32.mrb[0].mxu0
      %v874 = vadd.f32 %v651, %v873
      %v875 = vpop.f32.mrb[0].mxu0
      %876 = vmatprep.mubr.f32.mxu0 0.0
      %v877 = vand.u32 %v515, 4294901760
      %878 = vmatmul.mubr.f32.gmra.mrb[0].mxu0 %v877
      %v879 = vpop.f32.mrb[0].mxu0
      %v880 = vadd.f32 %v661, %v879
      %v881 = vpop.f32.mrb[0].mxu0
      %882 = vmatprep.mubr.f32.mxu0 0.0
      %v883 = vand.u32 %v518, 4294901760
      %884 = vmatmul.mubr.f32.gmra.mrb[0].mxu0 %v883
      %v885 = vpop.f32.mrb[0].mxu0
      %v886 = vadd.f32 %v671, %v885
      %v887 = vpop.f32.mrb[0].mxu0
      %888 = vmatprep.mubr.f32.mxu0 0.0
      %v889 = vand.u32 %v521, 4294901760
      %890 = vmatmul.mubr.f32.gmra.mrb[0].mxu0 %v889
      %v891 = vpop.f32.mrb[0].mxu0
      %v892 = vadd.f32 %v681, %v891
      %v893 = vpop.f32.mrb[0].mxu0
      %894 = vmatprep.mubr.f32.mxu0 0.0
      %v895 = vand.u32 %v524, 4294901760
      %896 = vmatmul.mubr.f32.gmra.mrb[0].mxu0 %v895
      %v897 = vpop.f32.mrb[0].mxu0
      %v898 = vadd.f32 %v691, %v897
      %v899 = vpop.f32.mrb[0].mxu0
      %900 = vmatprep.mubr.f32.mxu0 0.0
      %v901 = vand.u32 %v527, 4294901760
      %902 = vmatmul.mubr.f32.gmra.mrb[0].mxu0 %v901
      %v903 = vpop.f32.mrb[0].mxu0
      %v904 = vadd.f32 %v701, %v903
      %v905 = vpop.f32.mrb[0].mxu0
      %906 = vmatprep.mubr.f32.mxu0 0.0
      %v907 = vand.u32 %v530, 4294901760
      %908 = vmatmul.mubr.f32.gmra.mrb[0].mxu0 %v907
      %v909 = vpop.f32.mrb[0].mxu0
      %v910 = vadd.f32 %v711, %v909
      %v911 = vpop.f32.mrb[0].mxu0
      %912 = vmatprep.mubr.f32.mxu0 0.0
      %v913 = vand.u32 %v533, 4294901760
      %914 = vmatmul.mubr.f32.gmra.mrb[0].mxu0 %v913
      %v915 = vpop.f32.mrb[0].mxu0
      %v916 = vadd.f32 %v721, %v915
      %v917 = vpop.f32.mrb[0].mxu0
      %918 = vmatprep.mubr.f32.mxu0 0.0
      %v919 = vand.u32 %v536, 4294901760
      %920 = vmatmul.mubr.f32.gmra.mrb[0].mxu0 %v919
      %v921 = vpop.f32.mrb[0].mxu0
      %v922 = vadd.f32 %v731, %v921
      %v923 = vpop.f32.mrb[0].mxu0
      %924 = vmatprep.mubr.f32.mxu0 0.0
      %v925 = vand.u32 %v539, 4294901760
      %926 = vmatmul.mubr.f32.gmra.mrb[0].mxu0 %v925
      %v927 = vpop.f32.mrb[0].mxu0
      %v928 = vadd.f32 %v741, %v927
      %v929 = vpop.f32.mrb[0].mxu0
      %930 = vmatprep.mubr.f32.mxu0 0.0
      %v931 = vand.u32 %v542, 4294901760
      %932 = vmatmul.mubr.f32.gmra.mrb[0].mxu0 %v931
      %v933 = vpop.f32.mrb[0].mxu0
      %v934 = vadd.f32 %v751, %v933
      %v935 = vpop.f32.mrb[0].mxu0
      %936 = vmatprep.mubr.f32.mxu0 0.0
      %v937 = vand.u32 %v545, 4294901760
      %938 = vmatmul.mubr.f32.gmra.mrb[0].mxu0 %v937
      %v939 = vpop.f32.mrb[0].mxu0
      %v940 = vadd.f32 %v761, %v939
      %v941 = vpop.f32.mrb[0].mxu0
      %942 = vmatprep.mubr.f32.mxu0 0.0
      %v943 = vand.u32 %v548, 4294901760
      %944 = vmatmul.mubr.f32.gmra.mrb[0].mxu0 %v943
      %v945 = vpop.f32.mrb[0].mxu0
      %v946 = vadd.f32 %v771, %v945
      %v947 = vpop.f32.mrb[0].mxu0
      %948 = vmatprep.mubr.f32.mxu0 0.0
      %v949 = vand.u32 %v551, 4294901760
      %950 = vmatmul.mubr.f32.gmra.mrb[0].mxu0 %v949
      %v951 = vpop.f32.mrb[0].mxu0
      %v952 = vadd.f32 %v781, %v951
      %v953 = vpop.f32.mrb[0].mxu0
      %954 = vdwg.mxu0
      %955 = vmatprep.subr.mxu0 0.0
      %v956 = vand.u32 %v495, 4294901760
      %v957 = vsub.f32 %v495, %v956
      %958 = vmatpush1.msra.mxu0 %v957
      %959 = vmatprep.subr.mxu0 0.0
      %v960 = vand.u32 %v555, 4294901760
      %v961 = vsub.f32 %v555, %v960
      %962 = vmatpush1.msra.mxu0 %v961
      %963 = vmatprep.subr.mxu0 0.0
      %964 = vmatpush1.msra.mxu0 0.0
      %965 = vmatprep.subr.mxu0 0.0
      %966 = vmatpush1.msra.mxu0 0.0
      %967 = vmatprep.subr.mxu0 0.0
      %968 = vmatpush1.msra.mxu0 0.0
      %969 = vmatprep.subr.mxu0 0.0
      %970 = vmatpush1.msra.mxu0 0.0
      %971 = vmatprep.subr.mxu0 0.0
      %972 = vmatpush1.msra.mxu0 0.0
      %973 = vmatprep.subr.mxu0 0.0
      %974 = vmatpush1.msra.mxu0 0.0
      %975 = vmatprep.subr.mxu0 0.0
      %976 = vmatpush1.msra.mxu0 0.0
      %977 = vmatprep.subr.mxu0 0.0
      %978 = vmatpush1.msra.mxu0 0.0
      %979 = vmatprep.subr.mxu0 0.0
      %980 = vmatpush1.msra.mxu0 0.0
      %981 = vmatprep.subr.mxu0 0.0
      %982 = vmatpush1.msra.mxu0 0.0
      %983 = vmatprep.subr.mxu0 0.0
      %984 = vmatpush1.msra.mxu0 0.0
      %985 = vmatprep.subr.mxu0 0.0
      %986 = vmatpush1.msra.mxu0 0.0
      %987 = vmatprep.subr.mxu0 0.0
      %988 = vmatpush1.msra.mxu0 0.0
      %989 = vmatprep.subr.mxu0 0.0
      %990 = vmatpush1.msra.mxu0 0.0
      %991 = vmatprep.subr.mxu0 0.0
      %992 = vmatpush1.msra.mxu0 0.0
      %993 = vmatprep.subr.mxu0 0.0
      %994 = vmatpush1.msra.mxu0 0.0
      %995 = vmatprep.subr.mxu0 0.0
      %996 = vmatpush1.msra.mxu0 0.0
      %997 = vmatprep.subr.mxu0 0.0
      %998 = vmatpush1.msra.mxu0 0.0
      %999 = vmatprep.subr.mxu0 0.0
      %1000 = vmatpush1.msra.mxu0 0.0
      %1001 = vmatprep.subr.mxu0 0.0
      %1002 = vmatpush1.msra.mxu0 0.0
      %1003 = vmatprep.subr.mxu0 0.0
      %1004 = vmatpush1.msra.mxu0 0.0
      %1005 = vmatprep.subr.mxu0 0.0
      %1006 = vmatpush1.msra.mxu0 0.0
      %1007 = vmatprep.subr.mxu0 0.0
      %1008 = vmatpush1.msra.mxu0 0.0
      %1009 = vmatprep.subr.mxu0 0.0
      %1010 = vmatpush1.msra.mxu0 0.0
      %1011 = vmatprep.subr.mxu0 0.0
      %1012 = vmatpush1.msra.mxu0 0.0
      %1013 = vmatprep.subr.mxu0 0.0
      %1014 = vmatpush1.msra.mxu0 0.0
      %1015 = vmatprep.subr.mxu0 0.0
      %1016 = vmatpush1.msra.mxu0 0.0
      %1017 = vmatprep.subr.mxu0 0.0
      %1018 = vmatpush1.msra.mxu0 0.0
      %1019 = vmatprep.subr.mxu0 0.0
      %1020 = vmatpush1.msra.mxu0 0.0
      %1021 = vmatprep.subr.mxu0 0.0
      %1022 = vmatpush1.msra.mxu0 0.0
      %1023 = vmatprep.mubr.f32.mxu0 0.0
      %v1024 = vand.u32 %v506, 4294901760
      %v1025 = vsub.f32 %v506, %v1024
      %1026 = vmatmul.mubr.f32.gmra.mrb[0].mxu0 %v1025
      %v1027 = vpop.f32.mrb[0].mxu0
      %v1028 = vadd.f32 %v862, %v1027
      %v1029 = vpop.f32.mrb[0].mxu0
      %1030 = vmatprep.mubr.f32.mxu0 0.0
      %v1031 = vand.u32 %v509, 4294901760
      %v1032 = vsub.f32 %v509, %v1031
      %1033 = vmatmul.mubr.f32.gmra.mrb[0].mxu0 %v1032
      %v1034 = vpop.f32.mrb[0].mxu0
      %v1035 = vadd.f32 %v868, %v1034
      %v1036 = vpop.f32.mrb[0].mxu0
      %1037 = vmatprep.mubr.f32.mxu0 0.0
      %v1038 = vand.u32 %v512, 4294901760
      %v1039 = vsub.f32 %v512, %v1038
      %1040 = vmatmul.mubr.f32.gmra.mrb[0].mxu0 %v1039
      %v1041 = vpop.f32.mrb[0].mxu0
      %v1042 = vadd.f32 %v874, %v1041
      %v1043 = vpop.f32.mrb[0].mxu0
      %1044 = vmatprep.mubr.f32.mxu0 0.0
      %v1045 = vand.u32 %v515, 4294901760
      %v1046 = vsub.f32 %v515, %v1045
      %1047 = vmatmul.mubr.f32.gmra.mrb[0].mxu0 %v1046
      %v1048 = vpop.f32.mrb[0].mxu0
      %v1049 = vadd.f32 %v880, %v1048
      %v1050 = vpop.f32.mrb[0].mxu0
      %1051 = vmatprep.mubr.f32.mxu0 0.0
      %v1052 = vand.u32 %v518, 4294901760
      %v1053 = vsub.f32 %v518, %v1052
      %1054 = vmatmul.mubr.f32.gmra.mrb[0].mxu0 %v1053
      %v1055 = vpop.f32.mrb[0].mxu0
      %v1056 = vadd.f32 %v886, %v1055
      %v1057 = vpop.f32.mrb[0].mxu0
      %1058 = vmatprep.mubr.f32.mxu0 0.0
      %v1059 = vand.u32 %v521, 4294901760
      %v1060 = vsub.f32 %v521, %v1059
      %1061 = vmatmul.mubr.f32.gmra.mrb[0].mxu0 %v1060
      %v1062 = vpop.f32.mrb[0].mxu0
      %v1063 = vadd.f32 %v892, %v1062
      %v1064 = vpop.f32.mrb[0].mxu0
      %1065 = vmatprep.mubr.f32.mxu0 0.0
      %v1066 = vand.u32 %v524, 4294901760
      %v1067 = vsub.f32 %v524, %v1066
      %1068 = vmatmul.mubr.f32.gmra.mrb[0].mxu0 %v1067
      %v1069 = vpop.f32.mrb[0].mxu0
      %v1070 = vadd.f32 %v898, %v1069
      %v1071 = vpop.f32.mrb[0].mxu0
      %1072 = vmatprep.mubr.f32.mxu0 0.0
      %v1073 = vand.u32 %v527, 4294901760
      %v1074 = vsub.f32 %v527, %v1073
      %1075 = vmatmul.mubr.f32.gmra.mrb[0].mxu0 %v1074
      %v1076 = vpop.f32.mrb[0].mxu0
      %v1077 = vadd.f32 %v904, %v1076
      %v1078 = vpop.f32.mrb[0].mxu0
      %1079 = vmatprep.mubr.f32.mxu0 0.0
      %v1080 = vand.u32 %v530, 4294901760
      %v1081 = vsub.f32 %v530, %v1080
      %1082 = vmatmul.mubr.f32.gmra.mrb[0].mxu0 %v1081
      %v1083 = vpop.f32.mrb[0].mxu0
      %v1084 = vadd.f32 %v910, %v1083
      %v1085 = vpop.f32.mrb[0].mxu0
      %1086 = vmatprep.mubr.f32.mxu0 0.0
      %v1087 = vand.u32 %v533, 4294901760
      %v1088 = vsub.f32 %v533, %v1087
      %1089 = vmatmul.mubr.f32.gmra.mrb[0].mxu0 %v1088
      %v1090 = vpop.f32.mrb[0].mxu0
      %v1091 = vadd.f32 %v916, %v1090
      %v1092 = vpop.f32.mrb[0].mxu0
      %1093 = vmatprep.mubr.f32.mxu0 0.0
      %v1094 = vand.u32 %v536, 4294901760
      %v1095 = vsub.f32 %v536, %v1094
      %1096 = vmatmul.mubr.f32.gmra.mrb[0].mxu0 %v1095
      %v1097 = vpop.f32.mrb[0].mxu0
      %v1098 = vadd.f32 %v922, %v1097
      %v1099 = vpop.f32.mrb[0].mxu0
      %1100 = vmatprep.mubr.f32.mxu0 0.0
      %v1101 = vand.u32 %v539, 4294901760
      %v1102 = vsub.f32 %v539, %v1101
      %1103 = vmatmul.mubr.f32.gmra.mrb[0].mxu0 %v1102
      %v1104 = vpop.f32.mrb[0].mxu0
      %v1105 = vadd.f32 %v928, %v1104
      %v1106 = vpop.f32.mrb[0].mxu0
      %1107 = vmatprep.mubr.f32.mxu0 0.0
      %v1108 = vand.u32 %v542, 4294901760
      %v1109 = vsub.f32 %v542, %v1108
      %1110 = vmatmul.mubr.f32.gmra.mrb[0].mxu0 %v1109
      %v1111 = vpop.f32.mrb[0].mxu0
      %v1112 = vadd.f32 %v934, %v1111
      %v1113 = vpop.f32.mrb[0].mxu0
      %1114 = vmatprep.mubr.f32.mxu0 0.0
      %v1115 = vand.u32 %v545, 4294901760
      %v1116 = vsub.f32 %v545, %v1115
      %1117 = vmatmul.mubr.f32.gmra.mrb[0].mxu0 %v1116
      %v1118 = vpop.f32.mrb[0].mxu0
      %v1119 = vadd.f32 %v940, %v1118
      %v1120 = vpop.f32.mrb[0].mxu0
      %1121 = vmatprep.mubr.f32.mxu0 0.0
      %v1122 = vand.u32 %v548, 4294901760
      %v1123 = vsub.f32 %v548, %v1122
      %1124 = vmatmul.mubr.f32.gmra.mrb[0].mxu0 %v1123
      %v1125 = vpop.f32.mrb[0].mxu0
      %v1126 = vadd.f32 %v946, %v1125
      %v1127 = vpop.f32.mrb[0].mxu0
      %1128 = vmatprep.mubr.f32.mxu0 0.0
      %v1129 = vand.u32 %v551, 4294901760
      %v1130 = vsub.f32 %v551, %v1129
      %1131 = vmatmul.mubr.f32.gmra.mrb[0].mxu0 %v1130
      %v1132 = vpop.f32.mrb[0].mxu0
      %v1133 = vadd.f32 %v952, %v1132
      %v1134 = vpop.f32.mrb[0].mxu0
      %1135 = vdwg.mxu0
      %1136 = vmatprep.subr.mxu0 0.0
      %v1137 = vand.u32 %v495, 4294901760
      %1138 = vmatpush1.msra.mxu0 %v1137
      %1139 = vmatprep.subr.mxu0 0.0
      %v1140 = vand.u32 %v555, 4294901760
      %1141 = vmatpush1.msra.mxu0 %v1140
      %1142 = vmatprep.subr.mxu0 0.0
      %1143 = vmatpush1.msra.mxu0 0.0
      %1144 = vmatprep.subr.mxu0 0.0
      %1145 = vmatpush1.msra.mxu0 0.0
      %1146 = vmatprep.subr.mxu0 0.0
      %1147 = vmatpush1.msra.mxu0 0.0
      %1148 = vmatprep.subr.mxu0 0.0
      %1149 = vmatpush1.msra.mxu0 0.0
      %1150 = vmatprep.subr.mxu0 0.0
      %1151 = vmatpush1.msra.mxu0 0.0
      %1152 = vmatprep.subr.mxu0 0.0
      %1153 = vmatpush1.msra.mxu0 0.0
      %1154 = vmatprep.subr.mxu0 0.0
      %1155 = vmatpush1.msra.mxu0 0.0
      %1156 = vmatprep.subr.mxu0 0.0
      %1157 = vmatpush1.msra.mxu0 0.0
      %1158 = vmatprep.subr.mxu0 0.0
      %1159 = vmatpush1.msra.mxu0 0.0
      %1160 = vmatprep.subr.mxu0 0.0
      %1161 = vmatpush1.msra.mxu0 0.0
      %1162 = vmatprep.subr.mxu0 0.0
      %1163 = vmatpush1.msra.mxu0 0.0
      %1164 = vmatprep.subr.mxu0 0.0
      %1165 = vmatpush1.msra.mxu0 0.0
      %1166 = vmatprep.subr.mxu0 0.0
      %1167 = vmatpush1.msra.mxu0 0.0
      %1168 = vmatprep.subr.mxu0 0.0
      %1169 = vmatpush1.msra.mxu0 0.0
      %1170 = vmatprep.subr.mxu0 0.0
      %1171 = vmatpush1.msra.mxu0 0.0
      %1172 = vmatprep.subr.mxu0 0.0
      %1173 = vmatpush1.msra.mxu0 0.0
      %1174 = vmatprep.subr.mxu0 0.0
      %1175 = vmatpush1.msra.mxu0 0.0
      %1176 = vmatprep.subr.mxu0 0.0
      %1177 = vmatpush1.msra.mxu0 0.0
      %1178 = vmatprep.subr.mxu0 0.0
      %1179 = vmatpush1.msra.mxu0 0.0
      %1180 = vmatprep.subr.mxu0 0.0
      %1181 = vmatpush1.msra.mxu0 0.0
      %1182 = vmatprep.subr.mxu0 0.0
      %1183 = vmatpush1.msra.mxu0 0.0
      %1184 = vmatprep.subr.mxu0 0.0
      %1185 = vmatpush1.msra.mxu0 0.0
      %1186 = vmatprep.subr.mxu0 0.0
      %1187 = vmatpush1.msra.mxu0 0.0
      %1188 = vmatprep.subr.mxu0 0.0
      %1189 = vmatpush1.msra.mxu0 0.0
      %1190 = vmatprep.subr.mxu0 0.0
      %1191 = vmatpush1.msra.mxu0 0.0
      %1192 = vmatprep.subr.mxu0 0.0
      %1193 = vmatpush1.msra.mxu0 0.0
      %1194 = vmatprep.subr.mxu0 0.0
      %1195 = vmatpush1.msra.mxu0 0.0
      %1196 = vmatprep.subr.mxu0 0.0
      %1197 = vmatpush1.msra.mxu0 0.0
      %1198 = vmatprep.subr.mxu0 0.0
      %1199 = vmatpush1.msra.mxu0 0.0
      %1200 = vmatprep.subr.mxu0 0.0
      %1201 = vmatpush1.msra.mxu0 0.0
      %1202 = vmatprep.mubr.f32.mxu0 0.0
      %v1203 = vand.u32 %v506, 4294901760
      %v1204 = vsub.f32 %v506, %v1203
      %v1205 = vand.u32 %v1204, 4294901760
      %1206 = vmatmul.mubr.f32.gmra.mrb[0].mxu0 %v1205
      %v1207 = vpop.f32.mrb[0].mxu0
      %v1208 = vadd.f32 %v1028, %v1207
      %v1209 = vpop.f32.mrb[0].mxu0
      %1210 = vmatprep.mubr.f32.mxu0 0.0
      %v1211 = vand.u32 %v509, 4294901760
      %v1212 = vsub.f32 %v509, %v1211
      %v1213 = vand.u32 %v1212, 4294901760
      %1214 = vmatmul.mubr.f32.gmra.mrb[0].mxu0 %v1213
      %v1215 = vpop.f32.mrb[0].mxu0
      %v1216 = vadd.f32 %v1035, %v1215
      %v1217 = vpop.f32.mrb[0].mxu0
      %1218 = vmatprep.mubr.f32.mxu0 0.0
      %v1219 = vand.u32 %v512, 4294901760
      %v1220 = vsub.f32 %v512, %v1219
      %v1221 = vand.u32 %v1220, 4294901760
      %1222 = vmatmul.mubr.f32.gmra.mrb[0].mxu0 %v1221
      %v1223 = vpop.f32.mrb[0].mxu0
      %v1224 = vadd.f32 %v1042, %v1223
      %v1225 = vpop.f32.mrb[0].mxu0
      %1226 = vmatprep.mubr.f32.mxu0 0.0
      %v1227 = vand.u32 %v515, 4294901760
      %v1228 = vsub.f32 %v515, %v1227
      %v1229 = vand.u32 %v1228, 4294901760
      %1230 = vmatmul.mubr.f32.gmra.mrb[0].mxu0 %v1229
      %v1231 = vpop.f32.mrb[0].mxu0
      %v1232 = vadd.f32 %v1049, %v1231
      %v1233 = vpop.f32.mrb[0].mxu0
      %1234 = vmatprep.mubr.f32.mxu0 0.0
      %v1235 = vand.u32 %v518, 4294901760
      %v1236 = vsub.f32 %v518, %v1235
      %v1237 = vand.u32 %v1236, 4294901760
      %1238 = vmatmul.mubr.f32.gmra.mrb[0].mxu0 %v1237
      %v1239 = vpop.f32.mrb[0].mxu0
      %v1240 = vadd.f32 %v1056, %v1239
      %v1241 = vpop.f32.mrb[0].mxu0
      %1242 = vmatprep.mubr.f32.mxu0 0.0
      %v1243 = vand.u32 %v521, 4294901760
      %v1244 = vsub.f32 %v521, %v1243
      %v1245 = vand.u32 %v1244, 4294901760
      %1246 = vmatmul.mubr.f32.gmra.mrb[0].mxu0 %v1245
      %v1247 = vpop.f32.mrb[0].mxu0
      %v1248 = vadd.f32 %v1063, %v1247
      %v1249 = vpop.f32.mrb[0].mxu0
      %1250 = vmatprep.mubr.f32.mxu0 0.0
      %v1251 = vand.u32 %v524, 4294901760
      %v1252 = vsub.f32 %v524, %v1251
      %v1253 = vand.u32 %v1252, 4294901760
      %1254 = vmatmul.mubr.f32.gmra.mrb[0].mxu0 %v1253
      %v1255 = vpop.f32.mrb[0].mxu0
      %v1256 = vadd.f32 %v1070, %v1255
      %v1257 = vpop.f32.mrb[0].mxu0
      %1258 = vmatprep.mubr.f32.mxu0 0.0
      %v1259 = vand.u32 %v527, 4294901760
      %v1260 = vsub.f32 %v527, %v1259
      %v1261 = vand.u32 %v1260, 4294901760
      %1262 = vmatmul.mubr.f32.gmra.mrb[0].mxu0 %v1261
      %v1263 = vpop.f32.mrb[0].mxu0
      %v1264 = vadd.f32 %v1077, %v1263
      %v1265 = vpop.f32.mrb[0].mxu0
      %1266 = vmatprep.mubr.f32.mxu0 0.0
      %v1267 = vand.u32 %v530, 4294901760
      %v1268 = vsub.f32 %v530, %v1267
      %v1269 = vand.u32 %v1268, 4294901760
      %1270 = vmatmul.mubr.f32.gmra.mrb[0].mxu0 %v1269
      %v1271 = vpop.f32.mrb[0].mxu0
      %v1272 = vadd.f32 %v1084, %v1271
      %v1273 = vpop.f32.mrb[0].mxu0
      %1274 = vmatprep.mubr.f32.mxu0 0.0
      %v1275 = vand.u32 %v533, 4294901760
      %v1276 = vsub.f32 %v533, %v1275
      %v1277 = vand.u32 %v1276, 4294901760
      %1278 = vmatmul.mubr.f32.gmra.mrb[0].mxu0 %v1277
      %v1279 = vpop.f32.mrb[0].mxu0
      %v1280 = vadd.f32 %v1091, %v1279
      %v1281 = vpop.f32.mrb[0].mxu0
      %1282 = vmatprep.mubr.f32.mxu0 0.0
      %v1283 = vand.u32 %v536, 4294901760
      %v1284 = vsub.f32 %v536, %v1283
      %v1285 = vand.u32 %v1284, 4294901760
      %1286 = vmatmul.mubr.f32.gmra.mrb[0].mxu0 %v1285
      %v1287 = vpop.f32.mrb[0].mxu0
      %v1288 = vadd.f32 %v1098, %v1287
      %v1289 = vpop.f32.mrb[0].mxu0
      %1290 = vmatprep.mubr.f32.mxu0 0.0
      %v1291 = vand.u32 %v539, 4294901760
      %v1292 = vsub.f32 %v539, %v1291
      %v1293 = vand.u32 %v1292, 4294901760
      %1294 = vmatmul.mubr.f32.gmra.mrb[0].mxu0 %v1293
      %v1295 = vpop.f32.mrb[0].mxu0
      %v1296 = vadd.f32 %v1105, %v1295
      %v1297 = vpop.f32.mrb[0].mxu0
      %1298 = vmatprep.mubr.f32.mxu0 0.0
      %v1299 = vand.u32 %v542, 4294901760
      %v1300 = vsub.f32 %v542, %v1299
      %v1301 = vand.u32 %v1300, 4294901760
      %1302 = vmatmul.mubr.f32.gmra.mrb[0].mxu0 %v1301
      %v1303 = vpop.f32.mrb[0].mxu0
      %v1304 = vadd.f32 %v1112, %v1303
      %v1305 = vpop.f32.mrb[0].mxu0
      %1306 = vmatprep.mubr.f32.mxu0 0.0
      %v1307 = vand.u32 %v545, 4294901760
      %v1308 = vsub.f32 %v545, %v1307
      %v1309 = vand.u32 %v1308, 4294901760
      %1310 = vmatmul.mubr.f32.gmra.mrb[0].mxu0 %v1309
      %v1311 = vpop.f32.mrb[0].mxu0
      %v1312 = vadd.f32 %v1119, %v1311
      %v1313 = vpop.f32.mrb[0].mxu0
      %1314 = vmatprep.mubr.f32.mxu0 0.0
      %v1315 = vand.u32 %v548, 4294901760
      %v1316 = vsub.f32 %v548, %v1315
      %v1317 = vand.u32 %v1316, 4294901760
      %1318 = vmatmul.mubr.f32.gmra.mrb[0].mxu0 %v1317
      %v1319 = vpop.f32.mrb[0].mxu0
      %v1320 = vadd.f32 %v1126, %v1319
      %v1321 = vpop.f32.mrb[0].mxu0
      %1322 = vmatprep.mubr.f32.mxu0 0.0
      %v1323 = vand.u32 %v551, 4294901760
      %v1324 = vsub.f32 %v551, %v1323
      %v1325 = vand.u32 %v1324, 4294901760
      %1326 = vmatmul.mubr.f32.gmra.mrb[0].mxu0 %v1325
      %v1327 = vpop.f32.mrb[0].mxu0
      %v1328 = vadd.f32 %v1133, %v1327
      %v1329 = vpop.f32.mrb[0].mxu0
      %1330 = vdwg.mxu0
      %1331 = vmatprep.subr.mxu0 0.0
      %v1332 = vand.u32 %v495, 4294901760
      %v1333 = vsub.f32 %v495, %v1332
      %v1334 = vand.u32 %v1333, 4294901760
      %1335 = vmatpush1.msra.mxu0 %v1334
      %1336 = vmatprep.subr.mxu0 0.0
      %v1337 = vand.u32 %v555, 4294901760
      %v1338 = vsub.f32 %v555, %v1337
      %v1339 = vand.u32 %v1338, 4294901760
      %1340 = vmatpush1.msra.mxu0 %v1339
      %1341 = vmatprep.subr.mxu0 0.0
      %1342 = vmatpush1.msra.mxu0 0.0
      %1343 = vmatprep.subr.mxu0 0.0
      %1344 = vmatpush1.msra.mxu0 0.0
      %1345 = vmatprep.subr.mxu0 0.0
      %1346 = vmatpush1.msra.mxu0 0.0
      %1347 = vmatprep.subr.mxu0 0.0
      %1348 = vmatpush1.msra.mxu0 0.0
      %1349 = vmatprep.subr.mxu0 0.0
      %1350 = vmatpush1.msra.mxu0 0.0
      %1351 = vmatprep.subr.mxu0 0.0
      %1352 = vmatpush1.msra.mxu0 0.0
      %1353 = vmatprep.subr.mxu0 0.0
      %1354 = vmatpush1.msra.mxu0 0.0
      %1355 = vmatprep.subr.mxu0 0.0
      %1356 = vmatpush1.msra.mxu0 0.0
      %1357 = vmatprep.subr.mxu0 0.0
      %1358 = vmatpush1.msra.mxu0 0.0
      %1359 = vmatprep.subr.mxu0 0.0
      %1360 = vmatpush1.msra.mxu0 0.0
      %1361 = vmatprep.subr.mxu0 0.0
      %1362 = vmatpush1.msra.mxu0 0.0
      %1363 = vmatprep.subr.mxu0 0.0
      %1364 = vmatpush1.msra.mxu0 0.0
      %1365 = vmatprep.subr.mxu0 0.0
      %1366 = vmatpush1.msra.mxu0 0.0
      %1367 = vmatprep.subr.mxu0 0.0
      %1368 = vmatpush1.msra.mxu0 0.0
      %1369 = vmatprep.subr.mxu0 0.0
      %1370 = vmatpush1.msra.mxu0 0.0
      %1371 = vmatprep.subr.mxu0 0.0
      %1372 = vmatpush1.msra.mxu0 0.0
      %1373 = vmatprep.subr.mxu0 0.0
      %1374 = vmatpush1.msra.mxu0 0.0
      %1375 = vmatprep.subr.mxu0 0.0
      %1376 = vmatpush1.msra.mxu0 0.0
      %1377 = vmatprep.subr.mxu0 0.0
      %1378 = vmatpush1.msra.mxu0 0.0
      %1379 = vmatprep.subr.mxu0 0.0
      %1380 = vmatpush1.msra.mxu0 0.0
      %1381 = vmatprep.subr.mxu0 0.0
      %1382 = vmatpush1.msra.mxu0 0.0
      %1383 = vmatprep.subr.mxu0 0.0
      %1384 = vmatpush1.msra.mxu0 0.0
      %1385 = vmatprep.subr.mxu0 0.0
      %1386 = vmatpush1.msra.mxu0 0.0
      %1387 = vmatprep.subr.mxu0 0.0
      %1388 = vmatpush1.msra.mxu0 0.0
      %1389 = vmatprep.subr.mxu0 0.0
      %1390 = vmatpush1.msra.mxu0 0.0
      %1391 = vmatprep.subr.mxu0 0.0
      %1392 = vmatpush1.msra.mxu0 0.0
      %1393 = vmatprep.subr.mxu0 0.0
      %1394 = vmatpush1.msra.mxu0 0.0
      %1395 = vmatprep.subr.mxu0 0.0
      %1396 = vmatpush1.msra.mxu0 0.0
      %1397 = vmatprep.subr.mxu0 0.0
      %1398 = vmatpush1.msra.mxu0 0.0
      %1399 = vmatprep.subr.mxu0 0.0
      %1400 = vmatpush1.msra.mxu0 0.0
      %1401 = vmatprep.mubr.f32.mxu0 0.0
      %v1402 = vand.u32 %v506, 4294901760
      %1403 = vmatmul.mubr.f32.gmra.mrb[0].mxu0 %v1402
      %v1404 = vpop.f32.mrb[0].mxu0
      %v1405 = vadd.f32 %v1208, %v1404
      %v1406 = vpop.f32.mrb[0].mxu0
      %1407 = vmatprep.mubr.f32.mxu0 0.0
      %v1408 = vand.u32 %v509, 4294901760
      %1409 = vmatmul.mubr.f32.gmra.mrb[0].mxu0 %v1408
      %v1410 = vpop.f32.mrb[0].mxu0
      %v1411 = vadd.f32 %v1216, %v1410
      %v1412 = vpop.f32.mrb[0].mxu0
      %1413 = vmatprep.mubr.f32.mxu0 0.0
      %v1414 = vand.u32 %v512, 4294901760
      %1415 = vmatmul.mubr.f32.gmra.mrb[0].mxu0 %v1414
      %v1416 = vpop.f32.mrb[0].mxu0
      %v1417 = vadd.f32 %v1224, %v1416
      %v1418 = vpop.f32.mrb[0].mxu0
      %1419 = vmatprep.mubr.f32.mxu0 0.0
      %v1420 = vand.u32 %v515, 4294901760
      %1421 = vmatmul.mubr.f32.gmra.mrb[0].mxu0 %v1420
      %v1422 = vpop.f32.mrb[0].mxu0
      %v1423 = vadd.f32 %v1232, %v1422
      %v1424 = vpop.f32.mrb[0].mxu0
      %1425 = vmatprep.mubr.f32.mxu0 0.0
      %v1426 = vand.u32 %v518, 4294901760
      %1427 = vmatmul.mubr.f32.gmra.mrb[0].mxu0 %v1426
      %v1428 = vpop.f32.mrb[0].mxu0
      %v1429 = vadd.f32 %v1240, %v1428
      %v1430 = vpop.f32.mrb[0].mxu0
      %1431 = vmatprep.mubr.f32.mxu0 0.0
      %v1432 = vand.u32 %v521, 4294901760
      %1433 = vmatmul.mubr.f32.gmra.mrb[0].mxu0 %v1432
      %v1434 = vpop.f32.mrb[0].mxu0
      %v1435 = vadd.f32 %v1248, %v1434
      %v1436 = vpop.f32.mrb[0].mxu0
      %1437 = vmatprep.mubr.f32.mxu0 0.0
      %v1438 = vand.u32 %v524, 4294901760
      %1439 = vmatmul.mubr.f32.gmra.mrb[0].mxu0 %v1438
      %v1440 = vpop.f32.mrb[0].mxu0
      %v1441 = vadd.f32 %v1256, %v1440
      %v1442 = vpop.f32.mrb[0].mxu0
      %1443 = vmatprep.mubr.f32.mxu0 0.0
      %v1444 = vand.u32 %v527, 4294901760
      %1445 = vmatmul.mubr.f32.gmra.mrb[0].mxu0 %v1444
      %v1446 = vpop.f32.mrb[0].mxu0
      %v1447 = vadd.f32 %v1264, %v1446
      %v1448 = vpop.f32.mrb[0].mxu0
      %1449 = vmatprep.mubr.f32.mxu0 0.0
      %v1450 = vand.u32 %v530, 4294901760
      %1451 = vmatmul.mubr.f32.gmra.mrb[0].mxu0 %v1450
      %v1452 = vpop.f32.mrb[0].mxu0
      %v1453 = vadd.f32 %v1272, %v1452
      %v1454 = vpop.f32.mrb[0].mxu0
      %1455 = vmatprep.mubr.f32.mxu0 0.0
      %v1456 = vand.u32 %v533, 4294901760
      %1457 = vmatmul.mubr.f32.gmra.mrb[0].mxu0 %v1456
      %v1458 = vpop.f32.mrb[0].mxu0
      %v1459 = vadd.f32 %v1280, %v1458
      %v1460 = vpop.f32.mrb[0].mxu0
      %1461 = vmatprep.mubr.f32.mxu0 0.0
      %v1462 = vand.u32 %v536, 4294901760
      %1463 = vmatmul.mubr.f32.gmra.mrb[0].mxu0 %v1462
      %v1464 = vpop.f32.mrb[0].mxu0
      %v1465 = vadd.f32 %v1288, %v1464
      %v1466 = vpop.f32.mrb[0].mxu0
      %1467 = vmatprep.mubr.f32.mxu0 0.0
      %v1468 = vand.u32 %v539, 4294901760
      %1469 = vmatmul.mubr.f32.gmra.mrb[0].mxu0 %v1468
      %v1470 = vpop.f32.mrb[0].mxu0
      %v1471 = vadd.f32 %v1296, %v1470
      %v1472 = vpop.f32.mrb[0].mxu0
      %1473 = vmatprep.mubr.f32.mxu0 0.0
      %v1474 = vand.u32 %v542, 4294901760
      %1475 = vmatmul.mubr.f32.gmra.mrb[0].mxu0 %v1474
      %v1476 = vpop.f32.mrb[0].mxu0
      %v1477 = vadd.f32 %v1304, %v1476
      %v1478 = vpop.f32.mrb[0].mxu0
      %1479 = vmatprep.mubr.f32.mxu0 0.0
      %v1480 = vand.u32 %v545, 4294901760
      %1481 = vmatmul.mubr.f32.gmra.mrb[0].mxu0 %v1480
      %v1482 = vpop.f32.mrb[0].mxu0
      %v1483 = vadd.f32 %v1312, %v1482
      %v1484 = vpop.f32.mrb[0].mxu0
      %1485 = vmatprep.mubr.f32.mxu0 0.0
      %v1486 = vand.u32 %v548, 4294901760
      %1487 = vmatmul.mubr.f32.gmra.mrb[0].mxu0 %v1486
      %v1488 = vpop.f32.mrb[0].mxu0
      %v1489 = vadd.f32 %v1320, %v1488
      %v1490 = vpop.f32.mrb[0].mxu0
      %1491 = vmatprep.mubr.f32.mxu0 0.0
      %v1492 = vand.u32 %v551, 4294901760
      %1493 = vmatmul.mubr.f32.gmra.mrb[0].mxu0 %v1492
      %v1494 = vpop.f32.mrb[0].mxu0
      %v1495 = vadd.f32 %v1328, %v1494
      %v1496 = vpop.f32.mrb[0].mxu0
      %1497 = vdwg.mxu0
      %1498 = vmatprep.subr.mxu0 0.0
      %v1499 = vand.u32 %v495, 4294901760
      %1500 = vmatpush1.msra.mxu0 %v1499
      %1501 = vmatprep.subr.mxu0 0.0
      %v1502 = vand.u32 %v555, 4294901760
      %1503 = vmatpush1.msra.mxu0 %v1502
      %1504 = vmatprep.subr.mxu0 0.0
      %1505 = vmatpush1.msra.mxu0 0.0
      %1506 = vmatprep.subr.mxu0 0.0
      %1507 = vmatpush1.msra.mxu0 0.0
      %1508 = vmatprep.subr.mxu0 0.0
      %1509 = vmatpush1.msra.mxu0 0.0
      %1510 = vmatprep.subr.mxu0 0.0
      %1511 = vmatpush1.msra.mxu0 0.0
      %1512 = vmatprep.subr.mxu0 0.0
      %1513 = vmatpush1.msra.mxu0 0.0
      %1514 = vmatprep.subr.mxu0 0.0
      %1515 = vmatpush1.msra.mxu0 0.0
      %1516 = vmatprep.subr.mxu0 0.0
      %1517 = vmatpush1.msra.mxu0 0.0
      %1518 = vmatprep.subr.mxu0 0.0
      %1519 = vmatpush1.msra.mxu0 0.0
      %1520 = vmatprep.subr.mxu0 0.0
      %1521 = vmatpush1.msra.mxu0 0.0
      %1522 = vmatprep.subr.mxu0 0.0
      %1523 = vmatpush1.msra.mxu0 0.0
      %1524 = vmatprep.subr.mxu0 0.0
      %1525 = vmatpush1.msra.mxu0 0.0
      %1526 = vmatprep.subr.mxu0 0.0
      %1527 = vmatpush1.msra.mxu0 0.0
      %1528 = vmatprep.subr.mxu0 0.0
      %1529 = vmatpush1.msra.mxu0 0.0
      %1530 = vmatprep.subr.mxu0 0.0
      %1531 = vmatpush1.msra.mxu0 0.0
      %1532 = vmatprep.subr.mxu0 0.0
      %1533 = vmatpush1.msra.mxu0 0.0
      %1534 = vmatprep.subr.mxu0 0.0
      %1535 = vmatpush1.msra.mxu0 0.0
      %1536 = vmatprep.subr.mxu0 0.0
      %1537 = vmatpush1.msra.mxu0 0.0
      %1538 = vmatprep.subr.mxu0 0.0
      %1539 = vmatpush1.msra.mxu0 0.0
      %1540 = vmatprep.subr.mxu0 0.0
      %1541 = vmatpush1.msra.mxu0 0.0
      %1542 = vmatprep.subr.mxu0 0.0
      %1543 = vmatpush1.msra.mxu0 0.0
      %1544 = vmatprep.subr.mxu0 0.0
      %1545 = vmatpush1.msra.mxu0 0.0
      %1546 = vmatprep.subr.mxu0 0.0
      %1547 = vmatpush1.msra.mxu0 0.0
      %1548 = vmatprep.subr.mxu0 0.0
      %1549 = vmatpush1.msra.mxu0 0.0
      %1550 = vmatprep.subr.mxu0 0.0
      %1551 = vmatpush1.msra.mxu0 0.0
      %1552 = vmatprep.subr.mxu0 0.0
      %1553 = vmatpush1.msra.mxu0 0.0
      %1554 = vmatprep.subr.mxu0 0.0
      %1555 = vmatpush1.msra.mxu0 0.0
      %1556 = vmatprep.subr.mxu0 0.0
      %1557 = vmatpush1.msra.mxu0 0.0
      %1558 = vmatprep.subr.mxu0 0.0
      %1559 = vmatpush1.msra.mxu0 0.0
      %1560 = vmatprep.subr.mxu0 0.0
      %1561 = vmatpush1.msra.mxu0 0.0
      %1562 = vmatprep.subr.mxu0 0.0
      %1563 = vmatpush1.msra.mxu0 0.0
      %1564 = vmatprep.mubr.f32.mxu0 0.0
      %v1565 = vand.u32 %v506, 4294901760
      %1566 = vmatmul.mubr.f32.gmra.mrb[0].mxu0 %v1565
      %v1567 = vpop.f32.mrb[0].mxu0
      %v1568 = vadd.f32 %v1405, %v1567
      %v1569 = vpop.f32.mrb[0].mxu0
      %1570 = vmatprep.mubr.f32.mxu0 0.0
      %v1571 = vand.u32 %v509, 4294901760
      %1572 = vmatmul.mubr.f32.gmra.mrb[0].mxu0 %v1571
      %v1573 = vpop.f32.mrb[0].mxu0
      %v1574 = vadd.f32 %v1411, %v1573
      %v1575 = vpop.f32.mrb[0].mxu0
      %1576 = vmatprep.mubr.f32.mxu0 0.0
      %v1577 = vand.u32 %v512, 4294901760
      %1578 = vmatmul.mubr.f32.gmra.mrb[0].mxu0 %v1577
      %v1579 = vpop.f32.mrb[0].mxu0
      %v1580 = vadd.f32 %v1417, %v1579
      %v1581 = vpop.f32.mrb[0].mxu0
      %1582 = vmatprep.mubr.f32.mxu0 0.0
      %v1583 = vand.u32 %v515, 4294901760
      %1584 = vmatmul.mubr.f32.gmra.mrb[0].mxu0 %v1583
      %v1585 = vpop.f32.mrb[0].mxu0
      %v1586 = vadd.f32 %v1423, %v1585
      %v1587 = vpop.f32.mrb[0].mxu0
      %1588 = vmatprep.mubr.f32.mxu0 0.0
      %v1589 = vand.u32 %v518, 4294901760
      %1590 = vmatmul.mubr.f32.gmra.mrb[0].mxu0 %v1589
      %v1591 = vpop.f32.mrb[0].mxu0
      %v1592 = vadd.f32 %v1429, %v1591
      %v1593 = vpop.f32.mrb[0].mxu0
      %1594 = vmatprep.mubr.f32.mxu0 0.0
      %v1595 = vand.u32 %v521, 4294901760
      %1596 = vmatmul.mubr.f32.gmra.mrb[0].mxu0 %v1595
      %v1597 = vpop.f32.mrb[0].mxu0
      %v1598 = vadd.f32 %v1435, %v1597
      %v1599 = vpop.f32.mrb[0].mxu0
      %1600 = vmatprep.mubr.f32.mxu0 0.0
      %v1601 = vand.u32 %v524, 4294901760
      %1602 = vmatmul.mubr.f32.gmra.mrb[0].mxu0 %v1601
      %v1603 = vpop.f32.mrb[0].mxu0
      %v1604 = vadd.f32 %v1441, %v1603
      %v1605 = vpop.f32.mrb[0].mxu0
      %1606 = vmatprep.mubr.f32.mxu0 0.0
      %v1607 = vand.u32 %v527, 4294901760
      %1608 = vmatmul.mubr.f32.gmra.mrb[0].mxu0 %v1607
      %v1609 = vpop.f32.mrb[0].mxu0
      %v1610 = vadd.f32 %v1447, %v1609
      %v1611 = vpop.f32.mrb[0].mxu0
      %1612 = vmatprep.mubr.f32.mxu0 0.0
      %v1613 = vand.u32 %v530, 4294901760
      %1614 = vmatmul.mubr.f32.gmra.mrb[0].mxu0 %v1613
      %v1615 = vpop.f32.mrb[0].mxu0
      %v1616 = vadd.f32 %v1453, %v1615
      %v1617 = vpop.f32.mrb[0].mxu0
      %1618 = vmatprep.mubr.f32.mxu0 0.0
      %v1619 = vand.u32 %v533, 4294901760
      %1620 = vmatmul.mubr.f32.gmra.mrb[0].mxu0 %v1619
      %v1621 = vpop.f32.mrb[0].mxu0
      %v1622 = vadd.f32 %v1459, %v1621
      %v1623 = vpop.f32.mrb[0].mxu0
      %1624 = vmatprep.mubr.f32.mxu0 0.0
      %v1625 = vand.u32 %v536, 4294901760
      %1626 = vmatmul.mubr.f32.gmra.mrb[0].mxu0 %v1625
      %v1627 = vpop.f32.mrb[0].mxu0
      %v1628 = vadd.f32 %v1465, %v1627
      %v1629 = vpop.f32.mrb[0].mxu0
      %1630 = vmatprep.mubr.f32.mxu0 0.0
      %v1631 = vand.u32 %v539, 4294901760
      %1632 = vmatmul.mubr.f32.gmra.mrb[0].mxu0 %v1631
      %v1633 = vpop.f32.mrb[0].mxu0
      %v1634 = vadd.f32 %v1471, %v1633
      %v1635 = vpop.f32.mrb[0].mxu0
      %1636 = vmatprep.mubr.f32.mxu0 0.0
      %v1637 = vand.u32 %v542, 4294901760
      %1638 = vmatmul.mubr.f32.gmra.mrb[0].mxu0 %v1637
      %v1639 = vpop.f32.mrb[0].mxu0
      %v1640 = vadd.f32 %v1477, %v1639
      %v1641 = vpop.f32.mrb[0].mxu0
      %1642 = vmatprep.mubr.f32.mxu0 0.0
      %v1643 = vand.u32 %v545, 4294901760
      %1644 = vmatmul.mubr.f32.gmra.mrb[0].mxu0 %v1643
      %v1645 = vpop.f32.mrb[0].mxu0
      %v1646 = vadd.f32 %v1483, %v1645
      %v1647 = vpop.f32.mrb[0].mxu0
      %1648 = vmatprep.mubr.f32.mxu0 0.0
      %v1649 = vand.u32 %v548, 4294901760
      %1650 = vmatmul.mubr.f32.gmra.mrb[0].mxu0 %v1649
      %v1651 = vpop.f32.mrb[0].mxu0
      %v1652 = vadd.f32 %v1489, %v1651
      %v1653 = vpop.f32.mrb[0].mxu0
      %1654 = vmatprep.mubr.f32.mxu0 0.0
      %v1655 = vand.u32 %v551, 4294901760
      %1656 = vmatmul.mubr.f32.gmra.mrb[0].mxu0 %v1655
      %v1657 = vpop.f32.mrb[0].mxu0
      %v1658 = vadd.f32 %v1495, %v1657
      %v1659 = vpop.f32.mrb[0].mxu0
      %1660 = vdwg.mxu0
      %v1661 = vmax.f32 %v1568, 0.0
      %v1662 = vmax.f32 %v1574, 0.0
      %v1663 = vmax.f32 %v1580, 0.0
      %v1664 = vmax.f32 %v1586, 0.0
      %v1665 = vmax.f32 %v1592, 0.0
      %v1666 = vmax.f32 %v1598, 0.0
      %v1667 = vmax.f32 %v1604, 0.0
      %v1668 = vmax.f32 %v1610, 0.0
      %v1669 = vmax.f32 %v1616, 0.0
      %v1670 = vmax.f32 %v1622, 0.0
      %v1671 = vmax.f32 %v1628, 0.0
      %v1672 = vmax.f32 %v1634, 0.0
      %v1673 = vmax.f32 %v1640, 0.0
      %v1674 = vmax.f32 %v1646, 0.0
      %v1675 = vmax.f32 %v1652, 0.0
      %v1676 = vmax.f32 %v1658, 0.0
      %1677 = vmatprep.subr.mxu0 0.0
      %v1678 = vand.u32 %v1661, 4294901760
      %1679 = vmatpush1.msra.mxu0 %v1678
      %1680 = vmatprep.subr.mxu0 0.0
      %v1681 = vand.u32 %v1662, 4294901760
      %1682 = vmatpush1.msra.mxu0 %v1681
      %1683 = vmatprep.subr.mxu0 0.0
      %v1684 = vand.u32 %v1663, 4294901760
      %1685 = vmatpush1.msra.mxu0 %v1684
      %1686 = vmatprep.subr.mxu0 0.0
      %v1687 = vand.u32 %v1664, 4294901760
      %1688 = vmatpush1.msra.mxu0 %v1687
      %1689 = vmatprep.subr.mxu0 0.0
      %v1690 = vand.u32 %v1665, 4294901760
      %1691 = vmatpush1.msra.mxu0 %v1690
      %1692 = vmatprep.subr.mxu0 0.0
      %v1693 = vand.u32 %v1666, 4294901760
      %1694 = vmatpush1.msra.mxu0 %v1693
      %1695 = vmatprep.subr.mxu0 0.0
      %v1696 = vand.u32 %v1667, 4294901760
      %1697 = vmatpush1.msra.mxu0 %v1696
      %1698 = vmatprep.subr.mxu0 0.0
      %v1699 = vand.u32 %v1668, 4294901760
      %1700 = vmatpush1.msra.mxu0 %v1699
      %1701 = vmatprep.subr.mxu0 0.0
      %v1702 = vand.u32 %v1669, 4294901760
      %1703 = vmatpush1.msra.mxu0 %v1702
      %1704 = vmatprep.subr.mxu0 0.0
      %v1705 = vand.u32 %v1670, 4294901760
      %1706 = vmatpush1.msra.mxu0 %v1705
      %1707 = vmatprep.subr.mxu0 0.0
      %v1708 = vand.u32 %v1671, 4294901760
      %1709 = vmatpush1.msra.mxu0 %v1708
      %1710 = vmatprep.subr.mxu0 0.0
      %v1711 = vand.u32 %v1672, 4294901760
      %1712 = vmatpush1.msra.mxu0 %v1711
      %1713 = vmatprep.subr.mxu0 0.0
      %v1714 = vand.u32 %v1673, 4294901760
      %1715 = vmatpush1.msra.mxu0 %v1714
      %1716 = vmatprep.subr.mxu0 0.0
      %v1717 = vand.u32 %v1674, 4294901760
      %1718 = vmatpush1.msra.mxu0 %v1717
      %1719 = vmatprep.subr.mxu0 0.0
      %v1720 = vand.u32 %v1675, 4294901760
      %1721 = vmatpush1.msra.mxu0 %v1720
      %1722 = vmatprep.subr.mxu0 0.0
      %v1723 = vand.u32 %v1676, 4294901760
      %1724 = vmatpush1.msra.mxu0 %v1723
      %1725 = vmatprep.subr.mxu0 0.0
      %1726 = vmatpush1.msra.mxu0 0.0
      %1727 = vmatprep.subr.mxu0 0.0
      %1728 = vmatpush1.msra.mxu0 0.0
      %1729 = vmatprep.subr.mxu0 0.0
      %1730 = vmatpush1.msra.mxu0 0.0
      %1731 = vmatprep.subr.mxu0 0.0
      %1732 = vmatpush1.msra.mxu0 0.0
      %1733 = vmatprep.subr.mxu0 0.0
      %1734 = vmatpush1.msra.mxu0 0.0
      %1735 = vmatprep.subr.mxu0 0.0
      %1736 = vmatpush1.msra.mxu0 0.0
      %1737 = vmatprep.subr.mxu0 0.0
      %1738 = vmatpush1.msra.mxu0 0.0
      %1739 = vmatprep.subr.mxu0 0.0
      %1740 = vmatpush1.msra.mxu0 0.0
      %1741 = vmatprep.subr.mxu0 0.0
      %1742 = vmatpush1.msra.mxu0 0.0
      %1743 = vmatprep.subr.mxu0 0.0
      %1744 = vmatpush1.msra.mxu0 0.0
      %1745 = vmatprep.subr.mxu0 0.0
      %1746 = vmatpush1.msra.mxu0 0.0
      %1747 = vmatprep.subr.mxu0 0.0
      %1748 = vmatpush1.msra.mxu0 0.0
      %1749 = vmatprep.subr.mxu0 0.0
      %1750 = vmatpush1.msra.mxu0 0.0
      %1751 = vmatprep.subr.mxu0 0.0
      %1752 = vmatpush1.msra.mxu0 0.0
      %1753 = vmatprep.subr.mxu0 0.0
      %1754 = vmatpush1.msra.mxu0 0.0
      %1755 = vmatprep.subr.mxu0 0.0
      %1756 = vmatpush1.msra.mxu0 0.0
      %1757 = vmatprep.mubr.f32.mxu0 0.0
      %v1758 = vand.u32 %v463, 4294901760
      %v1759 = vsub.f32 %v463, %v1758
      %v1760 = vand.u32 %v1759, 4294901760
      %v1761 = vsub.f32 %v1759, %v1760
      %v1762 = vand.u32 %v1761, 4294901760
      %1763 = vmatmul.mubr.f32.gmra.mrb[0].mxu0 %v1762
      %v1764 = vpop.f32.mrb[0].mxu0
      %v1765 = vadd.f32 0.0, %v1764
      %v1766 = vpop.f32.mrb[0].mxu0
      %1767 = vmatprep.mubr.f32.mxu0 0.0
      %v1768 = vand.u32 %v464, 4294901760
      %v1769 = vsub.f32 %v464, %v1768
      %v1770 = vand.u32 %v1769, 4294901760
      %v1771 = vsub.f32 %v1769, %v1770
      %v1772 = vand.u32 %v1771, 4294901760
      %1773 = vmatmul.mubr.f32.gmra.mrb[0].mxu0 %v1772
      %v1774 = vpop.f32.mrb[0].mxu0
      %v1775 = vadd.f32 0.0, %v1774
      %v1776 = vpop.f32.mrb[0].mxu0
      %1777 = vmatprep.mubr.f32.mxu0 0.0
      %v1778 = vand.u32 %v465, 4294901760
      %v1779 = vsub.f32 %v465, %v1778
      %v1780 = vand.u32 %v1779, 4294901760
      %v1781 = vsub.f32 %v1779, %v1780
      %v1782 = vand.u32 %v1781, 4294901760
      %1783 = vmatmul.mubr.f32.gmra.mrb[0].mxu0 %v1782
      %v1784 = vpop.f32.mrb[0].mxu0
      %v1785 = vadd.f32 0.0, %v1784
      %v1786 = vpop.f32.mrb[0].mxu0
      %1787 = vmatprep.mubr.f32.mxu0 0.0
      %v1788 = vand.u32 %v466, 4294901760
      %v1789 = vsub.f32 %v466, %v1788
      %v1790 = vand.u32 %v1789, 4294901760
      %v1791 = vsub.f32 %v1789, %v1790
      %v1792 = vand.u32 %v1791, 4294901760
      %1793 = vmatmul.mubr.f32.gmra.mrb[0].mxu0 %v1792
      %v1794 = vpop.f32.mrb[0].mxu0
      %v1795 = vadd.f32 0.0, %v1794
      %v1796 = vpop.f32.mrb[0].mxu0
      %1797 = vmatprep.mubr.f32.mxu0 0.0
      %v1798 = vand.u32 %v467, 4294901760
      %v1799 = vsub.f32 %v467, %v1798
      %v1800 = vand.u32 %v1799, 4294901760
      %v1801 = vsub.f32 %v1799, %v1800
      %v1802 = vand.u32 %v1801, 4294901760
      %1803 = vmatmul.mubr.f32.gmra.mrb[0].mxu0 %v1802
      %v1804 = vpop.f32.mrb[0].mxu0
      %v1805 = vadd.f32 0.0, %v1804
      %v1806 = vpop.f32.mrb[0].mxu0
      %1807 = vmatprep.mubr.f32.mxu0 0.0
      %v1808 = vand.u32 %v468, 4294901760
      %v1809 = vsub.f32 %v468, %v1808
      %v1810 = vand.u32 %v1809, 4294901760
      %v1811 = vsub.f32 %v1809, %v1810
      %v1812 = vand.u32 %v1811, 4294901760
      %1813 = vmatmul.mubr.f32.gmra.mrb[0].mxu0 %v1812
      %v1814 = vpop.f32.mrb[0].mxu0
      %v1815 = vadd.f32 0.0, %v1814
      %v1816 = vpop.f32.mrb[0].mxu0
      %1817 = vmatprep.mubr.f32.mxu0 0.0
      %v1818 = vand.u32 %v469, 4294901760
      %v1819 = vsub.f32 %v469, %v1818
      %v1820 = vand.u32 %v1819, 4294901760
      %v1821 = vsub.f32 %v1819, %v1820
      %v1822 = vand.u32 %v1821, 4294901760
      %1823 = vmatmul.mubr.f32.gmra.mrb[0].mxu0 %v1822
      %v1824 = vpop.f32.mrb[0].mxu0
      %v1825 = vadd.f32 0.0, %v1824
      %v1826 = vpop.f32.mrb[0].mxu0
      %1827 = vmatprep.mubr.f32.mxu0 0.0
      %v1828 = vand.u32 %v470, 4294901760
      %v1829 = vsub.f32 %v470, %v1828
      %v1830 = vand.u32 %v1829, 4294901760
      %v1831 = vsub.f32 %v1829, %v1830
      %v1832 = vand.u32 %v1831, 4294901760
      %1833 = vmatmul.mubr.f32.gmra.mrb[0].mxu0 %v1832
      %v1834 = vpop.f32.mrb[0].mxu0
      %v1835 = vadd.f32 0.0, %v1834
      %v1836 = vpop.f32.mrb[0].mxu0
      %1837 = vmatprep.mubr.f32.mxu0 0.0
      %v1838 = vand.u32 %v471, 4294901760
      %v1839 = vsub.f32 %v471, %v1838
      %v1840 = vand.u32 %v1839, 4294901760
      %v1841 = vsub.f32 %v1839, %v1840
      %v1842 = vand.u32 %v1841, 4294901760
      %1843 = vmatmul.mubr.f32.gmra.mrb[0].mxu0 %v1842
      %v1844 = vpop.f32.mrb[0].mxu0
      %v1845 = vadd.f32 0.0, %v1844
      %v1846 = vpop.f32.mrb[0].mxu0
      %1847 = vmatprep.mubr.f32.mxu0 0.0
      %v1848 = vand.u32 %v472, 4294901760
      %v1849 = vsub.f32 %v472, %v1848
      %v1850 = vand.u32 %v1849, 4294901760
      %v1851 = vsub.f32 %v1849, %v1850
      %v1852 = vand.u32 %v1851, 4294901760
      %1853 = vmatmul.mubr.f32.gmra.mrb[0].mxu0 %v1852
      %v1854 = vpop.f32.mrb[0].mxu0
      %v1855 = vadd.f32 0.0, %v1854
      %v1856 = vpop.f32.mrb[0].mxu0
      %1857 = vmatprep.mubr.f32.mxu0 0.0
      %v1858 = vand.u32 %v473, 4294901760
      %v1859 = vsub.f32 %v473, %v1858
      %v1860 = vand.u32 %v1859, 4294901760
      %v1861 = vsub.f32 %v1859, %v1860
      %v1862 = vand.u32 %v1861, 4294901760
      %1863 = vmatmul.mubr.f32.gmra.mrb[0].mxu0 %v1862
      %v1864 = vpop.f32.mrb[0].mxu0
      %v1865 = vadd.f32 0.0, %v1864
      %v1866 = vpop.f32.mrb[0].mxu0
      %1867 = vmatprep.mubr.f32.mxu0 0.0
      %v1868 = vand.u32 %v474, 4294901760
      %v1869 = vsub.f32 %v474, %v1868
      %v1870 = vand.u32 %v1869, 4294901760
      %v1871 = vsub.f32 %v1869, %v1870
      %v1872 = vand.u32 %v1871, 4294901760
      %1873 = vmatmul.mubr.f32.gmra.mrb[0].mxu0 %v1872
      %v1874 = vpop.f32.mrb[0].mxu0
      %v1875 = vadd.f32 0.0, %v1874
      %v1876 = vpop.f32.mrb[0].mxu0
      %1877 = vmatprep.mubr.f32.mxu0 0.0
      %v1878 = vand.u32 %v475, 4294901760
      %v1879 = vsub.f32 %v475, %v1878
      %v1880 = vand.u32 %v1879, 4294901760
      %v1881 = vsub.f32 %v1879, %v1880
      %v1882 = vand.u32 %v1881, 4294901760
      %1883 = vmatmul.mubr.f32.gmra.mrb[0].mxu0 %v1882
      %v1884 = vpop.f32.mrb[0].mxu0
      %v1885 = vadd.f32 0.0, %v1884
      %v1886 = vpop.f32.mrb[0].mxu0
      %1887 = vmatprep.mubr.f32.mxu0 0.0
      %v1888 = vand.u32 %v476, 4294901760
      %v1889 = vsub.f32 %v476, %v1888
      %v1890 = vand.u32 %v1889, 4294901760
      %v1891 = vsub.f32 %v1889, %v1890
      %v1892 = vand.u32 %v1891, 4294901760
      %1893 = vmatmul.mubr.f32.gmra.mrb[0].mxu0 %v1892
      %v1894 = vpop.f32.mrb[0].mxu0
      %v1895 = vadd.f32 0.0, %v1894
      %v1896 = vpop.f32.mrb[0].mxu0
      %1897 = vmatprep.mubr.f32.mxu0 0.0
      %v1898 = vand.u32 %v477, 4294901760
      %v1899 = vsub.f32 %v477, %v1898
      %v1900 = vand.u32 %v1899, 4294901760
      %v1901 = vsub.f32 %v1899, %v1900
      %v1902 = vand.u32 %v1901, 4294901760
      %1903 = vmatmul.mubr.f32.gmra.mrb[0].mxu0 %v1902
      %v1904 = vpop.f32.mrb[0].mxu0
      %v1905 = vadd.f32 0.0, %v1904
      %v1906 = vpop.f32.mrb[0].mxu0
      %1907 = vmatprep.mubr.f32.mxu0 0.0
      %v1908 = vand.u32 %v478, 4294901760
      %v1909 = vsub.f32 %v478, %v1908
      %v1910 = vand.u32 %v1909, 4294901760
      %v1911 = vsub.f32 %v1909, %v1910
      %v1912 = vand.u32 %v1911, 4294901760
      %1913 = vmatmul.mubr.f32.gmra.mrb[0].mxu0 %v1912
      %v1914 = vpop.f32.mrb[0].mxu0
      %v1915 = vadd.f32 0.0, %v1914
      %v1916 = vpop.f32.mrb[0].mxu0
      %1917 = vdwg.mxu0
      %1918 = vmatprep.subr.mxu0 0.0
      %v1919 = vand.u32 %v1661, 4294901760
      %v1920 = vsub.f32 %v1661, %v1919
      %v1921 = vand.u32 %v1920, 4294901760
      %v1922 = vsub.f32 %v1920, %v1921
      %v1923 = vand.u32 %v1922, 4294901760
      %1924 = vmatpush1.msra.mxu0 %v1923
      %1925 = vmatprep.subr.mxu0 0.0
      %v1926 = vand.u32 %v1662, 4294901760
      %v1927 = vsub.f32 %v1662, %v1926
      %v1928 = vand.u32 %v1927, 4294901760
      %v1929 = vsub.f32 %v1927, %v1928
      %v1930 = vand.u32 %v1929, 4294901760
      %1931 = vmatpush1.msra.mxu0 %v1930
      %1932 = vmatprep.subr.mxu0 0.0
      %v1933 = vand.u32 %v1663, 4294901760
      %v1934 = vsub.f32 %v1663, %v1933
      %v1935 = vand.u32 %v1934, 4294901760
      %v1936 = vsub.f32 %v1934, %v1935
      %v1937 = vand.u32 %v1936, 4294901760
      %1938 = vmatpush1.msra.mxu0 %v1937
      %1939 = vmatprep.subr.mxu0 0.0
      %v1940 = vand.u32 %v1664, 4294901760
      %v1941 = vsub.f32 %v1664, %v1940
      %v1942 = vand.u32 %v1941, 4294901760
      %v1943 = vsub.f32 %v1941, %v1942
      %v1944 = vand.u32 %v1943, 4294901760
      %1945 = vmatpush1.msra.mxu0 %v1944
      %1946 = vmatprep.subr.mxu0 0.0
      %v1947 = vand.u32 %v1665, 4294901760
      %v1948 = vsub.f32 %v1665, %v1947
      %v1949 = vand.u32 %v1948, 4294901760
      %v1950 = vsub.f32 %v1948, %v1949
      %v1951 = vand.u32 %v1950, 4294901760
      %1952 = vmatpush1.msra.mxu0 %v1951
      %1953 = vmatprep.subr.mxu0 0.0
      %v1954 = vand.u32 %v1666, 4294901760
      %v1955 = vsub.f32 %v1666, %v1954
      %v1956 = vand.u32 %v1955, 4294901760
      %v1957 = vsub.f32 %v1955, %v1956
      %v1958 = vand.u32 %v1957, 4294901760
      %1959 = vmatpush1.msra.mxu0 %v1958
      %1960 = vmatprep.subr.mxu0 0.0
      %v1961 = vand.u32 %v1667, 4294901760
      %v1962 = vsub.f32 %v1667, %v1961
      %v1963 = vand.u32 %v1962, 4294901760
      %v1964 = vsub.f32 %v1962, %v1963
      %v1965 = vand.u32 %v1964, 4294901760
      %1966 = vmatpush1.msra.mxu0 %v1965
      %1967 = vmatprep.subr.mxu0 0.0
      %v1968 = vand.u32 %v1668, 4294901760
      %v1969 = vsub.f32 %v1668, %v1968
      %v1970 = vand.u32 %v1969, 4294901760
      %v1971 = vsub.f32 %v1969, %v1970
      %v1972 = vand.u32 %v1971, 4294901760
      %1973 = vmatpush1.msra.mxu0 %v1972
      %1974 = vmatprep.subr.mxu0 0.0
      %v1975 = vand.u32 %v1669, 4294901760
      %v1976 = vsub.f32 %v1669, %v1975
      %v1977 = vand.u32 %v1976, 4294901760
      %v1978 = vsub.f32 %v1976, %v1977
      %v1979 = vand.u32 %v1978, 4294901760
      %1980 = vmatpush1.msra.mxu0 %v1979
      %1981 = vmatprep.subr.mxu0 0.0
      %v1982 = vand.u32 %v1670, 4294901760
      %v1983 = vsub.f32 %v1670, %v1982
      %v1984 = vand.u32 %v1983, 4294901760
      %v1985 = vsub.f32 %v1983, %v1984
      %v1986 = vand.u32 %v1985, 4294901760
      %1987 = vmatpush1.msra.mxu0 %v1986
      %1988 = vmatprep.subr.mxu0 0.0
      %v1989 = vand.u32 %v1671, 4294901760
      %v1990 = vsub.f32 %v1671, %v1989
      %v1991 = vand.u32 %v1990, 4294901760
      %v1992 = vsub.f32 %v1990, %v1991
      %v1993 = vand.u32 %v1992, 4294901760
      %1994 = vmatpush1.msra.mxu0 %v1993
      %1995 = vmatprep.subr.mxu0 0.0
      %v1996 = vand.u32 %v1672, 4294901760
      %v1997 = vsub.f32 %v1672, %v1996
      %v1998 = vand.u32 %v1997, 4294901760
      %v1999 = vsub.f32 %v1997, %v1998
      %v2000 = vand.u32 %v1999, 4294901760
      %2001 = vmatpush1.msra.mxu0 %v2000
      %2002 = vmatprep.subr.mxu0 0.0
      %v2003 = vand.u32 %v1673, 4294901760
      %v2004 = vsub.f32 %v1673, %v2003
      %v2005 = vand.u32 %v2004, 4294901760
      %v2006 = vsub.f32 %v2004, %v2005
      %v2007 = vand.u32 %v2006, 4294901760
      %2008 = vmatpush1.msra.mxu0 %v2007
      %2009 = vmatprep.subr.mxu0 0.0
      %v2010 = vand.u32 %v1674, 4294901760
      %v2011 = vsub.f32 %v1674, %v2010
      %v2012 = vand.u32 %v2011, 4294901760
      %v2013 = vsub.f32 %v2011, %v2012
      %v2014 = vand.u32 %v2013, 4294901760
      %2015 = vmatpush1.msra.mxu0 %v2014
      %2016 = vmatprep.subr.mxu0 0.0
      %v2017 = vand.u32 %v1675, 4294901760
      %v2018 = vsub.f32 %v1675, %v2017
      %v2019 = vand.u32 %v2018, 4294901760
      %v2020 = vsub.f32 %v2018, %v2019
      %v2021 = vand.u32 %v2020, 4294901760
      %2022 = vmatpush1.msra.mxu0 %v2021
      %2023 = vmatprep.subr.mxu0 0.0
      %v2024 = vand.u32 %v1676, 4294901760
      %v2025 = vsub.f32 %v1676, %v2024
      %v2026 = vand.u32 %v2025, 4294901760
      %v2027 = vsub.f32 %v2025, %v2026
      %v2028 = vand.u32 %v2027, 4294901760
      %2029 = vmatpush1.msra.mxu0 %v2028
      %2030 = vmatprep.subr.mxu0 0.0
      %2031 = vmatpush1.msra.mxu0 0.0
      %2032 = vmatprep.subr.mxu0 0.0
      %2033 = vmatpush1.msra.mxu0 0.0
      %2034 = vmatprep.subr.mxu0 0.0
      %2035 = vmatpush1.msra.mxu0 0.0
      %2036 = vmatprep.subr.mxu0 0.0
      %2037 = vmatpush1.msra.mxu0 0.0
      %2038 = vmatprep.subr.mxu0 0.0
      %2039 = vmatpush1.msra.mxu0 0.0
      %2040 = vmatprep.subr.mxu0 0.0
      %2041 = vmatpush1.msra.mxu0 0.0
      %2042 = vmatprep.subr.mxu0 0.0
      %2043 = vmatpush1.msra.mxu0 0.0
      %2044 = vmatprep.subr.mxu0 0.0
      %2045 = vmatpush1.msra.mxu0 0.0
      %2046 = vmatprep.subr.mxu0 0.0
      %2047 = vmatpush1.msra.mxu0 0.0
      %2048 = vmatprep.subr.mxu0 0.0
      %2049 = vmatpush1.msra.mxu0 0.0
      %2050 = vmatprep.subr.mxu0 0.0
      %2051 = vmatpush1.msra.mxu0 0.0
      %2052 = vmatprep.subr.mxu0 0.0
      %2053 = vmatpush1.msra.mxu0 0.0
      %2054 = vmatprep.subr.mxu0 0.0
      %2055 = vmatpush1.msra.mxu0 0.0
      %2056 = vmatprep.subr.mxu0 0.0
      %2057 = vmatpush1.msra.mxu0 0.0
      %2058 = vmatprep.subr.mxu0 0.0
      %2059 = vmatpush1.msra.mxu0 0.0
      %2060 = vmatprep.subr.mxu0 0.0
      %2061 = vmatpush1.msra.mxu0 0.0
      %2062 = vmatprep.mubr.f32.mxu0 0.0
      %v2063 = vand.u32 %v463, 4294901760
      %2064 = vmatmul.mubr.f32.gmra.mrb[0].mxu0 %v2063
      %v2065 = vpop.f32.mrb[0].mxu0
      %v2066 = vadd.f32 %v1765, %v2065
      %v2067 = vpop.f32.mrb[0].mxu0
      %2068 = vmatprep.mubr.f32.mxu0 0.0
      %v2069 = vand.u32 %v464, 4294901760
      %2070 = vmatmul.mubr.f32.gmra.mrb[0].mxu0 %v2069
      %v2071 = vpop.f32.mrb[0].mxu0
      %v2072 = vadd.f32 %v1775, %v2071
      %v2073 = vpop.f32.mrb[0].mxu0
      %2074 = vmatprep.mubr.f32.mxu0 0.0
      %v2075 = vand.u32 %v465, 4294901760
      %2076 = vmatmul.mubr.f32.gmra.mrb[0].mxu0 %v2075
      %v2077 = vpop.f32.mrb[0].mxu0
      %v2078 = vadd.f32 %v1785, %v2077
      %v2079 = vpop.f32.mrb[0].mxu0
      %2080 = vmatprep.mubr.f32.mxu0 0.0
      %v2081 = vand.u32 %v466, 4294901760
      %2082 = vmatmul.mubr.f32.gmra.mrb[0].mxu0 %v2081
      %v2083 = vpop.f32.mrb[0].mxu0
      %v2084 = vadd.f32 %v1795, %v2083
      %v2085 = vpop.f32.mrb[0].mxu0
      %2086 = vmatprep.mubr.f32.mxu0 0.0
      %v2087 = vand.u32 %v467, 4294901760
      %2088 = vmatmul.mubr.f32.gmra.mrb[0].mxu0 %v2087
      %v2089 = vpop.f32.mrb[0].mxu0
      %v2090 = vadd.f32 %v1805, %v2089
      %v2091 = vpop.f32.mrb[0].mxu0
      %2092 = vmatprep.mubr.f32.mxu0 0.0
      %v2093 = vand.u32 %v468, 4294901760
      %2094 = vmatmul.mubr.f32.gmra.mrb[0].mxu0 %v2093
      %v2095 = vpop.f32.mrb[0].mxu0
      %v2096 = vadd.f32 %v1815, %v2095
      %v2097 = vpop.f32.mrb[0].mxu0
      %2098 = vmatprep.mubr.f32.mxu0 0.0
      %v2099 = vand.u32 %v469, 4294901760
      %2100 = vmatmul.mubr.f32.gmra.mrb[0].mxu0 %v2099
      %v2101 = vpop.f32.mrb[0].mxu0
      %v2102 = vadd.f32 %v1825, %v2101
      %v2103 = vpop.f32.mrb[0].mxu0
      %2104 = vmatprep.mubr.f32.mxu0 0.0
      %v2105 = vand.u32 %v470, 4294901760
      %2106 = vmatmul.mubr.f32.gmra.mrb[0].mxu0 %v2105
      %v2107 = vpop.f32.mrb[0].mxu0
      %v2108 = vadd.f32 %v1835, %v2107
      %v2109 = vpop.f32.mrb[0].mxu0
      %2110 = vmatprep.mubr.f32.mxu0 0.0
      %v2111 = vand.u32 %v471, 4294901760
      %2112 = vmatmul.mubr.f32.gmra.mrb[0].mxu0 %v2111
      %v2113 = vpop.f32.mrb[0].mxu0
      %v2114 = vadd.f32 %v1845, %v2113
      %v2115 = vpop.f32.mrb[0].mxu0
      %2116 = vmatprep.mubr.f32.mxu0 0.0
      %v2117 = vand.u32 %v472, 4294901760
      %2118 = vmatmul.mubr.f32.gmra.mrb[0].mxu0 %v2117
      %v2119 = vpop.f32.mrb[0].mxu0
      %v2120 = vadd.f32 %v1855, %v2119
      %v2121 = vpop.f32.mrb[0].mxu0
      %2122 = vmatprep.mubr.f32.mxu0 0.0
      %v2123 = vand.u32 %v473, 4294901760
      %2124 = vmatmul.mubr.f32.gmra.mrb[0].mxu0 %v2123
      %v2125 = vpop.f32.mrb[0].mxu0
      %v2126 = vadd.f32 %v1865, %v2125
      %v2127 = vpop.f32.mrb[0].mxu0
      %2128 = vmatprep.mubr.f32.mxu0 0.0
      %v2129 = vand.u32 %v474, 4294901760
      %2130 = vmatmul.mubr.f32.gmra.mrb[0].mxu0 %v2129
      %v2131 = vpop.f32.mrb[0].mxu0
      %v2132 = vadd.f32 %v1875, %v2131
      %v2133 = vpop.f32.mrb[0].mxu0
      %2134 = vmatprep.mubr.f32.mxu0 0.0
      %v2135 = vand.u32 %v475, 4294901760
      %2136 = vmatmul.mubr.f32.gmra.mrb[0].mxu0 %v2135
      %v2137 = vpop.f32.mrb[0].mxu0
      %v2138 = vadd.f32 %v1885, %v2137
      %v2139 = vpop.f32.mrb[0].mxu0
      %2140 = vmatprep.mubr.f32.mxu0 0.0
      %v2141 = vand.u32 %v476, 4294901760
      %2142 = vmatmul.mubr.f32.gmra.mrb[0].mxu0 %v2141
      %v2143 = vpop.f32.mrb[0].mxu0
      %v2144 = vadd.f32 %v1895, %v2143
      %v2145 = vpop.f32.mrb[0].mxu0
      %2146 = vmatprep.mubr.f32.mxu0 0.0
      %v2147 = vand.u32 %v477, 4294901760
      %2148 = vmatmul.mubr.f32.gmra.mrb[0].mxu0 %v2147
      %v2149 = vpop.f32.mrb[0].mxu0
      %v2150 = vadd.f32 %v1905, %v2149
      %v2151 = vpop.f32.mrb[0].mxu0
      %2152 = vmatprep.mubr.f32.mxu0 0.0
      %v2153 = vand.u32 %v478, 4294901760
      %2154 = vmatmul.mubr.f32.gmra.mrb[0].mxu0 %v2153
      %v2155 = vpop.f32.mrb[0].mxu0
      %v2156 = vadd.f32 %v1915, %v2155
      %v2157 = vpop.f32.mrb[0].mxu0
      %2158 = vdwg.mxu0
      %2159 = vmatprep.subr.mxu0 0.0
      %v2160 = vand.u32 %v1661, 4294901760
      %v2161 = vsub.f32 %v1661, %v2160
      %2162 = vmatpush1.msra.mxu0 %v2161
      %2163 = vmatprep.subr.mxu0 0.0
      %v2164 = vand.u32 %v1662, 4294901760
      %v2165 = vsub.f32 %v1662, %v2164
      %2166 = vmatpush1.msra.mxu0 %v2165
      %2167 = vmatprep.subr.mxu0 0.0
      %v2168 = vand.u32 %v1663, 4294901760
      %v2169 = vsub.f32 %v1663, %v2168
      %2170 = vmatpush1.msra.mxu0 %v2169
      %2171 = vmatprep.subr.mxu0 0.0
      %v2172 = vand.u32 %v1664, 4294901760
      %v2173 = vsub.f32 %v1664, %v2172
      %2174 = vmatpush1.msra.mxu0 %v2173
      %2175 = vmatprep.subr.mxu0 0.0
      %v2176 = vand.u32 %v1665, 4294901760
      %v2177 = vsub.f32 %v1665, %v2176
      %2178 = vmatpush1.msra.mxu0 %v2177
      %2179 = vmatprep.subr.mxu0 0.0
      %v2180 = vand.u32 %v1666, 4294901760
      %v2181 = vsub.f32 %v1666, %v2180
      %2182 = vmatpush1.msra.mxu0 %v2181
      %2183 = vmatprep.subr.mxu0 0.0
      %v2184 = vand.u32 %v1667, 4294901760
      %v2185 = vsub.f32 %v1667, %v2184
      %2186 = vmatpush1.msra.mxu0 %v2185
      %2187 = vmatprep.subr.mxu0 0.0
      %v2188 = vand.u32 %v1668, 4294901760
      %v2189 = vsub.f32 %v1668, %v2188
      %2190 = vmatpush1.msra.mxu0 %v2189
      %2191 = vmatprep.subr.mxu0 0.0
      %v2192 = vand.u32 %v1669, 4294901760
      %v2193 = vsub.f32 %v1669, %v2192
      %2194 = vmatpush1.msra.mxu0 %v2193
      %2195 = vmatprep.subr.mxu0 0.0
      %v2196 = vand.u32 %v1670, 4294901760
      %v2197 = vsub.f32 %v1670, %v2196
      %2198 = vmatpush1.msra.mxu0 %v2197
      %2199 = vmatprep.subr.mxu0 0.0
      %v2200 = vand.u32 %v1671, 4294901760
      %v2201 = vsub.f32 %v1671, %v2200
      %2202 = vmatpush1.msra.mxu0 %v2201
      %2203 = vmatprep.subr.mxu0 0.0
      %v2204 = vand.u32 %v1672, 4294901760
      %v2205 = vsub.f32 %v1672, %v2204
      %2206 = vmatpush1.msra.mxu0 %v2205
      %2207 = vmatprep.subr.mxu0 0.0
      %v2208 = vand.u32 %v1673, 4294901760
      %v2209 = vsub.f32 %v1673, %v2208
      %2210 = vmatpush1.msra.mxu0 %v2209
      %2211 = vmatprep.subr.mxu0 0.0
      %v2212 = vand.u32 %v1674, 4294901760
      %v2213 = vsub.f32 %v1674, %v2212
      %2214 = vmatpush1.msra.mxu0 %v2213
      %2215 = vmatprep.subr.mxu0 0.0
      %v2216 = vand.u32 %v1675, 4294901760
      %v2217 = vsub.f32 %v1675, %v2216
      %2218 = vmatpush1.msra.mxu0 %v2217
      %2219 = vmatprep.subr.mxu0 0.0
      %v2220 = vand.u32 %v1676, 4294901760
      %v2221 = vsub.f32 %v1676, %v2220
      %2222 = vmatpush1.msra.mxu0 %v2221
      %2223 = vmatprep.subr.mxu0 0.0
      %2224 = vmatpush1.msra.mxu0 0.0
      %2225 = vmatprep.subr.mxu0 0.0
      %2226 = vmatpush1.msra.mxu0 0.0
      %2227 = vmatprep.subr.mxu0 0.0
      %2228 = vmatpush1.msra.mxu0 0.0
      %2229 = vmatprep.subr.mxu0 0.0
      %2230 = vmatpush1.msra.mxu0 0.0
      %2231 = vmatprep.subr.mxu0 0.0
      %2232 = vmatpush1.msra.mxu0 0.0
      %2233 = vmatprep.subr.mxu0 0.0
      %2234 = vmatpush1.msra.mxu0 0.0
      %2235 = vmatprep.subr.mxu0 0.0
      %2236 = vmatpush1.msra.mxu0 0.0
      %2237 = vmatprep.subr.mxu0 0.0
      %2238 = vmatpush1.msra.mxu0 0.0
      %2239 = vmatprep.subr.mxu0 0.0
      %2240 = vmatpush1.msra.mxu0 0.0
      %2241 = vmatprep.subr.mxu0 0.0
      %2242 = vmatpush1.msra.mxu0 0.0
      %2243 = vmatprep.subr.mxu0 0.0
      %2244 = vmatpush1.msra.mxu0 0.0
      %2245 = vmatprep.subr.mxu0 0.0
      %2246 = vmatpush1.msra.mxu0 0.0
      %2247 = vmatprep.subr.mxu0 0.0
      %2248 = vmatpush1.msra.mxu0 0.0
      %2249 = vmatprep.subr.mxu0 0.0
      %2250 = vmatpush1.msra.mxu0 0.0
      %2251 = vmatprep.subr.mxu0 0.0
      %2252 = vmatpush1.msra.mxu0 0.0
      %2253 = vmatprep.subr.mxu0 0.0
      %2254 = vmatpush1.msra.mxu0 0.0
      %2255 = vmatprep.mubr.f32.mxu0 0.0
      %v2256 = vand.u32 %v463, 4294901760
      %v2257 = vsub.f32 %v463, %v2256
      %2258 = vmatmul.mubr.f32.gmra.mrb[0].mxu0 %v2257
      %v2259 = vpop.f32.mrb[0].mxu0
      %v2260 = vadd.f32 %v2066, %v2259
      %v2261 = vpop.f32.mrb[0].mxu0
      %2262 = vmatprep.mubr.f32.mxu0 0.0
      %v2263 = vand.u32 %v464, 4294901760
      %v2264 = vsub.f32 %v464, %v2263
      %2265 = vmatmul.mubr.f32.gmra.mrb[0].mxu0 %v2264
      %v2266 = vpop.f32.mrb[0].mxu0
      %v2267 = vadd.f32 %v2072, %v2266
      %v2268 = vpop.f32.mrb[0].mxu0
      %2269 = vmatprep.mubr.f32.mxu0 0.0
      %v2270 = vand.u32 %v465, 4294901760
      %v2271 = vsub.f32 %v465, %v2270
      %2272 = vmatmul.mubr.f32.gmra.mrb[0].mxu0 %v2271
      %v2273 = vpop.f32.mrb[0].mxu0
      %v2274 = vadd.f32 %v2078, %v2273
      %v2275 = vpop.f32.mrb[0].mxu0
      %2276 = vmatprep.mubr.f32.mxu0 0.0
      %v2277 = vand.u32 %v466, 4294901760
      %v2278 = vsub.f32 %v466, %v2277
      %2279 = vmatmul.mubr.f32.gmra.mrb[0].mxu0 %v2278
      %v2280 = vpop.f32.mrb[0].mxu0
      %v2281 = vadd.f32 %v2084, %v2280
      %v2282 = vpop.f32.mrb[0].mxu0
      %2283 = vmatprep.mubr.f32.mxu0 0.0
      %v2284 = vand.u32 %v467, 4294901760
      %v2285 = vsub.f32 %v467, %v2284
      %2286 = vmatmul.mubr.f32.gmra.mrb[0].mxu0 %v2285
      %v2287 = vpop.f32.mrb[0].mxu0
      %v2288 = vadd.f32 %v2090, %v2287
      %v2289 = vpop.f32.mrb[0].mxu0
      %2290 = vmatprep.mubr.f32.mxu0 0.0
      %v2291 = vand.u32 %v468, 4294901760
      %v2292 = vsub.f32 %v468, %v2291
      %2293 = vmatmul.mubr.f32.gmra.mrb[0].mxu0 %v2292
      %v2294 = vpop.f32.mrb[0].mxu0
      %v2295 = vadd.f32 %v2096, %v2294
      %v2296 = vpop.f32.mrb[0].mxu0
      %2297 = vmatprep.mubr.f32.mxu0 0.0
      %v2298 = vand.u32 %v469, 4294901760
      %v2299 = vsub.f32 %v469, %v2298
      %2300 = vmatmul.mubr.f32.gmra.mrb[0].mxu0 %v2299
      %v2301 = vpop.f32.mrb[0].mxu0
      %v2302 = vadd.f32 %v2102, %v2301
      %v2303 = vpop.f32.mrb[0].mxu0
      %2304 = vmatprep.mubr.f32.mxu0 0.0
      %v2305 = vand.u32 %v470, 4294901760
      %v2306 = vsub.f32 %v470, %v2305
      %2307 = vmatmul.mubr.f32.gmra.mrb[0].mxu0 %v2306
      %v2308 = vpop.f32.mrb[0].mxu0
      %v2309 = vadd.f32 %v2108, %v2308
      %v2310 = vpop.f32.mrb[0].mxu0
      %2311 = vmatprep.mubr.f32.mxu0 0.0
      %v2312 = vand.u32 %v471, 4294901760
      %v2313 = vsub.f32 %v471, %v2312
      %2314 = vmatmul.mubr.f32.gmra.mrb[0].mxu0 %v2313
      %v2315 = vpop.f32.mrb[0].mxu0
      %v2316 = vadd.f32 %v2114, %v2315
      %v2317 = vpop.f32.mrb[0].mxu0
      %2318 = vmatprep.mubr.f32.mxu0 0.0
      %v2319 = vand.u32 %v472, 4294901760
      %v2320 = vsub.f32 %v472, %v2319
      %2321 = vmatmul.mubr.f32.gmra.mrb[0].mxu0 %v2320
      %v2322 = vpop.f32.mrb[0].mxu0
      %v2323 = vadd.f32 %v2120, %v2322
      %v2324 = vpop.f32.mrb[0].mxu0
      %2325 = vmatprep.mubr.f32.mxu0 0.0
      %v2326 = vand.u32 %v473, 4294901760
      %v2327 = vsub.f32 %v473, %v2326
      %2328 = vmatmul.mubr.f32.gmra.mrb[0].mxu0 %v2327
      %v2329 = vpop.f32.mrb[0].mxu0
      %v2330 = vadd.f32 %v2126, %v2329
      %v2331 = vpop.f32.mrb[0].mxu0
      %2332 = vmatprep.mubr.f32.mxu0 0.0
      %v2333 = vand.u32 %v474, 4294901760
      %v2334 = vsub.f32 %v474, %v2333
      %2335 = vmatmul.mubr.f32.gmra.mrb[0].mxu0 %v2334
      %v2336 = vpop.f32.mrb[0].mxu0
      %v2337 = vadd.f32 %v2132, %v2336
      %v2338 = vpop.f32.mrb[0].mxu0
      %2339 = vmatprep.mubr.f32.mxu0 0.0
      %v2340 = vand.u32 %v475, 4294901760
      %v2341 = vsub.f32 %v475, %v2340
      %2342 = vmatmul.mubr.f32.gmra.mrb[0].mxu0 %v2341
      %v2343 = vpop.f32.mrb[0].mxu0
      %v2344 = vadd.f32 %v2138, %v2343
      %v2345 = vpop.f32.mrb[0].mxu0
      %2346 = vmatprep.mubr.f32.mxu0 0.0
      %v2347 = vand.u32 %v476, 4294901760
      %v2348 = vsub.f32 %v476, %v2347
      %2349 = vmatmul.mubr.f32.gmra.mrb[0].mxu0 %v2348
      %v2350 = vpop.f32.mrb[0].mxu0
      %v2351 = vadd.f32 %v2144, %v2350
      %v2352 = vpop.f32.mrb[0].mxu0
      %2353 = vmatprep.mubr.f32.mxu0 0.0
      %v2354 = vand.u32 %v477, 4294901760
      %v2355 = vsub.f32 %v477, %v2354
      %2356 = vmatmul.mubr.f32.gmra.mrb[0].mxu0 %v2355
      %v2357 = vpop.f32.mrb[0].mxu0
      %v2358 = vadd.f32 %v2150, %v2357
      %v2359 = vpop.f32.mrb[0].mxu0
      %2360 = vmatprep.mubr.f32.mxu0 0.0
      %v2361 = vand.u32 %v478, 4294901760
      %v2362 = vsub.f32 %v478, %v2361
      %2363 = vmatmul.mubr.f32.gmra.mrb[0].mxu0 %v2362
      %v2364 = vpop.f32.mrb[0].mxu0
      %v2365 = vadd.f32 %v2156, %v2364
      %v2366 = vpop.f32.mrb[0].mxu0
      %2367 = vdwg.mxu0
      %2368 = vmatprep.subr.mxu0 0.0
      %v2369 = vand.u32 %v1661, 4294901760
      %2370 = vmatpush1.msra.mxu0 %v2369
      %2371 = vmatprep.subr.mxu0 0.0
      %v2372 = vand.u32 %v1662, 4294901760
      %2373 = vmatpush1.msra.mxu0 %v2372
      %2374 = vmatprep.subr.mxu0 0.0
      %v2375 = vand.u32 %v1663, 4294901760
      %2376 = vmatpush1.msra.mxu0 %v2375
      %2377 = vmatprep.subr.mxu0 0.0
      %v2378 = vand.u32 %v1664, 4294901760
      %2379 = vmatpush1.msra.mxu0 %v2378
      %2380 = vmatprep.subr.mxu0 0.0
      %v2381 = vand.u32 %v1665, 4294901760
      %2382 = vmatpush1.msra.mxu0 %v2381
      %2383 = vmatprep.subr.mxu0 0.0
      %v2384 = vand.u32 %v1666, 4294901760
      %2385 = vmatpush1.msra.mxu0 %v2384
      %2386 = vmatprep.subr.mxu0 0.0
      %v2387 = vand.u32 %v1667, 4294901760
      %2388 = vmatpush1.msra.mxu0 %v2387
      %2389 = vmatprep.subr.mxu0 0.0
      %v2390 = vand.u32 %v1668, 4294901760
      %2391 = vmatpush1.msra.mxu0 %v2390
      %2392 = vmatprep.subr.mxu0 0.0
      %v2393 = vand.u32 %v1669, 4294901760
      %2394 = vmatpush1.msra.mxu0 %v2393
      %2395 = vmatprep.subr.mxu0 0.0
      %v2396 = vand.u32 %v1670, 4294901760
      %2397 = vmatpush1.msra.mxu0 %v2396
      %2398 = vmatprep.subr.mxu0 0.0
      %v2399 = vand.u32 %v1671, 4294901760
      %2400 = vmatpush1.msra.mxu0 %v2399
      %2401 = vmatprep.subr.mxu0 0.0
      %v2402 = vand.u32 %v1672, 4294901760
      %2403 = vmatpush1.msra.mxu0 %v2402
      %2404 = vmatprep.subr.mxu0 0.0
      %v2405 = vand.u32 %v1673, 4294901760
      %2406 = vmatpush1.msra.mxu0 %v2405
      %2407 = vmatprep.subr.mxu0 0.0
      %v2408 = vand.u32 %v1674, 4294901760
      %2409 = vmatpush1.msra.mxu0 %v2408
      %2410 = vmatprep.subr.mxu0 0.0
      %v2411 = vand.u32 %v1675, 4294901760
      %2412 = vmatpush1.msra.mxu0 %v2411
      %2413 = vmatprep.subr.mxu0 0.0
      %v2414 = vand.u32 %v1676, 4294901760
      %2415 = vmatpush1.msra.mxu0 %v2414
      %2416 = vmatprep.subr.mxu0 0.0
      %2417 = vmatpush1.msra.mxu0 0.0
      %2418 = vmatprep.subr.mxu0 0.0
      %2419 = vmatpush1.msra.mxu0 0.0
      %2420 = vmatprep.subr.mxu0 0.0
      %2421 = vmatpush1.msra.mxu0 0.0
      %2422 = vmatprep.subr.mxu0 0.0
      %2423 = vmatpush1.msra.mxu0 0.0
      %2424 = vmatprep.subr.mxu0 0.0
      %2425 = vmatpush1.msra.mxu0 0.0
      %2426 = vmatprep.subr.mxu0 0.0
      %2427 = vmatpush1.msra.mxu0 0.0
      %2428 = vmatprep.subr.mxu0 0.0
      %2429 = vmatpush1.msra.mxu0 0.0
      %2430 = vmatprep.subr.mxu0 0.0
      %2431 = vmatpush1.msra.mxu0 0.0
      %2432 = vmatprep.subr.mxu0 0.0
      %2433 = vmatpush1.msra.mxu0 0.0
      %2434 = vmatprep.subr.mxu0 0.0
      %2435 = vmatpush1.msra.mxu0 0.0
      %2436 = vmatprep.subr.mxu0 0.0
      %2437 = vmatpush1.msra.mxu0 0.0
      %2438 = vmatprep.subr.mxu0 0.0
      %2439 = vmatpush1.msra.mxu0 0.0
      %2440 = vmatprep.subr.mxu0 0.0
      %2441 = vmatpush1.msra.mxu0 0.0
      %2442 = vmatprep.subr.mxu0 0.0
      %2443 = vmatpush1.msra.mxu0 0.0
      %2444 = vmatprep.subr.mxu0 0.0
      %2445 = vmatpush1.msra.mxu0 0.0
      %2446 = vmatprep.subr.mxu0 0.0
      %2447 = vmatpush1.msra.mxu0 0.0
      %2448 = vmatprep.mubr.f32.mxu0 0.0
      %v2449 = vand.u32 %v463, 4294901760
      %v2450 = vsub.f32 %v463, %v2449
      %v2451 = vand.u32 %v2450, 4294901760
      %2452 = vmatmul.mubr.f32.gmra.mrb[0].mxu0 %v2451
      %v2453 = vpop.f32.mrb[0].mxu0
      %v2454 = vadd.f32 %v2260, %v2453
      %v2455 = vpop.f32.mrb[0].mxu0
      %2456 = vmatprep.mubr.f32.mxu0 0.0
      %v2457 = vand.u32 %v464, 4294901760
      %v2458 = vsub.f32 %v464, %v2457
      %v2459 = vand.u32 %v2458, 4294901760
      %2460 = vmatmul.mubr.f32.gmra.mrb[0].mxu0 %v2459
      %v2461 = vpop.f32.mrb[0].mxu0
      %v2462 = vadd.f32 %v2267, %v2461
      %v2463 = vpop.f32.mrb[0].mxu0
      %2464 = vmatprep.mubr.f32.mxu0 0.0
      %v2465 = vand.u32 %v465, 4294901760
      %v2466 = vsub.f32 %v465, %v2465
      %v2467 = vand.u32 %v2466, 4294901760
      %2468 = vmatmul.mubr.f32.gmra.mrb[0].mxu0 %v2467
      %v2469 = vpop.f32.mrb[0].mxu0
      %v2470 = vadd.f32 %v2274, %v2469
      %v2471 = vpop.f32.mrb[0].mxu0
      %2472 = vmatprep.mubr.f32.mxu0 0.0
      %v2473 = vand.u32 %v466, 4294901760
      %v2474 = vsub.f32 %v466, %v2473
      %v2475 = vand.u32 %v2474, 4294901760
      %2476 = vmatmul.mubr.f32.gmra.mrb[0].mxu0 %v2475
      %v2477 = vpop.f32.mrb[0].mxu0
      %v2478 = vadd.f32 %v2281, %v2477
      %v2479 = vpop.f32.mrb[0].mxu0
      %2480 = vmatprep.mubr.f32.mxu0 0.0
      %v2481 = vand.u32 %v467, 4294901760
      %v2482 = vsub.f32 %v467, %v2481
      %v2483 = vand.u32 %v2482, 4294901760
      %2484 = vmatmul.mubr.f32.gmra.mrb[0].mxu0 %v2483
      %v2485 = vpop.f32.mrb[0].mxu0
      %v2486 = vadd.f32 %v2288, %v2485
      %v2487 = vpop.f32.mrb[0].mxu0
      %2488 = vmatprep.mubr.f32.mxu0 0.0
      %v2489 = vand.u32 %v468, 4294901760
      %v2490 = vsub.f32 %v468, %v2489
      %v2491 = vand.u32 %v2490, 4294901760
      %2492 = vmatmul.mubr.f32.gmra.mrb[0].mxu0 %v2491
      %v2493 = vpop.f32.mrb[0].mxu0
      %v2494 = vadd.f32 %v2295, %v2493
      %v2495 = vpop.f32.mrb[0].mxu0
      %2496 = vmatprep.mubr.f32.mxu0 0.0
      %v2497 = vand.u32 %v469, 4294901760
      %v2498 = vsub.f32 %v469, %v2497
      %v2499 = vand.u32 %v2498, 4294901760
      %2500 = vmatmul.mubr.f32.gmra.mrb[0].mxu0 %v2499
      %v2501 = vpop.f32.mrb[0].mxu0
      %v2502 = vadd.f32 %v2302, %v2501
      %v2503 = vpop.f32.mrb[0].mxu0
      %2504 = vmatprep.mubr.f32.mxu0 0.0
      %v2505 = vand.u32 %v470, 4294901760
      %v2506 = vsub.f32 %v470, %v2505
      %v2507 = vand.u32 %v2506, 4294901760
      %2508 = vmatmul.mubr.f32.gmra.mrb[0].mxu0 %v2507
      %v2509 = vpop.f32.mrb[0].mxu0
      %v2510 = vadd.f32 %v2309, %v2509
      %v2511 = vpop.f32.mrb[0].mxu0
      %2512 = vmatprep.mubr.f32.mxu0 0.0
      %v2513 = vand.u32 %v471, 4294901760
      %v2514 = vsub.f32 %v471, %v2513
      %v2515 = vand.u32 %v2514, 4294901760
      %2516 = vmatmul.mubr.f32.gmra.mrb[0].mxu0 %v2515
      %v2517 = vpop.f32.mrb[0].mxu0
      %v2518 = vadd.f32 %v2316, %v2517
      %v2519 = vpop.f32.mrb[0].mxu0
      %2520 = vmatprep.mubr.f32.mxu0 0.0
      %v2521 = vand.u32 %v472, 4294901760
      %v2522 = vsub.f32 %v472, %v2521
      %v2523 = vand.u32 %v2522, 4294901760
      %2524 = vmatmul.mubr.f32.gmra.mrb[0].mxu0 %v2523
      %v2525 = vpop.f32.mrb[0].mxu0
      %v2526 = vadd.f32 %v2323, %v2525
      %v2527 = vpop.f32.mrb[0].mxu0
      %2528 = vmatprep.mubr.f32.mxu0 0.0
      %v2529 = vand.u32 %v473, 4294901760
      %v2530 = vsub.f32 %v473, %v2529
      %v2531 = vand.u32 %v2530, 4294901760
      %2532 = vmatmul.mubr.f32.gmra.mrb[0].mxu0 %v2531
      %v2533 = vpop.f32.mrb[0].mxu0
      %v2534 = vadd.f32 %v2330, %v2533
      %v2535 = vpop.f32.mrb[0].mxu0
      %2536 = vmatprep.mubr.f32.mxu0 0.0
      %v2537 = vand.u32 %v474, 4294901760
      %v2538 = vsub.f32 %v474, %v2537
      %v2539 = vand.u32 %v2538, 4294901760
      %2540 = vmatmul.mubr.f32.gmra.mrb[0].mxu0 %v2539
      %v2541 = vpop.f32.mrb[0].mxu0
      %v2542 = vadd.f32 %v2337, %v2541
      %v2543 = vpop.f32.mrb[0].mxu0
      %2544 = vmatprep.mubr.f32.mxu0 0.0
      %v2545 = vand.u32 %v475, 4294901760
      %v2546 = vsub.f32 %v475, %v2545
      %v2547 = vand.u32 %v2546, 4294901760
      %2548 = vmatmul.mubr.f32.gmra.mrb[0].mxu0 %v2547
      %v2549 = vpop.f32.mrb[0].mxu0
      %v2550 = vadd.f32 %v2344, %v2549
      %v2551 = vpop.f32.mrb[0].mxu0
      %2552 = vmatprep.mubr.f32.mxu0 0.0
      %v2553 = vand.u32 %v476, 4294901760
      %v2554 = vsub.f32 %v476, %v2553
      %v2555 = vand.u32 %v2554, 4294901760
      %2556 = vmatmul.mubr.f32.gmra.mrb[0].mxu0 %v2555
      %v2557 = vpop.f32.mrb[0].mxu0
      %v2558 = vadd.f32 %v2351, %v2557
      %v2559 = vpop.f32.mrb[0].mxu0
      %2560 = vmatprep.mubr.f32.mxu0 0.0
      %v2561 = vand.u32 %v477, 4294901760
      %v2562 = vsub.f32 %v477, %v2561
      %v2563 = vand.u32 %v2562, 4294901760
      %2564 = vmatmul.mubr.f32.gmra.mrb[0].mxu0 %v2563
      %v2565 = vpop.f32.mrb[0].mxu0
      %v2566 = vadd.f32 %v2358, %v2565
      %v2567 = vpop.f32.mrb[0].mxu0
      %2568 = vmatprep.mubr.f32.mxu0 0.0
      %v2569 = vand.u32 %v478, 4294901760
      %v2570 = vsub.f32 %v478, %v2569
      %v2571 = vand.u32 %v2570, 4294901760
      %2572 = vmatmul.mubr.f32.gmra.mrb[0].mxu0 %v2571
      %v2573 = vpop.f32.mrb[0].mxu0
      %v2574 = vadd.f32 %v2365, %v2573
      %v2575 = vpop.f32.mrb[0].mxu0
      %2576 = vdwg.mxu0
      %2577 = vmatprep.subr.mxu0 0.0
      %v2578 = vand.u32 %v1661, 4294901760
      %v2579 = vsub.f32 %v1661, %v2578
      %v2580 = vand.u32 %v2579, 4294901760
      %2581 = vmatpush1.msra.mxu0 %v2580
      %2582 = vmatprep.subr.mxu0 0.0
      %v2583 = vand.u32 %v1662, 4294901760
      %v2584 = vsub.f32 %v1662, %v2583
      %v2585 = vand.u32 %v2584, 4294901760
      %2586 = vmatpush1.msra.mxu0 %v2585
      %2587 = vmatprep.subr.mxu0 0.0
      %v2588 = vand.u32 %v1663, 4294901760
      %v2589 = vsub.f32 %v1663, %v2588
      %v2590 = vand.u32 %v2589, 4294901760
      %2591 = vmatpush1.msra.mxu0 %v2590
      %2592 = vmatprep.subr.mxu0 0.0
      %v2593 = vand.u32 %v1664, 4294901760
      %v2594 = vsub.f32 %v1664, %v2593
      %v2595 = vand.u32 %v2594, 4294901760
      %2596 = vmatpush1.msra.mxu0 %v2595
      %2597 = vmatprep.subr.mxu0 0.0
      %v2598 = vand.u32 %v1665, 4294901760
      %v2599 = vsub.f32 %v1665, %v2598
      %v2600 = vand.u32 %v2599, 4294901760
      %2601 = vmatpush1.msra.mxu0 %v2600
      %2602 = vmatprep.subr.mxu0 0.0
      %v2603 = vand.u32 %v1666, 4294901760
      %v2604 = vsub.f32 %v1666, %v2603
      %v2605 = vand.u32 %v2604, 4294901760
      %2606 = vmatpush1.msra.mxu0 %v2605
      %2607 = vmatprep.subr.mxu0 0.0
      %v2608 = vand.u32 %v1667, 4294901760
      %v2609 = vsub.f32 %v1667, %v2608
      %v2610 = vand.u32 %v2609, 4294901760
      %2611 = vmatpush1.msra.mxu0 %v2610
      %2612 = vmatprep.subr.mxu0 0.0
      %v2613 = vand.u32 %v1668, 4294901760
      %v2614 = vsub.f32 %v1668, %v2613
      %v2615 = vand.u32 %v2614, 4294901760
      %2616 = vmatpush1.msra.mxu0 %v2615
      %2617 = vmatprep.subr.mxu0 0.0
      %v2618 = vand.u32 %v1669, 4294901760
      %v2619 = vsub.f32 %v1669, %v2618
      %v2620 = vand.u32 %v2619, 4294901760
      %2621 = vmatpush1.msra.mxu0 %v2620
      %2622 = vmatprep.subr.mxu0 0.0
      %v2623 = vand.u32 %v1670, 4294901760
      %v2624 = vsub.f32 %v1670, %v2623
      %v2625 = vand.u32 %v2624, 4294901760
      %2626 = vmatpush1.msra.mxu0 %v2625
      %2627 = vmatprep.subr.mxu0 0.0
      %v2628 = vand.u32 %v1671, 4294901760
      %v2629 = vsub.f32 %v1671, %v2628
      %v2630 = vand.u32 %v2629, 4294901760
      %2631 = vmatpush1.msra.mxu0 %v2630
      %2632 = vmatprep.subr.mxu0 0.0
      %v2633 = vand.u32 %v1672, 4294901760
      %v2634 = vsub.f32 %v1672, %v2633
      %v2635 = vand.u32 %v2634, 4294901760
      %2636 = vmatpush1.msra.mxu0 %v2635
      %2637 = vmatprep.subr.mxu0 0.0
      %v2638 = vand.u32 %v1673, 4294901760
      %v2639 = vsub.f32 %v1673, %v2638
      %v2640 = vand.u32 %v2639, 4294901760
      %2641 = vmatpush1.msra.mxu0 %v2640
      %2642 = vmatprep.subr.mxu0 0.0
      %v2643 = vand.u32 %v1674, 4294901760
      %v2644 = vsub.f32 %v1674, %v2643
      %v2645 = vand.u32 %v2644, 4294901760
      %2646 = vmatpush1.msra.mxu0 %v2645
      %2647 = vmatprep.subr.mxu0 0.0
      %v2648 = vand.u32 %v1675, 4294901760
      %v2649 = vsub.f32 %v1675, %v2648
      %v2650 = vand.u32 %v2649, 4294901760
      %2651 = vmatpush1.msra.mxu0 %v2650
      %2652 = vmatprep.subr.mxu0 0.0
      %v2653 = vand.u32 %v1676, 4294901760
      %v2654 = vsub.f32 %v1676, %v2653
      %v2655 = vand.u32 %v2654, 4294901760
      %2656 = vmatpush1.msra.mxu0 %v2655
      %2657 = vmatprep.subr.mxu0 0.0
      %2658 = vmatpush1.msra.mxu0 0.0
      %2659 = vmatprep.subr.mxu0 0.0
      %2660 = vmatpush1.msra.mxu0 0.0
      %2661 = vmatprep.subr.mxu0 0.0
      %2662 = vmatpush1.msra.mxu0 0.0
      %2663 = vmatprep.subr.mxu0 0.0
      %2664 = vmatpush1.msra.mxu0 0.0
      %2665 = vmatprep.subr.mxu0 0.0
      %2666 = vmatpush1.msra.mxu0 0.0
      %2667 = vmatprep.subr.mxu0 0.0
      %2668 = vmatpush1.msra.mxu0 0.0
      %2669 = vmatprep.subr.mxu0 0.0
      %2670 = vmatpush1.msra.mxu0 0.0
      %2671 = vmatprep.subr.mxu0 0.0
      %2672 = vmatpush1.msra.mxu0 0.0
      %2673 = vmatprep.subr.mxu0 0.0
      %2674 = vmatpush1.msra.mxu0 0.0
      %2675 = vmatprep.subr.mxu0 0.0
      %2676 = vmatpush1.msra.mxu0 0.0
      %2677 = vmatprep.subr.mxu0 0.0
      %2678 = vmatpush1.msra.mxu0 0.0
      %2679 = vmatprep.subr.mxu0 0.0
      %2680 = vmatpush1.msra.mxu0 0.0
      %2681 = vmatprep.subr.mxu0 0.0
      %2682 = vmatpush1.msra.mxu0 0.0
      %2683 = vmatprep.subr.mxu0 0.0
      %2684 = vmatpush1.msra.mxu0 0.0
      %2685 = vmatprep.subr.mxu0 0.0
      %2686 = vmatpush1.msra.mxu0 0.0
      %2687 = vmatprep.subr.mxu0 0.0
      %2688 = vmatpush1.msra.mxu0 0.0
      %2689 = vmatprep.mubr.f32.mxu0 0.0
      %v2690 = vand.u32 %v463, 4294901760
      %2691 = vmatmul.mubr.f32.gmra.mrb[0].mxu0 %v2690
      %v2692 = vpop.f32.mrb[0].mxu0
      %v2693 = vadd.f32 %v2454, %v2692
      %v2694 = vpop.f32.mrb[0].mxu0
      %2695 = vmatprep.mubr.f32.mxu0 0.0
      %v2696 = vand.u32 %v464, 4294901760
      %2697 = vmatmul.mubr.f32.gmra.mrb[0].mxu0 %v2696
      %v2698 = vpop.f32.mrb[0].mxu0
      %v2699 = vadd.f32 %v2462, %v2698
      %v2700 = vpop.f32.mrb[0].mxu0
      %2701 = vmatprep.mubr.f32.mxu0 0.0
      %v2702 = vand.u32 %v465, 4294901760
      %2703 = vmatmul.mubr.f32.gmra.mrb[0].mxu0 %v2702
      %v2704 = vpop.f32.mrb[0].mxu0
      %v2705 = vadd.f32 %v2470, %v2704
      %v2706 = vpop.f32.mrb[0].mxu0
      %2707 = vmatprep.mubr.f32.mxu0 0.0
      %v2708 = vand.u32 %v466, 4294901760
      %2709 = vmatmul.mubr.f32.gmra.mrb[0].mxu0 %v2708
      %v2710 = vpop.f32.mrb[0].mxu0
      %v2711 = vadd.f32 %v2478, %v2710
      %v2712 = vpop.f32.mrb[0].mxu0
      %2713 = vmatprep.mubr.f32.mxu0 0.0
      %v2714 = vand.u32 %v467, 4294901760
      %2715 = vmatmul.mubr.f32.gmra.mrb[0].mxu0 %v2714
      %v2716 = vpop.f32.mrb[0].mxu0
      %v2717 = vadd.f32 %v2486, %v2716
      %v2718 = vpop.f32.mrb[0].mxu0
      %2719 = vmatprep.mubr.f32.mxu0 0.0
      %v2720 = vand.u32 %v468, 4294901760
      %2721 = vmatmul.mubr.f32.gmra.mrb[0].mxu0 %v2720
      %v2722 = vpop.f32.mrb[0].mxu0
      %v2723 = vadd.f32 %v2494, %v2722
      %v2724 = vpop.f32.mrb[0].mxu0
      %2725 = vmatprep.mubr.f32.mxu0 0.0
      %v2726 = vand.u32 %v469, 4294901760
      %2727 = vmatmul.mubr.f32.gmra.mrb[0].mxu0 %v2726
      %v2728 = vpop.f32.mrb[0].mxu0
      %v2729 = vadd.f32 %v2502, %v2728
      %v2730 = vpop.f32.mrb[0].mxu0
      %2731 = vmatprep.mubr.f32.mxu0 0.0
      %v2732 = vand.u32 %v470, 4294901760
      %2733 = vmatmul.mubr.f32.gmra.mrb[0].mxu0 %v2732
      %v2734 = vpop.f32.mrb[0].mxu0
      %v2735 = vadd.f32 %v2510, %v2734
      %v2736 = vpop.f32.mrb[0].mxu0
      %2737 = vmatprep.mubr.f32.mxu0 0.0
      %v2738 = vand.u32 %v471, 4294901760
      %2739 = vmatmul.mubr.f32.gmra.mrb[0].mxu0 %v2738
      %v2740 = vpop.f32.mrb[0].mxu0
      %v2741 = vadd.f32 %v2518, %v2740
      %v2742 = vpop.f32.mrb[0].mxu0
      %2743 = vmatprep.mubr.f32.mxu0 0.0
      %v2744 = vand.u32 %v472, 4294901760
      %2745 = vmatmul.mubr.f32.gmra.mrb[0].mxu0 %v2744
      %v2746 = vpop.f32.mrb[0].mxu0
      %v2747 = vadd.f32 %v2526, %v2746
      %v2748 = vpop.f32.mrb[0].mxu0
      %2749 = vmatprep.mubr.f32.mxu0 0.0
      %v2750 = vand.u32 %v473, 4294901760
      %2751 = vmatmul.mubr.f32.gmra.mrb[0].mxu0 %v2750
      %v2752 = vpop.f32.mrb[0].mxu0
      %v2753 = vadd.f32 %v2534, %v2752
      %v2754 = vpop.f32.mrb[0].mxu0
      %2755 = vmatprep.mubr.f32.mxu0 0.0
      %v2756 = vand.u32 %v474, 4294901760
      %2757 = vmatmul.mubr.f32.gmra.mrb[0].mxu0 %v2756
      %v2758 = vpop.f32.mrb[0].mxu0
      %v2759 = vadd.f32 %v2542, %v2758
      %v2760 = vpop.f32.mrb[0].mxu0
      %2761 = vmatprep.mubr.f32.mxu0 0.0
      %v2762 = vand.u32 %v475, 4294901760
      %2763 = vmatmul.mubr.f32.gmra.mrb[0].mxu0 %v2762
      %v2764 = vpop.f32.mrb[0].mxu0
      %v2765 = vadd.f32 %v2550, %v2764
      %v2766 = vpop.f32.mrb[0].mxu0
      %2767 = vmatprep.mubr.f32.mxu0 0.0
      %v2768 = vand.u32 %v476, 4294901760
      %2769 = vmatmul.mubr.f32.gmra.mrb[0].mxu0 %v2768
      %v2770 = vpop.f32.mrb[0].mxu0
      %v2771 = vadd.f32 %v2558, %v2770
      %v2772 = vpop.f32.mrb[0].mxu0
      %2773 = vmatprep.mubr.f32.mxu0 0.0
      %v2774 = vand.u32 %v477, 4294901760
      %2775 = vmatmul.mubr.f32.gmra.mrb[0].mxu0 %v2774
      %v2776 = vpop.f32.mrb[0].mxu0
      %v2777 = vadd.f32 %v2566, %v2776
      %v2778 = vpop.f32.mrb[0].mxu0
      %2779 = vmatprep.mubr.f32.mxu0 0.0
      %v2780 = vand.u32 %v478, 4294901760
      %2781 = vmatmul.mubr.f32.gmra.mrb[0].mxu0 %v2780
      %v2782 = vpop.f32.mrb[0].mxu0
      %v2783 = vadd.f32 %v2574, %v2782
      %v2784 = vpop.f32.mrb[0].mxu0
      %2785 = vdwg.mxu0
      %2786 = vmatprep.subr.mxu0 0.0
      %v2787 = vand.u32 %v1661, 4294901760
      %2788 = vmatpush1.msra.mxu0 %v2787
      %2789 = vmatprep.subr.mxu0 0.0
      %v2790 = vand.u32 %v1662, 4294901760
      %2791 = vmatpush1.msra.mxu0 %v2790
      %2792 = vmatprep.subr.mxu0 0.0
      %v2793 = vand.u32 %v1663, 4294901760
      %2794 = vmatpush1.msra.mxu0 %v2793
      %2795 = vmatprep.subr.mxu0 0.0
      %v2796 = vand.u32 %v1664, 4294901760
      %2797 = vmatpush1.msra.mxu0 %v2796
      %2798 = vmatprep.subr.mxu0 0.0
      %v2799 = vand.u32 %v1665, 4294901760
      %2800 = vmatpush1.msra.mxu0 %v2799
      %2801 = vmatprep.subr.mxu0 0.0
      %v2802 = vand.u32 %v1666, 4294901760
      %2803 = vmatpush1.msra.mxu0 %v2802
      %2804 = vmatprep.subr.mxu0 0.0
      %v2805 = vand.u32 %v1667, 4294901760
      %2806 = vmatpush1.msra.mxu0 %v2805
      %2807 = vmatprep.subr.mxu0 0.0
      %v2808 = vand.u32 %v1668, 4294901760
      %2809 = vmatpush1.msra.mxu0 %v2808
      %2810 = vmatprep.subr.mxu0 0.0
      %v2811 = vand.u32 %v1669, 4294901760
      %2812 = vmatpush1.msra.mxu0 %v2811
      %2813 = vmatprep.subr.mxu0 0.0
      %v2814 = vand.u32 %v1670, 4294901760
      %2815 = vmatpush1.msra.mxu0 %v2814
      %2816 = vmatprep.subr.mxu0 0.0
      %v2817 = vand.u32 %v1671, 4294901760
      %2818 = vmatpush1.msra.mxu0 %v2817
      %2819 = vmatprep.subr.mxu0 0.0
      %v2820 = vand.u32 %v1672, 4294901760
      %2821 = vmatpush1.msra.mxu0 %v2820
      %2822 = vmatprep.subr.mxu0 0.0
      %v2823 = vand.u32 %v1673, 4294901760
      %2824 = vmatpush1.msra.mxu0 %v2823
      %2825 = vmatprep.subr.mxu0 0.0
      %v2826 = vand.u32 %v1674, 4294901760
      %2827 = vmatpush1.msra.mxu0 %v2826
      %2828 = vmatprep.subr.mxu0 0.0
      %v2829 = vand.u32 %v1675, 4294901760
      %2830 = vmatpush1.msra.mxu0 %v2829
      %2831 = vmatprep.subr.mxu0 0.0
      %v2832 = vand.u32 %v1676, 4294901760
      %2833 = vmatpush1.msra.mxu0 %v2832
      %2834 = vmatprep.subr.mxu0 0.0
      %2835 = vmatpush1.msra.mxu0 0.0
      %2836 = vmatprep.subr.mxu0 0.0
      %2837 = vmatpush1.msra.mxu0 0.0
      %2838 = vmatprep.subr.mxu0 0.0
      %2839 = vmatpush1.msra.mxu0 0.0
      %2840 = vmatprep.subr.mxu0 0.0
      %2841 = vmatpush1.msra.mxu0 0.0
      %2842 = vmatprep.subr.mxu0 0.0
      %2843 = vmatpush1.msra.mxu0 0.0
      %2844 = vmatprep.subr.mxu0 0.0
      %2845 = vmatpush1.msra.mxu0 0.0
      %2846 = vmatprep.subr.mxu0 0.0
      %2847 = vmatpush1.msra.mxu0 0.0
      %2848 = vmatprep.subr.mxu0 0.0
      %2849 = vmatpush1.msra.mxu0 0.0
      %2850 = vmatprep.subr.mxu0 0.0
      %2851 = vmatpush1.msra.mxu0 0.0
      %2852 = vmatprep.subr.mxu0 0.0
      %2853 = vmatpush1.msra.mxu0 0.0
      %2854 = vmatprep.subr.mxu0 0.0
      %2855 = vmatpush1.msra.mxu0 0.0
      %2856 = vmatprep.subr.mxu0 0.0
      %2857 = vmatpush1.msra.mxu0 0.0
      %2858 = vmatprep.subr.mxu0 0.0
      %2859 = vmatpush1.msra.mxu0 0.0
      %2860 = vmatprep.subr.mxu0 0.0
      %2861 = vmatpush1.msra.mxu0 0.0
      %2862 = vmatprep.subr.mxu0 0.0
      %2863 = vmatpush1.msra.mxu0 0.0
      %2864 = vmatprep.subr.mxu0 0.0
      %2865 = vmatpush1.msra.mxu0 0.0
      %2866 = vmatprep.mubr.f32.mxu0 0.0
      %v2867 = vand.u32 %v463, 4294901760
      %2868 = vmatmul.mubr.f32.gmra.mrb[0].mxu0 %v2867
      %v2869 = vpop.f32.mrb[0].mxu0
      %v2870 = vadd.f32 %v2693, %v2869
      %v2871 = vpop.f32.mrb[0].mxu0
      %2872 = vmatprep.mubr.f32.mxu0 0.0
      %v2873 = vand.u32 %v464, 4294901760
      %2874 = vmatmul.mubr.f32.gmra.mrb[0].mxu0 %v2873
      %v2875 = vpop.f32.mrb[0].mxu0
      %v2876 = vadd.f32 %v2699, %v2875
      %v2877 = vpop.f32.mrb[0].mxu0
      %2878 = vmatprep.mubr.f32.mxu0 0.0
      %v2879 = vand.u32 %v465, 4294901760
      %2880 = vmatmul.mubr.f32.gmra.mrb[0].mxu0 %v2879
      %v2881 = vpop.f32.mrb[0].mxu0
      %v2882 = vadd.f32 %v2705, %v2881
      %v2883 = vpop.f32.mrb[0].mxu0
      %2884 = vmatprep.mubr.f32.mxu0 0.0
      %v2885 = vand.u32 %v466, 4294901760
      %2886 = vmatmul.mubr.f32.gmra.mrb[0].mxu0 %v2885
      %v2887 = vpop.f32.mrb[0].mxu0
      %v2888 = vadd.f32 %v2711, %v2887
      %v2889 = vpop.f32.mrb[0].mxu0
      %2890 = vmatprep.mubr.f32.mxu0 0.0
      %v2891 = vand.u32 %v467, 4294901760
      %2892 = vmatmul.mubr.f32.gmra.mrb[0].mxu0 %v2891
      %v2893 = vpop.f32.mrb[0].mxu0
      %v2894 = vadd.f32 %v2717, %v2893
      %v2895 = vpop.f32.mrb[0].mxu0
      %2896 = vmatprep.mubr.f32.mxu0 0.0
      %v2897 = vand.u32 %v468, 4294901760
      %2898 = vmatmul.mubr.f32.gmra.mrb[0].mxu0 %v2897
      %v2899 = vpop.f32.mrb[0].mxu0
      %v2900 = vadd.f32 %v2723, %v2899
      %v2901 = vpop.f32.mrb[0].mxu0
      %2902 = vmatprep.mubr.f32.mxu0 0.0
      %v2903 = vand.u32 %v469, 4294901760
      %2904 = vmatmul.mubr.f32.gmra.mrb[0].mxu0 %v2903
      %v2905 = vpop.f32.mrb[0].mxu0
      %v2906 = vadd.f32 %v2729, %v2905
      %v2907 = vpop.f32.mrb[0].mxu0
      %2908 = vmatprep.mubr.f32.mxu0 0.0
      %v2909 = vand.u32 %v470, 4294901760
      %2910 = vmatmul.mubr.f32.gmra.mrb[0].mxu0 %v2909
      %v2911 = vpop.f32.mrb[0].mxu0
      %v2912 = vadd.f32 %v2735, %v2911
      %v2913 = vpop.f32.mrb[0].mxu0
      %2914 = vmatprep.mubr.f32.mxu0 0.0
      %v2915 = vand.u32 %v471, 4294901760
      %2916 = vmatmul.mubr.f32.gmra.mrb[0].mxu0 %v2915
      %v2917 = vpop.f32.mrb[0].mxu0
      %v2918 = vadd.f32 %v2741, %v2917
      %v2919 = vpop.f32.mrb[0].mxu0
      %2920 = vmatprep.mubr.f32.mxu0 0.0
      %v2921 = vand.u32 %v472, 4294901760
      %2922 = vmatmul.mubr.f32.gmra.mrb[0].mxu0 %v2921
      %v2923 = vpop.f32.mrb[0].mxu0
      %v2924 = vadd.f32 %v2747, %v2923
      %v2925 = vpop.f32.mrb[0].mxu0
      %2926 = vmatprep.mubr.f32.mxu0 0.0
      %v2927 = vand.u32 %v473, 4294901760
      %2928 = vmatmul.mubr.f32.gmra.mrb[0].mxu0 %v2927
      %v2929 = vpop.f32.mrb[0].mxu0
      %v2930 = vadd.f32 %v2753, %v2929
      %v2931 = vpop.f32.mrb[0].mxu0
      %2932 = vmatprep.mubr.f32.mxu0 0.0
      %v2933 = vand.u32 %v474, 4294901760
      %2934 = vmatmul.mubr.f32.gmra.mrb[0].mxu0 %v2933
      %v2935 = vpop.f32.mrb[0].mxu0
      %v2936 = vadd.f32 %v2759, %v2935
      %v2937 = vpop.f32.mrb[0].mxu0
      %2938 = vmatprep.mubr.f32.mxu0 0.0
      %v2939 = vand.u32 %v475, 4294901760
      %2940 = vmatmul.mubr.f32.gmra.mrb[0].mxu0 %v2939
      %v2941 = vpop.f32.mrb[0].mxu0
      %v2942 = vadd.f32 %v2765, %v2941
      %v2943 = vpop.f32.mrb[0].mxu0
      %2944 = vmatprep.mubr.f32.mxu0 0.0
      %v2945 = vand.u32 %v476, 4294901760
      %2946 = vmatmul.mubr.f32.gmra.mrb[0].mxu0 %v2945
      %v2947 = vpop.f32.mrb[0].mxu0
      %v2948 = vadd.f32 %v2771, %v2947
      %v2949 = vpop.f32.mrb[0].mxu0
      %2950 = vmatprep.mubr.f32.mxu0 0.0
      %v2951 = vand.u32 %v477, 4294901760
      %2952 = vmatmul.mubr.f32.gmra.mrb[0].mxu0 %v2951
      %v2953 = vpop.f32.mrb[0].mxu0
      %v2954 = vadd.f32 %v2777, %v2953
      %v2955 = vpop.f32.mrb[0].mxu0
      %2956 = vmatprep.mubr.f32.mxu0 0.0
      %v2957 = vand.u32 %v478, 4294901760
      %2958 = vmatmul.mubr.f32.gmra.mrb[0].mxu0 %v2957
      %v2959 = vpop.f32.mrb[0].mxu0
      %v2960 = vadd.f32 %v2783, %v2959
      %v2961 = vpop.f32.mrb[0].mxu0
      %2962 = vdwg.mxu0
      %v2963 = vsel %vm431, 1, 0
      %v2964 = vsel %vm432, 1, 0
      %v2965 = vsel %vm433, 1, 0
      %v2966 = vsel %vm434, 1, 0
      %v2967 = vsel %vm435, 1, 0
      %v2968 = vsel %vm436, 1, 0
      %v2969 = vsel %vm437, 1, 0
      %v2970 = vsel %vm438, 1, 0
      %v2971 = vsel %vm439, 1, 0
      %v2972 = vsel %vm440, 1, 0
      %v2973 = vsel %vm441, 1, 0
      %v2974 = vsel %vm442, 1, 0
      %v2975 = vsel %vm443, 1, 0
      %v2976 = vsel %vm444, 1, 0
      %v2977 = vsel %vm445, 1, 0
      %v2978 = vsel %vm446, 1, 0
      %vm2979 = vcmp.eq.s32.totalorder %v2963, 1
      %vm2980 = vcmp.eq.s32.totalorder %v2964, 1
      %vm2981 = vcmp.eq.s32.totalorder %v2965, 1
      %vm2982 = vcmp.eq.s32.totalorder %v2966, 1
      %vm2983 = vcmp.eq.s32.totalorder %v2967, 1
      %vm2984 = vcmp.eq.s32.totalorder %v2968, 1
      %vm2985 = vcmp.eq.s32.totalorder %v2969, 1
      %vm2986 = vcmp.eq.s32.totalorder %v2970, 1
      %vm2987 = vcmp.eq.s32.totalorder %v2971, 1
      %vm2988 = vcmp.eq.s32.totalorder %v2972, 1
      %vm2989 = vcmp.eq.s32.totalorder %v2973, 1
      %vm2990 = vcmp.eq.s32.totalorder %v2974, 1
      %vm2991 = vcmp.eq.s32.totalorder %v2975, 1
      %vm2992 = vcmp.eq.s32.totalorder %v2976, 1
      %vm2993 = vcmp.eq.s32.totalorder %v2977, 1
      %vm2994 = vcmp.eq.s32.totalorder %v2978, 1
      %v2995 = vsel %vm2979, 0.0, %v2954
      %v2996 = vsel %vm2980, 0.0, %v2960
      %v2997 = vsel %vm2981, 0.0, %v2870
      %v2998 = vsel %vm2982, 0.0, %v2876
      %v2999 = vsel %vm2983, 0.0, %v2882
      %v3000 = vsel %vm2984, 0.0, %v2888
      %v3001 = vsel %vm2985, 0.0, %v2894
      %v3002 = vsel %vm2986, 0.0, %v2900
      %v3003 = vsel %vm2987, 0.0, %v2906
      %v3004 = vsel %vm2988, 0.0, %v2912
      %v3005 = vsel %vm2989, 0.0, %v2918
      %v3006 = vsel %vm2990, 0.0, %v2924
      %v3007 = vsel %vm2991, 0.0, %v2930
      %v3008 = vsel %vm2992, 0.0, %v2936
      %v3009 = vsel %vm2993, 0.0, %v2942
      %v3010 = vsel %vm2994, 0.0, %v2948
      %v3011 = vsel %vm447, 1, 0
      %v3012 = vsel %vm448, 1, 0
      %v3013 = vsel %vm449, 1, 0
      %v3014 = vsel %vm450, 1, 0
      %v3015 = vsel %vm451, 1, 0
      %v3016 = vsel %vm452, 1, 0
      %v3017 = vsel %vm453, 1, 0
      %v3018 = vsel %vm454, 1, 0
      %v3019 = vsel %vm455, 1, 0
      %v3020 = vsel %vm456, 1, 0
      %v3021 = vsel %vm457, 1, 0
      %v3022 = vsel %vm458, 1, 0
      %v3023 = vsel %vm459, 1, 0
      %v3024 = vsel %vm460, 1, 0
      %v3025 = vsel %vm461, 1, 0
      %v3026 = vsel %vm462, 1, 0
      %vm3027 = vcmp.eq.s32.totalorder %v3011, 1
      %vm3028 = vcmp.eq.s32.totalorder %v3012, 1
      %vm3029 = vcmp.eq.s32.totalorder %v3013, 1
      %vm3030 = vcmp.eq.s32.totalorder %v3014, 1
      %vm3031 = vcmp.eq.s32.totalorder %v3015, 1
      %vm3032 = vcmp.eq.s32.totalorder %v3016, 1
      %vm3033 = vcmp.eq.s32.totalorder %v3017, 1
      %vm3034 = vcmp.eq.s32.totalorder %v3018, 1
      %vm3035 = vcmp.eq.s32.totalorder %v3019, 1
      %vm3036 = vcmp.eq.s32.totalorder %v3020, 1
      %vm3037 = vcmp.eq.s32.totalorder %v3021, 1
      %vm3038 = vcmp.eq.s32.totalorder %v3022, 1
      %vm3039 = vcmp.eq.s32.totalorder %v3023, 1
      %vm3040 = vcmp.eq.s32.totalorder %v3024, 1
      %vm3041 = vcmp.eq.s32.totalorder %v3025, 1
      %vm3042 = vcmp.eq.s32.totalorder %v3026, 1
      %v3043 = vsel %vm3027, 0.0, %v2882
      %v3044 = vsel %vm3028, 0.0, %v2888
      %v3045 = vsel %vm3029, 0.0, %v2894
      %v3046 = vsel %vm3030, 0.0, %v2900
      %v3047 = vsel %vm3031, 0.0, %v2906
      %v3048 = vsel %vm3032, 0.0, %v2912
      %v3049 = vsel %vm3033, 0.0, %v2918
      %v3050 = vsel %vm3034, 0.0, %v2924
      %v3051 = vsel %vm3035, 0.0, %v2930
      %v3052 = vsel %vm3036, 0.0, %v2936
      %v3053 = vsel %vm3037, 0.0, %v2942
      %v3054 = vsel %vm3038, 0.0, %v2948
      %v3055 = vsel %vm3039, 0.0, %v2954
      %v3056 = vsel %vm3040, 0.0, %v2960
      %v3057 = vsel %vm3041, 0.0, %v2870
      %v3058 = vsel %vm3042, 0.0, %v2876
      %3075 = vrot.lane.b32.xlu0 %v2870, 64
      %v3076 = vpop.permute.xlu0 %3075
      %3077 = vrot.lane.b32.xlu0 %v2876, 64
      %v3078 = vpop.permute.xlu0 %3077
      %3079 = vrot.lane.b32.xlu0 %v2882, 64
      %v3080 = vpop.permute.xlu0 %3079
      %3081 = vrot.lane.b32.xlu0 %v2888, 64
      %v3082 = vpop.permute.xlu0 %3081
      %3083 = vrot.lane.b32.xlu0 %v2894, 64
      %v3084 = vpop.permute.xlu0 %3083
      %3085 = vrot.lane.b32.xlu0 %v2900, 64
      %v3086 = vpop.permute.xlu0 %3085
      %3087 = vrot.lane.b32.xlu0 %v2906, 64
      %v3088 = vpop.permute.xlu0 %3087
      %3089 = vrot.lane.b32.xlu0 %v2912, 64
      %v3090 = vpop.permute.xlu0 %3089
      %3091 = vrot.lane.b32.xlu0 %v2918, 64
      %v3092 = vpop.permute.xlu0 %3091
      %3093 = vrot.lane.b32.xlu0 %v2924, 64
      %v3094 = vpop.permute.xlu0 %3093
      %3095 = vrot.lane.b32.xlu0 %v2930, 64
      %v3096 = vpop.permute.xlu0 %3095
      %3097 = vrot.lane.b32.xlu0 %v2936, 64
      %v3098 = vpop.permute.xlu0 %3097
      %3099 = vrot.lane.b32.xlu0 %v2942, 64
      %v3100 = vpop.permute.xlu0 %3099
      %3101 = vrot.lane.b32.xlu0 %v2948, 64
      %v3102 = vpop.permute.xlu0 %3101
      %3103 = vrot.lane.b32.xlu0 %v2954, 64
      %v3104 = vpop.permute.xlu0 %3103
      %3105 = vrot.lane.b32.xlu0 %v2960, 64
      %v3106 = vpop.permute.xlu0 %3105
      %vm3123 = vcmask 523264
      %v3124 = vsel %vm3123, %v2995, %v3076
      %v3125 = vsel %vm3123, %v2996, %v3078
      %v3126 = vsel %vm3123, %v2997, %v3080
      %v3127 = vsel %vm3123, %v2998, %v3082
      %v3128 = vsel %vm3123, %v2999, %v3084
      %v3129 = vsel %vm3123, %v3000, %v3086
      %v3130 = vsel %vm3123, %v3001, %v3088
      %v3131 = vsel %vm3123, %v3002, %v3090
      %v3132 = vsel %vm3123, %v3003, %v3092
      %v3133 = vsel %vm3123, %v3004, %v3094
      %v3134 = vsel %vm3123, %v3005, %v3096
      %v3135 = vsel %vm3123, %v3006, %v3098
      %v3136 = vsel %vm3123, %v3007, %v3100
      %v3137 = vsel %vm3123, %v3008, %v3102
      %v3138 = vsel %vm3123, %v3009, %v3104
      %v3139 = vsel %vm3123, %v3010, %v3106
      %v3140 = vld [vmem:[%s4] sm:$0xff]
      %v3141 = vld [vmem:[%s4 + $0x8] sm:$0xff]
      %v3142 = vld [vmem:[%s4 + $0x10] sm:$0xff]
      %v3143 = vld [vmem:[%s4 + $0x18] sm:$0xff]
      %v3144 = vld [vmem:[%s4 + $0x20] sm:$0xff]
      %v3145 = vld [vmem:[%s4 + $0x28] sm:$0xff]
      %v3146 = vld [vmem:[%s4 + $0x30] sm:$0xff]
      %v3147 = vld [vmem:[%s4 + $0x38] sm:$0xff]
      %v3148 = vld [vmem:[%s4 + $0x40] sm:$0xff]
      %v3149 = vld [vmem:[%s4 + $0x48] sm:$0xff]
      %v3150 = vld [vmem:[%s4 + $0x50] sm:$0xff]
      %v3151 = vld [vmem:[%s4 + $0x58] sm:$0xff]
      %v3152 = vld [vmem:[%s4 + $0x60] sm:$0xff]
      %v3153 = vld [vmem:[%s4 + $0x68] sm:$0xff]
      %v3154 = vld [vmem:[%s4 + $0x70] sm:$0xff]
      %v3155 = vld [vmem:[%s4 + $0x78] sm:$0xff]
      %v3156 = vld [vmem:[%s4 + $0x80] sm:$0xff]
      %v3157 = vld [vmem:[%s4 + $0x88] sm:$0xff]
      %v3158 = vld [vmem:[%s4 + $0x90] sm:$0xff]
      %v3159 = vld [vmem:[%s4 + $0x98] sm:$0xff]
      %v3160 = vld [vmem:[%s4 + $0xa0] sm:$0xff]
      %v3161 = vld [vmem:[%s4 + $0xa8] sm:$0xff]
      %v3162 = vld [vmem:[%s4 + $0xb0] sm:$0xff]
      %v3163 = vld [vmem:[%s4 + $0xb8] sm:$0xff]
      %v3164 = vld [vmem:[%s5] sm:$0x1]
      %v3166 = vlaneseq
      %v3167 = vshrl.u32 %v3166, 7
      %v3168 = vsub.s32 0, %v3167
      %v3169 = vrot.slane %v3164, %v3168
      %v3172 = vsel %vm3123, %v3043, 0
      %v3175 = vsel %vm3123, %v3044, 0
      %v3178 = vsel %vm3123, %v3045, 0
      %v3181 = vsel %vm3123, %v3046, 0
      %v3184 = vsel %vm3123, %v3047, 0
      %v3187 = vsel %vm3123, %v3048, 0
      %v3190 = vsel %vm3123, %v3049, 0
      %v3193 = vsel %vm3123, %v3050, 0
      %v3196 = vsel %vm3123, %v3051, 0
      %v3199 = vsel %vm3123, %v3052, 0
      %v3202 = vsel %vm3123, %v3053, 0
      %v3205 = vsel %vm3123, %v3054, 0
      %v3208 = vsel %vm3123, %v3055, 0
      %v3211 = vsel %vm3123, %v3056, 0
      %v3214 = vsel %vm3123, %v3057, 0
      %v3217 = vsel %vm3123, %v3058, 0
      %3219 = vmatprep.subr.mxu0 0.0
      %v3220 = vand.u32 %v3140, 4294901760
      %3221 = vmatpush1.msra.mxu0 %v3220
      %3222 = vmatprep.subr.mxu0 0.0
      %v3223 = vand.u32 %v3141, 4294901760
      %3224 = vmatpush1.msra.mxu0 %v3223
      %3225 = vmatprep.subr.mxu0 0.0
      %v3226 = vand.u32 %v3142, 4294901760
      %3227 = vmatpush1.msra.mxu0 %v3226
      %3228 = vmatprep.subr.mxu0 0.0
      %v3229 = vand.u32 %v3143, 4294901760
      %3230 = vmatpush1.msra.mxu0 %v3229
      %3231 = vmatprep.subr.mxu0 0.0
      %v3232 = vand.u32 %v3144, 4294901760
      %3233 = vmatpush1.msra.mxu0 %v3232
      %3234 = vmatprep.subr.mxu0 0.0
      %v3235 = vand.u32 %v3145, 4294901760
      %3236 = vmatpush1.msra.mxu0 %v3235
      %3237 = vmatprep.subr.mxu0 0.0
      %v3238 = vand.u32 %v3146, 4294901760
      %3239 = vmatpush1.msra.mxu0 %v3238
      %3240 = vmatprep.subr.mxu0 0.0
      %v3241 = vand.u32 %v3147, 4294901760
      %3242 = vmatpush1.msra.mxu0 %v3241
      %3243 = vmatprep.subr.mxu0 0.0
      %v3244 = vand.u32 %v3148, 4294901760
      %3245 = vmatpush1.msra.mxu0 %v3244
      %3246 = vmatprep.subr.mxu0 0.0
      %v3247 = vand.u32 %v3149, 4294901760
      %3248 = vmatpush1.msra.mxu0 %v3247
      %3249 = vmatprep.subr.mxu0 0.0
      %v3250 = vand.u32 %v3150, 4294901760
      %3251 = vmatpush1.msra.mxu0 %v3250
      %3252 = vmatprep.subr.mxu0 0.0
      %v3253 = vand.u32 %v3151, 4294901760
      %3254 = vmatpush1.msra.mxu0 %v3253
      %3255 = vmatprep.subr.mxu0 0.0
      %v3256 = vand.u32 %v3152, 4294901760
      %3257 = vmatpush1.msra.mxu0 %v3256
      %3258 = vmatprep.subr.mxu0 0.0
      %v3259 = vand.u32 %v3153, 4294901760
      %3260 = vmatpush1.msra.mxu0 %v3259
      %3261 = vmatprep.subr.mxu0 0.0
      %v3262 = vand.u32 %v3154, 4294901760
      %3263 = vmatpush1.msra.mxu0 %v3262
      %3264 = vmatprep.subr.mxu0 0.0
      %v3265 = vand.u32 %v3155, 4294901760
      %3266 = vmatpush1.msra.mxu0 %v3265
      %3267 = vmatprep.subr.mxu0 0.0
      %v3268 = vand.u32 %v3156, 4294901760
      %3269 = vmatpush1.msra.mxu0 %v3268
      %3270 = vmatprep.subr.mxu0 0.0
      %v3271 = vand.u32 %v3157, 4294901760
      %3272 = vmatpush1.msra.mxu0 %v3271
      %3273 = vmatprep.subr.mxu0 0.0
      %v3274 = vand.u32 %v3158, 4294901760
      %3275 = vmatpush1.msra.mxu0 %v3274
      %3276 = vmatprep.subr.mxu0 0.0
      %v3277 = vand.u32 %v3159, 4294901760
      %3278 = vmatpush1.msra.mxu0 %v3277
      %3279 = vmatprep.subr.mxu0 0.0
      %v3280 = vand.u32 %v3160, 4294901760
      %3281 = vmatpush1.msra.mxu0 %v3280
      %3282 = vmatprep.subr.mxu0 0.0
      %v3283 = vand.u32 %v3161, 4294901760
      %3284 = vmatpush1.msra.mxu0 %v3283
      %3285 = vmatprep.subr.mxu0 0.0
      %v3286 = vand.u32 %v3162, 4294901760
      %3287 = vmatpush1.msra.mxu0 %v3286
      %3288 = vmatprep.subr.mxu0 0.0
      %v3289 = vand.u32 %v3163, 4294901760
      %3290 = vmatpush1.msra.mxu0 %v3289
      %3291 = vmatprep.subr.mxu0 0.0
      %3292 = vmatpush1.msra.mxu0 0.0
      %3293 = vmatprep.subr.mxu0 0.0
      %3294 = vmatpush1.msra.mxu0 0.0
      %3295 = vmatprep.subr.mxu0 0.0
      %3296 = vmatpush1.msra.mxu0 0.0
      %3297 = vmatprep.subr.mxu0 0.0
      %3298 = vmatpush1.msra.mxu0 0.0
      %3299 = vmatprep.subr.mxu0 0.0
      %3300 = vmatpush1.msra.mxu0 0.0
      %3301 = vmatprep.subr.mxu0 0.0
      %3302 = vmatpush1.msra.mxu0 0.0
      %3303 = vmatprep.subr.mxu0 0.0
      %3304 = vmatpush1.msra.mxu0 0.0
      %3305 = vmatprep.subr.mxu0 0.0
      %3306 = vmatpush1.msra.mxu0 0.0
      %v3307 = vand.u32 %v3172, 4294901760
      %v3308 = vsub.f32 %v3172, %v3307
      %v3309 = vand.u32 %v3308, 4294901760
      %v3310 = vsub.f32 %v3308, %v3309
      %v3311 = vand.u32 %v3310, 4294901760
      %3312 = vmatprep.mubr.f32.mxu0 %v3311
      %v3313 = vand.u32 %v3124, 4294901760
      %v3314 = vsub.f32 %v3124, %v3313
      %v3315 = vand.u32 %v3314, 4294901760
      %v3316 = vsub.f32 %v3314, %v3315
      %v3317 = vand.u32 %v3316, 4294901760
      %3318 = vmatmul.mubr.f32.gmra.mrb[0].mxu0 %v3317
      %v3319 = vpop.f32.mrb[0].mxu0
      %v3320 = vadd.f32 %v3169, %v3319
      %v3321 = vpop.f32.mrb[0].mxu0
      %v3322 = vand.u32 %v3175, 4294901760
      %v3323 = vsub.f32 %v3175, %v3322
      %v3324 = vand.u32 %v3323, 4294901760
      %v3325 = vsub.f32 %v3323, %v3324
      %v3326 = vand.u32 %v3325, 4294901760
      %3327 = vmatprep.mubr.f32.mxu0 %v3326
      %v3328 = vand.u32 %v3125, 4294901760
      %v3329 = vsub.f32 %v3125, %v3328
      %v3330 = vand.u32 %v3329, 4294901760
      %v3331 = vsub.f32 %v3329, %v3330
      %v3332 = vand.u32 %v3331, 4294901760
      %3333 = vmatmul.mubr.f32.gmra.mrb[0].mxu0 %v3332
      %v3334 = vpop.f32.mrb[0].mxu0
      %v3335 = vadd.f32 %v3169, %v3334
      %v3336 = vpop.f32.mrb[0].mxu0
      %v3337 = vand.u32 %v3178, 4294901760
      %v3338 = vsub.f32 %v3178, %v3337
      %v3339 = vand.u32 %v3338, 4294901760
      %v3340 = vsub.f32 %v3338, %v3339
      %v3341 = vand.u32 %v3340, 4294901760
      %3342 = vmatprep.mubr.f32.mxu0 %v3341
      %v3343 = vand.u32 %v3126, 4294901760
      %v3344 = vsub.f32 %v3126, %v3343
      %v3345 = vand.u32 %v3344, 4294901760
      %v3346 = vsub.f32 %v3344, %v3345
      %v3347 = vand.u32 %v3346, 4294901760
      %3348 = vmatmul.mubr.f32.gmra.mrb[0].mxu0 %v3347
      %v3349 = vpop.f32.mrb[0].mxu0
      %v3350 = vadd.f32 %v3169, %v3349
      %v3351 = vpop.f32.mrb[0].mxu0
      %v3352 = vand.u32 %v3181, 4294901760
      %v3353 = vsub.f32 %v3181, %v3352
      %v3354 = vand.u32 %v3353, 4294901760
      %v3355 = vsub.f32 %v3353, %v3354
      %v3356 = vand.u32 %v3355, 4294901760
      %3357 = vmatprep.mubr.f32.mxu0 %v3356
      %v3358 = vand.u32 %v3127, 4294901760
      %v3359 = vsub.f32 %v3127, %v3358
      %v3360 = vand.u32 %v3359, 4294901760
      %v3361 = vsub.f32 %v3359, %v3360
      %v3362 = vand.u32 %v3361, 4294901760
      %3363 = vmatmul.mubr.f32.gmra.mrb[0].mxu0 %v3362
      %v3364 = vpop.f32.mrb[0].mxu0
      %v3365 = vadd.f32 %v3169, %v3364
      %v3366 = vpop.f32.mrb[0].mxu0
      %v3367 = vand.u32 %v3184, 4294901760
      %v3368 = vsub.f32 %v3184, %v3367
      %v3369 = vand.u32 %v3368, 4294901760
      %v3370 = vsub.f32 %v3368, %v3369
      %v3371 = vand.u32 %v3370, 4294901760
      %3372 = vmatprep.mubr.f32.mxu0 %v3371
      %v3373 = vand.u32 %v3128, 4294901760
      %v3374 = vsub.f32 %v3128, %v3373
      %v3375 = vand.u32 %v3374, 4294901760
      %v3376 = vsub.f32 %v3374, %v3375
      %v3377 = vand.u32 %v3376, 4294901760
      %3378 = vmatmul.mubr.f32.gmra.mrb[0].mxu0 %v3377
      %v3379 = vpop.f32.mrb[0].mxu0
      %v3380 = vadd.f32 %v3169, %v3379
      %v3381 = vpop.f32.mrb[0].mxu0
      %v3382 = vand.u32 %v3187, 4294901760
      %v3383 = vsub.f32 %v3187, %v3382
      %v3384 = vand.u32 %v3383, 4294901760
      %v3385 = vsub.f32 %v3383, %v3384
      %v3386 = vand.u32 %v3385, 4294901760
      %3387 = vmatprep.mubr.f32.mxu0 %v3386
      %v3388 = vand.u32 %v3129, 4294901760
      %v3389 = vsub.f32 %v3129, %v3388
      %v3390 = vand.u32 %v3389, 4294901760
      %v3391 = vsub.f32 %v3389, %v3390
      %v3392 = vand.u32 %v3391, 4294901760
      %3393 = vmatmul.mubr.f32.gmra.mrb[0].mxu0 %v3392
      %v3394 = vpop.f32.mrb[0].mxu0
      %v3395 = vadd.f32 %v3169, %v3394
      %v3396 = vpop.f32.mrb[0].mxu0
      %v3397 = vand.u32 %v3190, 4294901760
      %v3398 = vsub.f32 %v3190, %v3397
      %v3399 = vand.u32 %v3398, 4294901760
      %v3400 = vsub.f32 %v3398, %v3399
      %v3401 = vand.u32 %v3400, 4294901760
      %3402 = vmatprep.mubr.f32.mxu0 %v3401
      %v3403 = vand.u32 %v3130, 4294901760
      %v3404 = vsub.f32 %v3130, %v3403
      %v3405 = vand.u32 %v3404, 4294901760
      %v3406 = vsub.f32 %v3404, %v3405
      %v3407 = vand.u32 %v3406, 4294901760
      %3408 = vmatmul.mubr.f32.gmra.mrb[0].mxu0 %v3407
      %v3409 = vpop.f32.mrb[0].mxu0
      %v3410 = vadd.f32 %v3169, %v3409
      %v3411 = vpop.f32.mrb[0].mxu0
      %v3412 = vand.u32 %v3193, 4294901760
      %v3413 = vsub.f32 %v3193, %v3412
      %v3414 = vand.u32 %v3413, 4294901760
      %v3415 = vsub.f32 %v3413, %v3414
      %v3416 = vand.u32 %v3415, 4294901760
      %3417 = vmatprep.mubr.f32.mxu0 %v3416
      %v3418 = vand.u32 %v3131, 4294901760
      %v3419 = vsub.f32 %v3131, %v3418
      %v3420 = vand.u32 %v3419, 4294901760
      %v3421 = vsub.f32 %v3419, %v3420
      %v3422 = vand.u32 %v3421, 4294901760
      %3423 = vmatmul.mubr.f32.gmra.mrb[0].mxu0 %v3422
      %v3424 = vpop.f32.mrb[0].mxu0
      %v3425 = vadd.f32 %v3169, %v3424
      %v3426 = vpop.f32.mrb[0].mxu0
      %v3427 = vand.u32 %v3196, 4294901760
      %v3428 = vsub.f32 %v3196, %v3427
      %v3429 = vand.u32 %v3428, 4294901760
      %v3430 = vsub.f32 %v3428, %v3429
      %v3431 = vand.u32 %v3430, 4294901760
      %3432 = vmatprep.mubr.f32.mxu0 %v3431
      %v3433 = vand.u32 %v3132, 4294901760
      %v3434 = vsub.f32 %v3132, %v3433
      %v3435 = vand.u32 %v3434, 4294901760
      %v3436 = vsub.f32 %v3434, %v3435
      %v3437 = vand.u32 %v3436, 4294901760
      %3438 = vmatmul.mubr.f32.gmra.mrb[0].mxu0 %v3437
      %v3439 = vpop.f32.mrb[0].mxu0
      %v3440 = vadd.f32 %v3169, %v3439
      %v3441 = vpop.f32.mrb[0].mxu0
      %v3442 = vand.u32 %v3199, 4294901760
      %v3443 = vsub.f32 %v3199, %v3442
      %v3444 = vand.u32 %v3443, 4294901760
      %v3445 = vsub.f32 %v3443, %v3444
      %v3446 = vand.u32 %v3445, 4294901760
      %3447 = vmatprep.mubr.f32.mxu0 %v3446
      %v3448 = vand.u32 %v3133, 4294901760
      %v3449 = vsub.f32 %v3133, %v3448
      %v3450 = vand.u32 %v3449, 4294901760
      %v3451 = vsub.f32 %v3449, %v3450
      %v3452 = vand.u32 %v3451, 4294901760
      %3453 = vmatmul.mubr.f32.gmra.mrb[0].mxu0 %v3452
      %v3454 = vpop.f32.mrb[0].mxu0
      %v3455 = vadd.f32 %v3169, %v3454
      %v3456 = vpop.f32.mrb[0].mxu0
      %v3457 = vand.u32 %v3202, 4294901760
      %v3458 = vsub.f32 %v3202, %v3457
      %v3459 = vand.u32 %v3458, 4294901760
      %v3460 = vsub.f32 %v3458, %v3459
      %v3461 = vand.u32 %v3460, 4294901760
      %3462 = vmatprep.mubr.f32.mxu0 %v3461
      %v3463 = vand.u32 %v3134, 4294901760
      %v3464 = vsub.f32 %v3134, %v3463
      %v3465 = vand.u32 %v3464, 4294901760
      %v3466 = vsub.f32 %v3464, %v3465
      %v3467 = vand.u32 %v3466, 4294901760
      %3468 = vmatmul.mubr.f32.gmra.mrb[0].mxu0 %v3467
      %v3469 = vpop.f32.mrb[0].mxu0
      %v3470 = vadd.f32 %v3169, %v3469
      %v3471 = vpop.f32.mrb[0].mxu0
      %v3472 = vand.u32 %v3205, 4294901760
      %v3473 = vsub.f32 %v3205, %v3472
      %v3474 = vand.u32 %v3473, 4294901760
      %v3475 = vsub.f32 %v3473, %v3474
      %v3476 = vand.u32 %v3475, 4294901760
      %3477 = vmatprep.mubr.f32.mxu0 %v3476
      %v3478 = vand.u32 %v3135, 4294901760
      %v3479 = vsub.f32 %v3135, %v3478
      %v3480 = vand.u32 %v3479, 4294901760
      %v3481 = vsub.f32 %v3479, %v3480
      %v3482 = vand.u32 %v3481, 4294901760
      %3483 = vmatmul.mubr.f32.gmra.mrb[0].mxu0 %v3482
      %v3484 = vpop.f32.mrb[0].mxu0
      %v3485 = vadd.f32 %v3169, %v3484
      %v3486 = vpop.f32.mrb[0].mxu0
      %v3487 = vand.u32 %v3208, 4294901760
      %v3488 = vsub.f32 %v3208, %v3487
      %v3489 = vand.u32 %v3488, 4294901760
      %v3490 = vsub.f32 %v3488, %v3489
      %v3491 = vand.u32 %v3490, 4294901760
      %3492 = vmatprep.mubr.f32.mxu0 %v3491
      %v3493 = vand.u32 %v3136, 4294901760
      %v3494 = vsub.f32 %v3136, %v3493
      %v3495 = vand.u32 %v3494, 4294901760
      %v3496 = vsub.f32 %v3494, %v3495
      %v3497 = vand.u32 %v3496, 4294901760
      %3498 = vmatmul.mubr.f32.gmra.mrb[0].mxu0 %v3497
      %v3499 = vpop.f32.mrb[0].mxu0
      %v3500 = vadd.f32 %v3169, %v3499
      %v3501 = vpop.f32.mrb[0].mxu0
      %v3502 = vand.u32 %v3211, 4294901760
      %v3503 = vsub.f32 %v3211, %v3502
      %v3504 = vand.u32 %v3503, 4294901760
      %v3505 = vsub.f32 %v3503, %v3504
      %v3506 = vand.u32 %v3505, 4294901760
      %3507 = vmatprep.mubr.f32.mxu0 %v3506
      %v3508 = vand.u32 %v3137, 4294901760
      %v3509 = vsub.f32 %v3137, %v3508
      %v3510 = vand.u32 %v3509, 4294901760
      %v3511 = vsub.f32 %v3509, %v3510
      %v3512 = vand.u32 %v3511, 4294901760
      %3513 = vmatmul.mubr.f32.gmra.mrb[0].mxu0 %v3512
      %v3514 = vpop.f32.mrb[0].mxu0
      %v3515 = vadd.f32 %v3169, %v3514
      %v3516 = vpop.f32.mrb[0].mxu0
      %v3517 = vand.u32 %v3214, 4294901760
      %v3518 = vsub.f32 %v3214, %v3517
      %v3519 = vand.u32 %v3518, 4294901760
      %v3520 = vsub.f32 %v3518, %v3519
      %v3521 = vand.u32 %v3520, 4294901760
      %3522 = vmatprep.mubr.f32.mxu0 %v3521
      %v3523 = vand.u32 %v3138, 4294901760
      %v3524 = vsub.f32 %v3138, %v3523
      %v3525 = vand.u32 %v3524, 4294901760
      %v3526 = vsub.f32 %v3524, %v3525
      %v3527 = vand.u32 %v3526, 4294901760
      %3528 = vmatmul.mubr.f32.gmra.mrb[0].mxu0 %v3527
      %v3529 = vpop.f32.mrb[0].mxu0
      %v3530 = vadd.f32 %v3169, %v3529
      %v3531 = vpop.f32.mrb[0].mxu0
      %v3532 = vand.u32 %v3217, 4294901760
      %v3533 = vsub.f32 %v3217, %v3532
      %v3534 = vand.u32 %v3533, 4294901760
      %v3535 = vsub.f32 %v3533, %v3534
      %v3536 = vand.u32 %v3535, 4294901760
      %3537 = vmatprep.mubr.f32.mxu0 %v3536
      %v3538 = vand.u32 %v3139, 4294901760
      %v3539 = vsub.f32 %v3139, %v3538
      %v3540 = vand.u32 %v3539, 4294901760
      %v3541 = vsub.f32 %v3539, %v3540
      %v3542 = vand.u32 %v3541, 4294901760
      %3543 = vmatmul.mubr.f32.gmra.mrb[0].mxu0 %v3542
      %v3544 = vpop.f32.mrb[0].mxu0
      %v3545 = vadd.f32 %v3169, %v3544
      %v3546 = vpop.f32.mrb[0].mxu0
      %3547 = vdwg.mxu0
      %3548 = vmatprep.subr.mxu0 0.0
      %v3549 = vand.u32 %v3140, 4294901760
      %v3550 = vsub.f32 %v3140, %v3549
      %v3551 = vand.u32 %v3550, 4294901760
      %v3552 = vsub.f32 %v3550, %v3551
      %v3553 = vand.u32 %v3552, 4294901760
      %3554 = vmatpush1.msra.mxu0 %v3553
      %3555 = vmatprep.subr.mxu0 0.0
      %v3556 = vand.u32 %v3141, 4294901760
      %v3557 = vsub.f32 %v3141, %v3556
      %v3558 = vand.u32 %v3557, 4294901760
      %v3559 = vsub.f32 %v3557, %v3558
      %v3560 = vand.u32 %v3559, 4294901760
      %3561 = vmatpush1.msra.mxu0 %v3560
      %3562 = vmatprep.subr.mxu0 0.0
      %v3563 = vand.u32 %v3142, 4294901760
      %v3564 = vsub.f32 %v3142, %v3563
      %v3565 = vand.u32 %v3564, 4294901760
      %v3566 = vsub.f32 %v3564, %v3565
      %v3567 = vand.u32 %v3566, 4294901760
      %3568 = vmatpush1.msra.mxu0 %v3567
      %3569 = vmatprep.subr.mxu0 0.0
      %v3570 = vand.u32 %v3143, 4294901760
      %v3571 = vsub.f32 %v3143, %v3570
      %v3572 = vand.u32 %v3571, 4294901760
      %v3573 = vsub.f32 %v3571, %v3572
      %v3574 = vand.u32 %v3573, 4294901760
      %3575 = vmatpush1.msra.mxu0 %v3574
      %3576 = vmatprep.subr.mxu0 0.0
      %v3577 = vand.u32 %v3144, 4294901760
      %v3578 = vsub.f32 %v3144, %v3577
      %v3579 = vand.u32 %v3578, 4294901760
      %v3580 = vsub.f32 %v3578, %v3579
      %v3581 = vand.u32 %v3580, 4294901760
      %3582 = vmatpush1.msra.mxu0 %v3581
      %3583 = vmatprep.subr.mxu0 0.0
      %v3584 = vand.u32 %v3145, 4294901760
      %v3585 = vsub.f32 %v3145, %v3584
      %v3586 = vand.u32 %v3585, 4294901760
      %v3587 = vsub.f32 %v3585, %v3586
      %v3588 = vand.u32 %v3587, 4294901760
      %3589 = vmatpush1.msra.mxu0 %v3588
      %3590 = vmatprep.subr.mxu0 0.0
      %v3591 = vand.u32 %v3146, 4294901760
      %v3592 = vsub.f32 %v3146, %v3591
      %v3593 = vand.u32 %v3592, 4294901760
      %v3594 = vsub.f32 %v3592, %v3593
      %v3595 = vand.u32 %v3594, 4294901760
      %3596 = vmatpush1.msra.mxu0 %v3595
      %3597 = vmatprep.subr.mxu0 0.0
      %v3598 = vand.u32 %v3147, 4294901760
      %v3599 = vsub.f32 %v3147, %v3598
      %v3600 = vand.u32 %v3599, 4294901760
      %v3601 = vsub.f32 %v3599, %v3600
      %v3602 = vand.u32 %v3601, 4294901760
      %3603 = vmatpush1.msra.mxu0 %v3602
      %3604 = vmatprep.subr.mxu0 0.0
      %v3605 = vand.u32 %v3148, 4294901760
      %v3606 = vsub.f32 %v3148, %v3605
      %v3607 = vand.u32 %v3606, 4294901760
      %v3608 = vsub.f32 %v3606, %v3607
      %v3609 = vand.u32 %v3608, 4294901760
      %3610 = vmatpush1.msra.mxu0 %v3609
      %3611 = vmatprep.subr.mxu0 0.0
      %v3612 = vand.u32 %v3149, 4294901760
      %v3613 = vsub.f32 %v3149, %v3612
      %v3614 = vand.u32 %v3613, 4294901760
      %v3615 = vsub.f32 %v3613, %v3614
      %v3616 = vand.u32 %v3615, 4294901760
      %3617 = vmatpush1.msra.mxu0 %v3616
      %3618 = vmatprep.subr.mxu0 0.0
      %v3619 = vand.u32 %v3150, 4294901760
      %v3620 = vsub.f32 %v3150, %v3619
      %v3621 = vand.u32 %v3620, 4294901760
      %v3622 = vsub.f32 %v3620, %v3621
      %v3623 = vand.u32 %v3622, 4294901760
      %3624 = vmatpush1.msra.mxu0 %v3623
      %3625 = vmatprep.subr.mxu0 0.0
      %v3626 = vand.u32 %v3151, 4294901760
      %v3627 = vsub.f32 %v3151, %v3626
      %v3628 = vand.u32 %v3627, 4294901760
      %v3629 = vsub.f32 %v3627, %v3628
      %v3630 = vand.u32 %v3629, 4294901760
      %3631 = vmatpush1.msra.mxu0 %v3630
      %3632 = vmatprep.subr.mxu0 0.0
      %v3633 = vand.u32 %v3152, 4294901760
      %v3634 = vsub.f32 %v3152, %v3633
      %v3635 = vand.u32 %v3634, 4294901760
      %v3636 = vsub.f32 %v3634, %v3635
      %v3637 = vand.u32 %v3636, 4294901760
      %3638 = vmatpush1.msra.mxu0 %v3637
      %3639 = vmatprep.subr.mxu0 0.0
      %v3640 = vand.u32 %v3153, 4294901760
      %v3641 = vsub.f32 %v3153, %v3640
      %v3642 = vand.u32 %v3641, 4294901760
      %v3643 = vsub.f32 %v3641, %v3642
      %v3644 = vand.u32 %v3643, 4294901760
      %3645 = vmatpush1.msra.mxu0 %v3644
      %3646 = vmatprep.subr.mxu0 0.0
      %v3647 = vand.u32 %v3154, 4294901760
      %v3648 = vsub.f32 %v3154, %v3647
      %v3649 = vand.u32 %v3648, 4294901760
      %v3650 = vsub.f32 %v3648, %v3649
      %v3651 = vand.u32 %v3650, 4294901760
      %3652 = vmatpush1.msra.mxu0 %v3651
      %3653 = vmatprep.subr.mxu0 0.0
      %v3654 = vand.u32 %v3155, 4294901760
      %v3655 = vsub.f32 %v3155, %v3654
      %v3656 = vand.u32 %v3655, 4294901760
      %v3657 = vsub.f32 %v3655, %v3656
      %v3658 = vand.u32 %v3657, 4294901760
      %3659 = vmatpush1.msra.mxu0 %v3658
      %3660 = vmatprep.subr.mxu0 0.0
      %v3661 = vand.u32 %v3156, 4294901760
      %v3662 = vsub.f32 %v3156, %v3661
      %v3663 = vand.u32 %v3662, 4294901760
      %v3664 = vsub.f32 %v3662, %v3663
      %v3665 = vand.u32 %v3664, 4294901760
      %3666 = vmatpush1.msra.mxu0 %v3665
      %3667 = vmatprep.subr.mxu0 0.0
      %v3668 = vand.u32 %v3157, 4294901760
      %v3669 = vsub.f32 %v3157, %v3668
      %v3670 = vand.u32 %v3669, 4294901760
      %v3671 = vsub.f32 %v3669, %v3670
      %v3672 = vand.u32 %v3671, 4294901760
      %3673 = vmatpush1.msra.mxu0 %v3672
      %3674 = vmatprep.subr.mxu0 0.0
      %v3675 = vand.u32 %v3158, 4294901760
      %v3676 = vsub.f32 %v3158, %v3675
      %v3677 = vand.u32 %v3676, 4294901760
      %v3678 = vsub.f32 %v3676, %v3677
      %v3679 = vand.u32 %v3678, 4294901760
      %3680 = vmatpush1.msra.mxu0 %v3679
      %3681 = vmatprep.subr.mxu0 0.0
      %v3682 = vand.u32 %v3159, 4294901760
      %v3683 = vsub.f32 %v3159, %v3682
      %v3684 = vand.u32 %v3683, 4294901760
      %v3685 = vsub.f32 %v3683, %v3684
      %v3686 = vand.u32 %v3685, 4294901760
      %3687 = vmatpush1.msra.mxu0 %v3686
      %3688 = vmatprep.subr.mxu0 0.0
      %v3689 = vand.u32 %v3160, 4294901760
      %v3690 = vsub.f32 %v3160, %v3689
      %v3691 = vand.u32 %v3690, 4294901760
      %v3692 = vsub.f32 %v3690, %v3691
      %v3693 = vand.u32 %v3692, 4294901760
      %3694 = vmatpush1.msra.mxu0 %v3693
      %3695 = vmatprep.subr.mxu0 0.0
      %v3696 = vand.u32 %v3161, 4294901760
      %v3697 = vsub.f32 %v3161, %v3696
      %v3698 = vand.u32 %v3697, 4294901760
      %v3699 = vsub.f32 %v3697, %v3698
      %v3700 = vand.u32 %v3699, 4294901760
      %3701 = vmatpush1.msra.mxu0 %v3700
      %3702 = vmatprep.subr.mxu0 0.0
      %v3703 = vand.u32 %v3162, 4294901760
      %v3704 = vsub.f32 %v3162, %v3703
      %v3705 = vand.u32 %v3704, 4294901760
      %v3706 = vsub.f32 %v3704, %v3705
      %v3707 = vand.u32 %v3706, 4294901760
      %3708 = vmatpush1.msra.mxu0 %v3707
      %3709 = vmatprep.subr.mxu0 0.0
      %v3710 = vand.u32 %v3163, 4294901760
      %v3711 = vsub.f32 %v3163, %v3710
      %v3712 = vand.u32 %v3711, 4294901760
      %v3713 = vsub.f32 %v3711, %v3712
      %v3714 = vand.u32 %v3713, 4294901760
      %3715 = vmatpush1.msra.mxu0 %v3714
      %3716 = vmatprep.subr.mxu0 0.0
      %3717 = vmatpush1.msra.mxu0 0.0
      %3718 = vmatprep.subr.mxu0 0.0
      %3719 = vmatpush1.msra.mxu0 0.0
      %3720 = vmatprep.subr.mxu0 0.0
      %3721 = vmatpush1.msra.mxu0 0.0
      %3722 = vmatprep.subr.mxu0 0.0
      %3723 = vmatpush1.msra.mxu0 0.0
      %3724 = vmatprep.subr.mxu0 0.0
      %3725 = vmatpush1.msra.mxu0 0.0
      %3726 = vmatprep.subr.mxu0 0.0
      %3727 = vmatpush1.msra.mxu0 0.0
      %3728 = vmatprep.subr.mxu0 0.0
      %3729 = vmatpush1.msra.mxu0 0.0
      %3730 = vmatprep.subr.mxu0 0.0
      %3731 = vmatpush1.msra.mxu0 0.0
      %v3732 = vand.u32 %v3172, 4294901760
      %3733 = vmatprep.mubr.f32.mxu0 %v3732
      %v3734 = vand.u32 %v3124, 4294901760
      %3735 = vmatmul.mubr.f32.gmra.mrb[0].mxu0 %v3734
      %v3736 = vpop.f32.mrb[0].mxu0
      %v3737 = vadd.f32 %v3320, %v3736
      %v3738 = vpop.f32.mrb[0].mxu0
      %v3739 = vand.u32 %v3175, 4294901760
      %3740 = vmatprep.mubr.f32.mxu0 %v3739
      %v3741 = vand.u32 %v3125, 4294901760
      %3742 = vmatmul.mubr.f32.gmra.mrb[0].mxu0 %v3741
      %v3743 = vpop.f32.mrb[0].mxu0
      %v3744 = vadd.f32 %v3335, %v3743
      %v3745 = vpop.f32.mrb[0].mxu0
      %v3746 = vand.u32 %v3178, 4294901760
      %3747 = vmatprep.mubr.f32.mxu0 %v3746
      %v3748 = vand.u32 %v3126, 4294901760
      %3749 = vmatmul.mubr.f32.gmra.mrb[0].mxu0 %v3748
      %v3750 = vpop.f32.mrb[0].mxu0
      %v3751 = vadd.f32 %v3350, %v3750
      %v3752 = vpop.f32.mrb[0].mxu0
      %v3753 = vand.u32 %v3181, 4294901760
      %3754 = vmatprep.mubr.f32.mxu0 %v3753
      %v3755 = vand.u32 %v3127, 4294901760
      %3756 = vmatmul.mubr.f32.gmra.mrb[0].mxu0 %v3755
      %v3757 = vpop.f32.mrb[0].mxu0
      %v3758 = vadd.f32 %v3365, %v3757
      %v3759 = vpop.f32.mrb[0].mxu0
      %v3760 = vand.u32 %v3184, 4294901760
      %3761 = vmatprep.mubr.f32.mxu0 %v3760
      %v3762 = vand.u32 %v3128, 4294901760
      %3763 = vmatmul.mubr.f32.gmra.mrb[0].mxu0 %v3762
      %v3764 = vpop.f32.mrb[0].mxu0
      %v3765 = vadd.f32 %v3380, %v3764
      %v3766 = vpop.f32.mrb[0].mxu0
      %v3767 = vand.u32 %v3187, 4294901760
      %3768 = vmatprep.mubr.f32.mxu0 %v3767
      %v3769 = vand.u32 %v3129, 4294901760
      %3770 = vmatmul.mubr.f32.gmra.mrb[0].mxu0 %v3769
      %v3771 = vpop.f32.mrb[0].mxu0
      %v3772 = vadd.f32 %v3395, %v3771
      %v3773 = vpop.f32.mrb[0].mxu0
      %v3774 = vand.u32 %v3190, 4294901760
      %3775 = vmatprep.mubr.f32.mxu0 %v3774
      %v3776 = vand.u32 %v3130, 4294901760
      %3777 = vmatmul.mubr.f32.gmra.mrb[0].mxu0 %v3776
      %v3778 = vpop.f32.mrb[0].mxu0
      %v3779 = vadd.f32 %v3410, %v3778
      %v3780 = vpop.f32.mrb[0].mxu0
      %v3781 = vand.u32 %v3193, 4294901760
      %3782 = vmatprep.mubr.f32.mxu0 %v3781
      %v3783 = vand.u32 %v3131, 4294901760
      %3784 = vmatmul.mubr.f32.gmra.mrb[0].mxu0 %v3783
      %v3785 = vpop.f32.mrb[0].mxu0
      %v3786 = vadd.f32 %v3425, %v3785
      %v3787 = vpop.f32.mrb[0].mxu0
      %v3788 = vand.u32 %v3196, 4294901760
      %3789 = vmatprep.mubr.f32.mxu0 %v3788
      %v3790 = vand.u32 %v3132, 4294901760
      %3791 = vmatmul.mubr.f32.gmra.mrb[0].mxu0 %v3790
      %v3792 = vpop.f32.mrb[0].mxu0
      %v3793 = vadd.f32 %v3440, %v3792
      %v3794 = vpop.f32.mrb[0].mxu0
      %v3795 = vand.u32 %v3199, 4294901760
      %3796 = vmatprep.mubr.f32.mxu0 %v3795
      %v3797 = vand.u32 %v3133, 4294901760
      %3798 = vmatmul.mubr.f32.gmra.mrb[0].mxu0 %v3797
      %v3799 = vpop.f32.mrb[0].mxu0
      %v3800 = vadd.f32 %v3455, %v3799
      %v3801 = vpop.f32.mrb[0].mxu0
      %v3802 = vand.u32 %v3202, 4294901760
      %3803 = vmatprep.mubr.f32.mxu0 %v3802
      %v3804 = vand.u32 %v3134, 4294901760
      %3805 = vmatmul.mubr.f32.gmra.mrb[0].mxu0 %v3804
      %v3806 = vpop.f32.mrb[0].mxu0
      %v3807 = vadd.f32 %v3470, %v3806
      %v3808 = vpop.f32.mrb[0].mxu0
      %v3809 = vand.u32 %v3205, 4294901760
      %3810 = vmatprep.mubr.f32.mxu0 %v3809
      %v3811 = vand.u32 %v3135, 4294901760
      %3812 = vmatmul.mubr.f32.gmra.mrb[0].mxu0 %v3811
      %v3813 = vpop.f32.mrb[0].mxu0
      %v3814 = vadd.f32 %v3485, %v3813
      %v3815 = vpop.f32.mrb[0].mxu0
      %v3816 = vand.u32 %v3208, 4294901760
      %3817 = vmatprep.mubr.f32.mxu0 %v3816
      %v3818 = vand.u32 %v3136, 4294901760
      %3819 = vmatmul.mubr.f32.gmra.mrb[0].mxu0 %v3818
      %v3820 = vpop.f32.mrb[0].mxu0
      %v3821 = vadd.f32 %v3500, %v3820
      %v3822 = vpop.f32.mrb[0].mxu0
      %v3823 = vand.u32 %v3211, 4294901760
      %3824 = vmatprep.mubr.f32.mxu0 %v3823
      %v3825 = vand.u32 %v3137, 4294901760
      %3826 = vmatmul.mubr.f32.gmra.mrb[0].mxu0 %v3825
      %v3827 = vpop.f32.mrb[0].mxu0
      %v3828 = vadd.f32 %v3515, %v3827
      %v3829 = vpop.f32.mrb[0].mxu0
      %v3830 = vand.u32 %v3214, 4294901760
      %3831 = vmatprep.mubr.f32.mxu0 %v3830
      %v3832 = vand.u32 %v3138, 4294901760
      %3833 = vmatmul.mubr.f32.gmra.mrb[0].mxu0 %v3832
      %v3834 = vpop.f32.mrb[0].mxu0
      %v3835 = vadd.f32 %v3530, %v3834
      %v3836 = vpop.f32.mrb[0].mxu0
      %v3837 = vand.u32 %v3217, 4294901760
      %3838 = vmatprep.mubr.f32.mxu0 %v3837
      %v3839 = vand.u32 %v3139, 4294901760
      %3840 = vmatmul.mubr.f32.gmra.mrb[0].mxu0 %v3839
      %v3841 = vpop.f32.mrb[0].mxu0
      %v3842 = vadd.f32 %v3545, %v3841
      %v3843 = vpop.f32.mrb[0].mxu0
      %3844 = vdwg.mxu0
      %3845 = vmatprep.subr.mxu0 0.0
      %v3846 = vand.u32 %v3140, 4294901760
      %v3847 = vsub.f32 %v3140, %v3846
      %3848 = vmatpush1.msra.mxu0 %v3847
      %3849 = vmatprep.subr.mxu0 0.0
      %v3850 = vand.u32 %v3141, 4294901760
      %v3851 = vsub.f32 %v3141, %v3850
      %3852 = vmatpush1.msra.mxu0 %v3851
      %3853 = vmatprep.subr.mxu0 0.0
      %v3854 = vand.u32 %v3142, 4294901760
      %v3855 = vsub.f32 %v3142, %v3854
      %3856 = vmatpush1.msra.mxu0 %v3855
      %3857 = vmatprep.subr.mxu0 0.0
      %v3858 = vand.u32 %v3143, 4294901760
      %v3859 = vsub.f32 %v3143, %v3858
      %3860 = vmatpush1.msra.mxu0 %v3859
      %3861 = vmatprep.subr.mxu0 0.0
      %v3862 = vand.u32 %v3144, 4294901760
      %v3863 = vsub.f32 %v3144, %v3862
      %3864 = vmatpush1.msra.mxu0 %v3863
      %3865 = vmatprep.subr.mxu0 0.0
      %v3866 = vand.u32 %v3145, 4294901760
      %v3867 = vsub.f32 %v3145, %v3866
      %3868 = vmatpush1.msra.mxu0 %v3867
      %3869 = vmatprep.subr.mxu0 0.0
      %v3870 = vand.u32 %v3146, 4294901760
      %v3871 = vsub.f32 %v3146, %v3870
      %3872 = vmatpush1.msra.mxu0 %v3871
      %3873 = vmatprep.subr.mxu0 0.0
      %v3874 = vand.u32 %v3147, 4294901760
      %v3875 = vsub.f32 %v3147, %v3874
      %3876 = vmatpush1.msra.mxu0 %v3875
      %3877 = vmatprep.subr.mxu0 0.0
      %v3878 = vand.u32 %v3148, 4294901760
      %v3879 = vsub.f32 %v3148, %v3878
      %3880 = vmatpush1.msra.mxu0 %v3879
      %3881 = vmatprep.subr.mxu0 0.0
      %v3882 = vand.u32 %v3149, 4294901760
      %v3883 = vsub.f32 %v3149, %v3882
      %3884 = vmatpush1.msra.mxu0 %v3883
      %3885 = vmatprep.subr.mxu0 0.0
      %v3886 = vand.u32 %v3150, 4294901760
      %v3887 = vsub.f32 %v3150, %v3886
      %3888 = vmatpush1.msra.mxu0 %v3887
      %3889 = vmatprep.subr.mxu0 0.0
      %v3890 = vand.u32 %v3151, 4294901760
      %v3891 = vsub.f32 %v3151, %v3890
      %3892 = vmatpush1.msra.mxu0 %v3891
      %3893 = vmatprep.subr.mxu0 0.0
      %v3894 = vand.u32 %v3152, 4294901760
      %v3895 = vsub.f32 %v3152, %v3894
      %3896 = vmatpush1.msra.mxu0 %v3895
      %3897 = vmatprep.subr.mxu0 0.0
      %v3898 = vand.u32 %v3153, 4294901760
      %v3899 = vsub.f32 %v3153, %v3898
      %3900 = vmatpush1.msra.mxu0 %v3899
      %3901 = vmatprep.subr.mxu0 0.0
      %v3902 = vand.u32 %v3154, 4294901760
      %v3903 = vsub.f32 %v3154, %v3902
      %3904 = vmatpush1.msra.mxu0 %v3903
      %3905 = vmatprep.subr.mxu0 0.0
      %v3906 = vand.u32 %v3155, 4294901760
      %v3907 = vsub.f32 %v3155, %v3906
      %3908 = vmatpush1.msra.mxu0 %v3907
      %3909 = vmatprep.subr.mxu0 0.0
      %v3910 = vand.u32 %v3156, 4294901760
      %v3911 = vsub.f32 %v3156, %v3910
      %3912 = vmatpush1.msra.mxu0 %v3911
      %3913 = vmatprep.subr.mxu0 0.0
      %v3914 = vand.u32 %v3157, 4294901760
      %v3915 = vsub.f32 %v3157, %v3914
      %3916 = vmatpush1.msra.mxu0 %v3915
      %3917 = vmatprep.subr.mxu0 0.0
      %v3918 = vand.u32 %v3158, 4294901760
      %v3919 = vsub.f32 %v3158, %v3918
      %3920 = vmatpush1.msra.mxu0 %v3919
      %3921 = vmatprep.subr.mxu0 0.0
      %v3922 = vand.u32 %v3159, 4294901760
      %v3923 = vsub.f32 %v3159, %v3922
      %3924 = vmatpush1.msra.mxu0 %v3923
      %3925 = vmatprep.subr.mxu0 0.0
      %v3926 = vand.u32 %v3160, 4294901760
      %v3927 = vsub.f32 %v3160, %v3926
      %3928 = vmatpush1.msra.mxu0 %v3927
      %3929 = vmatprep.subr.mxu0 0.0
      %v3930 = vand.u32 %v3161, 4294901760
      %v3931 = vsub.f32 %v3161, %v3930
      %3932 = vmatpush1.msra.mxu0 %v3931
      %3933 = vmatprep.subr.mxu0 0.0
      %v3934 = vand.u32 %v3162, 4294901760
      %v3935 = vsub.f32 %v3162, %v3934
      %3936 = vmatpush1.msra.mxu0 %v3935
      %3937 = vmatprep.subr.mxu0 0.0
      %v3938 = vand.u32 %v3163, 4294901760
      %v3939 = vsub.f32 %v3163, %v3938
      %3940 = vmatpush1.msra.mxu0 %v3939
      %3941 = vmatprep.subr.mxu0 0.0
      %3942 = vmatpush1.msra.mxu0 0.0
      %3943 = vmatprep.subr.mxu0 0.0
      %3944 = vmatpush1.msra.mxu0 0.0
      %3945 = vmatprep.subr.mxu0 0.0
      %3946 = vmatpush1.msra.mxu0 0.0
      %3947 = vmatprep.subr.mxu0 0.0
      %3948 = vmatpush1.msra.mxu0 0.0
      %3949 = vmatprep.subr.mxu0 0.0
      %3950 = vmatpush1.msra.mxu0 0.0
      %3951 = vmatprep.subr.mxu0 0.0
      %3952 = vmatpush1.msra.mxu0 0.0
      %3953 = vmatprep.subr.mxu0 0.0
      %3954 = vmatpush1.msra.mxu0 0.0
      %3955 = vmatprep.subr.mxu0 0.0
      %3956 = vmatpush1.msra.mxu0 0.0
      %v3957 = vand.u32 %v3172, 4294901760
      %v3958 = vsub.f32 %v3172, %v3957
      %3959 = vmatprep.mubr.f32.mxu0 %v3958
      %v3960 = vand.u32 %v3124, 4294901760
      %v3961 = vsub.f32 %v3124, %v3960
      %3962 = vmatmul.mubr.f32.gmra.mrb[0].mxu0 %v3961
      %v3963 = vpop.f32.mrb[0].mxu0
      %v3964 = vadd.f32 %v3737, %v3963
      %v3965 = vpop.f32.mrb[0].mxu0
      %v3966 = vand.u32 %v3175, 4294901760
      %v3967 = vsub.f32 %v3175, %v3966
      %3968 = vmatprep.mubr.f32.mxu0 %v3967
      %v3969 = vand.u32 %v3125, 4294901760
      %v3970 = vsub.f32 %v3125, %v3969
      %3971 = vmatmul.mubr.f32.gmra.mrb[0].mxu0 %v3970
      %v3972 = vpop.f32.mrb[0].mxu0
      %v3973 = vadd.f32 %v3744, %v3972
      %v3974 = vpop.f32.mrb[0].mxu0
      %v3975 = vand.u32 %v3178, 4294901760
      %v3976 = vsub.f32 %v3178, %v3975
      %3977 = vmatprep.mubr.f32.mxu0 %v3976
      %v3978 = vand.u32 %v3126, 4294901760
      %v3979 = vsub.f32 %v3126, %v3978
      %3980 = vmatmul.mubr.f32.gmra.mrb[0].mxu0 %v3979
      %v3981 = vpop.f32.mrb[0].mxu0
      %v3982 = vadd.f32 %v3751, %v3981
      %v3983 = vpop.f32.mrb[0].mxu0
      %v3984 = vand.u32 %v3181, 4294901760
      %v3985 = vsub.f32 %v3181, %v3984
      %3986 = vmatprep.mubr.f32.mxu0 %v3985
      %v3987 = vand.u32 %v3127, 4294901760
      %v3988 = vsub.f32 %v3127, %v3987
      %3989 = vmatmul.mubr.f32.gmra.mrb[0].mxu0 %v3988
      %v3990 = vpop.f32.mrb[0].mxu0
      %v3991 = vadd.f32 %v3758, %v3990
      %v3992 = vpop.f32.mrb[0].mxu0
      %v3993 = vand.u32 %v3184, 4294901760
      %v3994 = vsub.f32 %v3184, %v3993
      %3995 = vmatprep.mubr.f32.mxu0 %v3994
      %v3996 = vand.u32 %v3128, 4294901760
      %v3997 = vsub.f32 %v3128, %v3996
      %3998 = vmatmul.mubr.f32.gmra.mrb[0].mxu0 %v3997
      %v3999 = vpop.f32.mrb[0].mxu0
      %v4000 = vadd.f32 %v3765, %v3999
      %v4001 = vpop.f32.mrb[0].mxu0
      %v4002 = vand.u32 %v3187, 4294901760
      %v4003 = vsub.f32 %v3187, %v4002
      %4004 = vmatprep.mubr.f32.mxu0 %v4003
      %v4005 = vand.u32 %v3129, 4294901760
      %v4006 = vsub.f32 %v3129, %v4005
      %4007 = vmatmul.mubr.f32.gmra.mrb[0].mxu0 %v4006
      %v4008 = vpop.f32.mrb[0].mxu0
      %v4009 = vadd.f32 %v3772, %v4008
      %v4010 = vpop.f32.mrb[0].mxu0
      %v4011 = vand.u32 %v3190, 4294901760
      %v4012 = vsub.f32 %v3190, %v4011
      %4013 = vmatprep.mubr.f32.mxu0 %v4012
      %v4014 = vand.u32 %v3130, 4294901760
      %v4015 = vsub.f32 %v3130, %v4014
      %4016 = vmatmul.mubr.f32.gmra.mrb[0].mxu0 %v4015
      %v4017 = vpop.f32.mrb[0].mxu0
      %v4018 = vadd.f32 %v3779, %v4017
      %v4019 = vpop.f32.mrb[0].mxu0
      %v4020 = vand.u32 %v3193, 4294901760
      %v4021 = vsub.f32 %v3193, %v4020
      %4022 = vmatprep.mubr.f32.mxu0 %v4021
      %v4023 = vand.u32 %v3131, 4294901760
      %v4024 = vsub.f32 %v3131, %v4023
      %4025 = vmatmul.mubr.f32.gmra.mrb[0].mxu0 %v4024
      %v4026 = vpop.f32.mrb[0].mxu0
      %v4027 = vadd.f32 %v3786, %v4026
      %v4028 = vpop.f32.mrb[0].mxu0
      %v4029 = vand.u32 %v3196, 4294901760
      %v4030 = vsub.f32 %v3196, %v4029
      %4031 = vmatprep.mubr.f32.mxu0 %v4030
      %v4032 = vand.u32 %v3132, 4294901760
      %v4033 = vsub.f32 %v3132, %v4032
      %4034 = vmatmul.mubr.f32.gmra.mrb[0].mxu0 %v4033
      %v4035 = vpop.f32.mrb[0].mxu0
      %v4036 = vadd.f32 %v3793, %v4035
      %v4037 = vpop.f32.mrb[0].mxu0
      %v4038 = vand.u32 %v3199, 4294901760
      %v4039 = vsub.f32 %v3199, %v4038
      %4040 = vmatprep.mubr.f32.mxu0 %v4039
      %v4041 = vand.u32 %v3133, 4294901760
      %v4042 = vsub.f32 %v3133, %v4041
      %4043 = vmatmul.mubr.f32.gmra.mrb[0].mxu0 %v4042
      %v4044 = vpop.f32.mrb[0].mxu0
      %v4045 = vadd.f32 %v3800, %v4044
      %v4046 = vpop.f32.mrb[0].mxu0
      %v4047 = vand.u32 %v3202, 4294901760
      %v4048 = vsub.f32 %v3202, %v4047
      %4049 = vmatprep.mubr.f32.mxu0 %v4048
      %v4050 = vand.u32 %v3134, 4294901760
      %v4051 = vsub.f32 %v3134, %v4050
      %4052 = vmatmul.mubr.f32.gmra.mrb[0].mxu0 %v4051
      %v4053 = vpop.f32.mrb[0].mxu0
      %v4054 = vadd.f32 %v3807, %v4053
      %v4055 = vpop.f32.mrb[0].mxu0
      %v4056 = vand.u32 %v3205, 4294901760
      %v4057 = vsub.f32 %v3205, %v4056
      %4058 = vmatprep.mubr.f32.mxu0 %v4057
      %v4059 = vand.u32 %v3135, 4294901760
      %v4060 = vsub.f32 %v3135, %v4059
      %4061 = vmatmul.mubr.f32.gmra.mrb[0].mxu0 %v4060
      %v4062 = vpop.f32.mrb[0].mxu0
      %v4063 = vadd.f32 %v3814, %v4062
      %v4064 = vpop.f32.mrb[0].mxu0
      %v4065 = vand.u32 %v3208, 4294901760
      %v4066 = vsub.f32 %v3208, %v4065
      %4067 = vmatprep.mubr.f32.mxu0 %v4066
      %v4068 = vand.u32 %v3136, 4294901760
      %v4069 = vsub.f32 %v3136, %v4068
      %4070 = vmatmul.mubr.f32.gmra.mrb[0].mxu0 %v4069
      %v4071 = vpop.f32.mrb[0].mxu0
      %v4072 = vadd.f32 %v3821, %v4071
      %v4073 = vpop.f32.mrb[0].mxu0
      %v4074 = vand.u32 %v3211, 4294901760
      %v4075 = vsub.f32 %v3211, %v4074
      %4076 = vmatprep.mubr.f32.mxu0 %v4075
      %v4077 = vand.u32 %v3137, 4294901760
      %v4078 = vsub.f32 %v3137, %v4077
      %4079 = vmatmul.mubr.f32.gmra.mrb[0].mxu0 %v4078
      %v4080 = vpop.f32.mrb[0].mxu0
      %v4081 = vadd.f32 %v3828, %v4080
      %v4082 = vpop.f32.mrb[0].mxu0
      %v4083 = vand.u32 %v3214, 4294901760
      %v4084 = vsub.f32 %v3214, %v4083
      %4085 = vmatprep.mubr.f32.mxu0 %v4084
      %v4086 = vand.u32 %v3138, 4294901760
      %v4087 = vsub.f32 %v3138, %v4086
      %4088 = vmatmul.mubr.f32.gmra.mrb[0].mxu0 %v4087
      %v4089 = vpop.f32.mrb[0].mxu0
      %v4090 = vadd.f32 %v3835, %v4089
      %v4091 = vpop.f32.mrb[0].mxu0
      %v4092 = vand.u32 %v3217, 4294901760
      %v4093 = vsub.f32 %v3217, %v4092
      %4094 = vmatprep.mubr.f32.mxu0 %v4093
      %v4095 = vand.u32 %v3139, 4294901760
      %v4096 = vsub.f32 %v3139, %v4095
      %4097 = vmatmul.mubr.f32.gmra.mrb[0].mxu0 %v4096
      %v4098 = vpop.f32.mrb[0].mxu0
      %v4099 = vadd.f32 %v3842, %v4098
      %v4100 = vpop.f32.mrb[0].mxu0
      %4101 = vdwg.mxu0
      %4102 = vmatprep.subr.mxu0 0.0
      %v4103 = vand.u32 %v3140, 4294901760
      %4104 = vmatpush1.msra.mxu0 %v4103
      %4105 = vmatprep.subr.mxu0 0.0
      %v4106 = vand.u32 %v3141, 4294901760
      %4107 = vmatpush1.msra.mxu0 %v4106
      %4108 = vmatprep.subr.mxu0 0.0
      %v4109 = vand.u32 %v3142, 4294901760
      %4110 = vmatpush1.msra.mxu0 %v4109
      %4111 = vmatprep.subr.mxu0 0.0
      %v4112 = vand.u32 %v3143, 4294901760
      %4113 = vmatpush1.msra.mxu0 %v4112
      %4114 = vmatprep.subr.mxu0 0.0
      %v4115 = vand.u32 %v3144, 4294901760
      %4116 = vmatpush1.msra.mxu0 %v4115
      %4117 = vmatprep.subr.mxu0 0.0
      %v4118 = vand.u32 %v3145, 4294901760
      %4119 = vmatpush1.msra.mxu0 %v4118
      %4120 = vmatprep.subr.mxu0 0.0
      %v4121 = vand.u32 %v3146, 4294901760
      %4122 = vmatpush1.msra.mxu0 %v4121
      %4123 = vmatprep.subr.mxu0 0.0
      %v4124 = vand.u32 %v3147, 4294901760
      %4125 = vmatpush1.msra.mxu0 %v4124
      %4126 = vmatprep.subr.mxu0 0.0
      %v4127 = vand.u32 %v3148, 4294901760
      %4128 = vmatpush1.msra.mxu0 %v4127
      %4129 = vmatprep.subr.mxu0 0.0
      %v4130 = vand.u32 %v3149, 4294901760
      %4131 = vmatpush1.msra.mxu0 %v4130
      %4132 = vmatprep.subr.mxu0 0.0
      %v4133 = vand.u32 %v3150, 4294901760
      %4134 = vmatpush1.msra.mxu0 %v4133
      %4135 = vmatprep.subr.mxu0 0.0
      %v4136 = vand.u32 %v3151, 4294901760
      %4137 = vmatpush1.msra.mxu0 %v4136
      %4138 = vmatprep.subr.mxu0 0.0
      %v4139 = vand.u32 %v3152, 4294901760
      %4140 = vmatpush1.msra.mxu0 %v4139
      %4141 = vmatprep.subr.mxu0 0.0
      %v4142 = vand.u32 %v3153, 4294901760
      %4143 = vmatpush1.msra.mxu0 %v4142
      %4144 = vmatprep.subr.mxu0 0.0
      %v4145 = vand.u32 %v3154, 4294901760
      %4146 = vmatpush1.msra.mxu0 %v4145
      %4147 = vmatprep.subr.mxu0 0.0
      %v4148 = vand.u32 %v3155, 4294901760
      %4149 = vmatpush1.msra.mxu0 %v4148
      %4150 = vmatprep.subr.mxu0 0.0
      %v4151 = vand.u32 %v3156, 4294901760
      %4152 = vmatpush1.msra.mxu0 %v4151
      %4153 = vmatprep.subr.mxu0 0.0
      %v4154 = vand.u32 %v3157, 4294901760
      %4155 = vmatpush1.msra.mxu0 %v4154
      %4156 = vmatprep.subr.mxu0 0.0
      %v4157 = vand.u32 %v3158, 4294901760
      %4158 = vmatpush1.msra.mxu0 %v4157
      %4159 = vmatprep.subr.mxu0 0.0
      %v4160 = vand.u32 %v3159, 4294901760
      %4161 = vmatpush1.msra.mxu0 %v4160
      %4162 = vmatprep.subr.mxu0 0.0
      %v4163 = vand.u32 %v3160, 4294901760
      %4164 = vmatpush1.msra.mxu0 %v4163
      %4165 = vmatprep.subr.mxu0 0.0
      %v4166 = vand.u32 %v3161, 4294901760
      %4167 = vmatpush1.msra.mxu0 %v4166
      %4168 = vmatprep.subr.mxu0 0.0
      %v4169 = vand.u32 %v3162, 4294901760
      %4170 = vmatpush1.msra.mxu0 %v4169
      %4171 = vmatprep.subr.mxu0 0.0
      %v4172 = vand.u32 %v3163, 4294901760
      %4173 = vmatpush1.msra.mxu0 %v4172
      %4174 = vmatprep.subr.mxu0 0.0
      %4175 = vmatpush1.msra.mxu0 0.0
      %4176 = vmatprep.subr.mxu0 0.0
      %4177 = vmatpush1.msra.mxu0 0.0
      %4178 = vmatprep.subr.mxu0 0.0
      %4179 = vmatpush1.msra.mxu0 0.0
      %4180 = vmatprep.subr.mxu0 0.0
      %4181 = vmatpush1.msra.mxu0 0.0
      %4182 = vmatprep.subr.mxu0 0.0
      %4183 = vmatpush1.msra.mxu0 0.0
      %4184 = vmatprep.subr.mxu0 0.0
      %4185 = vmatpush1.msra.mxu0 0.0
      %4186 = vmatprep.subr.mxu0 0.0
      %4187 = vmatpush1.msra.mxu0 0.0
      %4188 = vmatprep.subr.mxu0 0.0
      %4189 = vmatpush1.msra.mxu0 0.0
      %v4190 = vand.u32 %v3172, 4294901760
      %v4191 = vsub.f32 %v3172, %v4190
      %v4192 = vand.u32 %v4191, 4294901760
      %4193 = vmatprep.mubr.f32.mxu0 %v4192
      %v4194 = vand.u32 %v3124, 4294901760
      %v4195 = vsub.f32 %v3124, %v4194
      %v4196 = vand.u32 %v4195, 4294901760
      %4197 = vmatmul.mubr.f32.gmra.mrb[0].mxu0 %v4196
      %v4198 = vpop.f32.mrb[0].mxu0
      %v4199 = vadd.f32 %v3964, %v4198
      %v4200 = vpop.f32.mrb[0].mxu0
      %v4201 = vand.u32 %v3175, 4294901760
      %v4202 = vsub.f32 %v3175, %v4201
      %v4203 = vand.u32 %v4202, 4294901760
      %4204 = vmatprep.mubr.f32.mxu0 %v4203
      %v4205 = vand.u32 %v3125, 4294901760
      %v4206 = vsub.f32 %v3125, %v4205
      %v4207 = vand.u32 %v4206, 4294901760
      %4208 = vmatmul.mubr.f32.gmra.mrb[0].mxu0 %v4207
      %v4209 = vpop.f32.mrb[0].mxu0
      %v4210 = vadd.f32 %v3973, %v4209
      %v4211 = vpop.f32.mrb[0].mxu0
      %v4212 = vand.u32 %v3178, 4294901760
      %v4213 = vsub.f32 %v3178, %v4212
      %v4214 = vand.u32 %v4213, 4294901760
      %4215 = vmatprep.mubr.f32.mxu0 %v4214
      %v4216 = vand.u32 %v3126, 4294901760
      %v4217 = vsub.f32 %v3126, %v4216
      %v4218 = vand.u32 %v4217, 4294901760
      %4219 = vmatmul.mubr.f32.gmra.mrb[0].mxu0 %v4218
      %v4220 = vpop.f32.mrb[0].mxu0
      %v4221 = vadd.f32 %v3982, %v4220
      %v4222 = vpop.f32.mrb[0].mxu0
      %v4223 = vand.u32 %v3181, 4294901760
      %v4224 = vsub.f32 %v3181, %v4223
      %v4225 = vand.u32 %v4224, 4294901760
      %4226 = vmatprep.mubr.f32.mxu0 %v4225
      %v4227 = vand.u32 %v3127, 4294901760
      %v4228 = vsub.f32 %v3127, %v4227
      %v4229 = vand.u32 %v4228, 4294901760
      %4230 = vmatmul.mubr.f32.gmra.mrb[0].mxu0 %v4229
      %v4231 = vpop.f32.mrb[0].mxu0
      %v4232 = vadd.f32 %v3991, %v4231
      %v4233 = vpop.f32.mrb[0].mxu0
      %v4234 = vand.u32 %v3184, 4294901760
      %v4235 = vsub.f32 %v3184, %v4234
      %v4236 = vand.u32 %v4235, 4294901760
      %4237 = vmatprep.mubr.f32.mxu0 %v4236
      %v4238 = vand.u32 %v3128, 4294901760
      %v4239 = vsub.f32 %v3128, %v4238
      %v4240 = vand.u32 %v4239, 4294901760
      %4241 = vmatmul.mubr.f32.gmra.mrb[0].mxu0 %v4240
      %v4242 = vpop.f32.mrb[0].mxu0
      %v4243 = vadd.f32 %v4000, %v4242
      %v4244 = vpop.f32.mrb[0].mxu0
      %v4245 = vand.u32 %v3187, 4294901760
      %v4246 = vsub.f32 %v3187, %v4245
      %v4247 = vand.u32 %v4246, 4294901760
      %4248 = vmatprep.mubr.f32.mxu0 %v4247
      %v4249 = vand.u32 %v3129, 4294901760
      %v4250 = vsub.f32 %v3129, %v4249
      %v4251 = vand.u32 %v4250, 4294901760
      %4252 = vmatmul.mubr.f32.gmra.mrb[0].mxu0 %v4251
      %v4253 = vpop.f32.mrb[0].mxu0
      %v4254 = vadd.f32 %v4009, %v4253
      %v4255 = vpop.f32.mrb[0].mxu0
      %v4256 = vand.u32 %v3190, 4294901760
      %v4257 = vsub.f32 %v3190, %v4256
      %v4258 = vand.u32 %v4257, 4294901760
      %4259 = vmatprep.mubr.f32.mxu0 %v4258
      %v4260 = vand.u32 %v3130, 4294901760
      %v4261 = vsub.f32 %v3130, %v4260
      %v4262 = vand.u32 %v4261, 4294901760
      %4263 = vmatmul.mubr.f32.gmra.mrb[0].mxu0 %v4262
      %v4264 = vpop.f32.mrb[0].mxu0
      %v4265 = vadd.f32 %v4018, %v4264
      %v4266 = vpop.f32.mrb[0].mxu0
      %v4267 = vand.u32 %v3193, 4294901760
      %v4268 = vsub.f32 %v3193, %v4267
      %v4269 = vand.u32 %v4268, 4294901760
      %4270 = vmatprep.mubr.f32.mxu0 %v4269
      %v4271 = vand.u32 %v3131, 4294901760
      %v4272 = vsub.f32 %v3131, %v4271
      %v4273 = vand.u32 %v4272, 4294901760
      %4274 = vmatmul.mubr.f32.gmra.mrb[0].mxu0 %v4273
      %v4275 = vpop.f32.mrb[0].mxu0
      %v4276 = vadd.f32 %v4027, %v4275
      %v4277 = vpop.f32.mrb[0].mxu0
      %v4278 = vand.u32 %v3196, 4294901760
      %v4279 = vsub.f32 %v3196, %v4278
      %v4280 = vand.u32 %v4279, 4294901760
      %4281 = vmatprep.mubr.f32.mxu0 %v4280
      %v4282 = vand.u32 %v3132, 4294901760
      %v4283 = vsub.f32 %v3132, %v4282
      %v4284 = vand.u32 %v4283, 4294901760
      %4285 = vmatmul.mubr.f32.gmra.mrb[0].mxu0 %v4284
      %v4286 = vpop.f32.mrb[0].mxu0
      %v4287 = vadd.f32 %v4036, %v4286
      %v4288 = vpop.f32.mrb[0].mxu0
      %v4289 = vand.u32 %v3199, 4294901760
      %v4290 = vsub.f32 %v3199, %v4289
      %v4291 = vand.u32 %v4290, 4294901760
      %4292 = vmatprep.mubr.f32.mxu0 %v4291
      %v4293 = vand.u32 %v3133, 4294901760
      %v4294 = vsub.f32 %v3133, %v4293
      %v4295 = vand.u32 %v4294, 4294901760
      %4296 = vmatmul.mubr.f32.gmra.mrb[0].mxu0 %v4295
      %v4297 = vpop.f32.mrb[0].mxu0
      %v4298 = vadd.f32 %v4045, %v4297
      %v4299 = vpop.f32.mrb[0].mxu0
      %v4300 = vand.u32 %v3202, 4294901760
      %v4301 = vsub.f32 %v3202, %v4300
      %v4302 = vand.u32 %v4301, 4294901760
      %4303 = vmatprep.mubr.f32.mxu0 %v4302
      %v4304 = vand.u32 %v3134, 4294901760
      %v4305 = vsub.f32 %v3134, %v4304
      %v4306 = vand.u32 %v4305, 4294901760
      %4307 = vmatmul.mubr.f32.gmra.mrb[0].mxu0 %v4306
      %v4308 = vpop.f32.mrb[0].mxu0
      %v4309 = vadd.f32 %v4054, %v4308
      %v4310 = vpop.f32.mrb[0].mxu0
      %v4311 = vand.u32 %v3205, 4294901760
      %v4312 = vsub.f32 %v3205, %v4311
      %v4313 = vand.u32 %v4312, 4294901760
      %4314 = vmatprep.mubr.f32.mxu0 %v4313
      %v4315 = vand.u32 %v3135, 4294901760
      %v4316 = vsub.f32 %v3135, %v4315
      %v4317 = vand.u32 %v4316, 4294901760
      %4318 = vmatmul.mubr.f32.gmra.mrb[0].mxu0 %v4317
      %v4319 = vpop.f32.mrb[0].mxu0
      %v4320 = vadd.f32 %v4063, %v4319
      %v4321 = vpop.f32.mrb[0].mxu0
      %v4322 = vand.u32 %v3208, 4294901760
      %v4323 = vsub.f32 %v3208, %v4322
      %v4324 = vand.u32 %v4323, 4294901760
      %4325 = vmatprep.mubr.f32.mxu0 %v4324
      %v4326 = vand.u32 %v3136, 4294901760
      %v4327 = vsub.f32 %v3136, %v4326
      %v4328 = vand.u32 %v4327, 4294901760
      %4329 = vmatmul.mubr.f32.gmra.mrb[0].mxu0 %v4328
      %v4330 = vpop.f32.mrb[0].mxu0
      %v4331 = vadd.f32 %v4072, %v4330
      %v4332 = vpop.f32.mrb[0].mxu0
      %v4333 = vand.u32 %v3211, 4294901760
      %v4334 = vsub.f32 %v3211, %v4333
      %v4335 = vand.u32 %v4334, 4294901760
      %4336 = vmatprep.mubr.f32.mxu0 %v4335
      %v4337 = vand.u32 %v3137, 4294901760
      %v4338 = vsub.f32 %v3137, %v4337
      %v4339 = vand.u32 %v4338, 4294901760
      %4340 = vmatmul.mubr.f32.gmra.mrb[0].mxu0 %v4339
      %v4341 = vpop.f32.mrb[0].mxu0
      %v4342 = vadd.f32 %v4081, %v4341
      %v4343 = vpop.f32.mrb[0].mxu0
      %v4344 = vand.u32 %v3214, 4294901760
      %v4345 = vsub.f32 %v3214, %v4344
      %v4346 = vand.u32 %v4345, 4294901760
      %4347 = vmatprep.mubr.f32.mxu0 %v4346
      %v4348 = vand.u32 %v3138, 4294901760
      %v4349 = vsub.f32 %v3138, %v4348
      %v4350 = vand.u32 %v4349, 4294901760
      %4351 = vmatmul.mubr.f32.gmra.mrb[0].mxu0 %v4350
      %v4352 = vpop.f32.mrb[0].mxu0
      %v4353 = vadd.f32 %v4090, %v4352
      %v4354 = vpop.f32.mrb[0].mxu0
      %v4355 = vand.u32 %v3217, 4294901760
      %v4356 = vsub.f32 %v3217, %v4355
      %v4357 = vand.u32 %v4356, 4294901760
      %4358 = vmatprep.mubr.f32.mxu0 %v4357
      %v4359 = vand.u32 %v3139, 4294901760
      %v4360 = vsub.f32 %v3139, %v4359
      %v4361 = vand.u32 %v4360, 4294901760
      %4362 = vmatmul.mubr.f32.gmra.mrb[0].mxu0 %v4361
      %v4363 = vpop.f32.mrb[0].mxu0
      %v4364 = vadd.f32 %v4099, %v4363
      %v4365 = vpop.f32.mrb[0].mxu0
      %4366 = vdwg.mxu0
      %4367 = vmatprep.subr.mxu0 0.0
      %v4368 = vand.u32 %v3140, 4294901760
      %v4369 = vsub.f32 %v3140, %v4368
      %v4370 = vand.u32 %v4369, 4294901760
      %4371 = vmatpush1.msra.mxu0 %v4370
      %4372 = vmatprep.subr.mxu0 0.0
      %v4373 = vand.u32 %v3141, 4294901760
      %v4374 = vsub.f32 %v3141, %v4373
      %v4375 = vand.u32 %v4374, 4294901760
      %4376 = vmatpush1.msra.mxu0 %v4375
      %4377 = vmatprep.subr.mxu0 0.0
      %v4378 = vand.u32 %v3142, 4294901760
      %v4379 = vsub.f32 %v3142, %v4378
      %v4380 = vand.u32 %v4379, 4294901760
      %4381 = vmatpush1.msra.mxu0 %v4380
      %4382 = vmatprep.subr.mxu0 0.0
      %v4383 = vand.u32 %v3143, 4294901760
      %v4384 = vsub.f32 %v3143, %v4383
      %v4385 = vand.u32 %v4384, 4294901760
      %4386 = vmatpush1.msra.mxu0 %v4385
      %4387 = vmatprep.subr.mxu0 0.0
      %v4388 = vand.u32 %v3144, 4294901760
      %v4389 = vsub.f32 %v3144, %v4388
      %v4390 = vand.u32 %v4389, 4294901760
      %4391 = vmatpush1.msra.mxu0 %v4390
      %4392 = vmatprep.subr.mxu0 0.0
      %v4393 = vand.u32 %v3145, 4294901760
      %v4394 = vsub.f32 %v3145, %v4393
      %v4395 = vand.u32 %v4394, 4294901760
      %4396 = vmatpush1.msra.mxu0 %v4395
      %4397 = vmatprep.subr.mxu0 0.0
      %v4398 = vand.u32 %v3146, 4294901760
      %v4399 = vsub.f32 %v3146, %v4398
      %v4400 = vand.u32 %v4399, 4294901760
      %4401 = vmatpush1.msra.mxu0 %v4400
      %4402 = vmatprep.subr.mxu0 0.0
      %v4403 = vand.u32 %v3147, 4294901760
      %v4404 = vsub.f32 %v3147, %v4403
      %v4405 = vand.u32 %v4404, 4294901760
      %4406 = vmatpush1.msra.mxu0 %v4405
      %4407 = vmatprep.subr.mxu0 0.0
      %v4408 = vand.u32 %v3148, 4294901760
      %v4409 = vsub.f32 %v3148, %v4408
      %v4410 = vand.u32 %v4409, 4294901760
      %4411 = vmatpush1.msra.mxu0 %v4410
      %4412 = vmatprep.subr.mxu0 0.0
      %v4413 = vand.u32 %v3149, 4294901760
      %v4414 = vsub.f32 %v3149, %v4413
      %v4415 = vand.u32 %v4414, 4294901760
      %4416 = vmatpush1.msra.mxu0 %v4415
      %4417 = vmatprep.subr.mxu0 0.0
      %v4418 = vand.u32 %v3150, 4294901760
      %v4419 = vsub.f32 %v3150, %v4418
      %v4420 = vand.u32 %v4419, 4294901760
      %4421 = vmatpush1.msra.mxu0 %v4420
      %4422 = vmatprep.subr.mxu0 0.0
      %v4423 = vand.u32 %v3151, 4294901760
      %v4424 = vsub.f32 %v3151, %v4423
      %v4425 = vand.u32 %v4424, 4294901760
      %4426 = vmatpush1.msra.mxu0 %v4425
      %4427 = vmatprep.subr.mxu0 0.0
      %v4428 = vand.u32 %v3152, 4294901760
      %v4429 = vsub.f32 %v3152, %v4428
      %v4430 = vand.u32 %v4429, 4294901760
      %4431 = vmatpush1.msra.mxu0 %v4430
      %4432 = vmatprep.subr.mxu0 0.0
      %v4433 = vand.u32 %v3153, 4294901760
      %v4434 = vsub.f32 %v3153, %v4433
      %v4435 = vand.u32 %v4434, 4294901760
      %4436 = vmatpush1.msra.mxu0 %v4435
      %4437 = vmatprep.subr.mxu0 0.0
      %v4438 = vand.u32 %v3154, 4294901760
      %v4439 = vsub.f32 %v3154, %v4438
      %v4440 = vand.u32 %v4439, 4294901760
      %4441 = vmatpush1.msra.mxu0 %v4440
      %4442 = vmatprep.subr.mxu0 0.0
      %v4443 = vand.u32 %v3155, 4294901760
      %v4444 = vsub.f32 %v3155, %v4443
      %v4445 = vand.u32 %v4444, 4294901760
      %4446 = vmatpush1.msra.mxu0 %v4445
      %4447 = vmatprep.subr.mxu0 0.0
      %v4448 = vand.u32 %v3156, 4294901760
      %v4449 = vsub.f32 %v3156, %v4448
      %v4450 = vand.u32 %v4449, 4294901760
      %4451 = vmatpush1.msra.mxu0 %v4450
      %4452 = vmatprep.subr.mxu0 0.0
      %v4453 = vand.u32 %v3157, 4294901760
      %v4454 = vsub.f32 %v3157, %v4453
      %v4455 = vand.u32 %v4454, 4294901760
      %4456 = vmatpush1.msra.mxu0 %v4455
      %4457 = vmatprep.subr.mxu0 0.0
      %v4458 = vand.u32 %v3158, 4294901760
      %v4459 = vsub.f32 %v3158, %v4458
      %v4460 = vand.u32 %v4459, 4294901760
      %4461 = vmatpush1.msra.mxu0 %v4460
      %4462 = vmatprep.subr.mxu0 0.0
      %v4463 = vand.u32 %v3159, 4294901760
      %v4464 = vsub.f32 %v3159, %v4463
      %v4465 = vand.u32 %v4464, 4294901760
      %4466 = vmatpush1.msra.mxu0 %v4465
      %4467 = vmatprep.subr.mxu0 0.0
      %v4468 = vand.u32 %v3160, 4294901760
      %v4469 = vsub.f32 %v3160, %v4468
      %v4470 = vand.u32 %v4469, 4294901760
      %4471 = vmatpush1.msra.mxu0 %v4470
      %4472 = vmatprep.subr.mxu0 0.0
      %v4473 = vand.u32 %v3161, 4294901760
      %v4474 = vsub.f32 %v3161, %v4473
      %v4475 = vand.u32 %v4474, 4294901760
      %4476 = vmatpush1.msra.mxu0 %v4475
      %4477 = vmatprep.subr.mxu0 0.0
      %v4478 = vand.u32 %v3162, 4294901760
      %v4479 = vsub.f32 %v3162, %v4478
      %v4480 = vand.u32 %v4479, 4294901760
      %4481 = vmatpush1.msra.mxu0 %v4480
      %4482 = vmatprep.subr.mxu0 0.0
      %v4483 = vand.u32 %v3163, 4294901760
      %v4484 = vsub.f32 %v3163, %v4483
      %v4485 = vand.u32 %v4484, 4294901760
      %4486 = vmatpush1.msra.mxu0 %v4485
      %4487 = vmatprep.subr.mxu0 0.0
      %4488 = vmatpush1.msra.mxu0 0.0
      %4489 = vmatprep.subr.mxu0 0.0
      %4490 = vmatpush1.msra.mxu0 0.0
      %4491 = vmatprep.subr.mxu0 0.0
      %4492 = vmatpush1.msra.mxu0 0.0
      %4493 = vmatprep.subr.mxu0 0.0
      %4494 = vmatpush1.msra.mxu0 0.0
      %4495 = vmatprep.subr.mxu0 0.0
      %4496 = vmatpush1.msra.mxu0 0.0
      %4497 = vmatprep.subr.mxu0 0.0
      %4498 = vmatpush1.msra.mxu0 0.0
      %4499 = vmatprep.subr.mxu0 0.0
      %4500 = vmatpush1.msra.mxu0 0.0
      %4501 = vmatprep.subr.mxu0 0.0
      %4502 = vmatpush1.msra.mxu0 0.0
      %v4503 = vand.u32 %v3172, 4294901760
      %4504 = vmatprep.mubr.f32.mxu0 %v4503
      %v4505 = vand.u32 %v3124, 4294901760
      %4506 = vmatmul.mubr.f32.gmra.mrb[0].mxu0 %v4505
      %v4507 = vpop.f32.mrb[0].mxu0
      %v4508 = vadd.f32 %v4199, %v4507
      %v4509 = vpop.f32.mrb[0].mxu0
      %v4510 = vand.u32 %v3175, 4294901760
      %4511 = vmatprep.mubr.f32.mxu0 %v4510
      %v4512 = vand.u32 %v3125, 4294901760
      %4513 = vmatmul.mubr.f32.gmra.mrb[0].mxu0 %v4512
      %v4514 = vpop.f32.mrb[0].mxu0
      %v4515 = vadd.f32 %v4210, %v4514
      %v4516 = vpop.f32.mrb[0].mxu0
      %v4517 = vand.u32 %v3178, 4294901760
      %4518 = vmatprep.mubr.f32.mxu0 %v4517
      %v4519 = vand.u32 %v3126, 4294901760
      %4520 = vmatmul.mubr.f32.gmra.mrb[0].mxu0 %v4519
      %v4521 = vpop.f32.mrb[0].mxu0
      %v4522 = vadd.f32 %v4221, %v4521
      %v4523 = vpop.f32.mrb[0].mxu0
      %v4524 = vand.u32 %v3181, 4294901760
      %4525 = vmatprep.mubr.f32.mxu0 %v4524
      %v4526 = vand.u32 %v3127, 4294901760
      %4527 = vmatmul.mubr.f32.gmra.mrb[0].mxu0 %v4526
      %v4528 = vpop.f32.mrb[0].mxu0
      %v4529 = vadd.f32 %v4232, %v4528
      %v4530 = vpop.f32.mrb[0].mxu0
      %v4531 = vand.u32 %v3184, 4294901760
      %4532 = vmatprep.mubr.f32.mxu0 %v4531
      %v4533 = vand.u32 %v3128, 4294901760
      %4534 = vmatmul.mubr.f32.gmra.mrb[0].mxu0 %v4533
      %v4535 = vpop.f32.mrb[0].mxu0
      %v4536 = vadd.f32 %v4243, %v4535
      %v4537 = vpop.f32.mrb[0].mxu0
      %v4538 = vand.u32 %v3187, 4294901760
      %4539 = vmatprep.mubr.f32.mxu0 %v4538
      %v4540 = vand.u32 %v3129, 4294901760
      %4541 = vmatmul.mubr.f32.gmra.mrb[0].mxu0 %v4540
      %v4542 = vpop.f32.mrb[0].mxu0
      %v4543 = vadd.f32 %v4254, %v4542
      %v4544 = vpop.f32.mrb[0].mxu0
      %v4545 = vand.u32 %v3190, 4294901760
      %4546 = vmatprep.mubr.f32.mxu0 %v4545
      %v4547 = vand.u32 %v3130, 4294901760
      %4548 = vmatmul.mubr.f32.gmra.mrb[0].mxu0 %v4547
      %v4549 = vpop.f32.mrb[0].mxu0
      %v4550 = vadd.f32 %v4265, %v4549
      %v4551 = vpop.f32.mrb[0].mxu0
      %v4552 = vand.u32 %v3193, 4294901760
      %4553 = vmatprep.mubr.f32.mxu0 %v4552
      %v4554 = vand.u32 %v3131, 4294901760
      %4555 = vmatmul.mubr.f32.gmra.mrb[0].mxu0 %v4554
      %v4556 = vpop.f32.mrb[0].mxu0
      %v4557 = vadd.f32 %v4276, %v4556
      %v4558 = vpop.f32.mrb[0].mxu0
      %v4559 = vand.u32 %v3196, 4294901760
      %4560 = vmatprep.mubr.f32.mxu0 %v4559
      %v4561 = vand.u32 %v3132, 4294901760
      %4562 = vmatmul.mubr.f32.gmra.mrb[0].mxu0 %v4561
      %v4563 = vpop.f32.mrb[0].mxu0
      %v4564 = vadd.f32 %v4287, %v4563
      %v4565 = vpop.f32.mrb[0].mxu0
      %v4566 = vand.u32 %v3199, 4294901760
      %4567 = vmatprep.mubr.f32.mxu0 %v4566
      %v4568 = vand.u32 %v3133, 4294901760
      %4569 = vmatmul.mubr.f32.gmra.mrb[0].mxu0 %v4568
      %v4570 = vpop.f32.mrb[0].mxu0
      %v4571 = vadd.f32 %v4298, %v4570
      %v4572 = vpop.f32.mrb[0].mxu0
      %v4573 = vand.u32 %v3202, 4294901760
      %4574 = vmatprep.mubr.f32.mxu0 %v4573
      %v4575 = vand.u32 %v3134, 4294901760
      %4576 = vmatmul.mubr.f32.gmra.mrb[0].mxu0 %v4575
      %v4577 = vpop.f32.mrb[0].mxu0
      %v4578 = vadd.f32 %v4309, %v4577
      %v4579 = vpop.f32.mrb[0].mxu0
      %v4580 = vand.u32 %v3205, 4294901760
      %4581 = vmatprep.mubr.f32.mxu0 %v4580
      %v4582 = vand.u32 %v3135, 4294901760
      %4583 = vmatmul.mubr.f32.gmra.mrb[0].mxu0 %v4582
      %v4584 = vpop.f32.mrb[0].mxu0
      %v4585 = vadd.f32 %v4320, %v4584
      %v4586 = vpop.f32.mrb[0].mxu0
      %v4587 = vand.u32 %v3208, 4294901760
      %4588 = vmatprep.mubr.f32.mxu0 %v4587
      %v4589 = vand.u32 %v3136, 4294901760
      %4590 = vmatmul.mubr.f32.gmra.mrb[0].mxu0 %v4589
      %v4591 = vpop.f32.mrb[0].mxu0
      %v4592 = vadd.f32 %v4331, %v4591
      %v4593 = vpop.f32.mrb[0].mxu0
      %v4594 = vand.u32 %v3211, 4294901760
      %4595 = vmatprep.mubr.f32.mxu0 %v4594
      %v4596 = vand.u32 %v3137, 4294901760
      %4597 = vmatmul.mubr.f32.gmra.mrb[0].mxu0 %v4596
      %v4598 = vpop.f32.mrb[0].mxu0
      %v4599 = vadd.f32 %v4342, %v4598
      %v4600 = vpop.f32.mrb[0].mxu0
      %v4601 = vand.u32 %v3214, 4294901760
      %4602 = vmatprep.mubr.f32.mxu0 %v4601
      %v4603 = vand.u32 %v3138, 4294901760
      %4604 = vmatmul.mubr.f32.gmra.mrb[0].mxu0 %v4603
      %v4605 = vpop.f32.mrb[0].mxu0
      %v4606 = vadd.f32 %v4353, %v4605
      %v4607 = vpop.f32.mrb[0].mxu0
      %v4608 = vand.u32 %v3217, 4294901760
      %4609 = vmatprep.mubr.f32.mxu0 %v4608
      %v4610 = vand.u32 %v3139, 4294901760
      %4611 = vmatmul.mubr.f32.gmra.mrb[0].mxu0 %v4610
      %v4612 = vpop.f32.mrb[0].mxu0
      %v4613 = vadd.f32 %v4364, %v4612
      %v4614 = vpop.f32.mrb[0].mxu0
      %4615 = vdwg.mxu0
      %4616 = vmatprep.subr.mxu0 0.0
      %v4617 = vand.u32 %v3140, 4294901760
      %4618 = vmatpush1.msra.mxu0 %v4617
      %4619 = vmatprep.subr.mxu0 0.0
      %v4620 = vand.u32 %v3141, 4294901760
      %4621 = vmatpush1.msra.mxu0 %v4620
      %4622 = vmatprep.subr.mxu0 0.0
      %v4623 = vand.u32 %v3142, 4294901760
      %4624 = vmatpush1.msra.mxu0 %v4623
      %4625 = vmatprep.subr.mxu0 0.0
      %v4626 = vand.u32 %v3143, 4294901760
      %4627 = vmatpush1.msra.mxu0 %v4626
      %4628 = vmatprep.subr.mxu0 0.0
      %v4629 = vand.u32 %v3144, 4294901760
      %4630 = vmatpush1.msra.mxu0 %v4629
      %4631 = vmatprep.subr.mxu0 0.0
      %v4632 = vand.u32 %v3145, 4294901760
      %4633 = vmatpush1.msra.mxu0 %v4632
      %4634 = vmatprep.subr.mxu0 0.0
      %v4635 = vand.u32 %v3146, 4294901760
      %4636 = vmatpush1.msra.mxu0 %v4635
      %4637 = vmatprep.subr.mxu0 0.0
      %v4638 = vand.u32 %v3147, 4294901760
      %4639 = vmatpush1.msra.mxu0 %v4638
      %4640 = vmatprep.subr.mxu0 0.0
      %v4641 = vand.u32 %v3148, 4294901760
      %4642 = vmatpush1.msra.mxu0 %v4641
      %4643 = vmatprep.subr.mxu0 0.0
      %v4644 = vand.u32 %v3149, 4294901760
      %4645 = vmatpush1.msra.mxu0 %v4644
      %4646 = vmatprep.subr.mxu0 0.0
      %v4647 = vand.u32 %v3150, 4294901760
      %4648 = vmatpush1.msra.mxu0 %v4647
      %4649 = vmatprep.subr.mxu0 0.0
      %v4650 = vand.u32 %v3151, 4294901760
      %4651 = vmatpush1.msra.mxu0 %v4650
      %4652 = vmatprep.subr.mxu0 0.0
      %v4653 = vand.u32 %v3152, 4294901760
      %4654 = vmatpush1.msra.mxu0 %v4653
      %4655 = vmatprep.subr.mxu0 0.0
      %v4656 = vand.u32 %v3153, 4294901760
      %4657 = vmatpush1.msra.mxu0 %v4656
      %4658 = vmatprep.subr.mxu0 0.0
      %v4659 = vand.u32 %v3154, 4294901760
      %4660 = vmatpush1.msra.mxu0 %v4659
      %4661 = vmatprep.subr.mxu0 0.0
      %v4662 = vand.u32 %v3155, 4294901760
      %4663 = vmatpush1.msra.mxu0 %v4662
      %4664 = vmatprep.subr.mxu0 0.0
      %v4665 = vand.u32 %v3156, 4294901760
      %4666 = vmatpush1.msra.mxu0 %v4665
      %4667 = vmatprep.subr.mxu0 0.0
      %v4668 = vand.u32 %v3157, 4294901760
      %4669 = vmatpush1.msra.mxu0 %v4668
      %4670 = vmatprep.subr.mxu0 0.0
      %v4671 = vand.u32 %v3158, 4294901760
      %4672 = vmatpush1.msra.mxu0 %v4671
      %4673 = vmatprep.subr.mxu0 0.0
      %v4674 = vand.u32 %v3159, 4294901760
      %4675 = vmatpush1.msra.mxu0 %v4674
      %4676 = vmatprep.subr.mxu0 0.0
      %v4677 = vand.u32 %v3160, 4294901760
      %4678 = vmatpush1.msra.mxu0 %v4677
      %4679 = vmatprep.subr.mxu0 0.0
      %v4680 = vand.u32 %v3161, 4294901760
      %4681 = vmatpush1.msra.mxu0 %v4680
      %4682 = vmatprep.subr.mxu0 0.0
      %v4683 = vand.u32 %v3162, 4294901760
      %4684 = vmatpush1.msra.mxu0 %v4683
      %4685 = vmatprep.subr.mxu0 0.0
      %v4686 = vand.u32 %v3163, 4294901760
      %4687 = vmatpush1.msra.mxu0 %v4686
      %4688 = vmatprep.subr.mxu0 0.0
      %4689 = vmatpush1.msra.mxu0 0.0
      %4690 = vmatprep.subr.mxu0 0.0
      %4691 = vmatpush1.msra.mxu0 0.0
      %4692 = vmatprep.subr.mxu0 0.0
      %4693 = vmatpush1.msra.mxu0 0.0
      %4694 = vmatprep.subr.mxu0 0.0
      %4695 = vmatpush1.msra.mxu0 0.0
      %4696 = vmatprep.subr.mxu0 0.0
      %4697 = vmatpush1.msra.mxu0 0.0
      %4698 = vmatprep.subr.mxu0 0.0
      %4699 = vmatpush1.msra.mxu0 0.0
      %4700 = vmatprep.subr.mxu0 0.0
      %4701 = vmatpush1.msra.mxu0 0.0
      %4702 = vmatprep.subr.mxu0 0.0
      %4703 = vmatpush1.msra.mxu0 0.0
      %v4704 = vand.u32 %v3172, 4294901760
      %4705 = vmatprep.mubr.f32.mxu0 %v4704
      %v4706 = vand.u32 %v3124, 4294901760
      %4707 = vmatmul.mubr.f32.gmra.mrb[0].mxu0 %v4706
      %v4708 = vpop.f32.mrb[0].mxu0
      %v4709 = vadd.f32 %v4508, %v4708
      %v4710 = vpop.f32.mrb[0].mxu0
      %v4711 = vand.u32 %v3175, 4294901760
      %4712 = vmatprep.mubr.f32.mxu0 %v4711
      %v4713 = vand.u32 %v3125, 4294901760
      %4714 = vmatmul.mubr.f32.gmra.mrb[0].mxu0 %v4713
      %v4715 = vpop.f32.mrb[0].mxu0
      %v4716 = vadd.f32 %v4515, %v4715
      %v4717 = vpop.f32.mrb[0].mxu0
      %v4718 = vand.u32 %v3178, 4294901760
      %4719 = vmatprep.mubr.f32.mxu0 %v4718
      %v4720 = vand.u32 %v3126, 4294901760
      %4721 = vmatmul.mubr.f32.gmra.mrb[0].mxu0 %v4720
      %v4722 = vpop.f32.mrb[0].mxu0
      %v4723 = vadd.f32 %v4522, %v4722
      %v4724 = vpop.f32.mrb[0].mxu0
      %v4725 = vand.u32 %v3181, 4294901760
      %4726 = vmatprep.mubr.f32.mxu0 %v4725
      %v4727 = vand.u32 %v3127, 4294901760
      %4728 = vmatmul.mubr.f32.gmra.mrb[0].mxu0 %v4727
      %v4729 = vpop.f32.mrb[0].mxu0
      %v4730 = vadd.f32 %v4529, %v4729
      %v4731 = vpop.f32.mrb[0].mxu0
      %v4732 = vand.u32 %v3184, 4294901760
      %4733 = vmatprep.mubr.f32.mxu0 %v4732
      %v4734 = vand.u32 %v3128, 4294901760
      %4735 = vmatmul.mubr.f32.gmra.mrb[0].mxu0 %v4734
      %v4736 = vpop.f32.mrb[0].mxu0
      %v4737 = vadd.f32 %v4536, %v4736
      %v4738 = vpop.f32.mrb[0].mxu0
      %v4739 = vand.u32 %v3187, 4294901760
      %4740 = vmatprep.mubr.f32.mxu0 %v4739
      %v4741 = vand.u32 %v3129, 4294901760
      %4742 = vmatmul.mubr.f32.gmra.mrb[0].mxu0 %v4741
      %v4743 = vpop.f32.mrb[0].mxu0
      %v4744 = vadd.f32 %v4543, %v4743
      %v4745 = vpop.f32.mrb[0].mxu0
      %v4746 = vand.u32 %v3190, 4294901760
      %4747 = vmatprep.mubr.f32.mxu0 %v4746
      %v4748 = vand.u32 %v3130, 4294901760
      %4749 = vmatmul.mubr.f32.gmra.mrb[0].mxu0 %v4748
      %v4750 = vpop.f32.mrb[0].mxu0
      %v4751 = vadd.f32 %v4550, %v4750
      %v4752 = vpop.f32.mrb[0].mxu0
      %v4753 = vand.u32 %v3193, 4294901760
      %4754 = vmatprep.mubr.f32.mxu0 %v4753
      %v4755 = vand.u32 %v3131, 4294901760
      %4756 = vmatmul.mubr.f32.gmra.mrb[0].mxu0 %v4755
      %v4757 = vpop.f32.mrb[0].mxu0
      %v4758 = vadd.f32 %v4557, %v4757
      %v4759 = vpop.f32.mrb[0].mxu0
      %v4760 = vand.u32 %v3196, 4294901760
      %4761 = vmatprep.mubr.f32.mxu0 %v4760
      %v4762 = vand.u32 %v3132, 4294901760
      %4763 = vmatmul.mubr.f32.gmra.mrb[0].mxu0 %v4762
      %v4764 = vpop.f32.mrb[0].mxu0
      %v4765 = vadd.f32 %v4564, %v4764
      %v4766 = vpop.f32.mrb[0].mxu0
      %v4767 = vand.u32 %v3199, 4294901760
      %4768 = vmatprep.mubr.f32.mxu0 %v4767
      %v4769 = vand.u32 %v3133, 4294901760
      %4770 = vmatmul.mubr.f32.gmra.mrb[0].mxu0 %v4769
      %v4771 = vpop.f32.mrb[0].mxu0
      %v4772 = vadd.f32 %v4571, %v4771
      %v4773 = vpop.f32.mrb[0].mxu0
      %v4774 = vand.u32 %v3202, 4294901760
      %4775 = vmatprep.mubr.f32.mxu0 %v4774
      %v4776 = vand.u32 %v3134, 4294901760
      %4777 = vmatmul.mubr.f32.gmra.mrb[0].mxu0 %v4776
      %v4778 = vpop.f32.mrb[0].mxu0
      %v4779 = vadd.f32 %v4578, %v4778
      %v4780 = vpop.f32.mrb[0].mxu0
      %v4781 = vand.u32 %v3205, 4294901760
      %4782 = vmatprep.mubr.f32.mxu0 %v4781
      %v4783 = vand.u32 %v3135, 4294901760
      %4784 = vmatmul.mubr.f32.gmra.mrb[0].mxu0 %v4783
      %v4785 = vpop.f32.mrb[0].mxu0
      %v4786 = vadd.f32 %v4585, %v4785
      %v4787 = vpop.f32.mrb[0].mxu0
      %v4788 = vand.u32 %v3208, 4294901760
      %4789 = vmatprep.mubr.f32.mxu0 %v4788
      %v4790 = vand.u32 %v3136, 4294901760
      %4791 = vmatmul.mubr.f32.gmra.mrb[0].mxu0 %v4790
      %v4792 = vpop.f32.mrb[0].mxu0
      %v4793 = vadd.f32 %v4592, %v4792
      %v4794 = vpop.f32.mrb[0].mxu0
      %v4795 = vand.u32 %v3211, 4294901760
      %4796 = vmatprep.mubr.f32.mxu0 %v4795
      %v4797 = vand.u32 %v3137, 4294901760
      %4798 = vmatmul.mubr.f32.gmra.mrb[0].mxu0 %v4797
      %v4799 = vpop.f32.mrb[0].mxu0
      %v4800 = vadd.f32 %v4599, %v4799
      %v4801 = vpop.f32.mrb[0].mxu0
      %v4802 = vand.u32 %v3214, 4294901760
      %4803 = vmatprep.mubr.f32.mxu0 %v4802
      %v4804 = vand.u32 %v3138, 4294901760
      %4805 = vmatmul.mubr.f32.gmra.mrb[0].mxu0 %v4804
      %v4806 = vpop.f32.mrb[0].mxu0
      %v4807 = vadd.f32 %v4606, %v4806
      %v4808 = vpop.f32.mrb[0].mxu0
      %v4809 = vand.u32 %v3217, 4294901760
      %4810 = vmatprep.mubr.f32.mxu0 %v4809
      %v4811 = vand.u32 %v3139, 4294901760
      %4812 = vmatmul.mubr.f32.gmra.mrb[0].mxu0 %v4811
      %v4813 = vpop.f32.mrb[0].mxu0
      %v4814 = vadd.f32 %v4613, %v4813
      %v4815 = vpop.f32.mrb[0].mxu0
      %4816 = vdwg.mxu0
      %v4817 = vsel %vm2979, 0.0, %v4807
      %v4818 = vsel %vm2980, 0.0, %v4814
      %v4819 = vsel %vm2981, 0.0, %v4709
      %v4820 = vsel %vm2982, 0.0, %v4716
      %v4821 = vsel %vm2983, 0.0, %v4723
      %v4822 = vsel %vm2984, 0.0, %v4730
      %v4823 = vsel %vm2985, 0.0, %v4737
      %v4824 = vsel %vm2986, 0.0, %v4744
      %v4825 = vsel %vm2987, 0.0, %v4751
      %v4826 = vsel %vm2988, 0.0, %v4758
      %v4827 = vsel %vm2989, 0.0, %v4765
      %v4828 = vsel %vm2990, 0.0, %v4772
      %v4829 = vsel %vm2991, 0.0, %v4779
      %v4830 = vsel %vm2992, 0.0, %v4786
      %v4831 = vsel %vm2993, 0.0, %v4793
      %v4832 = vsel %vm2994, 0.0, %v4800
      %v4833 = vsel %vm3027, 0.0, %v4723
      %v4834 = vsel %vm3028, 0.0, %v4730
      %v4835 = vsel %vm3029, 0.0, %v4737
      %v4836 = vsel %vm3030, 0.0, %v4744
      %v4837 = vsel %vm3031, 0.0, %v4751
      %v4838 = vsel %vm3032, 0.0, %v4758
      %v4839 = vsel %vm3033, 0.0, %v4765
      %v4840 = vsel %vm3034, 0.0, %v4772
      %v4841 = vsel %vm3035, 0.0, %v4779
      %v4842 = vsel %vm3036, 0.0, %v4786
      %v4843 = vsel %vm3037, 0.0, %v4793
      %v4844 = vsel %vm3038, 0.0, %v4800
      %v4845 = vsel %vm3039, 0.0, %v4807
      %v4846 = vsel %vm3040, 0.0, %v4814
      %v4847 = vsel %vm3041, 0.0, %v4709
      %v4848 = vsel %vm3042, 0.0, %v4716
      %4865 = vrot.lane.b32.xlu0 %v4709, 64
      %v4866 = vpop.permute.xlu0 %4865
      %4867 = vrot.lane.b32.xlu0 %v4716, 64
      %v4868 = vpop.permute.xlu0 %4867
      %4869 = vrot.lane.b32.xlu0 %v4723, 64
      %v4870 = vpop.permute.xlu0 %4869
      %4871 = vrot.lane.b32.xlu0 %v4730, 64
      %v4872 = vpop.permute.xlu0 %4871
      %4873 = vrot.lane.b32.xlu0 %v4737, 64
      %v4874 = vpop.permute.xlu0 %4873
      %4875 = vrot.lane.b32.xlu0 %v4744, 64
      %v4876 = vpop.permute.xlu0 %4875
      %4877 = vrot.lane.b32.xlu0 %v4751, 64
      %v4878 = vpop.permute.xlu0 %4877
      %4879 = vrot.lane.b32.xlu0 %v4758, 64
      %v4880 = vpop.permute.xlu0 %4879
      %4881 = vrot.lane.b32.xlu0 %v4765, 64
      %v4882 = vpop.permute.xlu0 %4881
      %4883 = vrot.lane.b32.xlu0 %v4772, 64
      %v4884 = vpop.permute.xlu0 %4883
      %4885 = vrot.lane.b32.xlu0 %v4779, 64
      %v4886 = vpop.permute.xlu0 %4885
      %4887 = vrot.lane.b32.xlu0 %v4786, 64
      %v4888 = vpop.permute.xlu0 %4887
      %4889 = vrot.lane.b32.xlu0 %v4793, 64
      %v4890 = vpop.permute.xlu0 %4889
      %4891 = vrot.lane.b32.xlu0 %v4800, 64
      %v4892 = vpop.permute.xlu0 %4891
      %4893 = vrot.lane.b32.xlu0 %v4807, 64
      %v4894 = vpop.permute.xlu0 %4893
      %4895 = vrot.lane.b32.xlu0 %v4814, 64
      %v4896 = vpop.permute.xlu0 %4895
      %v4913 = vsel %vm3123, %v4817, %v4866
      %v4914 = vsel %vm3123, %v4818, %v4868
      %v4915 = vsel %vm3123, %v4819, %v4870
      %v4916 = vsel %vm3123, %v4820, %v4872
      %v4917 = vsel %vm3123, %v4821, %v4874
      %v4918 = vsel %vm3123, %v4822, %v4876
      %v4919 = vsel %vm3123, %v4823, %v4878
      %v4920 = vsel %vm3123, %v4824, %v4880
      %v4921 = vsel %vm3123, %v4825, %v4882
      %v4922 = vsel %vm3123, %v4826, %v4884
      %v4923 = vsel %vm3123, %v4827, %v4886
      %v4924 = vsel %vm3123, %v4828, %v4888
      %v4925 = vsel %vm3123, %v4829, %v4890
      %v4926 = vsel %vm3123, %v4830, %v4892
      %v4927 = vsel %vm3123, %v4831, %v4894
      %v4928 = vsel %vm3123, %v4832, %v4896
      %v4929 = vld [vmem:[%s6] sm:$0xff]
      %v4930 = vld [vmem:[%s6 + $0x8] sm:$0xff]
      %v4931 = vld [vmem:[%s6 + $0x10] sm:$0xff]
      %v4932 = vld [vmem:[%s6 + $0x18] sm:$0xff]
      %v4933 = vld [vmem:[%s6 + $0x20] sm:$0xff]
      %v4934 = vld [vmem:[%s6 + $0x28] sm:$0xff]
      %v4935 = vld [vmem:[%s6 + $0x30] sm:$0xff]
      %v4936 = vld [vmem:[%s6 + $0x38] sm:$0xff]
      %v4937 = vld [vmem:[%s6 + $0x40] sm:$0xff]
      %v4938 = vld [vmem:[%s6 + $0x48] sm:$0xff]
      %v4939 = vld [vmem:[%s6 + $0x50] sm:$0xff]
      %v4940 = vld [vmem:[%s6 + $0x58] sm:$0xff]
      %v4941 = vld [vmem:[%s6 + $0x60] sm:$0xff]
      %v4942 = vld [vmem:[%s6 + $0x68] sm:$0xff]
      %v4943 = vld [vmem:[%s6 + $0x70] sm:$0xff]
      %v4944 = vld [vmem:[%s6 + $0x78] sm:$0xff]
      %v4945 = vld [vmem:[%s6 + $0x80] sm:$0xff]
      %v4946 = vld [vmem:[%s6 + $0x88] sm:$0xff]
      %v4947 = vld [vmem:[%s6 + $0x90] sm:$0xff]
      %v4948 = vld [vmem:[%s6 + $0x98] sm:$0xff]
      %v4949 = vld [vmem:[%s6 + $0xa0] sm:$0xff]
      %v4950 = vld [vmem:[%s6 + $0xa8] sm:$0xff]
      %v4951 = vld [vmem:[%s6 + $0xb0] sm:$0xff]
      %v4952 = vld [vmem:[%s6 + $0xb8] sm:$0xff]
      %v4953 = vld [vmem:[%s7] sm:$0x1]
      %v4955 = vlaneseq
      %v4956 = vshrl.u32 %v4955, 7
      %v4957 = vsub.s32 0, %v4956
      %v4958 = vrot.slane %v4953, %v4957
      %v4961 = vsel %vm3123, %v4833, 0
      %v4964 = vsel %vm3123, %v4834, 0
      %v4967 = vsel %vm3123, %v4835, 0
      %v4970 = vsel %vm3123, %v4836, 0
      %v4973 = vsel %vm3123, %v4837, 0
      %v4976 = vsel %vm3123, %v4838, 0
      %v4979 = vsel %vm3123, %v4839, 0
      %v4982 = vsel %vm3123, %v4840, 0
      %v4985 = vsel %vm3123, %v4841, 0
      %v4988 = vsel %vm3123, %v4842, 0
      %v4991 = vsel %vm3123, %v4843, 0
      %v4994 = vsel %vm3123, %v4844, 0
      %v4997 = vsel %vm3123, %v4845, 0
      %v5000 = vsel %vm3123, %v4846, 0
      %v5003 = vsel %vm3123, %v4847, 0
      %v5006 = vsel %vm3123, %v4848, 0
      %5008 = vmatprep.subr.mxu0 0.0
      %v5009 = vand.u32 %v4929, 4294901760
      %5010 = vmatpush1.msra.mxu0 %v5009
      %5011 = vmatprep.subr.mxu0 0.0
      %v5012 = vand.u32 %v4930, 4294901760
      %5013 = vmatpush1.msra.mxu0 %v5012
      %5014 = vmatprep.subr.mxu0 0.0
      %v5015 = vand.u32 %v4931, 4294901760
      %5016 = vmatpush1.msra.mxu0 %v5015
      %5017 = vmatprep.subr.mxu0 0.0
      %v5018 = vand.u32 %v4932, 4294901760
      %5019 = vmatpush1.msra.mxu0 %v5018
      %5020 = vmatprep.subr.mxu0 0.0
      %v5021 = vand.u32 %v4933, 4294901760
      %5022 = vmatpush1.msra.mxu0 %v5021
      %5023 = vmatprep.subr.mxu0 0.0
      %v5024 = vand.u32 %v4934, 4294901760
      %5025 = vmatpush1.msra.mxu0 %v5024
      %5026 = vmatprep.subr.mxu0 0.0
      %v5027 = vand.u32 %v4935, 4294901760
      %5028 = vmatpush1.msra.mxu0 %v5027
      %5029 = vmatprep.subr.mxu0 0.0
      %v5030 = vand.u32 %v4936, 4294901760
      %5031 = vmatpush1.msra.mxu0 %v5030
      %5032 = vmatprep.subr.mxu0 0.0
      %v5033 = vand.u32 %v4937, 4294901760
      %5034 = vmatpush1.msra.mxu0 %v5033
      %5035 = vmatprep.subr.mxu0 0.0
      %v5036 = vand.u32 %v4938, 4294901760
      %5037 = vmatpush1.msra.mxu0 %v5036
      %5038 = vmatprep.subr.mxu0 0.0
      %v5039 = vand.u32 %v4939, 4294901760
      %5040 = vmatpush1.msra.mxu0 %v5039
      %5041 = vmatprep.subr.mxu0 0.0
      %v5042 = vand.u32 %v4940, 4294901760
      %5043 = vmatpush1.msra.mxu0 %v5042
      %5044 = vmatprep.subr.mxu0 0.0
      %v5045 = vand.u32 %v4941, 4294901760
      %5046 = vmatpush1.msra.mxu0 %v5045
      %5047 = vmatprep.subr.mxu0 0.0
      %v5048 = vand.u32 %v4942, 4294901760
      %5049 = vmatpush1.msra.mxu0 %v5048
      %5050 = vmatprep.subr.mxu0 0.0
      %v5051 = vand.u32 %v4943, 4294901760
      %5052 = vmatpush1.msra.mxu0 %v5051
      %5053 = vmatprep.subr.mxu0 0.0
      %v5054 = vand.u32 %v4944, 4294901760
      %5055 = vmatpush1.msra.mxu0 %v5054
      %5056 = vmatprep.subr.mxu0 0.0
      %v5057 = vand.u32 %v4945, 4294901760
      %5058 = vmatpush1.msra.mxu0 %v5057
      %5059 = vmatprep.subr.mxu0 0.0
      %v5060 = vand.u32 %v4946, 4294901760
      %5061 = vmatpush1.msra.mxu0 %v5060
      %5062 = vmatprep.subr.mxu0 0.0
      %v5063 = vand.u32 %v4947, 4294901760
      %5064 = vmatpush1.msra.mxu0 %v5063
      %5065 = vmatprep.subr.mxu0 0.0
      %v5066 = vand.u32 %v4948, 4294901760
      %5067 = vmatpush1.msra.mxu0 %v5066
      %5068 = vmatprep.subr.mxu0 0.0
      %v5069 = vand.u32 %v4949, 4294901760
      %5070 = vmatpush1.msra.mxu0 %v5069
      %5071 = vmatprep.subr.mxu0 0.0
      %v5072 = vand.u32 %v4950, 4294901760
      %5073 = vmatpush1.msra.mxu0 %v5072
      %5074 = vmatprep.subr.mxu0 0.0
      %v5075 = vand.u32 %v4951, 4294901760
      %5076 = vmatpush1.msra.mxu0 %v5075
      %5077 = vmatprep.subr.mxu0 0.0
      %v5078 = vand.u32 %v4952, 4294901760
      %5079 = vmatpush1.msra.mxu0 %v5078
      %5080 = vmatprep.subr.mxu0 0.0
      %5081 = vmatpush1.msra.mxu0 0.0
      %5082 = vmatprep.subr.mxu0 0.0
      %5083 = vmatpush1.msra.mxu0 0.0
      %5084 = vmatprep.subr.mxu0 0.0
      %5085 = vmatpush1.msra.mxu0 0.0
      %5086 = vmatprep.subr.mxu0 0.0
      %5087 = vmatpush1.msra.mxu0 0.0
      %5088 = vmatprep.subr.mxu0 0.0
      %5089 = vmatpush1.msra.mxu0 0.0
      %5090 = vmatprep.subr.mxu0 0.0
      %5091 = vmatpush1.msra.mxu0 0.0
      %5092 = vmatprep.subr.mxu0 0.0
      %5093 = vmatpush1.msra.mxu0 0.0
      %5094 = vmatprep.subr.mxu0 0.0
      %5095 = vmatpush1.msra.mxu0 0.0
      %v5096 = vand.u32 %v4961, 4294901760
      %v5097 = vsub.f32 %v4961, %v5096
      %v5098 = vand.u32 %v5097, 4294901760
      %v5099 = vsub.f32 %v5097, %v5098
      %v5100 = vand.u32 %v5099, 4294901760
      %5101 = vmatprep.mubr.f32.mxu0 %v5100
      %v5102 = vand.u32 %v4913, 4294901760
      %v5103 = vsub.f32 %v4913, %v5102
      %v5104 = vand.u32 %v5103, 4294901760
      %v5105 = vsub.f32 %v5103, %v5104
      %v5106 = vand.u32 %v5105, 4294901760
      %5107 = vmatmul.mubr.f32.gmra.mrb[0].mxu0 %v5106
      %v5108 = vpop.f32.mrb[0].mxu0
      %v5109 = vadd.f32 %v4958, %v5108
      %v5110 = vpop.f32.mrb[0].mxu0
      %v5111 = vand.u32 %v4964, 4294901760
      %v5112 = vsub.f32 %v4964, %v5111
      %v5113 = vand.u32 %v5112, 4294901760
      %v5114 = vsub.f32 %v5112, %v5113
      %v5115 = vand.u32 %v5114, 4294901760
      %5116 = vmatprep.mubr.f32.mxu0 %v5115
      %v5117 = vand.u32 %v4914, 4294901760
      %v5118 = vsub.f32 %v4914, %v5117
      %v5119 = vand.u32 %v5118, 4294901760
      %v5120 = vsub.f32 %v5118, %v5119
      %v5121 = vand.u32 %v5120, 4294901760
      %5122 = vmatmul.mubr.f32.gmra.mrb[0].mxu0 %v5121
      %v5123 = vpop.f32.mrb[0].mxu0
      %v5124 = vadd.f32 %v4958, %v5123
      %v5125 = vpop.f32.mrb[0].mxu0
      %v5126 = vand.u32 %v4967, 4294901760
      %v5127 = vsub.f32 %v4967, %v5126
      %v5128 = vand.u32 %v5127, 4294901760
      %v5129 = vsub.f32 %v5127, %v5128
      %v5130 = vand.u32 %v5129, 4294901760
      %5131 = vmatprep.mubr.f32.mxu0 %v5130
      %v5132 = vand.u32 %v4915, 4294901760
      %v5133 = vsub.f32 %v4915, %v5132
      %v5134 = vand.u32 %v5133, 4294901760
      %v5135 = vsub.f32 %v5133, %v5134
      %v5136 = vand.u32 %v5135, 4294901760
      %5137 = vmatmul.mubr.f32.gmra.mrb[0].mxu0 %v5136
      %v5138 = vpop.f32.mrb[0].mxu0
      %v5139 = vadd.f32 %v4958, %v5138
      %v5140 = vpop.f32.mrb[0].mxu0
      %v5141 = vand.u32 %v4970, 4294901760
      %v5142 = vsub.f32 %v4970, %v5141
      %v5143 = vand.u32 %v5142, 4294901760
      %v5144 = vsub.f32 %v5142, %v5143
      %v5145 = vand.u32 %v5144, 4294901760
      %5146 = vmatprep.mubr.f32.mxu0 %v5145
      %v5147 = vand.u32 %v4916, 4294901760
      %v5148 = vsub.f32 %v4916, %v5147
      %v5149 = vand.u32 %v5148, 4294901760
      %v5150 = vsub.f32 %v5148, %v5149
      %v5151 = vand.u32 %v5150, 4294901760
      %5152 = vmatmul.mubr.f32.gmra.mrb[0].mxu0 %v5151
      %v5153 = vpop.f32.mrb[0].mxu0
      %v5154 = vadd.f32 %v4958, %v5153
      %v5155 = vpop.f32.mrb[0].mxu0
      %v5156 = vand.u32 %v4973, 4294901760
      %v5157 = vsub.f32 %v4973, %v5156
      %v5158 = vand.u32 %v5157, 4294901760
      %v5159 = vsub.f32 %v5157, %v5158
      %v5160 = vand.u32 %v5159, 4294901760
      %5161 = vmatprep.mubr.f32.mxu0 %v5160
      %v5162 = vand.u32 %v4917, 4294901760
      %v5163 = vsub.f32 %v4917, %v5162
      %v5164 = vand.u32 %v5163, 4294901760
      %v5165 = vsub.f32 %v5163, %v5164
      %v5166 = vand.u32 %v5165, 4294901760
      %5167 = vmatmul.mubr.f32.gmra.mrb[0].mxu0 %v5166
      %v5168 = vpop.f32.mrb[0].mxu0
      %v5169 = vadd.f32 %v4958, %v5168
      %v5170 = vpop.f32.mrb[0].mxu0
      %v5171 = vand.u32 %v4976, 4294901760
      %v5172 = vsub.f32 %v4976, %v5171
      %v5173 = vand.u32 %v5172, 4294901760
      %v5174 = vsub.f32 %v5172, %v5173
      %v5175 = vand.u32 %v5174, 4294901760
      %5176 = vmatprep.mubr.f32.mxu0 %v5175
      %v5177 = vand.u32 %v4918, 4294901760
      %v5178 = vsub.f32 %v4918, %v5177
      %v5179 = vand.u32 %v5178, 4294901760
      %v5180 = vsub.f32 %v5178, %v5179
      %v5181 = vand.u32 %v5180, 4294901760
      %5182 = vmatmul.mubr.f32.gmra.mrb[0].mxu0 %v5181
      %v5183 = vpop.f32.mrb[0].mxu0
      %v5184 = vadd.f32 %v4958, %v5183
      %v5185 = vpop.f32.mrb[0].mxu0
      %v5186 = vand.u32 %v4979, 4294901760
      %v5187 = vsub.f32 %v4979, %v5186
      %v5188 = vand.u32 %v5187, 4294901760
      %v5189 = vsub.f32 %v5187, %v5188
      %v5190 = vand.u32 %v5189, 4294901760
      %5191 = vmatprep.mubr.f32.mxu0 %v5190
      %v5192 = vand.u32 %v4919, 4294901760
      %v5193 = vsub.f32 %v4919, %v5192
      %v5194 = vand.u32 %v5193, 4294901760
      %v5195 = vsub.f32 %v5193, %v5194
      %v5196 = vand.u32 %v5195, 4294901760
      %5197 = vmatmul.mubr.f32.gmra.mrb[0].mxu0 %v5196
      %v5198 = vpop.f32.mrb[0].mxu0
      %v5199 = vadd.f32 %v4958, %v5198
      %v5200 = vpop.f32.mrb[0].mxu0
      %v5201 = vand.u32 %v4982, 4294901760
      %v5202 = vsub.f32 %v4982, %v5201
      %v5203 = vand.u32 %v5202, 4294901760
      %v5204 = vsub.f32 %v5202, %v5203
      %v5205 = vand.u32 %v5204, 4294901760
      %5206 = vmatprep.mubr.f32.mxu0 %v5205
      %v5207 = vand.u32 %v4920, 4294901760
      %v5208 = vsub.f32 %v4920, %v5207
      %v5209 = vand.u32 %v5208, 4294901760
      %v5210 = vsub.f32 %v5208, %v5209
      %v5211 = vand.u32 %v5210, 4294901760
      %5212 = vmatmul.mubr.f32.gmra.mrb[0].mxu0 %v5211
      %v5213 = vpop.f32.mrb[0].mxu0
      %v5214 = vadd.f32 %v4958, %v5213
      %v5215 = vpop.f32.mrb[0].mxu0
      %v5216 = vand.u32 %v4985, 4294901760
      %v5217 = vsub.f32 %v4985, %v5216
      %v5218 = vand.u32 %v5217, 4294901760
      %v5219 = vsub.f32 %v5217, %v5218
      %v5220 = vand.u32 %v5219, 4294901760
      %5221 = vmatprep.mubr.f32.mxu0 %v5220
      %v5222 = vand.u32 %v4921, 4294901760
      %v5223 = vsub.f32 %v4921, %v5222
      %v5224 = vand.u32 %v5223, 4294901760
      %v5225 = vsub.f32 %v5223, %v5224
      %v5226 = vand.u32 %v5225, 4294901760
      %5227 = vmatmul.mubr.f32.gmra.mrb[0].mxu0 %v5226
      %v5228 = vpop.f32.mrb[0].mxu0
      %v5229 = vadd.f32 %v4958, %v5228
      %v5230 = vpop.f32.mrb[0].mxu0
      %v5231 = vand.u32 %v4988, 4294901760
      %v5232 = vsub.f32 %v4988, %v5231
      %v5233 = vand.u32 %v5232, 4294901760
      %v5234 = vsub.f32 %v5232, %v5233
      %v5235 = vand.u32 %v5234, 4294901760
      %5236 = vmatprep.mubr.f32.mxu0 %v5235
      %v5237 = vand.u32 %v4922, 4294901760
      %v5238 = vsub.f32 %v4922, %v5237
      %v5239 = vand.u32 %v5238, 4294901760
      %v5240 = vsub.f32 %v5238, %v5239
      %v5241 = vand.u32 %v5240, 4294901760
      %5242 = vmatmul.mubr.f32.gmra.mrb[0].mxu0 %v5241
      %v5243 = vpop.f32.mrb[0].mxu0
      %v5244 = vadd.f32 %v4958, %v5243
      %v5245 = vpop.f32.mrb[0].mxu0
      %v5246 = vand.u32 %v4991, 4294901760
      %v5247 = vsub.f32 %v4991, %v5246
      %v5248 = vand.u32 %v5247, 4294901760
      %v5249 = vsub.f32 %v5247, %v5248
      %v5250 = vand.u32 %v5249, 4294901760
      %5251 = vmatprep.mubr.f32.mxu0 %v5250
      %v5252 = vand.u32 %v4923, 4294901760
      %v5253 = vsub.f32 %v4923, %v5252
      %v5254 = vand.u32 %v5253, 4294901760
      %v5255 = vsub.f32 %v5253, %v5254
      %v5256 = vand.u32 %v5255, 4294901760
      %5257 = vmatmul.mubr.f32.gmra.mrb[0].mxu0 %v5256
      %v5258 = vpop.f32.mrb[0].mxu0
      %v5259 = vadd.f32 %v4958, %v5258
      %v5260 = vpop.f32.mrb[0].mxu0
      %v5261 = vand.u32 %v4994, 4294901760
      %v5262 = vsub.f32 %v4994, %v5261
      %v5263 = vand.u32 %v5262, 4294901760
      %v5264 = vsub.f32 %v5262, %v5263
      %v5265 = vand.u32 %v5264, 4294901760
      %5266 = vmatprep.mubr.f32.mxu0 %v5265
      %v5267 = vand.u32 %v4924, 4294901760
      %v5268 = vsub.f32 %v4924, %v5267
      %v5269 = vand.u32 %v5268, 4294901760
      %v5270 = vsub.f32 %v5268, %v5269
      %v5271 = vand.u32 %v5270, 4294901760
      %5272 = vmatmul.mubr.f32.gmra.mrb[0].mxu0 %v5271
      %v5273 = vpop.f32.mrb[0].mxu0
      %v5274 = vadd.f32 %v4958, %v5273
      %v5275 = vpop.f32.mrb[0].mxu0
      %v5276 = vand.u32 %v4997, 4294901760
      %v5277 = vsub.f32 %v4997, %v5276
      %v5278 = vand.u32 %v5277, 4294901760
      %v5279 = vsub.f32 %v5277, %v5278
      %v5280 = vand.u32 %v5279, 4294901760
      %5281 = vmatprep.mubr.f32.mxu0 %v5280
      %v5282 = vand.u32 %v4925, 4294901760
      %v5283 = vsub.f32 %v4925, %v5282
      %v5284 = vand.u32 %v5283, 4294901760
      %v5285 = vsub.f32 %v5283, %v5284
      %v5286 = vand.u32 %v5285, 4294901760
      %5287 = vmatmul.mubr.f32.gmra.mrb[0].mxu0 %v5286
      %v5288 = vpop.f32.mrb[0].mxu0
      %v5289 = vadd.f32 %v4958, %v5288
      %v5290 = vpop.f32.mrb[0].mxu0
      %v5291 = vand.u32 %v5000, 4294901760
      %v5292 = vsub.f32 %v5000, %v5291
      %v5293 = vand.u32 %v5292, 4294901760
      %v5294 = vsub.f32 %v5292, %v5293
      %v5295 = vand.u32 %v5294, 4294901760
      %5296 = vmatprep.mubr.f32.mxu0 %v5295
      %v5297 = vand.u32 %v4926, 4294901760
      %v5298 = vsub.f32 %v4926, %v5297
      %v5299 = vand.u32 %v5298, 4294901760
      %v5300 = vsub.f32 %v5298, %v5299
      %v5301 = vand.u32 %v5300, 4294901760
      %5302 = vmatmul.mubr.f32.gmra.mrb[0].mxu0 %v5301
      %v5303 = vpop.f32.mrb[0].mxu0
      %v5304 = vadd.f32 %v4958, %v5303
      %v5305 = vpop.f32.mrb[0].mxu0
      %v5306 = vand.u32 %v5003, 4294901760
      %v5307 = vsub.f32 %v5003, %v5306
      %v5308 = vand.u32 %v5307, 4294901760
      %v5309 = vsub.f32 %v5307, %v5308
      %v5310 = vand.u32 %v5309, 4294901760
      %5311 = vmatprep.mubr.f32.mxu0 %v5310
      %v5312 = vand.u32 %v4927, 4294901760
      %v5313 = vsub.f32 %v4927, %v5312
      %v5314 = vand.u32 %v5313, 4294901760
      %v5315 = vsub.f32 %v5313, %v5314
      %v5316 = vand.u32 %v5315, 4294901760
      %5317 = vmatmul.mubr.f32.gmra.mrb[0].mxu0 %v5316
      %v5318 = vpop.f32.mrb[0].mxu0
      %v5319 = vadd.f32 %v4958, %v5318
      %v5320 = vpop.f32.mrb[0].mxu0
      %v5321 = vand.u32 %v5006, 4294901760
      %v5322 = vsub.f32 %v5006, %v5321
      %v5323 = vand.u32 %v5322, 4294901760
      %v5324 = vsub.f32 %v5322, %v5323
      %v5325 = vand.u32 %v5324, 4294901760
      %5326 = vmatprep.mubr.f32.mxu0 %v5325
      %v5327 = vand.u32 %v4928, 4294901760
      %v5328 = vsub.f32 %v4928, %v5327
      %v5329 = vand.u32 %v5328, 4294901760
      %v5330 = vsub.f32 %v5328, %v5329
      %v5331 = vand.u32 %v5330, 4294901760
      %5332 = vmatmul.mubr.f32.gmra.mrb[0].mxu0 %v5331
      %v5333 = vpop.f32.mrb[0].mxu0
      %v5334 = vadd.f32 %v4958, %v5333
      %v5335 = vpop.f32.mrb[0].mxu0
      %5336 = vdwg.mxu0
      %5337 = vmatprep.subr.mxu0 0.0
      %v5338 = vand.u32 %v4929, 4294901760
      %v5339 = vsub.f32 %v4929, %v5338
      %v5340 = vand.u32 %v5339, 4294901760
      %v5341 = vsub.f32 %v5339, %v5340
      %v5342 = vand.u32 %v5341, 4294901760
      %5343 = vmatpush1.msra.mxu0 %v5342
      %5344 = vmatprep.subr.mxu0 0.0
      %v5345 = vand.u32 %v4930, 4294901760
      %v5346 = vsub.f32 %v4930, %v5345
      %v5347 = vand.u32 %v5346, 4294901760
      %v5348 = vsub.f32 %v5346, %v5347
      %v5349 = vand.u32 %v5348, 4294901760
      %5350 = vmatpush1.msra.mxu0 %v5349
      %5351 = vmatprep.subr.mxu0 0.0
      %v5352 = vand.u32 %v4931, 4294901760
      %v5353 = vsub.f32 %v4931, %v5352
      %v5354 = vand.u32 %v5353, 4294901760
      %v5355 = vsub.f32 %v5353, %v5354
      %v5356 = vand.u32 %v5355, 4294901760
      %5357 = vmatpush1.msra.mxu0 %v5356
      %5358 = vmatprep.subr.mxu0 0.0
      %v5359 = vand.u32 %v4932, 4294901760
      %v5360 = vsub.f32 %v4932, %v5359
      %v5361 = vand.u32 %v5360, 4294901760
      %v5362 = vsub.f32 %v5360, %v5361
      %v5363 = vand.u32 %v5362, 4294901760
      %5364 = vmatpush1.msra.mxu0 %v5363
      %5365 = vmatprep.subr.mxu0 0.0
      %v5366 = vand.u32 %v4933, 4294901760
      %v5367 = vsub.f32 %v4933, %v5366
      %v5368 = vand.u32 %v5367, 4294901760
      %v5369 = vsub.f32 %v5367, %v5368
      %v5370 = vand.u32 %v5369, 4294901760
      %5371 = vmatpush1.msra.mxu0 %v5370
      %5372 = vmatprep.subr.mxu0 0.0
      %v5373 = vand.u32 %v4934, 4294901760
      %v5374 = vsub.f32 %v4934, %v5373
      %v5375 = vand.u32 %v5374, 4294901760
      %v5376 = vsub.f32 %v5374, %v5375
      %v5377 = vand.u32 %v5376, 4294901760
      %5378 = vmatpush1.msra.mxu0 %v5377
      %5379 = vmatprep.subr.mxu0 0.0
      %v5380 = vand.u32 %v4935, 4294901760
      %v5381 = vsub.f32 %v4935, %v5380
      %v5382 = vand.u32 %v5381, 4294901760
      %v5383 = vsub.f32 %v5381, %v5382
      %v5384 = vand.u32 %v5383, 4294901760
      %5385 = vmatpush1.msra.mxu0 %v5384
      %5386 = vmatprep.subr.mxu0 0.0
      %v5387 = vand.u32 %v4936, 4294901760
      %v5388 = vsub.f32 %v4936, %v5387
      %v5389 = vand.u32 %v5388, 4294901760
      %v5390 = vsub.f32 %v5388, %v5389
      %v5391 = vand.u32 %v5390, 4294901760
      %5392 = vmatpush1.msra.mxu0 %v5391
      %5393 = vmatprep.subr.mxu0 0.0
      %v5394 = vand.u32 %v4937, 4294901760
      %v5395 = vsub.f32 %v4937, %v5394
      %v5396 = vand.u32 %v5395, 4294901760
      %v5397 = vsub.f32 %v5395, %v5396
      %v5398 = vand.u32 %v5397, 4294901760
      %5399 = vmatpush1.msra.mxu0 %v5398
      %5400 = vmatprep.subr.mxu0 0.0
      %v5401 = vand.u32 %v4938, 4294901760
      %v5402 = vsub.f32 %v4938, %v5401
      %v5403 = vand.u32 %v5402, 4294901760
      %v5404 = vsub.f32 %v5402, %v5403
      %v5405 = vand.u32 %v5404, 4294901760
      %5406 = vmatpush1.msra.mxu0 %v5405
      %5407 = vmatprep.subr.mxu0 0.0
      %v5408 = vand.u32 %v4939, 4294901760
      %v5409 = vsub.f32 %v4939, %v5408
      %v5410 = vand.u32 %v5409, 4294901760
      %v5411 = vsub.f32 %v5409, %v5410
      %v5412 = vand.u32 %v5411, 4294901760
      %5413 = vmatpush1.msra.mxu0 %v5412
      %5414 = vmatprep.subr.mxu0 0.0
      %v5415 = vand.u32 %v4940, 4294901760
      %v5416 = vsub.f32 %v4940, %v5415
      %v5417 = vand.u32 %v5416, 4294901760
      %v5418 = vsub.f32 %v5416, %v5417
      %v5419 = vand.u32 %v5418, 4294901760
      %5420 = vmatpush1.msra.mxu0 %v5419
      %5421 = vmatprep.subr.mxu0 0.0
      %v5422 = vand.u32 %v4941, 4294901760
      %v5423 = vsub.f32 %v4941, %v5422
      %v5424 = vand.u32 %v5423, 4294901760
      %v5425 = vsub.f32 %v5423, %v5424
      %v5426 = vand.u32 %v5425, 4294901760
      %5427 = vmatpush1.msra.mxu0 %v5426
      %5428 = vmatprep.subr.mxu0 0.0
      %v5429 = vand.u32 %v4942, 4294901760
      %v5430 = vsub.f32 %v4942, %v5429
      %v5431 = vand.u32 %v5430, 4294901760
      %v5432 = vsub.f32 %v5430, %v5431
      %v5433 = vand.u32 %v5432, 4294901760
      %5434 = vmatpush1.msra.mxu0 %v5433
      %5435 = vmatprep.subr.mxu0 0.0
      %v5436 = vand.u32 %v4943, 4294901760
      %v5437 = vsub.f32 %v4943, %v5436
      %v5438 = vand.u32 %v5437, 4294901760
      %v5439 = vsub.f32 %v5437, %v5438
      %v5440 = vand.u32 %v5439, 4294901760
      %5441 = vmatpush1.msra.mxu0 %v5440
      %5442 = vmatprep.subr.mxu0 0.0
      %v5443 = vand.u32 %v4944, 4294901760
      %v5444 = vsub.f32 %v4944, %v5443
      %v5445 = vand.u32 %v5444, 4294901760
      %v5446 = vsub.f32 %v5444, %v5445
      %v5447 = vand.u32 %v5446, 4294901760
      %5448 = vmatpush1.msra.mxu0 %v5447
      %5449 = vmatprep.subr.mxu0 0.0
      %v5450 = vand.u32 %v4945, 4294901760
      %v5451 = vsub.f32 %v4945, %v5450
      %v5452 = vand.u32 %v5451, 4294901760
      %v5453 = vsub.f32 %v5451, %v5452
      %v5454 = vand.u32 %v5453, 4294901760
      %5455 = vmatpush1.msra.mxu0 %v5454
      %5456 = vmatprep.subr.mxu0 0.0
      %v5457 = vand.u32 %v4946, 4294901760
      %v5458 = vsub.f32 %v4946, %v5457
      %v5459 = vand.u32 %v5458, 4294901760
      %v5460 = vsub.f32 %v5458, %v5459
      %v5461 = vand.u32 %v5460, 4294901760
      %5462 = vmatpush1.msra.mxu0 %v5461
      %5463 = vmatprep.subr.mxu0 0.0
      %v5464 = vand.u32 %v4947, 4294901760
      %v5465 = vsub.f32 %v4947, %v5464
      %v5466 = vand.u32 %v5465, 4294901760
      %v5467 = vsub.f32 %v5465, %v5466
      %v5468 = vand.u32 %v5467, 4294901760
      %5469 = vmatpush1.msra.mxu0 %v5468
      %5470 = vmatprep.subr.mxu0 0.0
      %v5471 = vand.u32 %v4948, 4294901760
      %v5472 = vsub.f32 %v4948, %v5471
      %v5473 = vand.u32 %v5472, 4294901760
      %v5474 = vsub.f32 %v5472, %v5473
      %v5475 = vand.u32 %v5474, 4294901760
      %5476 = vmatpush1.msra.mxu0 %v5475
      %5477 = vmatprep.subr.mxu0 0.0
      %v5478 = vand.u32 %v4949, 4294901760
      %v5479 = vsub.f32 %v4949, %v5478
      %v5480 = vand.u32 %v5479, 4294901760
      %v5481 = vsub.f32 %v5479, %v5480
      %v5482 = vand.u32 %v5481, 4294901760
      %5483 = vmatpush1.msra.mxu0 %v5482
      %5484 = vmatprep.subr.mxu0 0.0
      %v5485 = vand.u32 %v4950, 4294901760
      %v5486 = vsub.f32 %v4950, %v5485
      %v5487 = vand.u32 %v5486, 4294901760
      %v5488 = vsub.f32 %v5486, %v5487
      %v5489 = vand.u32 %v5488, 4294901760
      %5490 = vmatpush1.msra.mxu0 %v5489
      %5491 = vmatprep.subr.mxu0 0.0
      %v5492 = vand.u32 %v4951, 4294901760
      %v5493 = vsub.f32 %v4951, %v5492
      %v5494 = vand.u32 %v5493, 4294901760
      %v5495 = vsub.f32 %v5493, %v5494
      %v5496 = vand.u32 %v5495, 4294901760
      %5497 = vmatpush1.msra.mxu0 %v5496
      %5498 = vmatprep.subr.mxu0 0.0
      %v5499 = vand.u32 %v4952, 4294901760
      %v5500 = vsub.f32 %v4952, %v5499
      %v5501 = vand.u32 %v5500, 4294901760
      %v5502 = vsub.f32 %v5500, %v5501
      %v5503 = vand.u32 %v5502, 4294901760
      %5504 = vmatpush1.msra.mxu0 %v5503
      %5505 = vmatprep.subr.mxu0 0.0
      %5506 = vmatpush1.msra.mxu0 0.0
      %5507 = vmatprep.subr.mxu0 0.0
      %5508 = vmatpush1.msra.mxu0 0.0
      %5509 = vmatprep.subr.mxu0 0.0
      %5510 = vmatpush1.msra.mxu0 0.0
      %5511 = vmatprep.subr.mxu0 0.0
      %5512 = vmatpush1.msra.mxu0 0.0
      %5513 = vmatprep.subr.mxu0 0.0
      %5514 = vmatpush1.msra.mxu0 0.0
      %5515 = vmatprep.subr.mxu0 0.0
      %5516 = vmatpush1.msra.mxu0 0.0
      %5517 = vmatprep.subr.mxu0 0.0
      %5518 = vmatpush1.msra.mxu0 0.0
      %5519 = vmatprep.subr.mxu0 0.0
      %5520 = vmatpush1.msra.mxu0 0.0
      %v5521 = vand.u32 %v4961, 4294901760
      %5522 = vmatprep.mubr.f32.mxu0 %v5521
      %v5523 = vand.u32 %v4913, 4294901760
      %5524 = vmatmul.mubr.f32.gmra.mrb[0].mxu0 %v5523
      %v5525 = vpop.f32.mrb[0].mxu0
      %v5526 = vadd.f32 %v5109, %v5525
      %v5527 = vpop.f32.mrb[0].mxu0
      %v5528 = vand.u32 %v4964, 4294901760
      %5529 = vmatprep.mubr.f32.mxu0 %v5528
      %v5530 = vand.u32 %v4914, 4294901760
      %5531 = vmatmul.mubr.f32.gmra.mrb[0].mxu0 %v5530
      %v5532 = vpop.f32.mrb[0].mxu0
      %v5533 = vadd.f32 %v5124, %v5532
      %v5534 = vpop.f32.mrb[0].mxu0
      %v5535 = vand.u32 %v4967, 4294901760
      %5536 = vmatprep.mubr.f32.mxu0 %v5535
      %v5537 = vand.u32 %v4915, 4294901760
      %5538 = vmatmul.mubr.f32.gmra.mrb[0].mxu0 %v5537
      %v5539 = vpop.f32.mrb[0].mxu0
      %v5540 = vadd.f32 %v5139, %v5539
      %v5541 = vpop.f32.mrb[0].mxu0
      %v5542 = vand.u32 %v4970, 4294901760
      %5543 = vmatprep.mubr.f32.mxu0 %v5542
      %v5544 = vand.u32 %v4916, 4294901760
      %5545 = vmatmul.mubr.f32.gmra.mrb[0].mxu0 %v5544
      %v5546 = vpop.f32.mrb[0].mxu0
      %v5547 = vadd.f32 %v5154, %v5546
      %v5548 = vpop.f32.mrb[0].mxu0
      %v5549 = vand.u32 %v4973, 4294901760
      %5550 = vmatprep.mubr.f32.mxu0 %v5549
      %v5551 = vand.u32 %v4917, 4294901760
      %5552 = vmatmul.mubr.f32.gmra.mrb[0].mxu0 %v5551
      %v5553 = vpop.f32.mrb[0].mxu0
      %v5554 = vadd.f32 %v5169, %v5553
      %v5555 = vpop.f32.mrb[0].mxu0
      %v5556 = vand.u32 %v4976, 4294901760
      %5557 = vmatprep.mubr.f32.mxu0 %v5556
      %v5558 = vand.u32 %v4918, 4294901760
      %5559 = vmatmul.mubr.f32.gmra.mrb[0].mxu0 %v5558
      %v5560 = vpop.f32.mrb[0].mxu0
      %v5561 = vadd.f32 %v5184, %v5560
      %v5562 = vpop.f32.mrb[0].mxu0
      %v5563 = vand.u32 %v4979, 4294901760
      %5564 = vmatprep.mubr.f32.mxu0 %v5563
      %v5565 = vand.u32 %v4919, 4294901760
      %5566 = vmatmul.mubr.f32.gmra.mrb[0].mxu0 %v5565
      %v5567 = vpop.f32.mrb[0].mxu0
      %v5568 = vadd.f32 %v5199, %v5567
      %v5569 = vpop.f32.mrb[0].mxu0
      %v5570 = vand.u32 %v4982, 4294901760
      %5571 = vmatprep.mubr.f32.mxu0 %v5570
      %v5572 = vand.u32 %v4920, 4294901760
      %5573 = vmatmul.mubr.f32.gmra.mrb[0].mxu0 %v5572
      %v5574 = vpop.f32.mrb[0].mxu0
      %v5575 = vadd.f32 %v5214, %v5574
      %v5576 = vpop.f32.mrb[0].mxu0
      %v5577 = vand.u32 %v4985, 4294901760
      %5578 = vmatprep.mubr.f32.mxu0 %v5577
      %v5579 = vand.u32 %v4921, 4294901760
      %5580 = vmatmul.mubr.f32.gmra.mrb[0].mxu0 %v5579
      %v5581 = vpop.f32.mrb[0].mxu0
      %v5582 = vadd.f32 %v5229, %v5581
      %v5583 = vpop.f32.mrb[0].mxu0
      %v5584 = vand.u32 %v4988, 4294901760
      %5585 = vmatprep.mubr.f32.mxu0 %v5584
      %v5586 = vand.u32 %v4922, 4294901760
      %5587 = vmatmul.mubr.f32.gmra.mrb[0].mxu0 %v5586
      %v5588 = vpop.f32.mrb[0].mxu0
      %v5589 = vadd.f32 %v5244, %v5588
      %v5590 = vpop.f32.mrb[0].mxu0
      %v5591 = vand.u32 %v4991, 4294901760
      %5592 = vmatprep.mubr.f32.mxu0 %v5591
      %v5593 = vand.u32 %v4923, 4294901760
      %5594 = vmatmul.mubr.f32.gmra.mrb[0].mxu0 %v5593
      %v5595 = vpop.f32.mrb[0].mxu0
      %v5596 = vadd.f32 %v5259, %v5595
      %v5597 = vpop.f32.mrb[0].mxu0
      %v5598 = vand.u32 %v4994, 4294901760
      %5599 = vmatprep.mubr.f32.mxu0 %v5598
      %v5600 = vand.u32 %v4924, 4294901760
      %5601 = vmatmul.mubr.f32.gmra.mrb[0].mxu0 %v5600
      %v5602 = vpop.f32.mrb[0].mxu0
      %v5603 = vadd.f32 %v5274, %v5602
      %v5604 = vpop.f32.mrb[0].mxu0
      %v5605 = vand.u32 %v4997, 4294901760
      %5606 = vmatprep.mubr.f32.mxu0 %v5605
      %v5607 = vand.u32 %v4925, 4294901760
      %5608 = vmatmul.mubr.f32.gmra.mrb[0].mxu0 %v5607
      %v5609 = vpop.f32.mrb[0].mxu0
      %v5610 = vadd.f32 %v5289, %v5609
      %v5611 = vpop.f32.mrb[0].mxu0
      %v5612 = vand.u32 %v5000, 4294901760
      %5613 = vmatprep.mubr.f32.mxu0 %v5612
      %v5614 = vand.u32 %v4926, 4294901760
      %5615 = vmatmul.mubr.f32.gmra.mrb[0].mxu0 %v5614
      %v5616 = vpop.f32.mrb[0].mxu0
      %v5617 = vadd.f32 %v5304, %v5616
      %v5618 = vpop.f32.mrb[0].mxu0
      %v5619 = vand.u32 %v5003, 4294901760
      %5620 = vmatprep.mubr.f32.mxu0 %v5619
      %v5621 = vand.u32 %v4927, 4294901760
      %5622 = vmatmul.mubr.f32.gmra.mrb[0].mxu0 %v5621
      %v5623 = vpop.f32.mrb[0].mxu0
      %v5624 = vadd.f32 %v5319, %v5623
      %v5625 = vpop.f32.mrb[0].mxu0
      %v5626 = vand.u32 %v5006, 4294901760
      %5627 = vmatprep.mubr.f32.mxu0 %v5626
      %v5628 = vand.u32 %v4928, 4294901760
      %5629 = vmatmul.mubr.f32.gmra.mrb[0].mxu0 %v5628
      %v5630 = vpop.f32.mrb[0].mxu0
      %v5631 = vadd.f32 %v5334, %v5630
      %v5632 = vpop.f32.mrb[0].mxu0
      %5633 = vdwg.mxu0
      %5634 = vmatprep.subr.mxu0 0.0
      %v5635 = vand.u32 %v4929, 4294901760
      %v5636 = vsub.f32 %v4929, %v5635
      %5637 = vmatpush1.msra.mxu0 %v5636
      %5638 = vmatprep.subr.mxu0 0.0
      %v5639 = vand.u32 %v4930, 4294901760
      %v5640 = vsub.f32 %v4930, %v5639
      %5641 = vmatpush1.msra.mxu0 %v5640
      %5642 = vmatprep.subr.mxu0 0.0
      %v5643 = vand.u32 %v4931, 4294901760
      %v5644 = vsub.f32 %v4931, %v5643
      %5645 = vmatpush1.msra.mxu0 %v5644
      %5646 = vmatprep.subr.mxu0 0.0
      %v5647 = vand.u32 %v4932, 4294901760
      %v5648 = vsub.f32 %v4932, %v5647
      %5649 = vmatpush1.msra.mxu0 %v5648
      %5650 = vmatprep.subr.mxu0 0.0
      %v5651 = vand.u32 %v4933, 4294901760
      %v5652 = vsub.f32 %v4933, %v5651
      %5653 = vmatpush1.msra.mxu0 %v5652
      %5654 = vmatprep.subr.mxu0 0.0
      %v5655 = vand.u32 %v4934, 4294901760
      %v5656 = vsub.f32 %v4934, %v5655
      %5657 = vmatpush1.msra.mxu0 %v5656
      %5658 = vmatprep.subr.mxu0 0.0
      %v5659 = vand.u32 %v4935, 4294901760
      %v5660 = vsub.f32 %v4935, %v5659
      %5661 = vmatpush1.msra.mxu0 %v5660
      %5662 = vmatprep.subr.mxu0 0.0
      %v5663 = vand.u32 %v4936, 4294901760
      %v5664 = vsub.f32 %v4936, %v5663
      %5665 = vmatpush1.msra.mxu0 %v5664
      %5666 = vmatprep.subr.mxu0 0.0
      %v5667 = vand.u32 %v4937, 4294901760
      %v5668 = vsub.f32 %v4937, %v5667
      %5669 = vmatpush1.msra.mxu0 %v5668
      %5670 = vmatprep.subr.mxu0 0.0
      %v5671 = vand.u32 %v4938, 4294901760
      %v5672 = vsub.f32 %v4938, %v5671
      %5673 = vmatpush1.msra.mxu0 %v5672
      %5674 = vmatprep.subr.mxu0 0.0
      %v5675 = vand.u32 %v4939, 4294901760
      %v5676 = vsub.f32 %v4939, %v5675
      %5677 = vmatpush1.msra.mxu0 %v5676
      %5678 = vmatprep.subr.mxu0 0.0
      %v5679 = vand.u32 %v4940, 4294901760
      %v5680 = vsub.f32 %v4940, %v5679
      %5681 = vmatpush1.msra.mxu0 %v5680
      %5682 = vmatprep.subr.mxu0 0.0
      %v5683 = vand.u32 %v4941, 4294901760
      %v5684 = vsub.f32 %v4941, %v5683
      %5685 = vmatpush1.msra.mxu0 %v5684
      %5686 = vmatprep.subr.mxu0 0.0
      %v5687 = vand.u32 %v4942, 4294901760
      %v5688 = vsub.f32 %v4942, %v5687
      %5689 = vmatpush1.msra.mxu0 %v5688
      %5690 = vmatprep.subr.mxu0 0.0
      %v5691 = vand.u32 %v4943, 4294901760
      %v5692 = vsub.f32 %v4943, %v5691
      %5693 = vmatpush1.msra.mxu0 %v5692
      %5694 = vmatprep.subr.mxu0 0.0
      %v5695 = vand.u32 %v4944, 4294901760
      %v5696 = vsub.f32 %v4944, %v5695
      %5697 = vmatpush1.msra.mxu0 %v5696
      %5698 = vmatprep.subr.mxu0 0.0
      %v5699 = vand.u32 %v4945, 4294901760
      %v5700 = vsub.f32 %v4945, %v5699
      %5701 = vmatpush1.msra.mxu0 %v5700
      %5702 = vmatprep.subr.mxu0 0.0
      %v5703 = vand.u32 %v4946, 4294901760
      %v5704 = vsub.f32 %v4946, %v5703
      %5705 = vmatpush1.msra.mxu0 %v5704
      %5706 = vmatprep.subr.mxu0 0.0
      %v5707 = vand.u32 %v4947, 4294901760
      %v5708 = vsub.f32 %v4947, %v5707
      %5709 = vmatpush1.msra.mxu0 %v5708
      %5710 = vmatprep.subr.mxu0 0.0
      %v5711 = vand.u32 %v4948, 4294901760
      %v5712 = vsub.f32 %v4948, %v5711
      %5713 = vmatpush1.msra.mxu0 %v5712
      %5714 = vmatprep.subr.mxu0 0.0
      %v5715 = vand.u32 %v4949, 4294901760
      %v5716 = vsub.f32 %v4949, %v5715
      %5717 = vmatpush1.msra.mxu0 %v5716
      %5718 = vmatprep.subr.mxu0 0.0
      %v5719 = vand.u32 %v4950, 4294901760
      %v5720 = vsub.f32 %v4950, %v5719
      %5721 = vmatpush1.msra.mxu0 %v5720
      %5722 = vmatprep.subr.mxu0 0.0
      %v5723 = vand.u32 %v4951, 4294901760
      %v5724 = vsub.f32 %v4951, %v5723
      %5725 = vmatpush1.msra.mxu0 %v5724
      %5726 = vmatprep.subr.mxu0 0.0
      %v5727 = vand.u32 %v4952, 4294901760
      %v5728 = vsub.f32 %v4952, %v5727
      %5729 = vmatpush1.msra.mxu0 %v5728
      %5730 = vmatprep.subr.mxu0 0.0
      %5731 = vmatpush1.msra.mxu0 0.0
      %5732 = vmatprep.subr.mxu0 0.0
      %5733 = vmatpush1.msra.mxu0 0.0
      %5734 = vmatprep.subr.mxu0 0.0
      %5735 = vmatpush1.msra.mxu0 0.0
      %5736 = vmatprep.subr.mxu0 0.0
      %5737 = vmatpush1.msra.mxu0 0.0
      %5738 = vmatprep.subr.mxu0 0.0
      %5739 = vmatpush1.msra.mxu0 0.0
      %5740 = vmatprep.subr.mxu0 0.0
      %5741 = vmatpush1.msra.mxu0 0.0
      %5742 = vmatprep.subr.mxu0 0.0
      %5743 = vmatpush1.msra.mxu0 0.0
      %5744 = vmatprep.subr.mxu0 0.0
      %5745 = vmatpush1.msra.mxu0 0.0
      %v5746 = vand.u32 %v4961, 4294901760
      %v5747 = vsub.f32 %v4961, %v5746
      %5748 = vmatprep.mubr.f32.mxu0 %v5747
      %v5749 = vand.u32 %v4913, 4294901760
      %v5750 = vsub.f32 %v4913, %v5749
      %5751 = vmatmul.mubr.f32.gmra.mrb[0].mxu0 %v5750
      %v5752 = vpop.f32.mrb[0].mxu0
      %v5753 = vadd.f32 %v5526, %v5752
      %v5754 = vpop.f32.mrb[0].mxu0
      %v5755 = vand.u32 %v4964, 4294901760
      %v5756 = vsub.f32 %v4964, %v5755
      %5757 = vmatprep.mubr.f32.mxu0 %v5756
      %v5758 = vand.u32 %v4914, 4294901760
      %v5759 = vsub.f32 %v4914, %v5758
      %5760 = vmatmul.mubr.f32.gmra.mrb[0].mxu0 %v5759
      %v5761 = vpop.f32.mrb[0].mxu0
      %v5762 = vadd.f32 %v5533, %v5761
      %v5763 = vpop.f32.mrb[0].mxu0
      %v5764 = vand.u32 %v4967, 4294901760
      %v5765 = vsub.f32 %v4967, %v5764
      %5766 = vmatprep.mubr.f32.mxu0 %v5765
      %v5767 = vand.u32 %v4915, 4294901760
      %v5768 = vsub.f32 %v4915, %v5767
      %5769 = vmatmul.mubr.f32.gmra.mrb[0].mxu0 %v5768
      %v5770 = vpop.f32.mrb[0].mxu0
      %v5771 = vadd.f32 %v5540, %v5770
      %v5772 = vpop.f32.mrb[0].mxu0
      %v5773 = vand.u32 %v4970, 4294901760
      %v5774 = vsub.f32 %v4970, %v5773
      %5775 = vmatprep.mubr.f32.mxu0 %v5774
      %v5776 = vand.u32 %v4916, 4294901760
      %v5777 = vsub.f32 %v4916, %v5776
      %5778 = vmatmul.mubr.f32.gmra.mrb[0].mxu0 %v5777
      %v5779 = vpop.f32.mrb[0].mxu0
      %v5780 = vadd.f32 %v5547, %v5779
      %v5781 = vpop.f32.mrb[0].mxu0
      %v5782 = vand.u32 %v4973, 4294901760
      %v5783 = vsub.f32 %v4973, %v5782
      %5784 = vmatprep.mubr.f32.mxu0 %v5783
      %v5785 = vand.u32 %v4917, 4294901760
      %v5786 = vsub.f32 %v4917, %v5785
      %5787 = vmatmul.mubr.f32.gmra.mrb[0].mxu0 %v5786
      %v5788 = vpop.f32.mrb[0].mxu0
      %v5789 = vadd.f32 %v5554, %v5788
      %v5790 = vpop.f32.mrb[0].mxu0
      %v5791 = vand.u32 %v4976, 4294901760
      %v5792 = vsub.f32 %v4976, %v5791
      %5793 = vmatprep.mubr.f32.mxu0 %v5792
      %v5794 = vand.u32 %v4918, 4294901760
      %v5795 = vsub.f32 %v4918, %v5794
      %5796 = vmatmul.mubr.f32.gmra.mrb[0].mxu0 %v5795
      %v5797 = vpop.f32.mrb[0].mxu0
      %v5798 = vadd.f32 %v5561, %v5797
      %v5799 = vpop.f32.mrb[0].mxu0
      %v5800 = vand.u32 %v4979, 4294901760
      %v5801 = vsub.f32 %v4979, %v5800
      %5802 = vmatprep.mubr.f32.mxu0 %v5801
      %v5803 = vand.u32 %v4919, 4294901760
      %v5804 = vsub.f32 %v4919, %v5803
      %5805 = vmatmul.mubr.f32.gmra.mrb[0].mxu0 %v5804
      %v5806 = vpop.f32.mrb[0].mxu0
      %v5807 = vadd.f32 %v5568, %v5806
      %v5808 = vpop.f32.mrb[0].mxu0
      %v5809 = vand.u32 %v4982, 4294901760
      %v5810 = vsub.f32 %v4982, %v5809
      %5811 = vmatprep.mubr.f32.mxu0 %v5810
      %v5812 = vand.u32 %v4920, 4294901760
      %v5813 = vsub.f32 %v4920, %v5812
      %5814 = vmatmul.mubr.f32.gmra.mrb[0].mxu0 %v5813
      %v5815 = vpop.f32.mrb[0].mxu0
      %v5816 = vadd.f32 %v5575, %v5815
      %v5817 = vpop.f32.mrb[0].mxu0
      %v5818 = vand.u32 %v4985, 4294901760
      %v5819 = vsub.f32 %v4985, %v5818
      %5820 = vmatprep.mubr.f32.mxu0 %v5819
      %v5821 = vand.u32 %v4921, 4294901760
      %v5822 = vsub.f32 %v4921, %v5821
      %5823 = vmatmul.mubr.f32.gmra.mrb[0].mxu0 %v5822
      %v5824 = vpop.f32.mrb[0].mxu0
      %v5825 = vadd.f32 %v5582, %v5824
      %v5826 = vpop.f32.mrb[0].mxu0
      %v5827 = vand.u32 %v4988, 4294901760
      %v5828 = vsub.f32 %v4988, %v5827
      %5829 = vmatprep.mubr.f32.mxu0 %v5828
      %v5830 = vand.u32 %v4922, 4294901760
      %v5831 = vsub.f32 %v4922, %v5830
      %5832 = vmatmul.mubr.f32.gmra.mrb[0].mxu0 %v5831
      %v5833 = vpop.f32.mrb[0].mxu0
      %v5834 = vadd.f32 %v5589, %v5833
      %v5835 = vpop.f32.mrb[0].mxu0
      %v5836 = vand.u32 %v4991, 4294901760
      %v5837 = vsub.f32 %v4991, %v5836
      %5838 = vmatprep.mubr.f32.mxu0 %v5837
      %v5839 = vand.u32 %v4923, 4294901760
      %v5840 = vsub.f32 %v4923, %v5839
      %5841 = vmatmul.mubr.f32.gmra.mrb[0].mxu0 %v5840
      %v5842 = vpop.f32.mrb[0].mxu0
      %v5843 = vadd.f32 %v5596, %v5842
      %v5844 = vpop.f32.mrb[0].mxu0
      %v5845 = vand.u32 %v4994, 4294901760
      %v5846 = vsub.f32 %v4994, %v5845
      %5847 = vmatprep.mubr.f32.mxu0 %v5846
      %v5848 = vand.u32 %v4924, 4294901760
      %v5849 = vsub.f32 %v4924, %v5848
      %5850 = vmatmul.mubr.f32.gmra.mrb[0].mxu0 %v5849
      %v5851 = vpop.f32.mrb[0].mxu0
      %v5852 = vadd.f32 %v5603, %v5851
      %v5853 = vpop.f32.mrb[0].mxu0
      %v5854 = vand.u32 %v4997, 4294901760
      %v5855 = vsub.f32 %v4997, %v5854
      %5856 = vmatprep.mubr.f32.mxu0 %v5855
      %v5857 = vand.u32 %v4925, 4294901760
      %v5858 = vsub.f32 %v4925, %v5857
      %5859 = vmatmul.mubr.f32.gmra.mrb[0].mxu0 %v5858
      %v5860 = vpop.f32.mrb[0].mxu0
      %v5861 = vadd.f32 %v5610, %v5860
      %v5862 = vpop.f32.mrb[0].mxu0
      %v5863 = vand.u32 %v5000, 4294901760
      %v5864 = vsub.f32 %v5000, %v5863
      %5865 = vmatprep.mubr.f32.mxu0 %v5864
      %v5866 = vand.u32 %v4926, 4294901760
      %v5867 = vsub.f32 %v4926, %v5866
      %5868 = vmatmul.mubr.f32.gmra.mrb[0].mxu0 %v5867
      %v5869 = vpop.f32.mrb[0].mxu0
      %v5870 = vadd.f32 %v5617, %v5869
      %v5871 = vpop.f32.mrb[0].mxu0
      %v5872 = vand.u32 %v5003, 4294901760
      %v5873 = vsub.f32 %v5003, %v5872
      %5874 = vmatprep.mubr.f32.mxu0 %v5873
      %v5875 = vand.u32 %v4927, 4294901760
      %v5876 = vsub.f32 %v4927, %v5875
      %5877 = vmatmul.mubr.f32.gmra.mrb[0].mxu0 %v5876
      %v5878 = vpop.f32.mrb[0].mxu0
      %v5879 = vadd.f32 %v5624, %v5878
      %v5880 = vpop.f32.mrb[0].mxu0
      %v5881 = vand.u32 %v5006, 4294901760
      %v5882 = vsub.f32 %v5006, %v5881
      %5883 = vmatprep.mubr.f32.mxu0 %v5882
      %v5884 = vand.u32 %v4928, 4294901760
      %v5885 = vsub.f32 %v4928, %v5884
      %5886 = vmatmul.mubr.f32.gmra.mrb[0].mxu0 %v5885
      %v5887 = vpop.f32.mrb[0].mxu0
      %v5888 = vadd.f32 %v5631, %v5887
      %v5889 = vpop.f32.mrb[0].mxu0
      %5890 = vdwg.mxu0
      %5891 = vmatprep.subr.mxu0 0.0
      %v5892 = vand.u32 %v4929, 4294901760
      %5893 = vmatpush1.msra.mxu0 %v5892
      %5894 = vmatprep.subr.mxu0 0.0
      %v5895 = vand.u32 %v4930, 4294901760
      %5896 = vmatpush1.msra.mxu0 %v5895
      %5897 = vmatprep.subr.mxu0 0.0
      %v5898 = vand.u32 %v4931, 4294901760
      %5899 = vmatpush1.msra.mxu0 %v5898
      %5900 = vmatprep.subr.mxu0 0.0
      %v5901 = vand.u32 %v4932, 4294901760
      %5902 = vmatpush1.msra.mxu0 %v5901
      %5903 = vmatprep.subr.mxu0 0.0
      %v5904 = vand.u32 %v4933, 4294901760
      %5905 = vmatpush1.msra.mxu0 %v5904
      %5906 = vmatprep.subr.mxu0 0.0
      %v5907 = vand.u32 %v4934, 4294901760
      %5908 = vmatpush1.msra.mxu0 %v5907
      %5909 = vmatprep.subr.mxu0 0.0
      %v5910 = vand.u32 %v4935, 4294901760
      %5911 = vmatpush1.msra.mxu0 %v5910
      %5912 = vmatprep.subr.mxu0 0.0
      %v5913 = vand.u32 %v4936, 4294901760
      %5914 = vmatpush1.msra.mxu0 %v5913
      %5915 = vmatprep.subr.mxu0 0.0
      %v5916 = vand.u32 %v4937, 4294901760
      %5917 = vmatpush1.msra.mxu0 %v5916
      %5918 = vmatprep.subr.mxu0 0.0
      %v5919 = vand.u32 %v4938, 4294901760
      %5920 = vmatpush1.msra.mxu0 %v5919
      %5921 = vmatprep.subr.mxu0 0.0
      %v5922 = vand.u32 %v4939, 4294901760
      %5923 = vmatpush1.msra.mxu0 %v5922
      %5924 = vmatprep.subr.mxu0 0.0
      %v5925 = vand.u32 %v4940, 4294901760
      %5926 = vmatpush1.msra.mxu0 %v5925
      %5927 = vmatprep.subr.mxu0 0.0
      %v5928 = vand.u32 %v4941, 4294901760
      %5929 = vmatpush1.msra.mxu0 %v5928
      %5930 = vmatprep.subr.mxu0 0.0
      %v5931 = vand.u32 %v4942, 4294901760
      %5932 = vmatpush1.msra.mxu0 %v5931
      %5933 = vmatprep.subr.mxu0 0.0
      %v5934 = vand.u32 %v4943, 4294901760
      %5935 = vmatpush1.msra.mxu0 %v5934
      %5936 = vmatprep.subr.mxu0 0.0
      %v5937 = vand.u32 %v4944, 4294901760
      %5938 = vmatpush1.msra.mxu0 %v5937
      %5939 = vmatprep.subr.mxu0 0.0
      %v5940 = vand.u32 %v4945, 4294901760
      %5941 = vmatpush1.msra.mxu0 %v5940
      %5942 = vmatprep.subr.mxu0 0.0
      %v5943 = vand.u32 %v4946, 4294901760
      %5944 = vmatpush1.msra.mxu0 %v5943
      %5945 = vmatprep.subr.mxu0 0.0
      %v5946 = vand.u32 %v4947, 4294901760
      %5947 = vmatpush1.msra.mxu0 %v5946
      %5948 = vmatprep.subr.mxu0 0.0
      %v5949 = vand.u32 %v4948, 4294901760
      %5950 = vmatpush1.msra.mxu0 %v5949
      %5951 = vmatprep.subr.mxu0 0.0
      %v5952 = vand.u32 %v4949, 4294901760
      %5953 = vmatpush1.msra.mxu0 %v5952
      %5954 = vmatprep.subr.mxu0 0.0
      %v5955 = vand.u32 %v4950, 4294901760
      %5956 = vmatpush1.msra.mxu0 %v5955
      %5957 = vmatprep.subr.mxu0 0.0
      %v5958 = vand.u32 %v4951, 4294901760
      %5959 = vmatpush1.msra.mxu0 %v5958
      %5960 = vmatprep.subr.mxu0 0.0
      %v5961 = vand.u32 %v4952, 4294901760
      %5962 = vmatpush1.msra.mxu0 %v5961
      %5963 = vmatprep.subr.mxu0 0.0
      %5964 = vmatpush1.msra.mxu0 0.0
      %5965 = vmatprep.subr.mxu0 0.0
      %5966 = vmatpush1.msra.mxu0 0.0
      %5967 = vmatprep.subr.mxu0 0.0
      %5968 = vmatpush1.msra.mxu0 0.0
      %5969 = vmatprep.subr.mxu0 0.0
      %5970 = vmatpush1.msra.mxu0 0.0
      %5971 = vmatprep.subr.mxu0 0.0
      %5972 = vmatpush1.msra.mxu0 0.0
      %5973 = vmatprep.subr.mxu0 0.0
      %5974 = vmatpush1.msra.mxu0 0.0
      %5975 = vmatprep.subr.mxu0 0.0
      %5976 = vmatpush1.msra.mxu0 0.0
      %5977 = vmatprep.subr.mxu0 0.0
      %5978 = vmatpush1.msra.mxu0 0.0
      %v5979 = vand.u32 %v4961, 4294901760
      %v5980 = vsub.f32 %v4961, %v5979
      %v5981 = vand.u32 %v5980, 4294901760
      %5982 = vmatprep.mubr.f32.mxu0 %v5981
      %v5983 = vand.u32 %v4913, 4294901760
      %v5984 = vsub.f32 %v4913, %v5983
      %v5985 = vand.u32 %v5984, 4294901760
      %5986 = vmatmul.mubr.f32.gmra.mrb[0].mxu0 %v5985
      %v5987 = vpop.f32.mrb[0].mxu0
      %v5988 = vadd.f32 %v5753, %v5987
      %v5989 = vpop.f32.mrb[0].mxu0
      %v5990 = vand.u32 %v4964, 4294901760
      %v5991 = vsub.f32 %v4964, %v5990
      %v5992 = vand.u32 %v5991, 4294901760
      %5993 = vmatprep.mubr.f32.mxu0 %v5992
      %v5994 = vand.u32 %v4914, 4294901760
      %v5995 = vsub.f32 %v4914, %v5994
      %v5996 = vand.u32 %v5995, 4294901760
      %5997 = vmatmul.mubr.f32.gmra.mrb[0].mxu0 %v5996
      %v5998 = vpop.f32.mrb[0].mxu0
      %v5999 = vadd.f32 %v5762, %v5998
      %v6000 = vpop.f32.mrb[0].mxu0
      %v6001 = vand.u32 %v4967, 4294901760
      %v6002 = vsub.f32 %v4967, %v6001
      %v6003 = vand.u32 %v6002, 4294901760
      %6004 = vmatprep.mubr.f32.mxu0 %v6003
      %v6005 = vand.u32 %v4915, 4294901760
      %v6006 = vsub.f32 %v4915, %v6005
      %v6007 = vand.u32 %v6006, 4294901760
      %6008 = vmatmul.mubr.f32.gmra.mrb[0].mxu0 %v6007
      %v6009 = vpop.f32.mrb[0].mxu0
      %v6010 = vadd.f32 %v5771, %v6009
      %v6011 = vpop.f32.mrb[0].mxu0
      %v6012 = vand.u32 %v4970, 4294901760
      %v6013 = vsub.f32 %v4970, %v6012
      %v6014 = vand.u32 %v6013, 4294901760
      %6015 = vmatprep.mubr.f32.mxu0 %v6014
      %v6016 = vand.u32 %v4916, 4294901760
      %v6017 = vsub.f32 %v4916, %v6016
      %v6018 = vand.u32 %v6017, 4294901760
      %6019 = vmatmul.mubr.f32.gmra.mrb[0].mxu0 %v6018
      %v6020 = vpop.f32.mrb[0].mxu0
      %v6021 = vadd.f32 %v5780, %v6020
      %v6022 = vpop.f32.mrb[0].mxu0
      %v6023 = vand.u32 %v4973, 4294901760
      %v6024 = vsub.f32 %v4973, %v6023
      %v6025 = vand.u32 %v6024, 4294901760
      %6026 = vmatprep.mubr.f32.mxu0 %v6025
      %v6027 = vand.u32 %v4917, 4294901760
      %v6028 = vsub.f32 %v4917, %v6027
      %v6029 = vand.u32 %v6028, 4294901760
      %6030 = vmatmul.mubr.f32.gmra.mrb[0].mxu0 %v6029
      %v6031 = vpop.f32.mrb[0].mxu0
      %v6032 = vadd.f32 %v5789, %v6031
      %v6033 = vpop.f32.mrb[0].mxu0
      %v6034 = vand.u32 %v4976, 4294901760
      %v6035 = vsub.f32 %v4976, %v6034
      %v6036 = vand.u32 %v6035, 4294901760
      %6037 = vmatprep.mubr.f32.mxu0 %v6036
      %v6038 = vand.u32 %v4918, 4294901760
      %v6039 = vsub.f32 %v4918, %v6038
      %v6040 = vand.u32 %v6039, 4294901760
      %6041 = vmatmul.mubr.f32.gmra.mrb[0].mxu0 %v6040
      %v6042 = vpop.f32.mrb[0].mxu0
      %v6043 = vadd.f32 %v5798, %v6042
      %v6044 = vpop.f32.mrb[0].mxu0
      %v6045 = vand.u32 %v4979, 4294901760
      %v6046 = vsub.f32 %v4979, %v6045
      %v6047 = vand.u32 %v6046, 4294901760
      %6048 = vmatprep.mubr.f32.mxu0 %v6047
      %v6049 = vand.u32 %v4919, 4294901760
      %v6050 = vsub.f32 %v4919, %v6049
      %v6051 = vand.u32 %v6050, 4294901760
      %6052 = vmatmul.mubr.f32.gmra.mrb[0].mxu0 %v6051
      %v6053 = vpop.f32.mrb[0].mxu0
      %v6054 = vadd.f32 %v5807, %v6053
      %v6055 = vpop.f32.mrb[0].mxu0
      %v6056 = vand.u32 %v4982, 4294901760
      %v6057 = vsub.f32 %v4982, %v6056
      %v6058 = vand.u32 %v6057, 4294901760
      %6059 = vmatprep.mubr.f32.mxu0 %v6058
      %v6060 = vand.u32 %v4920, 4294901760
      %v6061 = vsub.f32 %v4920, %v6060
      %v6062 = vand.u32 %v6061, 4294901760
      %6063 = vmatmul.mubr.f32.gmra.mrb[0].mxu0 %v6062
      %v6064 = vpop.f32.mrb[0].mxu0
      %v6065 = vadd.f32 %v5816, %v6064
      %v6066 = vpop.f32.mrb[0].mxu0
      %v6067 = vand.u32 %v4985, 4294901760
      %v6068 = vsub.f32 %v4985, %v6067
      %v6069 = vand.u32 %v6068, 4294901760
      %6070 = vmatprep.mubr.f32.mxu0 %v6069
      %v6071 = vand.u32 %v4921, 4294901760
      %v6072 = vsub.f32 %v4921, %v6071
      %v6073 = vand.u32 %v6072, 4294901760
      %6074 = vmatmul.mubr.f32.gmra.mrb[0].mxu0 %v6073
      %v6075 = vpop.f32.mrb[0].mxu0
      %v6076 = vadd.f32 %v5825, %v6075
      %v6077 = vpop.f32.mrb[0].mxu0
      %v6078 = vand.u32 %v4988, 4294901760
      %v6079 = vsub.f32 %v4988, %v6078
      %v6080 = vand.u32 %v6079, 4294901760
      %6081 = vmatprep.mubr.f32.mxu0 %v6080
      %v6082 = vand.u32 %v4922, 4294901760
      %v6083 = vsub.f32 %v4922, %v6082
      %v6084 = vand.u32 %v6083, 4294901760
      %6085 = vmatmul.mubr.f32.gmra.mrb[0].mxu0 %v6084
      %v6086 = vpop.f32.mrb[0].mxu0
      %v6087 = vadd.f32 %v5834, %v6086
      %v6088 = vpop.f32.mrb[0].mxu0
      %v6089 = vand.u32 %v4991, 4294901760
      %v6090 = vsub.f32 %v4991, %v6089
      %v6091 = vand.u32 %v6090, 4294901760
      %6092 = vmatprep.mubr.f32.mxu0 %v6091
      %v6093 = vand.u32 %v4923, 4294901760
      %v6094 = vsub.f32 %v4923, %v6093
      %v6095 = vand.u32 %v6094, 4294901760
      %6096 = vmatmul.mubr.f32.gmra.mrb[0].mxu0 %v6095
      %v6097 = vpop.f32.mrb[0].mxu0
      %v6098 = vadd.f32 %v5843, %v6097
      %v6099 = vpop.f32.mrb[0].mxu0
      %v6100 = vand.u32 %v4994, 4294901760
      %v6101 = vsub.f32 %v4994, %v6100
      %v6102 = vand.u32 %v6101, 4294901760
      %6103 = vmatprep.mubr.f32.mxu0 %v6102
      %v6104 = vand.u32 %v4924, 4294901760
      %v6105 = vsub.f32 %v4924, %v6104
      %v6106 = vand.u32 %v6105, 4294901760
      %6107 = vmatmul.mubr.f32.gmra.mrb[0].mxu0 %v6106
      %v6108 = vpop.f32.mrb[0].mxu0
      %v6109 = vadd.f32 %v5852, %v6108
      %v6110 = vpop.f32.mrb[0].mxu0
      %v6111 = vand.u32 %v4997, 4294901760
      %v6112 = vsub.f32 %v4997, %v6111
      %v6113 = vand.u32 %v6112, 4294901760
      %6114 = vmatprep.mubr.f32.mxu0 %v6113
      %v6115 = vand.u32 %v4925, 4294901760
      %v6116 = vsub.f32 %v4925, %v6115
      %v6117 = vand.u32 %v6116, 4294901760
      %6118 = vmatmul.mubr.f32.gmra.mrb[0].mxu0 %v6117
      %v6119 = vpop.f32.mrb[0].mxu0
      %v6120 = vadd.f32 %v5861, %v6119
      %v6121 = vpop.f32.mrb[0].mxu0
      %v6122 = vand.u32 %v5000, 4294901760
      %v6123 = vsub.f32 %v5000, %v6122
      %v6124 = vand.u32 %v6123, 4294901760
      %6125 = vmatprep.mubr.f32.mxu0 %v6124
      %v6126 = vand.u32 %v4926, 4294901760
      %v6127 = vsub.f32 %v4926, %v6126
      %v6128 = vand.u32 %v6127, 4294901760
      %6129 = vmatmul.mubr.f32.gmra.mrb[0].mxu0 %v6128
      %v6130 = vpop.f32.mrb[0].mxu0
      %v6131 = vadd.f32 %v5870, %v6130
      %v6132 = vpop.f32.mrb[0].mxu0
      %v6133 = vand.u32 %v5003, 4294901760
      %v6134 = vsub.f32 %v5003, %v6133
      %v6135 = vand.u32 %v6134, 4294901760
      %6136 = vmatprep.mubr.f32.mxu0 %v6135
      %v6137 = vand.u32 %v4927, 4294901760
      %v6138 = vsub.f32 %v4927, %v6137
      %v6139 = vand.u32 %v6138, 4294901760
      %6140 = vmatmul.mubr.f32.gmra.mrb[0].mxu0 %v6139
      %v6141 = vpop.f32.mrb[0].mxu0
      %v6142 = vadd.f32 %v5879, %v6141
      %v6143 = vpop.f32.mrb[0].mxu0
      %v6144 = vand.u32 %v5006, 4294901760
      %v6145 = vsub.f32 %v5006, %v6144
      %v6146 = vand.u32 %v6145, 4294901760
      %6147 = vmatprep.mubr.f32.mxu0 %v6146
      %v6148 = vand.u32 %v4928, 4294901760
      %v6149 = vsub.f32 %v4928, %v6148
      %v6150 = vand.u32 %v6149, 4294901760
      %6151 = vmatmul.mubr.f32.gmra.mrb[0].mxu0 %v6150
      %v6152 = vpop.f32.mrb[0].mxu0
      %v6153 = vadd.f32 %v5888, %v6152
      %v6154 = vpop.f32.mrb[0].mxu0
      %6155 = vdwg.mxu0
      %6156 = vmatprep.subr.mxu0 0.0
      %v6157 = vand.u32 %v4929, 4294901760
      %v6158 = vsub.f32 %v4929, %v6157
      %v6159 = vand.u32 %v6158, 4294901760
      %6160 = vmatpush1.msra.mxu0 %v6159
      %6161 = vmatprep.subr.mxu0 0.0
      %v6162 = vand.u32 %v4930, 4294901760
      %v6163 = vsub.f32 %v4930, %v6162
      %v6164 = vand.u32 %v6163, 4294901760
      %6165 = vmatpush1.msra.mxu0 %v6164
      %6166 = vmatprep.subr.mxu0 0.0
      %v6167 = vand.u32 %v4931, 4294901760
      %v6168 = vsub.f32 %v4931, %v6167
      %v6169 = vand.u32 %v6168, 4294901760
      %6170 = vmatpush1.msra.mxu0 %v6169
      %6171 = vmatprep.subr.mxu0 0.0
      %v6172 = vand.u32 %v4932, 4294901760
      %v6173 = vsub.f32 %v4932, %v6172
      %v6174 = vand.u32 %v6173, 4294901760
      %6175 = vmatpush1.msra.mxu0 %v6174
      %6176 = vmatprep.subr.mxu0 0.0
      %v6177 = vand.u32 %v4933, 4294901760
      %v6178 = vsub.f32 %v4933, %v6177
      %v6179 = vand.u32 %v6178, 4294901760
      %6180 = vmatpush1.msra.mxu0 %v6179
      %6181 = vmatprep.subr.mxu0 0.0
      %v6182 = vand.u32 %v4934, 4294901760
      %v6183 = vsub.f32 %v4934, %v6182
      %v6184 = vand.u32 %v6183, 4294901760
      %6185 = vmatpush1.msra.mxu0 %v6184
      %6186 = vmatprep.subr.mxu0 0.0
      %v6187 = vand.u32 %v4935, 4294901760
      %v6188 = vsub.f32 %v4935, %v6187
      %v6189 = vand.u32 %v6188, 4294901760
      %6190 = vmatpush1.msra.mxu0 %v6189
      %6191 = vmatprep.subr.mxu0 0.0
      %v6192 = vand.u32 %v4936, 4294901760
      %v6193 = vsub.f32 %v4936, %v6192
      %v6194 = vand.u32 %v6193, 4294901760
      %6195 = vmatpush1.msra.mxu0 %v6194
      %6196 = vmatprep.subr.mxu0 0.0
      %v6197 = vand.u32 %v4937, 4294901760
      %v6198 = vsub.f32 %v4937, %v6197
      %v6199 = vand.u32 %v6198, 4294901760
      %6200 = vmatpush1.msra.mxu0 %v6199
      %6201 = vmatprep.subr.mxu0 0.0
      %v6202 = vand.u32 %v4938, 4294901760
      %v6203 = vsub.f32 %v4938, %v6202
      %v6204 = vand.u32 %v6203, 4294901760
      %6205 = vmatpush1.msra.mxu0 %v6204
      %6206 = vmatprep.subr.mxu0 0.0
      %v6207 = vand.u32 %v4939, 4294901760
      %v6208 = vsub.f32 %v4939, %v6207
      %v6209 = vand.u32 %v6208, 4294901760
      %6210 = vmatpush1.msra.mxu0 %v6209
      %6211 = vmatprep.subr.mxu0 0.0
      %v6212 = vand.u32 %v4940, 4294901760
      %v6213 = vsub.f32 %v4940, %v6212
      %v6214 = vand.u32 %v6213, 4294901760
      %6215 = vmatpush1.msra.mxu0 %v6214
      %6216 = vmatprep.subr.mxu0 0.0
      %v6217 = vand.u32 %v4941, 4294901760
      %v6218 = vsub.f32 %v4941, %v6217
      %v6219 = vand.u32 %v6218, 4294901760
      %6220 = vmatpush1.msra.mxu0 %v6219
      %6221 = vmatprep.subr.mxu0 0.0
      %v6222 = vand.u32 %v4942, 4294901760
      %v6223 = vsub.f32 %v4942, %v6222
      %v6224 = vand.u32 %v6223, 4294901760
      %6225 = vmatpush1.msra.mxu0 %v6224
      %6226 = vmatprep.subr.mxu0 0.0
      %v6227 = vand.u32 %v4943, 4294901760
      %v6228 = vsub.f32 %v4943, %v6227
      %v6229 = vand.u32 %v6228, 4294901760
      %6230 = vmatpush1.msra.mxu0 %v6229
      %6231 = vmatprep.subr.mxu0 0.0
      %v6232 = vand.u32 %v4944, 4294901760
      %v6233 = vsub.f32 %v4944, %v6232
      %v6234 = vand.u32 %v6233, 4294901760
      %6235 = vmatpush1.msra.mxu0 %v6234
      %6236 = vmatprep.subr.mxu0 0.0
      %v6237 = vand.u32 %v4945, 4294901760
      %v6238 = vsub.f32 %v4945, %v6237
      %v6239 = vand.u32 %v6238, 4294901760
      %6240 = vmatpush1.msra.mxu0 %v6239
      %6241 = vmatprep.subr.mxu0 0.0
      %v6242 = vand.u32 %v4946, 4294901760
      %v6243 = vsub.f32 %v4946, %v6242
      %v6244 = vand.u32 %v6243, 4294901760
      %6245 = vmatpush1.msra.mxu0 %v6244
      %6246 = vmatprep.subr.mxu0 0.0
      %v6247 = vand.u32 %v4947, 4294901760
      %v6248 = vsub.f32 %v4947, %v6247
      %v6249 = vand.u32 %v6248, 4294901760
      %6250 = vmatpush1.msra.mxu0 %v6249
      %6251 = vmatprep.subr.mxu0 0.0
      %v6252 = vand.u32 %v4948, 4294901760
      %v6253 = vsub.f32 %v4948, %v6252
      %v6254 = vand.u32 %v6253, 4294901760
      %6255 = vmatpush1.msra.mxu0 %v6254
      %6256 = vmatprep.subr.mxu0 0.0
      %v6257 = vand.u32 %v4949, 4294901760
      %v6258 = vsub.f32 %v4949, %v6257
      %v6259 = vand.u32 %v6258, 4294901760
      %6260 = vmatpush1.msra.mxu0 %v6259
      %6261 = vmatprep.subr.mxu0 0.0
      %v6262 = vand.u32 %v4950, 4294901760
      %v6263 = vsub.f32 %v4950, %v6262
      %v6264 = vand.u32 %v6263, 4294901760
      %6265 = vmatpush1.msra.mxu0 %v6264
      %6266 = vmatprep.subr.mxu0 0.0
      %v6267 = vand.u32 %v4951, 4294901760
      %v6268 = vsub.f32 %v4951, %v6267
      %v6269 = vand.u32 %v6268, 4294901760
      %6270 = vmatpush1.msra.mxu0 %v6269
      %6271 = vmatprep.subr.mxu0 0.0
      %v6272 = vand.u32 %v4952, 4294901760
      %v6273 = vsub.f32 %v4952, %v6272
      %v6274 = vand.u32 %v6273, 4294901760
      %6275 = vmatpush1.msra.mxu0 %v6274
      %6276 = vmatprep.subr.mxu0 0.0
      %6277 = vmatpush1.msra.mxu0 0.0
      %6278 = vmatprep.subr.mxu0 0.0
      %6279 = vmatpush1.msra.mxu0 0.0
      %6280 = vmatprep.subr.mxu0 0.0
      %6281 = vmatpush1.msra.mxu0 0.0
      %6282 = vmatprep.subr.mxu0 0.0
      %6283 = vmatpush1.msra.mxu0 0.0
      %6284 = vmatprep.subr.mxu0 0.0
      %6285 = vmatpush1.msra.mxu0 0.0
      %6286 = vmatprep.subr.mxu0 0.0
      %6287 = vmatpush1.msra.mxu0 0.0
      %6288 = vmatprep.subr.mxu0 0.0
      %6289 = vmatpush1.msra.mxu0 0.0
      %6290 = vmatprep.subr.mxu0 0.0
      %6291 = vmatpush1.msra.mxu0 0.0
      %v6292 = vand.u32 %v4961, 4294901760
      %6293 = vmatprep.mubr.f32.mxu0 %v6292
      %v6294 = vand.u32 %v4913, 4294901760
      %6295 = vmatmul.mubr.f32.gmra.mrb[0].mxu0 %v6294
      %v6296 = vpop.f32.mrb[0].mxu0
      %v6297 = vadd.f32 %v5988, %v6296
      %v6298 = vpop.f32.mrb[0].mxu0
      %v6299 = vand.u32 %v4964, 4294901760
      %6300 = vmatprep.mubr.f32.mxu0 %v6299
      %v6301 = vand.u32 %v4914, 4294901760
      %6302 = vmatmul.mubr.f32.gmra.mrb[0].mxu0 %v6301
      %v6303 = vpop.f32.mrb[0].mxu0
      %v6304 = vadd.f32 %v5999, %v6303
      %v6305 = vpop.f32.mrb[0].mxu0
      %v6306 = vand.u32 %v4967, 4294901760
      %6307 = vmatprep.mubr.f32.mxu0 %v6306
      %v6308 = vand.u32 %v4915, 4294901760
      %6309 = vmatmul.mubr.f32.gmra.mrb[0].mxu0 %v6308
      %v6310 = vpop.f32.mrb[0].mxu0
      %v6311 = vadd.f32 %v6010, %v6310
      %v6312 = vpop.f32.mrb[0].mxu0
      %v6313 = vand.u32 %v4970, 4294901760
      %6314 = vmatprep.mubr.f32.mxu0 %v6313
      %v6315 = vand.u32 %v4916, 4294901760
      %6316 = vmatmul.mubr.f32.gmra.mrb[0].mxu0 %v6315
      %v6317 = vpop.f32.mrb[0].mxu0
      %v6318 = vadd.f32 %v6021, %v6317
      %v6319 = vpop.f32.mrb[0].mxu0
      %v6320 = vand.u32 %v4973, 4294901760
      %6321 = vmatprep.mubr.f32.mxu0 %v6320
      %v6322 = vand.u32 %v4917, 4294901760
      %6323 = vmatmul.mubr.f32.gmra.mrb[0].mxu0 %v6322
      %v6324 = vpop.f32.mrb[0].mxu0
      %v6325 = vadd.f32 %v6032, %v6324
      %v6326 = vpop.f32.mrb[0].mxu0
      %v6327 = vand.u32 %v4976, 4294901760
      %6328 = vmatprep.mubr.f32.mxu0 %v6327
      %v6329 = vand.u32 %v4918, 4294901760
      %6330 = vmatmul.mubr.f32.gmra.mrb[0].mxu0 %v6329
      %v6331 = vpop.f32.mrb[0].mxu0
      %v6332 = vadd.f32 %v6043, %v6331
      %v6333 = vpop.f32.mrb[0].mxu0
      %v6334 = vand.u32 %v4979, 4294901760
      %6335 = vmatprep.mubr.f32.mxu0 %v6334
      %v6336 = vand.u32 %v4919, 4294901760
      %6337 = vmatmul.mubr.f32.gmra.mrb[0].mxu0 %v6336
      %v6338 = vpop.f32.mrb[0].mxu0
      %v6339 = vadd.f32 %v6054, %v6338
      %v6340 = vpop.f32.mrb[0].mxu0
      %v6341 = vand.u32 %v4982, 4294901760
      %6342 = vmatprep.mubr.f32.mxu0 %v6341
      %v6343 = vand.u32 %v4920, 4294901760
      %6344 = vmatmul.mubr.f32.gmra.mrb[0].mxu0 %v6343
      %v6345 = vpop.f32.mrb[0].mxu0
      %v6346 = vadd.f32 %v6065, %v6345
      %v6347 = vpop.f32.mrb[0].mxu0
      %v6348 = vand.u32 %v4985, 4294901760
      %6349 = vmatprep.mubr.f32.mxu0 %v6348
      %v6350 = vand.u32 %v4921, 4294901760
      %6351 = vmatmul.mubr.f32.gmra.mrb[0].mxu0 %v6350
      %v6352 = vpop.f32.mrb[0].mxu0
      %v6353 = vadd.f32 %v6076, %v6352
      %v6354 = vpop.f32.mrb[0].mxu0
      %v6355 = vand.u32 %v4988, 4294901760
      %6356 = vmatprep.mubr.f32.mxu0 %v6355
      %v6357 = vand.u32 %v4922, 4294901760
      %6358 = vmatmul.mubr.f32.gmra.mrb[0].mxu0 %v6357
      %v6359 = vpop.f32.mrb[0].mxu0
      %v6360 = vadd.f32 %v6087, %v6359
      %v6361 = vpop.f32.mrb[0].mxu0
      %v6362 = vand.u32 %v4991, 4294901760
      %6363 = vmatprep.mubr.f32.mxu0 %v6362
      %v6364 = vand.u32 %v4923, 4294901760
      %6365 = vmatmul.mubr.f32.gmra.mrb[0].mxu0 %v6364
      %v6366 = vpop.f32.mrb[0].mxu0
      %v6367 = vadd.f32 %v6098, %v6366
      %v6368 = vpop.f32.mrb[0].mxu0
      %v6369 = vand.u32 %v4994, 4294901760
      %6370 = vmatprep.mubr.f32.mxu0 %v6369
      %v6371 = vand.u32 %v4924, 4294901760
      %6372 = vmatmul.mubr.f32.gmra.mrb[0].mxu0 %v6371
      %v6373 = vpop.f32.mrb[0].mxu0
      %v6374 = vadd.f32 %v6109, %v6373
      %v6375 = vpop.f32.mrb[0].mxu0
      %v6376 = vand.u32 %v4997, 4294901760
      %6377 = vmatprep.mubr.f32.mxu0 %v6376
      %v6378 = vand.u32 %v4925, 4294901760
      %6379 = vmatmul.mubr.f32.gmra.mrb[0].mxu0 %v6378
      %v6380 = vpop.f32.mrb[0].mxu0
      %v6381 = vadd.f32 %v6120, %v6380
      %v6382 = vpop.f32.mrb[0].mxu0
      %v6383 = vand.u32 %v5000, 4294901760
      %6384 = vmatprep.mubr.f32.mxu0 %v6383
      %v6385 = vand.u32 %v4926, 4294901760
      %6386 = vmatmul.mubr.f32.gmra.mrb[0].mxu0 %v6385
      %v6387 = vpop.f32.mrb[0].mxu0
      %v6388 = vadd.f32 %v6131, %v6387
      %v6389 = vpop.f32.mrb[0].mxu0
      %v6390 = vand.u32 %v5003, 4294901760
      %6391 = vmatprep.mubr.f32.mxu0 %v6390
      %v6392 = vand.u32 %v4927, 4294901760
      %6393 = vmatmul.mubr.f32.gmra.mrb[0].mxu0 %v6392
      %v6394 = vpop.f32.mrb[0].mxu0
      %v6395 = vadd.f32 %v6142, %v6394
      %v6396 = vpop.f32.mrb[0].mxu0
      %v6397 = vand.u32 %v5006, 4294901760
      %6398 = vmatprep.mubr.f32.mxu0 %v6397
      %v6399 = vand.u32 %v4928, 4294901760
      %6400 = vmatmul.mubr.f32.gmra.mrb[0].mxu0 %v6399
      %v6401 = vpop.f32.mrb[0].mxu0
      %v6402 = vadd.f32 %v6153, %v6401
      %v6403 = vpop.f32.mrb[0].mxu0
      %6404 = vdwg.mxu0
      %6405 = vmatprep.subr.mxu0 0.0
      %v6406 = vand.u32 %v4929, 4294901760
      %6407 = vmatpush1.msra.mxu0 %v6406
      %6408 = vmatprep.subr.mxu0 0.0
      %v6409 = vand.u32 %v4930, 4294901760
      %6410 = vmatpush1.msra.mxu0 %v6409
      %6411 = vmatprep.subr.mxu0 0.0
      %v6412 = vand.u32 %v4931, 4294901760
      %6413 = vmatpush1.msra.mxu0 %v6412
      %6414 = vmatprep.subr.mxu0 0.0
      %v6415 = vand.u32 %v4932, 4294901760
      %6416 = vmatpush1.msra.mxu0 %v6415
      %6417 = vmatprep.subr.mxu0 0.0
      %v6418 = vand.u32 %v4933, 4294901760
      %6419 = vmatpush1.msra.mxu0 %v6418
      %6420 = vmatprep.subr.mxu0 0.0
      %v6421 = vand.u32 %v4934, 4294901760
      %6422 = vmatpush1.msra.mxu0 %v6421
      %6423 = vmatprep.subr.mxu0 0.0
      %v6424 = vand.u32 %v4935, 4294901760
      %6425 = vmatpush1.msra.mxu0 %v6424
      %6426 = vmatprep.subr.mxu0 0.0
      %v6427 = vand.u32 %v4936, 4294901760
      %6428 = vmatpush1.msra.mxu0 %v6427
      %6429 = vmatprep.subr.mxu0 0.0
      %v6430 = vand.u32 %v4937, 4294901760
      %6431 = vmatpush1.msra.mxu0 %v6430
      %6432 = vmatprep.subr.mxu0 0.0
      %v6433 = vand.u32 %v4938, 4294901760
      %6434 = vmatpush1.msra.mxu0 %v6433
      %6435 = vmatprep.subr.mxu0 0.0
      %v6436 = vand.u32 %v4939, 4294901760
      %6437 = vmatpush1.msra.mxu0 %v6436
      %6438 = vmatprep.subr.mxu0 0.0
      %v6439 = vand.u32 %v4940, 4294901760
      %6440 = vmatpush1.msra.mxu0 %v6439
      %6441 = vmatprep.subr.mxu0 0.0
      %v6442 = vand.u32 %v4941, 4294901760
      %6443 = vmatpush1.msra.mxu0 %v6442
      %6444 = vmatprep.subr.mxu0 0.0
      %v6445 = vand.u32 %v4942, 4294901760
      %6446 = vmatpush1.msra.mxu0 %v6445
      %6447 = vmatprep.subr.mxu0 0.0
      %v6448 = vand.u32 %v4943, 4294901760
      %6449 = vmatpush1.msra.mxu0 %v6448
      %6450 = vmatprep.subr.mxu0 0.0
      %v6451 = vand.u32 %v4944, 4294901760
      %6452 = vmatpush1.msra.mxu0 %v6451
      %6453 = vmatprep.subr.mxu0 0.0
      %v6454 = vand.u32 %v4945, 4294901760
      %6455 = vmatpush1.msra.mxu0 %v6454
      %6456 = vmatprep.subr.mxu0 0.0
      %v6457 = vand.u32 %v4946, 4294901760
      %6458 = vmatpush1.msra.mxu0 %v6457
      %6459 = vmatprep.subr.mxu0 0.0
      %v6460 = vand.u32 %v4947, 4294901760
      %6461 = vmatpush1.msra.mxu0 %v6460
      %6462 = vmatprep.subr.mxu0 0.0
      %v6463 = vand.u32 %v4948, 4294901760
      %6464 = vmatpush1.msra.mxu0 %v6463
      %6465 = vmatprep.subr.mxu0 0.0
      %v6466 = vand.u32 %v4949, 4294901760
      %6467 = vmatpush1.msra.mxu0 %v6466
      %6468 = vmatprep.subr.mxu0 0.0
      %v6469 = vand.u32 %v4950, 4294901760
      %6470 = vmatpush1.msra.mxu0 %v6469
      %6471 = vmatprep.subr.mxu0 0.0
      %v6472 = vand.u32 %v4951, 4294901760
      %6473 = vmatpush1.msra.mxu0 %v6472
      %6474 = vmatprep.subr.mxu0 0.0
      %v6475 = vand.u32 %v4952, 4294901760
      %6476 = vmatpush1.msra.mxu0 %v6475
      %6477 = vmatprep.subr.mxu0 0.0
      %6478 = vmatpush1.msra.mxu0 0.0
      %6479 = vmatprep.subr.mxu0 0.0
      %6480 = vmatpush1.msra.mxu0 0.0
      %6481 = vmatprep.subr.mxu0 0.0
      %6482 = vmatpush1.msra.mxu0 0.0
      %6483 = vmatprep.subr.mxu0 0.0
      %6484 = vmatpush1.msra.mxu0 0.0
      %6485 = vmatprep.subr.mxu0 0.0
      %6486 = vmatpush1.msra.mxu0 0.0
      %6487 = vmatprep.subr.mxu0 0.0
      %6488 = vmatpush1.msra.mxu0 0.0
      %6489 = vmatprep.subr.mxu0 0.0
      %6490 = vmatpush1.msra.mxu0 0.0
      %6491 = vmatprep.subr.mxu0 0.0
      %6492 = vmatpush1.msra.mxu0 0.0
      %v6493 = vand.u32 %v4961, 4294901760
      %6494 = vmatprep.mubr.f32.mxu0 %v6493
      %v6495 = vand.u32 %v4913, 4294901760
      %6496 = vmatmul.mubr.f32.gmra.mrb[0].mxu0 %v6495
      %v6497 = vpop.f32.mrb[0].mxu0
      %v6498 = vadd.f32 %v6297, %v6497
      %v6499 = vpop.f32.mrb[0].mxu0
      %v6500 = vand.u32 %v4964, 4294901760
      %6501 = vmatprep.mubr.f32.mxu0 %v6500
      %v6502 = vand.u32 %v4914, 4294901760
      %6503 = vmatmul.mubr.f32.gmra.mrb[0].mxu0 %v6502
      %v6504 = vpop.f32.mrb[0].mxu0
      %v6505 = vadd.f32 %v6304, %v6504
      %v6506 = vpop.f32.mrb[0].mxu0
      %v6507 = vand.u32 %v4967, 4294901760
      %6508 = vmatprep.mubr.f32.mxu0 %v6507
      %v6509 = vand.u32 %v4915, 4294901760
      %6510 = vmatmul.mubr.f32.gmra.mrb[0].mxu0 %v6509
      %v6511 = vpop.f32.mrb[0].mxu0
      %v6512 = vadd.f32 %v6311, %v6511
      %v6513 = vpop.f32.mrb[0].mxu0
      %v6514 = vand.u32 %v4970, 4294901760
      %6515 = vmatprep.mubr.f32.mxu0 %v6514
      %v6516 = vand.u32 %v4916, 4294901760
      %6517 = vmatmul.mubr.f32.gmra.mrb[0].mxu0 %v6516
      %v6518 = vpop.f32.mrb[0].mxu0
      %v6519 = vadd.f32 %v6318, %v6518
      %v6520 = vpop.f32.mrb[0].mxu0
      %v6521 = vand.u32 %v4973, 4294901760
      %6522 = vmatprep.mubr.f32.mxu0 %v6521
      %v6523 = vand.u32 %v4917, 4294901760
      %6524 = vmatmul.mubr.f32.gmra.mrb[0].mxu0 %v6523
      %v6525 = vpop.f32.mrb[0].mxu0
      %v6526 = vadd.f32 %v6325, %v6525
      %v6527 = vpop.f32.mrb[0].mxu0
      %v6528 = vand.u32 %v4976, 4294901760
      %6529 = vmatprep.mubr.f32.mxu0 %v6528
      %v6530 = vand.u32 %v4918, 4294901760
      %6531 = vmatmul.mubr.f32.gmra.mrb[0].mxu0 %v6530
      %v6532 = vpop.f32.mrb[0].mxu0
      %v6533 = vadd.f32 %v6332, %v6532
      %v6534 = vpop.f32.mrb[0].mxu0
      %v6535 = vand.u32 %v4979, 4294901760
      %6536 = vmatprep.mubr.f32.mxu0 %v6535
      %v6537 = vand.u32 %v4919, 4294901760
      %6538 = vmatmul.mubr.f32.gmra.mrb[0].mxu0 %v6537
      %v6539 = vpop.f32.mrb[0].mxu0
      %v6540 = vadd.f32 %v6339, %v6539
      %v6541 = vpop.f32.mrb[0].mxu0
      %v6542 = vand.u32 %v4982, 4294901760
      %6543 = vmatprep.mubr.f32.mxu0 %v6542
      %v6544 = vand.u32 %v4920, 4294901760
      %6545 = vmatmul.mubr.f32.gmra.mrb[0].mxu0 %v6544
      %v6546 = vpop.f32.mrb[0].mxu0
      %v6547 = vadd.f32 %v6346, %v6546
      %v6548 = vpop.f32.mrb[0].mxu0
      %v6549 = vand.u32 %v4985, 4294901760
      %6550 = vmatprep.mubr.f32.mxu0 %v6549
      %v6551 = vand.u32 %v4921, 4294901760
      %6552 = vmatmul.mubr.f32.gmra.mrb[0].mxu0 %v6551
      %v6553 = vpop.f32.mrb[0].mxu0
      %v6554 = vadd.f32 %v6353, %v6553
      %v6555 = vpop.f32.mrb[0].mxu0
      %v6556 = vand.u32 %v4988, 4294901760
      %6557 = vmatprep.mubr.f32.mxu0 %v6556
      %v6558 = vand.u32 %v4922, 4294901760
      %6559 = vmatmul.mubr.f32.gmra.mrb[0].mxu0 %v6558
      %v6560 = vpop.f32.mrb[0].mxu0
      %v6561 = vadd.f32 %v6360, %v6560
      %v6562 = vpop.f32.mrb[0].mxu0
      %v6563 = vand.u32 %v4991, 4294901760
      %6564 = vmatprep.mubr.f32.mxu0 %v6563
      %v6565 = vand.u32 %v4923, 4294901760
      %6566 = vmatmul.mubr.f32.gmra.mrb[0].mxu0 %v6565
      %v6567 = vpop.f32.mrb[0].mxu0
      %v6568 = vadd.f32 %v6367, %v6567
      %v6569 = vpop.f32.mrb[0].mxu0
      %v6570 = vand.u32 %v4994, 4294901760
      %6571 = vmatprep.mubr.f32.mxu0 %v6570
      %v6572 = vand.u32 %v4924, 4294901760
      %6573 = vmatmul.mubr.f32.gmra.mrb[0].mxu0 %v6572
      %v6574 = vpop.f32.mrb[0].mxu0
      %v6575 = vadd.f32 %v6374, %v6574
      %v6576 = vpop.f32.mrb[0].mxu0
      %v6577 = vand.u32 %v4997, 4294901760
      %6578 = vmatprep.mubr.f32.mxu0 %v6577
      %v6579 = vand.u32 %v4925, 4294901760
      %6580 = vmatmul.mubr.f32.gmra.mrb[0].mxu0 %v6579
      %v6581 = vpop.f32.mrb[0].mxu0
      %v6582 = vadd.f32 %v6381, %v6581
      %v6583 = vpop.f32.mrb[0].mxu0
      %v6584 = vand.u32 %v5000, 4294901760
      %6585 = vmatprep.mubr.f32.mxu0 %v6584
      %v6586 = vand.u32 %v4926, 4294901760
      %6587 = vmatmul.mubr.f32.gmra.mrb[0].mxu0 %v6586
      %v6588 = vpop.f32.mrb[0].mxu0
      %v6589 = vadd.f32 %v6388, %v6588
      %v6590 = vpop.f32.mrb[0].mxu0
      %v6591 = vand.u32 %v5003, 4294901760
      %6592 = vmatprep.mubr.f32.mxu0 %v6591
      %v6593 = vand.u32 %v4927, 4294901760
      %6594 = vmatmul.mubr.f32.gmra.mrb[0].mxu0 %v6593
      %v6595 = vpop.f32.mrb[0].mxu0
      %v6596 = vadd.f32 %v6395, %v6595
      %v6597 = vpop.f32.mrb[0].mxu0
      %v6598 = vand.u32 %v5006, 4294901760
      %6599 = vmatprep.mubr.f32.mxu0 %v6598
      %v6600 = vand.u32 %v4928, 4294901760
      %6601 = vmatmul.mubr.f32.gmra.mrb[0].mxu0 %v6600
      %v6602 = vpop.f32.mrb[0].mxu0
      %v6603 = vadd.f32 %v6402, %v6602
      %v6604 = vpop.f32.mrb[0].mxu0
      %6605 = vdwg.mxu0
      %v6606 = vmax.f32 %v6498, 0.0
      %v6607 = vmax.f32 %v6505, 0.0
      %v6608 = vmax.f32 %v6512, 0.0
      %v6609 = vmax.f32 %v6519, 0.0
      %v6610 = vmax.f32 %v6526, 0.0
      %v6611 = vmax.f32 %v6533, 0.0
      %v6612 = vmax.f32 %v6540, 0.0
      %v6613 = vmax.f32 %v6547, 0.0
      %v6614 = vmax.f32 %v6554, 0.0
      %v6615 = vmax.f32 %v6561, 0.0
      %v6616 = vmax.f32 %v6568, 0.0
      %v6617 = vmax.f32 %v6575, 0.0
      %v6618 = vmax.f32 %v6582, 0.0
      %v6619 = vmax.f32 %v6589, 0.0
      %v6620 = vmax.f32 %v6596, 0.0
      %v6621 = vmax.f32 %v6603, 0.0
      %6622 = vmatprep.subr.mxu0 0.0
      %v6623 = vand.u32 %v6606, 4294901760
      %6624 = vmatpush1.msra.mxu0 %v6623
      %6625 = vmatprep.subr.mxu0 0.0
      %v6626 = vand.u32 %v6607, 4294901760
      %6627 = vmatpush1.msra.mxu0 %v6626
      %6628 = vmatprep.subr.mxu0 0.0
      %v6629 = vand.u32 %v6608, 4294901760
      %6630 = vmatpush1.msra.mxu0 %v6629
      %6631 = vmatprep.subr.mxu0 0.0
      %v6632 = vand.u32 %v6609, 4294901760
      %6633 = vmatpush1.msra.mxu0 %v6632
      %6634 = vmatprep.subr.mxu0 0.0
      %v6635 = vand.u32 %v6610, 4294901760
      %6636 = vmatpush1.msra.mxu0 %v6635
      %6637 = vmatprep.subr.mxu0 0.0
      %v6638 = vand.u32 %v6611, 4294901760
      %6639 = vmatpush1.msra.mxu0 %v6638
      %6640 = vmatprep.subr.mxu0 0.0
      %v6641 = vand.u32 %v6612, 4294901760
      %6642 = vmatpush1.msra.mxu0 %v6641
      %6643 = vmatprep.subr.mxu0 0.0
      %v6644 = vand.u32 %v6613, 4294901760
      %6645 = vmatpush1.msra.mxu0 %v6644
      %6646 = vmatprep.subr.mxu0 0.0
      %v6647 = vand.u32 %v6614, 4294901760
      %6648 = vmatpush1.msra.mxu0 %v6647
      %6649 = vmatprep.subr.mxu0 0.0
      %v6650 = vand.u32 %v6615, 4294901760
      %6651 = vmatpush1.msra.mxu0 %v6650
      %6652 = vmatprep.subr.mxu0 0.0
      %v6653 = vand.u32 %v6616, 4294901760
      %6654 = vmatpush1.msra.mxu0 %v6653
      %6655 = vmatprep.subr.mxu0 0.0
      %v6656 = vand.u32 %v6617, 4294901760
      %6657 = vmatpush1.msra.mxu0 %v6656
      %6658 = vmatprep.subr.mxu0 0.0
      %v6659 = vand.u32 %v6618, 4294901760
      %6660 = vmatpush1.msra.mxu0 %v6659
      %6661 = vmatprep.subr.mxu0 0.0
      %v6662 = vand.u32 %v6619, 4294901760
      %6663 = vmatpush1.msra.mxu0 %v6662
      %6664 = vmatprep.subr.mxu0 0.0
      %v6665 = vand.u32 %v6620, 4294901760
      %6666 = vmatpush1.msra.mxu0 %v6665
      %6667 = vmatprep.subr.mxu0 0.0
      %v6668 = vand.u32 %v6621, 4294901760
      %6669 = vmatpush1.msra.mxu0 %v6668
      %6670 = vmatprep.subr.mxu0 0.0
      %6671 = vmatpush1.msra.mxu0 0.0
      %6672 = vmatprep.subr.mxu0 0.0
      %6673 = vmatpush1.msra.mxu0 0.0
      %6674 = vmatprep.subr.mxu0 0.0
      %6675 = vmatpush1.msra.mxu0 0.0
      %6676 = vmatprep.subr.mxu0 0.0
      %6677 = vmatpush1.msra.mxu0 0.0
      %6678 = vmatprep.subr.mxu0 0.0
      %6679 = vmatpush1.msra.mxu0 0.0
      %6680 = vmatprep.subr.mxu0 0.0
      %6681 = vmatpush1.msra.mxu0 0.0
      %6682 = vmatprep.subr.mxu0 0.0
      %6683 = vmatpush1.msra.mxu0 0.0
      %6684 = vmatprep.subr.mxu0 0.0
      %6685 = vmatpush1.msra.mxu0 0.0
      %6686 = vmatprep.subr.mxu0 0.0
      %6687 = vmatpush1.msra.mxu0 0.0
      %6688 = vmatprep.subr.mxu0 0.0
      %6689 = vmatpush1.msra.mxu0 0.0
      %6690 = vmatprep.subr.mxu0 0.0
      %6691 = vmatpush1.msra.mxu0 0.0
      %6692 = vmatprep.subr.mxu0 0.0
      %6693 = vmatpush1.msra.mxu0 0.0
      %6694 = vmatprep.subr.mxu0 0.0
      %6695 = vmatpush1.msra.mxu0 0.0
      %6696 = vmatprep.subr.mxu0 0.0
      %6697 = vmatpush1.msra.mxu0 0.0
      %6698 = vmatprep.subr.mxu0 0.0
      %6699 = vmatpush1.msra.mxu0 0.0
      %6700 = vmatprep.subr.mxu0 0.0
      %6701 = vmatpush1.msra.mxu0 0.0
      %6702 = vmatprep.mubr.f32.mxu0 0.0
      %v6703 = vand.u32 %v463, 4294901760
      %v6704 = vsub.f32 %v463, %v6703
      %v6705 = vand.u32 %v6704, 4294901760
      %v6706 = vsub.f32 %v6704, %v6705
      %v6707 = vand.u32 %v6706, 4294901760
      %6708 = vmatmul.mubr.f32.gmra.mrb[0].mxu0 %v6707
      %v6709 = vpop.f32.mrb[0].mxu0
      %v6710 = vadd.f32 0.0, %v6709
      %v6711 = vpop.f32.mrb[0].mxu0
      %6712 = vmatprep.mubr.f32.mxu0 0.0
      %v6713 = vand.u32 %v464, 4294901760
      %v6714 = vsub.f32 %v464, %v6713
      %v6715 = vand.u32 %v6714, 4294901760
      %v6716 = vsub.f32 %v6714, %v6715
      %v6717 = vand.u32 %v6716, 4294901760
      %6718 = vmatmul.mubr.f32.gmra.mrb[0].mxu0 %v6717
      %v6719 = vpop.f32.mrb[0].mxu0
      %v6720 = vadd.f32 0.0, %v6719
      %v6721 = vpop.f32.mrb[0].mxu0
      %6722 = vmatprep.mubr.f32.mxu0 0.0
      %v6723 = vand.u32 %v465, 4294901760
      %v6724 = vsub.f32 %v465, %v6723
      %v6725 = vand.u32 %v6724, 4294901760
      %v6726 = vsub.f32 %v6724, %v6725
      %v6727 = vand.u32 %v6726, 4294901760
      %6728 = vmatmul.mubr.f32.gmra.mrb[0].mxu0 %v6727
      %v6729 = vpop.f32.mrb[0].mxu0
      %v6730 = vadd.f32 0.0, %v6729
      %v6731 = vpop.f32.mrb[0].mxu0
      %6732 = vmatprep.mubr.f32.mxu0 0.0
      %v6733 = vand.u32 %v466, 4294901760
      %v6734 = vsub.f32 %v466, %v6733
      %v6735 = vand.u32 %v6734, 4294901760
      %v6736 = vsub.f32 %v6734, %v6735
      %v6737 = vand.u32 %v6736, 4294901760
      %6738 = vmatmul.mubr.f32.gmra.mrb[0].mxu0 %v6737
      %v6739 = vpop.f32.mrb[0].mxu0
      %v6740 = vadd.f32 0.0, %v6739
      %v6741 = vpop.f32.mrb[0].mxu0
      %6742 = vmatprep.mubr.f32.mxu0 0.0
      %v6743 = vand.u32 %v467, 4294901760
      %v6744 = vsub.f32 %v467, %v6743
      %v6745 = vand.u32 %v6744, 4294901760
      %v6746 = vsub.f32 %v6744, %v6745
      %v6747 = vand.u32 %v6746, 4294901760
      %6748 = vmatmul.mubr.f32.gmra.mrb[0].mxu0 %v6747
      %v6749 = vpop.f32.mrb[0].mxu0
      %v6750 = vadd.f32 0.0, %v6749
      %v6751 = vpop.f32.mrb[0].mxu0
      %6752 = vmatprep.mubr.f32.mxu0 0.0
      %v6753 = vand.u32 %v468, 4294901760
      %v6754 = vsub.f32 %v468, %v6753
      %v6755 = vand.u32 %v6754, 4294901760
      %v6756 = vsub.f32 %v6754, %v6755
      %v6757 = vand.u32 %v6756, 4294901760
      %6758 = vmatmul.mubr.f32.gmra.mrb[0].mxu0 %v6757
      %v6759 = vpop.f32.mrb[0].mxu0
      %v6760 = vadd.f32 0.0, %v6759
      %v6761 = vpop.f32.mrb[0].mxu0
      %6762 = vmatprep.mubr.f32.mxu0 0.0
      %v6763 = vand.u32 %v469, 4294901760
      %v6764 = vsub.f32 %v469, %v6763
      %v6765 = vand.u32 %v6764, 4294901760
      %v6766 = vsub.f32 %v6764, %v6765
      %v6767 = vand.u32 %v6766, 4294901760
      %6768 = vmatmul.mubr.f32.gmra.mrb[0].mxu0 %v6767
      %v6769 = vpop.f32.mrb[0].mxu0
      %v6770 = vadd.f32 0.0, %v6769
      %v6771 = vpop.f32.mrb[0].mxu0
      %6772 = vmatprep.mubr.f32.mxu0 0.0
      %v6773 = vand.u32 %v470, 4294901760
      %v6774 = vsub.f32 %v470, %v6773
      %v6775 = vand.u32 %v6774, 4294901760
      %v6776 = vsub.f32 %v6774, %v6775
      %v6777 = vand.u32 %v6776, 4294901760
      %6778 = vmatmul.mubr.f32.gmra.mrb[0].mxu0 %v6777
      %v6779 = vpop.f32.mrb[0].mxu0
      %v6780 = vadd.f32 0.0, %v6779
      %v6781 = vpop.f32.mrb[0].mxu0
      %6782 = vmatprep.mubr.f32.mxu0 0.0
      %v6783 = vand.u32 %v471, 4294901760
      %v6784 = vsub.f32 %v471, %v6783
      %v6785 = vand.u32 %v6784, 4294901760
      %v6786 = vsub.f32 %v6784, %v6785
      %v6787 = vand.u32 %v6786, 4294901760
      %6788 = vmatmul.mubr.f32.gmra.mrb[0].mxu0 %v6787
      %v6789 = vpop.f32.mrb[0].mxu0
      %v6790 = vadd.f32 0.0, %v6789
      %v6791 = vpop.f32.mrb[0].mxu0
      %6792 = vmatprep.mubr.f32.mxu0 0.0
      %v6793 = vand.u32 %v472, 4294901760
      %v6794 = vsub.f32 %v472, %v6793
      %v6795 = vand.u32 %v6794, 4294901760
      %v6796 = vsub.f32 %v6794, %v6795
      %v6797 = vand.u32 %v6796, 4294901760
      %6798 = vmatmul.mubr.f32.gmra.mrb[0].mxu0 %v6797
      %v6799 = vpop.f32.mrb[0].mxu0
      %v6800 = vadd.f32 0.0, %v6799
      %v6801 = vpop.f32.mrb[0].mxu0
      %6802 = vmatprep.mubr.f32.mxu0 0.0
      %v6803 = vand.u32 %v473, 4294901760
      %v6804 = vsub.f32 %v473, %v6803
      %v6805 = vand.u32 %v6804, 4294901760
      %v6806 = vsub.f32 %v6804, %v6805
      %v6807 = vand.u32 %v6806, 4294901760
      %6808 = vmatmul.mubr.f32.gmra.mrb[0].mxu0 %v6807
      %v6809 = vpop.f32.mrb[0].mxu0
      %v6810 = vadd.f32 0.0, %v6809
      %v6811 = vpop.f32.mrb[0].mxu0
      %6812 = vmatprep.mubr.f32.mxu0 0.0
      %v6813 = vand.u32 %v474, 4294901760
      %v6814 = vsub.f32 %v474, %v6813
      %v6815 = vand.u32 %v6814, 4294901760
      %v6816 = vsub.f32 %v6814, %v6815
      %v6817 = vand.u32 %v6816, 4294901760
      %6818 = vmatmul.mubr.f32.gmra.mrb[0].mxu0 %v6817
      %v6819 = vpop.f32.mrb[0].mxu0
      %v6820 = vadd.f32 0.0, %v6819
      %v6821 = vpop.f32.mrb[0].mxu0
      %6822 = vmatprep.mubr.f32.mxu0 0.0
      %v6823 = vand.u32 %v475, 4294901760
      %v6824 = vsub.f32 %v475, %v6823
      %v6825 = vand.u32 %v6824, 4294901760
      %v6826 = vsub.f32 %v6824, %v6825
      %v6827 = vand.u32 %v6826, 4294901760
      %6828 = vmatmul.mubr.f32.gmra.mrb[0].mxu0 %v6827
      %v6829 = vpop.f32.mrb[0].mxu0
      %v6830 = vadd.f32 0.0, %v6829
      %v6831 = vpop.f32.mrb[0].mxu0
      %6832 = vmatprep.mubr.f32.mxu0 0.0
      %v6833 = vand.u32 %v476, 4294901760
      %v6834 = vsub.f32 %v476, %v6833
      %v6835 = vand.u32 %v6834, 4294901760
      %v6836 = vsub.f32 %v6834, %v6835
      %v6837 = vand.u32 %v6836, 4294901760
      %6838 = vmatmul.mubr.f32.gmra.mrb[0].mxu0 %v6837
      %v6839 = vpop.f32.mrb[0].mxu0
      %v6840 = vadd.f32 0.0, %v6839
      %v6841 = vpop.f32.mrb[0].mxu0
      %6842 = vmatprep.mubr.f32.mxu0 0.0
      %v6843 = vand.u32 %v477, 4294901760
      %v6844 = vsub.f32 %v477, %v6843
      %v6845 = vand.u32 %v6844, 4294901760
      %v6846 = vsub.f32 %v6844, %v6845
      %v6847 = vand.u32 %v6846, 4294901760
      %6848 = vmatmul.mubr.f32.gmra.mrb[0].mxu0 %v6847
      %v6849 = vpop.f32.mrb[0].mxu0
      %v6850 = vadd.f32 0.0, %v6849
      %v6851 = vpop.f32.mrb[0].mxu0
      %6852 = vmatprep.mubr.f32.mxu0 0.0
      %v6853 = vand.u32 %v478, 4294901760
      %v6854 = vsub.f32 %v478, %v6853
      %v6855 = vand.u32 %v6854, 4294901760
      %v6856 = vsub.f32 %v6854, %v6855
      %v6857 = vand.u32 %v6856, 4294901760
      %6858 = vmatmul.mubr.f32.gmra.mrb[0].mxu0 %v6857
      %v6859 = vpop.f32.mrb[0].mxu0
      %v6860 = vadd.f32 0.0, %v6859
      %v6861 = vpop.f32.mrb[0].mxu0
      %6862 = vdwg.mxu0
      %6863 = vmatprep.subr.mxu0 0.0
      %v6864 = vand.u32 %v6606, 4294901760
      %v6865 = vsub.f32 %v6606, %v6864
      %v6866 = vand.u32 %v6865, 4294901760
      %v6867 = vsub.f32 %v6865, %v6866
      %v6868 = vand.u32 %v6867, 4294901760
      %6869 = vmatpush1.msra.mxu0 %v6868
      %6870 = vmatprep.subr.mxu0 0.0
      %v6871 = vand.u32 %v6607, 4294901760
      %v6872 = vsub.f32 %v6607, %v6871
      %v6873 = vand.u32 %v6872, 4294901760
      %v6874 = vsub.f32 %v6872, %v6873
      %v6875 = vand.u32 %v6874, 4294901760
      %6876 = vmatpush1.msra.mxu0 %v6875
      %6877 = vmatprep.subr.mxu0 0.0
      %v6878 = vand.u32 %v6608, 4294901760
      %v6879 = vsub.f32 %v6608, %v6878
      %v6880 = vand.u32 %v6879, 4294901760
      %v6881 = vsub.f32 %v6879, %v6880
      %v6882 = vand.u32 %v6881, 4294901760
      %6883 = vmatpush1.msra.mxu0 %v6882
      %6884 = vmatprep.subr.mxu0 0.0
      %v6885 = vand.u32 %v6609, 4294901760
      %v6886 = vsub.f32 %v6609, %v6885
      %v6887 = vand.u32 %v6886, 4294901760
      %v6888 = vsub.f32 %v6886, %v6887
      %v6889 = vand.u32 %v6888, 4294901760
      %6890 = vmatpush1.msra.mxu0 %v6889
      %6891 = vmatprep.subr.mxu0 0.0
      %v6892 = vand.u32 %v6610, 4294901760
      %v6893 = vsub.f32 %v6610, %v6892
      %v6894 = vand.u32 %v6893, 4294901760
      %v6895 = vsub.f32 %v6893, %v6894
      %v6896 = vand.u32 %v6895, 4294901760
      %6897 = vmatpush1.msra.mxu0 %v6896
      %6898 = vmatprep.subr.mxu0 0.0
      %v6899 = vand.u32 %v6611, 4294901760
      %v6900 = vsub.f32 %v6611, %v6899
      %v6901 = vand.u32 %v6900, 4294901760
      %v6902 = vsub.f32 %v6900, %v6901
      %v6903 = vand.u32 %v6902, 4294901760
      %6904 = vmatpush1.msra.mxu0 %v6903
      %6905 = vmatprep.subr.mxu0 0.0
      %v6906 = vand.u32 %v6612, 4294901760
      %v6907 = vsub.f32 %v6612, %v6906
      %v6908 = vand.u32 %v6907, 4294901760
      %v6909 = vsub.f32 %v6907, %v6908
      %v6910 = vand.u32 %v6909, 4294901760
      %6911 = vmatpush1.msra.mxu0 %v6910
      %6912 = vmatprep.subr.mxu0 0.0
      %v6913 = vand.u32 %v6613, 4294901760
      %v6914 = vsub.f32 %v6613, %v6913
      %v6915 = vand.u32 %v6914, 4294901760
      %v6916 = vsub.f32 %v6914, %v6915
      %v6917 = vand.u32 %v6916, 4294901760
      %6918 = vmatpush1.msra.mxu0 %v6917
      %6919 = vmatprep.subr.mxu0 0.0
      %v6920 = vand.u32 %v6614, 4294901760
      %v6921 = vsub.f32 %v6614, %v6920
      %v6922 = vand.u32 %v6921, 4294901760
      %v6923 = vsub.f32 %v6921, %v6922
      %v6924 = vand.u32 %v6923, 4294901760
      %6925 = vmatpush1.msra.mxu0 %v6924
      %6926 = vmatprep.subr.mxu0 0.0
      %v6927 = vand.u32 %v6615, 4294901760
      %v6928 = vsub.f32 %v6615, %v6927
      %v6929 = vand.u32 %v6928, 4294901760
      %v6930 = vsub.f32 %v6928, %v6929
      %v6931 = vand.u32 %v6930, 4294901760
      %6932 = vmatpush1.msra.mxu0 %v6931
      %6933 = vmatprep.subr.mxu0 0.0
      %v6934 = vand.u32 %v6616, 4294901760
      %v6935 = vsub.f32 %v6616, %v6934
      %v6936 = vand.u32 %v6935, 4294901760
      %v6937 = vsub.f32 %v6935, %v6936
      %v6938 = vand.u32 %v6937, 4294901760
      %6939 = vmatpush1.msra.mxu0 %v6938
      %6940 = vmatprep.subr.mxu0 0.0
      %v6941 = vand.u32 %v6617, 4294901760
      %v6942 = vsub.f32 %v6617, %v6941
      %v6943 = vand.u32 %v6942, 4294901760
      %v6944 = vsub.f32 %v6942, %v6943
      %v6945 = vand.u32 %v6944, 4294901760
      %6946 = vmatpush1.msra.mxu0 %v6945
      %6947 = vmatprep.subr.mxu0 0.0
      %v6948 = vand.u32 %v6618, 4294901760
      %v6949 = vsub.f32 %v6618, %v6948
      %v6950 = vand.u32 %v6949, 4294901760
      %v6951 = vsub.f32 %v6949, %v6950
      %v6952 = vand.u32 %v6951, 4294901760
      %6953 = vmatpush1.msra.mxu0 %v6952
      %6954 = vmatprep.subr.mxu0 0.0
      %v6955 = vand.u32 %v6619, 4294901760
      %v6956 = vsub.f32 %v6619, %v6955
      %v6957 = vand.u32 %v6956, 4294901760
      %v6958 = vsub.f32 %v6956, %v6957
      %v6959 = vand.u32 %v6958, 4294901760
      %6960 = vmatpush1.msra.mxu0 %v6959
      %6961 = vmatprep.subr.mxu0 0.0
      %v6962 = vand.u32 %v6620, 4294901760
      %v6963 = vsub.f32 %v6620, %v6962
      %v6964 = vand.u32 %v6963, 4294901760
      %v6965 = vsub.f32 %v6963, %v6964
      %v6966 = vand.u32 %v6965, 4294901760
      %6967 = vmatpush1.msra.mxu0 %v6966
      %6968 = vmatprep.subr.mxu0 0.0
      %v6969 = vand.u32 %v6621, 4294901760
      %v6970 = vsub.f32 %v6621, %v6969
      %v6971 = vand.u32 %v6970, 4294901760
      %v6972 = vsub.f32 %v6970, %v6971
      %v6973 = vand.u32 %v6972, 4294901760
      %6974 = vmatpush1.msra.mxu0 %v6973
      %6975 = vmatprep.subr.mxu0 0.0
      %6976 = vmatpush1.msra.mxu0 0.0
      %6977 = vmatprep.subr.mxu0 0.0
      %6978 = vmatpush1.msra.mxu0 0.0
      %6979 = vmatprep.subr.mxu0 0.0
      %6980 = vmatpush1.msra.mxu0 0.0
      %6981 = vmatprep.subr.mxu0 0.0
      %6982 = vmatpush1.msra.mxu0 0.0
      %6983 = vmatprep.subr.mxu0 0.0
      %6984 = vmatpush1.msra.mxu0 0.0
      %6985 = vmatprep.subr.mxu0 0.0
      %6986 = vmatpush1.msra.mxu0 0.0
      %6987 = vmatprep.subr.mxu0 0.0
      %6988 = vmatpush1.msra.mxu0 0.0
      %6989 = vmatprep.subr.mxu0 0.0
      %6990 = vmatpush1.msra.mxu0 0.0
      %6991 = vmatprep.subr.mxu0 0.0
      %6992 = vmatpush1.msra.mxu0 0.0
      %6993 = vmatprep.subr.mxu0 0.0
      %6994 = vmatpush1.msra.mxu0 0.0
      %6995 = vmatprep.subr.mxu0 0.0
      %6996 = vmatpush1.msra.mxu0 0.0
      %6997 = vmatprep.subr.mxu0 0.0
      %6998 = vmatpush1.msra.mxu0 0.0
      %6999 = vmatprep.subr.mxu0 0.0
      %7000 = vmatpush1.msra.mxu0 0.0
      %7001 = vmatprep.subr.mxu0 0.0
      %7002 = vmatpush1.msra.mxu0 0.0
      %7003 = vmatprep.subr.mxu0 0.0
      %7004 = vmatpush1.msra.mxu0 0.0
      %7005 = vmatprep.subr.mxu0 0.0
      %7006 = vmatpush1.msra.mxu0 0.0
      %7007 = vmatprep.mubr.f32.mxu0 0.0
      %v7008 = vand.u32 %v463, 4294901760
      %7009 = vmatmul.mubr.f32.gmra.mrb[0].mxu0 %v7008
      %v7010 = vpop.f32.mrb[0].mxu0
      %v7011 = vadd.f32 %v6710, %v7010
      %v7012 = vpop.f32.mrb[0].mxu0
      %7013 = vmatprep.mubr.f32.mxu0 0.0
      %v7014 = vand.u32 %v464, 4294901760
      %7015 = vmatmul.mubr.f32.gmra.mrb[0].mxu0 %v7014
      %v7016 = vpop.f32.mrb[0].mxu0
      %v7017 = vadd.f32 %v6720, %v7016
      %v7018 = vpop.f32.mrb[0].mxu0
      %7019 = vmatprep.mubr.f32.mxu0 0.0
      %v7020 = vand.u32 %v465, 4294901760
      %7021 = vmatmul.mubr.f32.gmra.mrb[0].mxu0 %v7020
      %v7022 = vpop.f32.mrb[0].mxu0
      %v7023 = vadd.f32 %v6730, %v7022
      %v7024 = vpop.f32.mrb[0].mxu0
      %7025 = vmatprep.mubr.f32.mxu0 0.0
      %v7026 = vand.u32 %v466, 4294901760
      %7027 = vmatmul.mubr.f32.gmra.mrb[0].mxu0 %v7026
      %v7028 = vpop.f32.mrb[0].mxu0
      %v7029 = vadd.f32 %v6740, %v7028
      %v7030 = vpop.f32.mrb[0].mxu0
      %7031 = vmatprep.mubr.f32.mxu0 0.0
      %v7032 = vand.u32 %v467, 4294901760
      %7033 = vmatmul.mubr.f32.gmra.mrb[0].mxu0 %v7032
      %v7034 = vpop.f32.mrb[0].mxu0
      %v7035 = vadd.f32 %v6750, %v7034
      %v7036 = vpop.f32.mrb[0].mxu0
      %7037 = vmatprep.mubr.f32.mxu0 0.0
      %v7038 = vand.u32 %v468, 4294901760
      %7039 = vmatmul.mubr.f32.gmra.mrb[0].mxu0 %v7038
      %v7040 = vpop.f32.mrb[0].mxu0
      %v7041 = vadd.f32 %v6760, %v7040
      %v7042 = vpop.f32.mrb[0].mxu0
      %7043 = vmatprep.mubr.f32.mxu0 0.0
      %v7044 = vand.u32 %v469, 4294901760
      %7045 = vmatmul.mubr.f32.gmra.mrb[0].mxu0 %v7044
      %v7046 = vpop.f32.mrb[0].mxu0
      %v7047 = vadd.f32 %v6770, %v7046
      %v7048 = vpop.f32.mrb[0].mxu0
      %7049 = vmatprep.mubr.f32.mxu0 0.0
      %v7050 = vand.u32 %v470, 4294901760
      %7051 = vmatmul.mubr.f32.gmra.mrb[0].mxu0 %v7050
      %v7052 = vpop.f32.mrb[0].mxu0
      %v7053 = vadd.f32 %v6780, %v7052
      %v7054 = vpop.f32.mrb[0].mxu0
      %7055 = vmatprep.mubr.f32.mxu0 0.0
      %v7056 = vand.u32 %v471, 4294901760
      %7057 = vmatmul.mubr.f32.gmra.mrb[0].mxu0 %v7056
      %v7058 = vpop.f32.mrb[0].mxu0
      %v7059 = vadd.f32 %v6790, %v7058
      %v7060 = vpop.f32.mrb[0].mxu0
      %7061 = vmatprep.mubr.f32.mxu0 0.0
      %v7062 = vand.u32 %v472, 4294901760
      %7063 = vmatmul.mubr.f32.gmra.mrb[0].mxu0 %v7062
      %v7064 = vpop.f32.mrb[0].mxu0
      %v7065 = vadd.f32 %v6800, %v7064
      %v7066 = vpop.f32.mrb[0].mxu0
      %7067 = vmatprep.mubr.f32.mxu0 0.0
      %v7068 = vand.u32 %v473, 4294901760
      %7069 = vmatmul.mubr.f32.gmra.mrb[0].mxu0 %v7068
      %v7070 = vpop.f32.mrb[0].mxu0
      %v7071 = vadd.f32 %v6810, %v7070
      %v7072 = vpop.f32.mrb[0].mxu0
      %7073 = vmatprep.mubr.f32.mxu0 0.0
      %v7074 = vand.u32 %v474, 4294901760
      %7075 = vmatmul.mubr.f32.gmra.mrb[0].mxu0 %v7074
      %v7076 = vpop.f32.mrb[0].mxu0
      %v7077 = vadd.f32 %v6820, %v7076
      %v7078 = vpop.f32.mrb[0].mxu0
      %7079 = vmatprep.mubr.f32.mxu0 0.0
      %v7080 = vand.u32 %v475, 4294901760
      %7081 = vmatmul.mubr.f32.gmra.mrb[0].mxu0 %v7080
      %v7082 = vpop.f32.mrb[0].mxu0
      %v7083 = vadd.f32 %v6830, %v7082
      %v7084 = vpop.f32.mrb[0].mxu0
      %7085 = vmatprep.mubr.f32.mxu0 0.0
      %v7086 = vand.u32 %v476, 4294901760
      %7087 = vmatmul.mubr.f32.gmra.mrb[0].mxu0 %v7086
      %v7088 = vpop.f32.mrb[0].mxu0
      %v7089 = vadd.f32 %v6840, %v7088
      %v7090 = vpop.f32.mrb[0].mxu0
      %7091 = vmatprep.mubr.f32.mxu0 0.0
      %v7092 = vand.u32 %v477, 4294901760
      %7093 = vmatmul.mubr.f32.gmra.mrb[0].mxu0 %v7092
      %v7094 = vpop.f32.mrb[0].mxu0
      %v7095 = vadd.f32 %v6850, %v7094
      %v7096 = vpop.f32.mrb[0].mxu0
      %7097 = vmatprep.mubr.f32.mxu0 0.0
      %v7098 = vand.u32 %v478, 4294901760
      %7099 = vmatmul.mubr.f32.gmra.mrb[0].mxu0 %v7098
      %v7100 = vpop.f32.mrb[0].mxu0
      %v7101 = vadd.f32 %v6860, %v7100
      %v7102 = vpop.f32.mrb[0].mxu0
      %7103 = vdwg.mxu0
      %7104 = vmatprep.subr.mxu0 0.0
      %v7105 = vand.u32 %v6606, 4294901760
      %v7106 = vsub.f32 %v6606, %v7105
      %7107 = vmatpush1.msra.mxu0 %v7106
      %7108 = vmatprep.subr.mxu0 0.0
      %v7109 = vand.u32 %v6607, 4294901760
      %v7110 = vsub.f32 %v6607, %v7109
      %7111 = vmatpush1.msra.mxu0 %v7110
      %7112 = vmatprep.subr.mxu0 0.0
      %v7113 = vand.u32 %v6608, 4294901760
      %v7114 = vsub.f32 %v6608, %v7113
      %7115 = vmatpush1.msra.mxu0 %v7114
      %7116 = vmatprep.subr.mxu0 0.0
      %v7117 = vand.u32 %v6609, 4294901760
      %v7118 = vsub.f32 %v6609, %v7117
      %7119 = vmatpush1.msra.mxu0 %v7118
      %7120 = vmatprep.subr.mxu0 0.0
      %v7121 = vand.u32 %v6610, 4294901760
      %v7122 = vsub.f32 %v6610, %v7121
      %7123 = vmatpush1.msra.mxu0 %v7122
      %7124 = vmatprep.subr.mxu0 0.0
      %v7125 = vand.u32 %v6611, 4294901760
      %v7126 = vsub.f32 %v6611, %v7125
      %7127 = vmatpush1.msra.mxu0 %v7126
      %7128 = vmatprep.subr.mxu0 0.0
      %v7129 = vand.u32 %v6612, 4294901760
      %v7130 = vsub.f32 %v6612, %v7129
      %7131 = vmatpush1.msra.mxu0 %v7130
      %7132 = vmatprep.subr.mxu0 0.0
      %v7133 = vand.u32 %v6613, 4294901760
      %v7134 = vsub.f32 %v6613, %v7133
      %7135 = vmatpush1.msra.mxu0 %v7134
      %7136 = vmatprep.subr.mxu0 0.0
      %v7137 = vand.u32 %v6614, 4294901760
      %v7138 = vsub.f32 %v6614, %v7137
      %7139 = vmatpush1.msra.mxu0 %v7138
      %7140 = vmatprep.subr.mxu0 0.0
      %v7141 = vand.u32 %v6615, 4294901760
      %v7142 = vsub.f32 %v6615, %v7141
      %7143 = vmatpush1.msra.mxu0 %v7142
      %7144 = vmatprep.subr.mxu0 0.0
      %v7145 = vand.u32 %v6616, 4294901760
      %v7146 = vsub.f32 %v6616, %v7145
      %7147 = vmatpush1.msra.mxu0 %v7146
      %7148 = vmatprep.subr.mxu0 0.0
      %v7149 = vand.u32 %v6617, 4294901760
      %v7150 = vsub.f32 %v6617, %v7149
      %7151 = vmatpush1.msra.mxu0 %v7150
      %7152 = vmatprep.subr.mxu0 0.0
      %v7153 = vand.u32 %v6618, 4294901760
      %v7154 = vsub.f32 %v6618, %v7153
      %7155 = vmatpush1.msra.mxu0 %v7154
      %7156 = vmatprep.subr.mxu0 0.0
      %v7157 = vand.u32 %v6619, 4294901760
      %v7158 = vsub.f32 %v6619, %v7157
      %7159 = vmatpush1.msra.mxu0 %v7158
      %7160 = vmatprep.subr.mxu0 0.0
      %v7161 = vand.u32 %v6620, 4294901760
      %v7162 = vsub.f32 %v6620, %v7161
      %7163 = vmatpush1.msra.mxu0 %v7162
      %7164 = vmatprep.subr.mxu0 0.0
      %v7165 = vand.u32 %v6621, 4294901760
      %v7166 = vsub.f32 %v6621, %v7165
      %7167 = vmatpush1.msra.mxu0 %v7166
      %7168 = vmatprep.subr.mxu0 0.0
      %7169 = vmatpush1.msra.mxu0 0.0
      %7170 = vmatprep.subr.mxu0 0.0
      %7171 = vmatpush1.msra.mxu0 0.0
      %7172 = vmatprep.subr.mxu0 0.0
      %7173 = vmatpush1.msra.mxu0 0.0
      %7174 = vmatprep.subr.mxu0 0.0
      %7175 = vmatpush1.msra.mxu0 0.0
      %7176 = vmatprep.subr.mxu0 0.0
      %7177 = vmatpush1.msra.mxu0 0.0
      %7178 = vmatprep.subr.mxu0 0.0
      %7179 = vmatpush1.msra.mxu0 0.0
      %7180 = vmatprep.subr.mxu0 0.0
      %7181 = vmatpush1.msra.mxu0 0.0
      %7182 = vmatprep.subr.mxu0 0.0
      %7183 = vmatpush1.msra.mxu0 0.0
      %7184 = vmatprep.subr.mxu0 0.0
      %7185 = vmatpush1.msra.mxu0 0.0
      %7186 = vmatprep.subr.mxu0 0.0
      %7187 = vmatpush1.msra.mxu0 0.0
      %7188 = vmatprep.subr.mxu0 0.0
      %7189 = vmatpush1.msra.mxu0 0.0
      %7190 = vmatprep.subr.mxu0 0.0
      %7191 = vmatpush1.msra.mxu0 0.0
      %7192 = vmatprep.subr.mxu0 0.0
      %7193 = vmatpush1.msra.mxu0 0.0
      %7194 = vmatprep.subr.mxu0 0.0
      %7195 = vmatpush1.msra.mxu0 0.0
      %7196 = vmatprep.subr.mxu0 0.0
      %7197 = vmatpush1.msra.mxu0 0.0
      %7198 = vmatprep.subr.mxu0 0.0
      %7199 = vmatpush1.msra.mxu0 0.0
      %7200 = vmatprep.mubr.f32.mxu0 0.0
      %v7201 = vand.u32 %v463, 4294901760
      %v7202 = vsub.f32 %v463, %v7201
      %7203 = vmatmul.mubr.f32.gmra.mrb[0].mxu0 %v7202
      %v7204 = vpop.f32.mrb[0].mxu0
      %v7205 = vadd.f32 %v7011, %v7204
      %v7206 = vpop.f32.mrb[0].mxu0
      %7207 = vmatprep.mubr.f32.mxu0 0.0
      %v7208 = vand.u32 %v464, 4294901760
      %v7209 = vsub.f32 %v464, %v7208
      %7210 = vmatmul.mubr.f32.gmra.mrb[0].mxu0 %v7209
      %v7211 = vpop.f32.mrb[0].mxu0
      %v7212 = vadd.f32 %v7017, %v7211
      %v7213 = vpop.f32.mrb[0].mxu0
      %7214 = vmatprep.mubr.f32.mxu0 0.0
      %v7215 = vand.u32 %v465, 4294901760
      %v7216 = vsub.f32 %v465, %v7215
      %7217 = vmatmul.mubr.f32.gmra.mrb[0].mxu0 %v7216
      %v7218 = vpop.f32.mrb[0].mxu0
      %v7219 = vadd.f32 %v7023, %v7218
      %v7220 = vpop.f32.mrb[0].mxu0
      %7221 = vmatprep.mubr.f32.mxu0 0.0
      %v7222 = vand.u32 %v466, 4294901760
      %v7223 = vsub.f32 %v466, %v7222
      %7224 = vmatmul.mubr.f32.gmra.mrb[0].mxu0 %v7223
      %v7225 = vpop.f32.mrb[0].mxu0
      %v7226 = vadd.f32 %v7029, %v7225
      %v7227 = vpop.f32.mrb[0].mxu0
      %7228 = vmatprep.mubr.f32.mxu0 0.0
      %v7229 = vand.u32 %v467, 4294901760
      %v7230 = vsub.f32 %v467, %v7229
      %7231 = vmatmul.mubr.f32.gmra.mrb[0].mxu0 %v7230
      %v7232 = vpop.f32.mrb[0].mxu0
      %v7233 = vadd.f32 %v7035, %v7232
      %v7234 = vpop.f32.mrb[0].mxu0
      %7235 = vmatprep.mubr.f32.mxu0 0.0
      %v7236 = vand.u32 %v468, 4294901760
      %v7237 = vsub.f32 %v468, %v7236
      %7238 = vmatmul.mubr.f32.gmra.mrb[0].mxu0 %v7237
      %v7239 = vpop.f32.mrb[0].mxu0
      %v7240 = vadd.f32 %v7041, %v7239
      %v7241 = vpop.f32.mrb[0].mxu0
      %7242 = vmatprep.mubr.f32.mxu0 0.0
      %v7243 = vand.u32 %v469, 4294901760
      %v7244 = vsub.f32 %v469, %v7243
      %7245 = vmatmul.mubr.f32.gmra.mrb[0].mxu0 %v7244
      %v7246 = vpop.f32.mrb[0].mxu0
      %v7247 = vadd.f32 %v7047, %v7246
      %v7248 = vpop.f32.mrb[0].mxu0
      %7249 = vmatprep.mubr.f32.mxu0 0.0
      %v7250 = vand.u32 %v470, 4294901760
      %v7251 = vsub.f32 %v470, %v7250
      %7252 = vmatmul.mubr.f32.gmra.mrb[0].mxu0 %v7251
      %v7253 = vpop.f32.mrb[0].mxu0
      %v7254 = vadd.f32 %v7053, %v7253
      %v7255 = vpop.f32.mrb[0].mxu0
      %7256 = vmatprep.mubr.f32.mxu0 0.0
      %v7257 = vand.u32 %v471, 4294901760
      %v7258 = vsub.f32 %v471, %v7257
      %7259 = vmatmul.mubr.f32.gmra.mrb[0].mxu0 %v7258
      %v7260 = vpop.f32.mrb[0].mxu0
      %v7261 = vadd.f32 %v7059, %v7260
      %v7262 = vpop.f32.mrb[0].mxu0
      %7263 = vmatprep.mubr.f32.mxu0 0.0
      %v7264 = vand.u32 %v472, 4294901760
      %v7265 = vsub.f32 %v472, %v7264
      %7266 = vmatmul.mubr.f32.gmra.mrb[0].mxu0 %v7265
      %v7267 = vpop.f32.mrb[0].mxu0
      %v7268 = vadd.f32 %v7065, %v7267
      %v7269 = vpop.f32.mrb[0].mxu0
      %7270 = vmatprep.mubr.f32.mxu0 0.0
      %v7271 = vand.u32 %v473, 4294901760
      %v7272 = vsub.f32 %v473, %v7271
      %7273 = vmatmul.mubr.f32.gmra.mrb[0].mxu0 %v7272
      %v7274 = vpop.f32.mrb[0].mxu0
      %v7275 = vadd.f32 %v7071, %v7274
      %v7276 = vpop.f32.mrb[0].mxu0
      %7277 = vmatprep.mubr.f32.mxu0 0.0
      %v7278 = vand.u32 %v474, 4294901760
      %v7279 = vsub.f32 %v474, %v7278
      %7280 = vmatmul.mubr.f32.gmra.mrb[0].mxu0 %v7279
      %v7281 = vpop.f32.mrb[0].mxu0
      %v7282 = vadd.f32 %v7077, %v7281
      %v7283 = vpop.f32.mrb[0].mxu0
      %7284 = vmatprep.mubr.f32.mxu0 0.0
      %v7285 = vand.u32 %v475, 4294901760
      %v7286 = vsub.f32 %v475, %v7285
      %7287 = vmatmul.mubr.f32.gmra.mrb[0].mxu0 %v7286
      %v7288 = vpop.f32.mrb[0].mxu0
      %v7289 = vadd.f32 %v7083, %v7288
      %v7290 = vpop.f32.mrb[0].mxu0
      %7291 = vmatprep.mubr.f32.mxu0 0.0
      %v7292 = vand.u32 %v476, 4294901760
      %v7293 = vsub.f32 %v476, %v7292
      %7294 = vmatmul.mubr.f32.gmra.mrb[0].mxu0 %v7293
      %v7295 = vpop.f32.mrb[0].mxu0
      %v7296 = vadd.f32 %v7089, %v7295
      %v7297 = vpop.f32.mrb[0].mxu0
      %7298 = vmatprep.mubr.f32.mxu0 0.0
      %v7299 = vand.u32 %v477, 4294901760
      %v7300 = vsub.f32 %v477, %v7299
      %7301 = vmatmul.mubr.f32.gmra.mrb[0].mxu0 %v7300
      %v7302 = vpop.f32.mrb[0].mxu0
      %v7303 = vadd.f32 %v7095, %v7302
      %v7304 = vpop.f32.mrb[0].mxu0
      %7305 = vmatprep.mubr.f32.mxu0 0.0
      %v7306 = vand.u32 %v478, 4294901760
      %v7307 = vsub.f32 %v478, %v7306
      %7308 = vmatmul.mubr.f32.gmra.mrb[0].mxu0 %v7307
      %v7309 = vpop.f32.mrb[0].mxu0
      %v7310 = vadd.f32 %v7101, %v7309
      %v7311 = vpop.f32.mrb[0].mxu0
      %7312 = vdwg.mxu0
      %7313 = vmatprep.subr.mxu0 0.0
      %v7314 = vand.u32 %v6606, 4294901760
      %7315 = vmatpush1.msra.mxu0 %v7314
      %7316 = vmatprep.subr.mxu0 0.0
      %v7317 = vand.u32 %v6607, 4294901760
      %7318 = vmatpush1.msra.mxu0 %v7317
      %7319 = vmatprep.subr.mxu0 0.0
      %v7320 = vand.u32 %v6608, 4294901760
      %7321 = vmatpush1.msra.mxu0 %v7320
      %7322 = vmatprep.subr.mxu0 0.0
      %v7323 = vand.u32 %v6609, 4294901760
      %7324 = vmatpush1.msra.mxu0 %v7323
      %7325 = vmatprep.subr.mxu0 0.0
      %v7326 = vand.u32 %v6610, 4294901760
      %7327 = vmatpush1.msra.mxu0 %v7326
      %7328 = vmatprep.subr.mxu0 0.0
      %v7329 = vand.u32 %v6611, 4294901760
      %7330 = vmatpush1.msra.mxu0 %v7329
      %7331 = vmatprep.subr.mxu0 0.0
      %v7332 = vand.u32 %v6612, 4294901760
      %7333 = vmatpush1.msra.mxu0 %v7332
      %7334 = vmatprep.subr.mxu0 0.0
      %v7335 = vand.u32 %v6613, 4294901760
      %7336 = vmatpush1.msra.mxu0 %v7335
      %7337 = vmatprep.subr.mxu0 0.0
      %v7338 = vand.u32 %v6614, 4294901760
      %7339 = vmatpush1.msra.mxu0 %v7338
      %7340 = vmatprep.subr.mxu0 0.0
      %v7341 = vand.u32 %v6615, 4294901760
      %7342 = vmatpush1.msra.mxu0 %v7341
      %7343 = vmatprep.subr.mxu0 0.0
      %v7344 = vand.u32 %v6616, 4294901760
      %7345 = vmatpush1.msra.mxu0 %v7344
      %7346 = vmatprep.subr.mxu0 0.0
      %v7347 = vand.u32 %v6617, 4294901760
      %7348 = vmatpush1.msra.mxu0 %v7347
      %7349 = vmatprep.subr.mxu0 0.0
      %v7350 = vand.u32 %v6618, 4294901760
      %7351 = vmatpush1.msra.mxu0 %v7350
      %7352 = vmatprep.subr.mxu0 0.0
      %v7353 = vand.u32 %v6619, 4294901760
      %7354 = vmatpush1.msra.mxu0 %v7353
      %7355 = vmatprep.subr.mxu0 0.0
      %v7356 = vand.u32 %v6620, 4294901760
      %7357 = vmatpush1.msra.mxu0 %v7356
      %7358 = vmatprep.subr.mxu0 0.0
      %v7359 = vand.u32 %v6621, 4294901760
      %7360 = vmatpush1.msra.mxu0 %v7359
      %7361 = vmatprep.subr.mxu0 0.0
      %7362 = vmatpush1.msra.mxu0 0.0
      %7363 = vmatprep.subr.mxu0 0.0
      %7364 = vmatpush1.msra.mxu0 0.0
      %7365 = vmatprep.subr.mxu0 0.0
      %7366 = vmatpush1.msra.mxu0 0.0
      %7367 = vmatprep.subr.mxu0 0.0
      %7368 = vmatpush1.msra.mxu0 0.0
      %7369 = vmatprep.subr.mxu0 0.0
      %7370 = vmatpush1.msra.mxu0 0.0
      %7371 = vmatprep.subr.mxu0 0.0
      %7372 = vmatpush1.msra.mxu0 0.0
      %7373 = vmatprep.subr.mxu0 0.0
      %7374 = vmatpush1.msra.mxu0 0.0
      %7375 = vmatprep.subr.mxu0 0.0
      %7376 = vmatpush1.msra.mxu0 0.0
      %7377 = vmatprep.subr.mxu0 0.0
      %7378 = vmatpush1.msra.mxu0 0.0
      %7379 = vmatprep.subr.mxu0 0.0
      %7380 = vmatpush1.msra.mxu0 0.0
      %7381 = vmatprep.subr.mxu0 0.0
      %7382 = vmatpush1.msra.mxu0 0.0
      %7383 = vmatprep.subr.mxu0 0.0
      %7384 = vmatpush1.msra.mxu0 0.0
      %7385 = vmatprep.subr.mxu0 0.0
      %7386 = vmatpush1.msra.mxu0 0.0
      %7387 = vmatprep.subr.mxu0 0.0
      %7388 = vmatpush1.msra.mxu0 0.0
      %7389 = vmatprep.subr.mxu0 0.0
      %7390 = vmatpush1.msra.mxu0 0.0
      %7391 = vmatprep.subr.mxu0 0.0
      %7392 = vmatpush1.msra.mxu0 0.0
      %7393 = vmatprep.mubr.f32.mxu0 0.0
      %v7394 = vand.u32 %v463, 4294901760
      %v7395 = vsub.f32 %v463, %v7394
      %v7396 = vand.u32 %v7395, 4294901760
      %7397 = vmatmul.mubr.f32.gmra.mrb[0].mxu0 %v7396
      %v7398 = vpop.f32.mrb[0].mxu0
      %v7399 = vadd.f32 %v7205, %v7398
      %v7400 = vpop.f32.mrb[0].mxu0
      %7401 = vmatprep.mubr.f32.mxu0 0.0
      %v7402 = vand.u32 %v464, 4294901760
      %v7403 = vsub.f32 %v464, %v7402
      %v7404 = vand.u32 %v7403, 4294901760
      %7405 = vmatmul.mubr.f32.gmra.mrb[0].mxu0 %v7404
      %v7406 = vpop.f32.mrb[0].mxu0
      %v7407 = vadd.f32 %v7212, %v7406
      %v7408 = vpop.f32.mrb[0].mxu0
      %7409 = vmatprep.mubr.f32.mxu0 0.0
      %v7410 = vand.u32 %v465, 4294901760
      %v7411 = vsub.f32 %v465, %v7410
      %v7412 = vand.u32 %v7411, 4294901760
      %7413 = vmatmul.mubr.f32.gmra.mrb[0].mxu0 %v7412
      %v7414 = vpop.f32.mrb[0].mxu0
      %v7415 = vadd.f32 %v7219, %v7414
      %v7416 = vpop.f32.mrb[0].mxu0
      %7417 = vmatprep.mubr.f32.mxu0 0.0
      %v7418 = vand.u32 %v466, 4294901760
      %v7419 = vsub.f32 %v466, %v7418
      %v7420 = vand.u32 %v7419, 4294901760
      %7421 = vmatmul.mubr.f32.gmra.mrb[0].mxu0 %v7420
      %v7422 = vpop.f32.mrb[0].mxu0
      %v7423 = vadd.f32 %v7226, %v7422
      %v7424 = vpop.f32.mrb[0].mxu0
      %7425 = vmatprep.mubr.f32.mxu0 0.0
      %v7426 = vand.u32 %v467, 4294901760
      %v7427 = vsub.f32 %v467, %v7426
      %v7428 = vand.u32 %v7427, 4294901760
      %7429 = vmatmul.mubr.f32.gmra.mrb[0].mxu0 %v7428
      %v7430 = vpop.f32.mrb[0].mxu0
      %v7431 = vadd.f32 %v7233, %v7430
      %v7432 = vpop.f32.mrb[0].mxu0
      %7433 = vmatprep.mubr.f32.mxu0 0.0
      %v7434 = vand.u32 %v468, 4294901760
      %v7435 = vsub.f32 %v468, %v7434
      %v7436 = vand.u32 %v7435, 4294901760
      %7437 = vmatmul.mubr.f32.gmra.mrb[0].mxu0 %v7436
      %v7438 = vpop.f32.mrb[0].mxu0
      %v7439 = vadd.f32 %v7240, %v7438
      %v7440 = vpop.f32.mrb[0].mxu0
      %7441 = vmatprep.mubr.f32.mxu0 0.0
      %v7442 = vand.u32 %v469, 4294901760
      %v7443 = vsub.f32 %v469, %v7442
      %v7444 = vand.u32 %v7443, 4294901760
      %7445 = vmatmul.mubr.f32.gmra.mrb[0].mxu0 %v7444
      %v7446 = vpop.f32.mrb[0].mxu0
      %v7447 = vadd.f32 %v7247, %v7446
      %v7448 = vpop.f32.mrb[0].mxu0
      %7449 = vmatprep.mubr.f32.mxu0 0.0
      %v7450 = vand.u32 %v470, 4294901760
      %v7451 = vsub.f32 %v470, %v7450
      %v7452 = vand.u32 %v7451, 4294901760
      %7453 = vmatmul.mubr.f32.gmra.mrb[0].mxu0 %v7452
      %v7454 = vpop.f32.mrb[0].mxu0
      %v7455 = vadd.f32 %v7254, %v7454
      %v7456 = vpop.f32.mrb[0].mxu0
      %7457 = vmatprep.mubr.f32.mxu0 0.0
      %v7458 = vand.u32 %v471, 4294901760
      %v7459 = vsub.f32 %v471, %v7458
      %v7460 = vand.u32 %v7459, 4294901760
      %7461 = vmatmul.mubr.f32.gmra.mrb[0].mxu0 %v7460
      %v7462 = vpop.f32.mrb[0].mxu0
      %v7463 = vadd.f32 %v7261, %v7462
      %v7464 = vpop.f32.mrb[0].mxu0
      %7465 = vmatprep.mubr.f32.mxu0 0.0
      %v7466 = vand.u32 %v472, 4294901760
      %v7467 = vsub.f32 %v472, %v7466
      %v7468 = vand.u32 %v7467, 4294901760
      %7469 = vmatmul.mubr.f32.gmra.mrb[0].mxu0 %v7468
      %v7470 = vpop.f32.mrb[0].mxu0
      %v7471 = vadd.f32 %v7268, %v7470
      %v7472 = vpop.f32.mrb[0].mxu0
      %7473 = vmatprep.mubr.f32.mxu0 0.0
      %v7474 = vand.u32 %v473, 4294901760
      %v7475 = vsub.f32 %v473, %v7474
      %v7476 = vand.u32 %v7475, 4294901760
      %7477 = vmatmul.mubr.f32.gmra.mrb[0].mxu0 %v7476
      %v7478 = vpop.f32.mrb[0].mxu0
      %v7479 = vadd.f32 %v7275, %v7478
      %v7480 = vpop.f32.mrb[0].mxu0
      %7481 = vmatprep.mubr.f32.mxu0 0.0
      %v7482 = vand.u32 %v474, 4294901760
      %v7483 = vsub.f32 %v474, %v7482
      %v7484 = vand.u32 %v7483, 4294901760
      %7485 = vmatmul.mubr.f32.gmra.mrb[0].mxu0 %v7484
      %v7486 = vpop.f32.mrb[0].mxu0
      %v7487 = vadd.f32 %v7282, %v7486
      %v7488 = vpop.f32.mrb[0].mxu0
      %7489 = vmatprep.mubr.f32.mxu0 0.0
      %v7490 = vand.u32 %v475, 4294901760
      %v7491 = vsub.f32 %v475, %v7490
      %v7492 = vand.u32 %v7491, 4294901760
      %7493 = vmatmul.mubr.f32.gmra.mrb[0].mxu0 %v7492
      %v7494 = vpop.f32.mrb[0].mxu0
      %v7495 = vadd.f32 %v7289, %v7494
      %v7496 = vpop.f32.mrb[0].mxu0
      %7497 = vmatprep.mubr.f32.mxu0 0.0
      %v7498 = vand.u32 %v476, 4294901760
      %v7499 = vsub.f32 %v476, %v7498
      %v7500 = vand.u32 %v7499, 4294901760
      %7501 = vmatmul.mubr.f32.gmra.mrb[0].mxu0 %v7500
      %v7502 = vpop.f32.mrb[0].mxu0
      %v7503 = vadd.f32 %v7296, %v7502
      %v7504 = vpop.f32.mrb[0].mxu0
      %7505 = vmatprep.mubr.f32.mxu0 0.0
      %v7506 = vand.u32 %v477, 4294901760
      %v7507 = vsub.f32 %v477, %v7506
      %v7508 = vand.u32 %v7507, 4294901760
      %7509 = vmatmul.mubr.f32.gmra.mrb[0].mxu0 %v7508
      %v7510 = vpop.f32.mrb[0].mxu0
      %v7511 = vadd.f32 %v7303, %v7510
      %v7512 = vpop.f32.mrb[0].mxu0
      %7513 = vmatprep.mubr.f32.mxu0 0.0
      %v7514 = vand.u32 %v478, 4294901760
      %v7515 = vsub.f32 %v478, %v7514
      %v7516 = vand.u32 %v7515, 4294901760
      %7517 = vmatmul.mubr.f32.gmra.mrb[0].mxu0 %v7516
      %v7518 = vpop.f32.mrb[0].mxu0
      %v7519 = vadd.f32 %v7310, %v7518
      %v7520 = vpop.f32.mrb[0].mxu0
      %7521 = vdwg.mxu0
      %7522 = vmatprep.subr.mxu0 0.0
      %v7523 = vand.u32 %v6606, 4294901760
      %v7524 = vsub.f32 %v6606, %v7523
      %v7525 = vand.u32 %v7524, 4294901760
      %7526 = vmatpush1.msra.mxu0 %v7525
      %7527 = vmatprep.subr.mxu0 0.0
      %v7528 = vand.u32 %v6607, 4294901760
      %v7529 = vsub.f32 %v6607, %v7528
      %v7530 = vand.u32 %v7529, 4294901760
      %7531 = vmatpush1.msra.mxu0 %v7530
      %7532 = vmatprep.subr.mxu0 0.0
      %v7533 = vand.u32 %v6608, 4294901760
      %v7534 = vsub.f32 %v6608, %v7533
      %v7535 = vand.u32 %v7534, 4294901760
      %7536 = vmatpush1.msra.mxu0 %v7535
      %7537 = vmatprep.subr.mxu0 0.0
      %v7538 = vand.u32 %v6609, 4294901760
      %v7539 = vsub.f32 %v6609, %v7538
      %v7540 = vand.u32 %v7539, 4294901760
      %7541 = vmatpush1.msra.mxu0 %v7540
      %7542 = vmatprep.subr.mxu0 0.0
      %v7543 = vand.u32 %v6610, 4294901760
      %v7544 = vsub.f32 %v6610, %v7543
      %v7545 = vand.u32 %v7544, 4294901760
      %7546 = vmatpush1.msra.mxu0 %v7545
      %7547 = vmatprep.subr.mxu0 0.0
      %v7548 = vand.u32 %v6611, 4294901760
      %v7549 = vsub.f32 %v6611, %v7548
      %v7550 = vand.u32 %v7549, 4294901760
      %7551 = vmatpush1.msra.mxu0 %v7550
      %7552 = vmatprep.subr.mxu0 0.0
      %v7553 = vand.u32 %v6612, 4294901760
      %v7554 = vsub.f32 %v6612, %v7553
      %v7555 = vand.u32 %v7554, 4294901760
      %7556 = vmatpush1.msra.mxu0 %v7555
      %7557 = vmatprep.subr.mxu0 0.0
      %v7558 = vand.u32 %v6613, 4294901760
      %v7559 = vsub.f32 %v6613, %v7558
      %v7560 = vand.u32 %v7559, 4294901760
      %7561 = vmatpush1.msra.mxu0 %v7560
      %7562 = vmatprep.subr.mxu0 0.0
      %v7563 = vand.u32 %v6614, 4294901760
      %v7564 = vsub.f32 %v6614, %v7563
      %v7565 = vand.u32 %v7564, 4294901760
      %7566 = vmatpush1.msra.mxu0 %v7565
      %7567 = vmatprep.subr.mxu0 0.0
      %v7568 = vand.u32 %v6615, 4294901760
      %v7569 = vsub.f32 %v6615, %v7568
      %v7570 = vand.u32 %v7569, 4294901760
      %7571 = vmatpush1.msra.mxu0 %v7570
      %7572 = vmatprep.subr.mxu0 0.0
      %v7573 = vand.u32 %v6616, 4294901760
      %v7574 = vsub.f32 %v6616, %v7573
      %v7575 = vand.u32 %v7574, 4294901760
      %7576 = vmatpush1.msra.mxu0 %v7575
      %7577 = vmatprep.subr.mxu0 0.0
      %v7578 = vand.u32 %v6617, 4294901760
      %v7579 = vsub.f32 %v6617, %v7578
      %v7580 = vand.u32 %v7579, 4294901760
      %7581 = vmatpush1.msra.mxu0 %v7580
      %7582 = vmatprep.subr.mxu0 0.0
      %v7583 = vand.u32 %v6618, 4294901760
      %v7584 = vsub.f32 %v6618, %v7583
      %v7585 = vand.u32 %v7584, 4294901760
      %7586 = vmatpush1.msra.mxu0 %v7585
      %7587 = vmatprep.subr.mxu0 0.0
      %v7588 = vand.u32 %v6619, 4294901760
      %v7589 = vsub.f32 %v6619, %v7588
      %v7590 = vand.u32 %v7589, 4294901760
      %7591 = vmatpush1.msra.mxu0 %v7590
      %7592 = vmatprep.subr.mxu0 0.0
      %v7593 = vand.u32 %v6620, 4294901760
      %v7594 = vsub.f32 %v6620, %v7593
      %v7595 = vand.u32 %v7594, 4294901760
      %7596 = vmatpush1.msra.mxu0 %v7595
      %7597 = vmatprep.subr.mxu0 0.0
      %v7598 = vand.u32 %v6621, 4294901760
      %v7599 = vsub.f32 %v6621, %v7598
      %v7600 = vand.u32 %v7599, 4294901760
      %7601 = vmatpush1.msra.mxu0 %v7600
      %7602 = vmatprep.subr.mxu0 0.0
      %7603 = vmatpush1.msra.mxu0 0.0
      %7604 = vmatprep.subr.mxu0 0.0
      %7605 = vmatpush1.msra.mxu0 0.0
      %7606 = vmatprep.subr.mxu0 0.0
      %7607 = vmatpush1.msra.mxu0 0.0
      %7608 = vmatprep.subr.mxu0 0.0
      %7609 = vmatpush1.msra.mxu0 0.0
      %7610 = vmatprep.subr.mxu0 0.0
      %7611 = vmatpush1.msra.mxu0 0.0
      %7612 = vmatprep.subr.mxu0 0.0
      %7613 = vmatpush1.msra.mxu0 0.0
      %7614 = vmatprep.subr.mxu0 0.0
      %7615 = vmatpush1.msra.mxu0 0.0
      %7616 = vmatprep.subr.mxu0 0.0
      %7617 = vmatpush1.msra.mxu0 0.0
      %7618 = vmatprep.subr.mxu0 0.0
      %7619 = vmatpush1.msra.mxu0 0.0
      %7620 = vmatprep.subr.mxu0 0.0
      %7621 = vmatpush1.msra.mxu0 0.0
      %7622 = vmatprep.subr.mxu0 0.0
      %7623 = vmatpush1.msra.mxu0 0.0
      %7624 = vmatprep.subr.mxu0 0.0
      %7625 = vmatpush1.msra.mxu0 0.0
      %7626 = vmatprep.subr.mxu0 0.0
      %7627 = vmatpush1.msra.mxu0 0.0
      %7628 = vmatprep.subr.mxu0 0.0
      %7629 = vmatpush1.msra.mxu0 0.0
      %7630 = vmatprep.subr.mxu0 0.0
      %7631 = vmatpush1.msra.mxu0 0.0
      %7632 = vmatprep.subr.mxu0 0.0
      %7633 = vmatpush1.msra.mxu0 0.0
      %7634 = vmatprep.mubr.f32.mxu0 0.0
      %v7635 = vand.u32 %v463, 4294901760
      %7636 = vmatmul.mubr.f32.gmra.mrb[0].mxu0 %v7635
      %v7637 = vpop.f32.mrb[0].mxu0
      %v7638 = vadd.f32 %v7399, %v7637
      %v7639 = vpop.f32.mrb[0].mxu0
      %7640 = vmatprep.mubr.f32.mxu0 0.0
      %v7641 = vand.u32 %v464, 4294901760
      %7642 = vmatmul.mubr.f32.gmra.mrb[0].mxu0 %v7641
      %v7643 = vpop.f32.mrb[0].mxu0
      %v7644 = vadd.f32 %v7407, %v7643
      %v7645 = vpop.f32.mrb[0].mxu0
      %7646 = vmatprep.mubr.f32.mxu0 0.0
      %v7647 = vand.u32 %v465, 4294901760
      %7648 = vmatmul.mubr.f32.gmra.mrb[0].mxu0 %v7647
      %v7649 = vpop.f32.mrb[0].mxu0
      %v7650 = vadd.f32 %v7415, %v7649
      %v7651 = vpop.f32.mrb[0].mxu0
      %7652 = vmatprep.mubr.f32.mxu0 0.0
      %v7653 = vand.u32 %v466, 4294901760
      %7654 = vmatmul.mubr.f32.gmra.mrb[0].mxu0 %v7653
      %v7655 = vpop.f32.mrb[0].mxu0
      %v7656 = vadd.f32 %v7423, %v7655
      %v7657 = vpop.f32.mrb[0].mxu0
      %7658 = vmatprep.mubr.f32.mxu0 0.0
      %v7659 = vand.u32 %v467, 4294901760
      %7660 = vmatmul.mubr.f32.gmra.mrb[0].mxu0 %v7659
      %v7661 = vpop.f32.mrb[0].mxu0
      %v7662 = vadd.f32 %v7431, %v7661
      %v7663 = vpop.f32.mrb[0].mxu0
      %7664 = vmatprep.mubr.f32.mxu0 0.0
      %v7665 = vand.u32 %v468, 4294901760
      %7666 = vmatmul.mubr.f32.gmra.mrb[0].mxu0 %v7665
      %v7667 = vpop.f32.mrb[0].mxu0
      %v7668 = vadd.f32 %v7439, %v7667
      %v7669 = vpop.f32.mrb[0].mxu0
      %7670 = vmatprep.mubr.f32.mxu0 0.0
      %v7671 = vand.u32 %v469, 4294901760
      %7672 = vmatmul.mubr.f32.gmra.mrb[0].mxu0 %v7671
      %v7673 = vpop.f32.mrb[0].mxu0
      %v7674 = vadd.f32 %v7447, %v7673
      %v7675 = vpop.f32.mrb[0].mxu0
      %7676 = vmatprep.mubr.f32.mxu0 0.0
      %v7677 = vand.u32 %v470, 4294901760
      %7678 = vmatmul.mubr.f32.gmra.mrb[0].mxu0 %v7677
      %v7679 = vpop.f32.mrb[0].mxu0
      %v7680 = vadd.f32 %v7455, %v7679
      %v7681 = vpop.f32.mrb[0].mxu0
      %7682 = vmatprep.mubr.f32.mxu0 0.0
      %v7683 = vand.u32 %v471, 4294901760
      %7684 = vmatmul.mubr.f32.gmra.mrb[0].mxu0 %v7683
      %v7685 = vpop.f32.mrb[0].mxu0
      %v7686 = vadd.f32 %v7463, %v7685
      %v7687 = vpop.f32.mrb[0].mxu0
      %7688 = vmatprep.mubr.f32.mxu0 0.0
      %v7689 = vand.u32 %v472, 4294901760
      %7690 = vmatmul.mubr.f32.gmra.mrb[0].mxu0 %v7689
      %v7691 = vpop.f32.mrb[0].mxu0
      %v7692 = vadd.f32 %v7471, %v7691
      %v7693 = vpop.f32.mrb[0].mxu0
      %7694 = vmatprep.mubr.f32.mxu0 0.0
      %v7695 = vand.u32 %v473, 4294901760
      %7696 = vmatmul.mubr.f32.gmra.mrb[0].mxu0 %v7695
      %v7697 = vpop.f32.mrb[0].mxu0
      %v7698 = vadd.f32 %v7479, %v7697
      %v7699 = vpop.f32.mrb[0].mxu0
      %7700 = vmatprep.mubr.f32.mxu0 0.0
      %v7701 = vand.u32 %v474, 4294901760
      %7702 = vmatmul.mubr.f32.gmra.mrb[0].mxu0 %v7701
      %v7703 = vpop.f32.mrb[0].mxu0
      %v7704 = vadd.f32 %v7487, %v7703
      %v7705 = vpop.f32.mrb[0].mxu0
      %7706 = vmatprep.mubr.f32.mxu0 0.0
      %v7707 = vand.u32 %v475, 4294901760
      %7708 = vmatmul.mubr.f32.gmra.mrb[0].mxu0 %v7707
      %v7709 = vpop.f32.mrb[0].mxu0
      %v7710 = vadd.f32 %v7495, %v7709
      %v7711 = vpop.f32.mrb[0].mxu0
      %7712 = vmatprep.mubr.f32.mxu0 0.0
      %v7713 = vand.u32 %v476, 4294901760
      %7714 = vmatmul.mubr.f32.gmra.mrb[0].mxu0 %v7713
      %v7715 = vpop.f32.mrb[0].mxu0
      %v7716 = vadd.f32 %v7503, %v7715
      %v7717 = vpop.f32.mrb[0].mxu0
      %7718 = vmatprep.mubr.f32.mxu0 0.0
      %v7719 = vand.u32 %v477, 4294901760
      %7720 = vmatmul.mubr.f32.gmra.mrb[0].mxu0 %v7719
      %v7721 = vpop.f32.mrb[0].mxu0
      %v7722 = vadd.f32 %v7511, %v7721
      %v7723 = vpop.f32.mrb[0].mxu0
      %7724 = vmatprep.mubr.f32.mxu0 0.0
      %v7725 = vand.u32 %v478, 4294901760
      %7726 = vmatmul.mubr.f32.gmra.mrb[0].mxu0 %v7725
      %v7727 = vpop.f32.mrb[0].mxu0
      %v7728 = vadd.f32 %v7519, %v7727
      %v7729 = vpop.f32.mrb[0].mxu0
      %7730 = vdwg.mxu0
      %7731 = vmatprep.subr.mxu0 0.0
      %v7732 = vand.u32 %v6606, 4294901760
      %7733 = vmatpush1.msra.mxu0 %v7732
      %7734 = vmatprep.subr.mxu0 0.0
      %v7735 = vand.u32 %v6607, 4294901760
      %7736 = vmatpush1.msra.mxu0 %v7735
      %7737 = vmatprep.subr.mxu0 0.0
      %v7738 = vand.u32 %v6608, 4294901760
      %7739 = vmatpush1.msra.mxu0 %v7738
      %7740 = vmatprep.subr.mxu0 0.0
      %v7741 = vand.u32 %v6609, 4294901760
      %7742 = vmatpush1.msra.mxu0 %v7741
      %7743 = vmatprep.subr.mxu0 0.0
      %v7744 = vand.u32 %v6610, 4294901760
      %7745 = vmatpush1.msra.mxu0 %v7744
      %7746 = vmatprep.subr.mxu0 0.0
      %v7747 = vand.u32 %v6611, 4294901760
      %7748 = vmatpush1.msra.mxu0 %v7747
      %7749 = vmatprep.subr.mxu0 0.0
      %v7750 = vand.u32 %v6612, 4294901760
      %7751 = vmatpush1.msra.mxu0 %v7750
      %7752 = vmatprep.subr.mxu0 0.0
      %v7753 = vand.u32 %v6613, 4294901760
      %7754 = vmatpush1.msra.mxu0 %v7753
      %7755 = vmatprep.subr.mxu0 0.0
      %v7756 = vand.u32 %v6614, 4294901760
      %7757 = vmatpush1.msra.mxu0 %v7756
      %7758 = vmatprep.subr.mxu0 0.0
      %v7759 = vand.u32 %v6615, 4294901760
      %7760 = vmatpush1.msra.mxu0 %v7759
      %7761 = vmatprep.subr.mxu0 0.0
      %v7762 = vand.u32 %v6616, 4294901760
      %7763 = vmatpush1.msra.mxu0 %v7762
      %7764 = vmatprep.subr.mxu0 0.0
      %v7765 = vand.u32 %v6617, 4294901760
      %7766 = vmatpush1.msra.mxu0 %v7765
      %7767 = vmatprep.subr.mxu0 0.0
      %v7768 = vand.u32 %v6618, 4294901760
      %7769 = vmatpush1.msra.mxu0 %v7768
      %7770 = vmatprep.subr.mxu0 0.0
      %v7771 = vand.u32 %v6619, 4294901760
      %7772 = vmatpush1.msra.mxu0 %v7771
      %7773 = vmatprep.subr.mxu0 0.0
      %v7774 = vand.u32 %v6620, 4294901760
      %7775 = vmatpush1.msra.mxu0 %v7774
      %7776 = vmatprep.subr.mxu0 0.0
      %v7777 = vand.u32 %v6621, 4294901760
      %7778 = vmatpush1.msra.mxu0 %v7777
      %7779 = vmatprep.subr.mxu0 0.0
      %7780 = vmatpush1.msra.mxu0 0.0
      %7781 = vmatprep.subr.mxu0 0.0
      %7782 = vmatpush1.msra.mxu0 0.0
      %7783 = vmatprep.subr.mxu0 0.0
      %7784 = vmatpush1.msra.mxu0 0.0
      %7785 = vmatprep.subr.mxu0 0.0
      %7786 = vmatpush1.msra.mxu0 0.0
      %7787 = vmatprep.subr.mxu0 0.0
      %7788 = vmatpush1.msra.mxu0 0.0
      %7789 = vmatprep.subr.mxu0 0.0
      %7790 = vmatpush1.msra.mxu0 0.0
      %7791 = vmatprep.subr.mxu0 0.0
      %7792 = vmatpush1.msra.mxu0 0.0
      %7793 = vmatprep.subr.mxu0 0.0
      %7794 = vmatpush1.msra.mxu0 0.0
      %7795 = vmatprep.subr.mxu0 0.0
      %7796 = vmatpush1.msra.mxu0 0.0
      %7797 = vmatprep.subr.mxu0 0.0
      %7798 = vmatpush1.msra.mxu0 0.0
      %7799 = vmatprep.subr.mxu0 0.0
      %7800 = vmatpush1.msra.mxu0 0.0
      %7801 = vmatprep.subr.mxu0 0.0
      %7802 = vmatpush1.msra.mxu0 0.0
      %7803 = vmatprep.subr.mxu0 0.0
      %7804 = vmatpush1.msra.mxu0 0.0
      %7805 = vmatprep.subr.mxu0 0.0
      %7806 = vmatpush1.msra.mxu0 0.0
      %7807 = vmatprep.subr.mxu0 0.0
      %7808 = vmatpush1.msra.mxu0 0.0
      %7809 = vmatprep.subr.mxu0 0.0
      %7810 = vmatpush1.msra.mxu0 0.0
      %7811 = vmatprep.mubr.f32.mxu0 0.0
      %v7812 = vand.u32 %v463, 4294901760
      %7813 = vmatmul.mubr.f32.gmra.mrb[0].mxu0 %v7812
      %v7814 = vpop.f32.mrb[0].mxu0
      %v7815 = vadd.f32 %v7638, %v7814
      %v7816 = vpop.f32.mrb[0].mxu0
      %7817 = vmatprep.mubr.f32.mxu0 0.0
      %v7818 = vand.u32 %v464, 4294901760
      %7819 = vmatmul.mubr.f32.gmra.mrb[0].mxu0 %v7818
      %v7820 = vpop.f32.mrb[0].mxu0
      %v7821 = vadd.f32 %v7644, %v7820
      %v7822 = vpop.f32.mrb[0].mxu0
      %7823 = vmatprep.mubr.f32.mxu0 0.0
      %v7824 = vand.u32 %v465, 4294901760
      %7825 = vmatmul.mubr.f32.gmra.mrb[0].mxu0 %v7824
      %v7826 = vpop.f32.mrb[0].mxu0
      %v7827 = vadd.f32 %v7650, %v7826
      %v7828 = vpop.f32.mrb[0].mxu0
      %7829 = vmatprep.mubr.f32.mxu0 0.0
      %v7830 = vand.u32 %v466, 4294901760
      %7831 = vmatmul.mubr.f32.gmra.mrb[0].mxu0 %v7830
      %v7832 = vpop.f32.mrb[0].mxu0
      %v7833 = vadd.f32 %v7656, %v7832
      %v7834 = vpop.f32.mrb[0].mxu0
      %7835 = vmatprep.mubr.f32.mxu0 0.0
      %v7836 = vand.u32 %v467, 4294901760
      %7837 = vmatmul.mubr.f32.gmra.mrb[0].mxu0 %v7836
      %v7838 = vpop.f32.mrb[0].mxu0
      %v7839 = vadd.f32 %v7662, %v7838
      %v7840 = vpop.f32.mrb[0].mxu0
      %7841 = vmatprep.mubr.f32.mxu0 0.0
      %v7842 = vand.u32 %v468, 4294901760
      %7843 = vmatmul.mubr.f32.gmra.mrb[0].mxu0 %v7842
      %v7844 = vpop.f32.mrb[0].mxu0
      %v7845 = vadd.f32 %v7668, %v7844
      %v7846 = vpop.f32.mrb[0].mxu0
      %7847 = vmatprep.mubr.f32.mxu0 0.0
      %v7848 = vand.u32 %v469, 4294901760
      %7849 = vmatmul.mubr.f32.gmra.mrb[0].mxu0 %v7848
      %v7850 = vpop.f32.mrb[0].mxu0
      %v7851 = vadd.f32 %v7674, %v7850
      %v7852 = vpop.f32.mrb[0].mxu0
      %7853 = vmatprep.mubr.f32.mxu0 0.0
      %v7854 = vand.u32 %v470, 4294901760
      %7855 = vmatmul.mubr.f32.gmra.mrb[0].mxu0 %v7854
      %v7856 = vpop.f32.mrb[0].mxu0
      %v7857 = vadd.f32 %v7680, %v7856
      %v7858 = vpop.f32.mrb[0].mxu0
      %7859 = vmatprep.mubr.f32.mxu0 0.0
      %v7860 = vand.u32 %v471, 4294901760
      %7861 = vmatmul.mubr.f32.gmra.mrb[0].mxu0 %v7860
      %v7862 = vpop.f32.mrb[0].mxu0
      %v7863 = vadd.f32 %v7686, %v7862
      %v7864 = vpop.f32.mrb[0].mxu0
      %7865 = vmatprep.mubr.f32.mxu0 0.0
      %v7866 = vand.u32 %v472, 4294901760
      %7867 = vmatmul.mubr.f32.gmra.mrb[0].mxu0 %v7866
      %v7868 = vpop.f32.mrb[0].mxu0
      %v7869 = vadd.f32 %v7692, %v7868
      %v7870 = vpop.f32.mrb[0].mxu0
      %7871 = vmatprep.mubr.f32.mxu0 0.0
      %v7872 = vand.u32 %v473, 4294901760
      %7873 = vmatmul.mubr.f32.gmra.mrb[0].mxu0 %v7872
      %v7874 = vpop.f32.mrb[0].mxu0
      %v7875 = vadd.f32 %v7698, %v7874
      %v7876 = vpop.f32.mrb[0].mxu0
      %7877 = vmatprep.mubr.f32.mxu0 0.0
      %v7878 = vand.u32 %v474, 4294901760
      %7879 = vmatmul.mubr.f32.gmra.mrb[0].mxu0 %v7878
      %v7880 = vpop.f32.mrb[0].mxu0
      %v7881 = vadd.f32 %v7704, %v7880
      %v7882 = vpop.f32.mrb[0].mxu0
      %7883 = vmatprep.mubr.f32.mxu0 0.0
      %v7884 = vand.u32 %v475, 4294901760
      %7885 = vmatmul.mubr.f32.gmra.mrb[0].mxu0 %v7884
      %v7886 = vpop.f32.mrb[0].mxu0
      %v7887 = vadd.f32 %v7710, %v7886
      %v7888 = vpop.f32.mrb[0].mxu0
      %7889 = vmatprep.mubr.f32.mxu0 0.0
      %v7890 = vand.u32 %v476, 4294901760
      %7891 = vmatmul.mubr.f32.gmra.mrb[0].mxu0 %v7890
      %v7892 = vpop.f32.mrb[0].mxu0
      %v7893 = vadd.f32 %v7716, %v7892
      %v7894 = vpop.f32.mrb[0].mxu0
      %7895 = vmatprep.mubr.f32.mxu0 0.0
      %v7896 = vand.u32 %v477, 4294901760
      %7897 = vmatmul.mubr.f32.gmra.mrb[0].mxu0 %v7896
      %v7898 = vpop.f32.mrb[0].mxu0
      %v7899 = vadd.f32 %v7722, %v7898
      %v7900 = vpop.f32.mrb[0].mxu0
      %7901 = vmatprep.mubr.f32.mxu0 0.0
      %v7902 = vand.u32 %v478, 4294901760
      %7903 = vmatmul.mubr.f32.gmra.mrb[0].mxu0 %v7902
      %v7904 = vpop.f32.mrb[0].mxu0
      %v7905 = vadd.f32 %v7728, %v7904
      %v7906 = vpop.f32.mrb[0].mxu0
      %7907 = vdwg.mxu0
      %v7908 = vsel %vm2979, 0.0, %v7899
      %v7909 = vsel %vm2980, 0.0, %v7905
      %v7910 = vsel %vm2981, 0.0, %v7815
      %v7911 = vsel %vm2982, 0.0, %v7821
      %v7912 = vsel %vm2983, 0.0, %v7827
      %v7913 = vsel %vm2984, 0.0, %v7833
      %v7914 = vsel %vm2985, 0.0, %v7839
      %v7915 = vsel %vm2986, 0.0, %v7845
      %v7916 = vsel %vm2987, 0.0, %v7851
      %v7917 = vsel %vm2988, 0.0, %v7857
      %v7918 = vsel %vm2989, 0.0, %v7863
      %v7919 = vsel %vm2990, 0.0, %v7869
      %v7920 = vsel %vm2991, 0.0, %v7875
      %v7921 = vsel %vm2992, 0.0, %v7881
      %v7922 = vsel %vm2993, 0.0, %v7887
      %v7923 = vsel %vm2994, 0.0, %v7893
      %v7924 = vsel %vm3027, 0.0, %v7827
      %v7925 = vsel %vm3028, 0.0, %v7833
      %v7926 = vsel %vm3029, 0.0, %v7839
      %v7927 = vsel %vm3030, 0.0, %v7845
      %v7928 = vsel %vm3031, 0.0, %v7851
      %v7929 = vsel %vm3032, 0.0, %v7857
      %v7930 = vsel %vm3033, 0.0, %v7863
      %v7931 = vsel %vm3034, 0.0, %v7869
      %v7932 = vsel %vm3035, 0.0, %v7875
      %v7933 = vsel %vm3036, 0.0, %v7881
      %v7934 = vsel %vm3037, 0.0, %v7887
      %v7935 = vsel %vm3038, 0.0, %v7893
      %v7936 = vsel %vm3039, 0.0, %v7899
      %v7937 = vsel %vm3040, 0.0, %v7905
      %v7938 = vsel %vm3041, 0.0, %v7815
      %v7939 = vsel %vm3042, 0.0, %v7821
      %7956 = vrot.lane.b32.xlu0 %v7815, 64
      %v7957 = vpop.permute.xlu0 %7956
      %7958 = vrot.lane.b32.xlu0 %v7821, 64
      %v7959 = vpop.permute.xlu0 %7958
      %7960 = vrot.lane.b32.xlu0 %v7827, 64
      %v7961 = vpop.permute.xlu0 %7960
      %7962 = vrot.lane.b32.xlu0 %v7833, 64
      %v7963 = vpop.permute.xlu0 %7962
      %7964 = vrot.lane.b32.xlu0 %v7839, 64
      %v7965 = vpop.permute.xlu0 %7964
      %7966 = vrot.lane.b32.xlu0 %v7845, 64
      %v7967 = vpop.permute.xlu0 %7966
      %7968 = vrot.lane.b32.xlu0 %v7851, 64
      %v7969 = vpop.permute.xlu0 %7968
      %7970 = vrot.lane.b32.xlu0 %v7857, 64
      %v7971 = vpop.permute.xlu0 %7970
      %7972 = vrot.lane.b32.xlu0 %v7863, 64
      %v7973 = vpop.permute.xlu0 %7972
      %7974 = vrot.lane.b32.xlu0 %v7869, 64
      %v7975 = vpop.permute.xlu0 %7974
      %7976 = vrot.lane.b32.xlu0 %v7875, 64
      %v7977 = vpop.permute.xlu0 %7976
      %7978 = vrot.lane.b32.xlu0 %v7881, 64
      %v7979 = vpop.permute.xlu0 %7978
      %7980 = vrot.lane.b32.xlu0 %v7887, 64
      %v7981 = vpop.permute.xlu0 %7980
      %7982 = vrot.lane.b32.xlu0 %v7893, 64
      %v7983 = vpop.permute.xlu0 %7982
      %7984 = vrot.lane.b32.xlu0 %v7899, 64
      %v7985 = vpop.permute.xlu0 %7984
      %7986 = vrot.lane.b32.xlu0 %v7905, 64
      %v7987 = vpop.permute.xlu0 %7986
      %v8004 = vsel %vm3123, %v7908, %v7957
      %v8005 = vsel %vm3123, %v7909, %v7959
      %v8006 = vsel %vm3123, %v7910, %v7961
      %v8007 = vsel %vm3123, %v7911, %v7963
      %v8008 = vsel %vm3123, %v7912, %v7965
      %v8009 = vsel %vm3123, %v7913, %v7967
      %v8010 = vsel %vm3123, %v7914, %v7969
      %v8011 = vsel %vm3123, %v7915, %v7971
      %v8012 = vsel %vm3123, %v7916, %v7973
      %v8013 = vsel %vm3123, %v7917, %v7975
      %v8014 = vsel %vm3123, %v7918, %v7977
      %v8015 = vsel %vm3123, %v7919, %v7979
      %v8016 = vsel %vm3123, %v7920, %v7981
      %v8017 = vsel %vm3123, %v7921, %v7983
      %v8018 = vsel %vm3123, %v7922, %v7985
      %v8019 = vsel %vm3123, %v7923, %v7987
      %v8020 = vld [vmem:[%s8] sm:$0xff]
      %v8021 = vld [vmem:[%s8 + $0x8] sm:$0xff]
      %v8022 = vld [vmem:[%s8 + $0x10] sm:$0xff]
      %v8023 = vld [vmem:[%s8 + $0x18] sm:$0xff]
      %v8024 = vld [vmem:[%s8 + $0x20] sm:$0xff]
      %v8025 = vld [vmem:[%s8 + $0x28] sm:$0xff]
      %v8026 = vld [vmem:[%s8 + $0x30] sm:$0xff]
      %v8027 = vld [vmem:[%s8 + $0x38] sm:$0xff]
      %v8028 = vld [vmem:[%s8 + $0x40] sm:$0xff]
      %v8029 = vld [vmem:[%s8 + $0x48] sm:$0xff]
      %v8030 = vld [vmem:[%s8 + $0x50] sm:$0xff]
      %v8031 = vld [vmem:[%s8 + $0x58] sm:$0xff]
      %v8032 = vld [vmem:[%s8 + $0x60] sm:$0xff]
      %v8033 = vld [vmem:[%s8 + $0x68] sm:$0xff]
      %v8034 = vld [vmem:[%s8 + $0x70] sm:$0xff]
      %v8035 = vld [vmem:[%s8 + $0x78] sm:$0xff]
      %v8036 = vld [vmem:[%s8 + $0x80] sm:$0xff]
      %v8037 = vld [vmem:[%s8 + $0x88] sm:$0xff]
      %v8038 = vld [vmem:[%s8 + $0x90] sm:$0xff]
      %v8039 = vld [vmem:[%s8 + $0x98] sm:$0xff]
      %v8040 = vld [vmem:[%s8 + $0xa0] sm:$0xff]
      %v8041 = vld [vmem:[%s8 + $0xa8] sm:$0xff]
      %v8042 = vld [vmem:[%s8 + $0xb0] sm:$0xff]
      %v8043 = vld [vmem:[%s8 + $0xb8] sm:$0xff]
      %v8044 = vld [vmem:[%s9] sm:$0x1]
      %v8046 = vlaneseq
      %v8047 = vshrl.u32 %v8046, 7
      %v8048 = vsub.s32 0, %v8047
      %v8049 = vrot.slane %v8044, %v8048
      %v8052 = vsel %vm3123, %v7924, 0
      %v8055 = vsel %vm3123, %v7925, 0
      %v8058 = vsel %vm3123, %v7926, 0
      %v8061 = vsel %vm3123, %v7927, 0
      %v8064 = vsel %vm3123, %v7928, 0
      %v8067 = vsel %vm3123, %v7929, 0
      %v8070 = vsel %vm3123, %v7930, 0
      %v8073 = vsel %vm3123, %v7931, 0
      %v8076 = vsel %vm3123, %v7932, 0
      %v8079 = vsel %vm3123, %v7933, 0
      %v8082 = vsel %vm3123, %v7934, 0
      %v8085 = vsel %vm3123, %v7935, 0
      %v8088 = vsel %vm3123, %v7936, 0
      %v8091 = vsel %vm3123, %v7937, 0
      %v8094 = vsel %vm3123, %v7938, 0
      %v8097 = vsel %vm3123, %v7939, 0
      %8099 = vmatprep.subr.mxu0 0.0
      %v8100 = vand.u32 %v8020, 4294901760
      %8101 = vmatpush1.msra.mxu0 %v8100
      %8102 = vmatprep.subr.mxu0 0.0
      %v8103 = vand.u32 %v8021, 4294901760
      %8104 = vmatpush1.msra.mxu0 %v8103
      %8105 = vmatprep.subr.mxu0 0.0
      %v8106 = vand.u32 %v8022, 4294901760
      %8107 = vmatpush1.msra.mxu0 %v8106
      %8108 = vmatprep.subr.mxu0 0.0
      %v8109 = vand.u32 %v8023, 4294901760
      %8110 = vmatpush1.msra.mxu0 %v8109
      %8111 = vmatprep.subr.mxu0 0.0
      %v8112 = vand.u32 %v8024, 4294901760
      %8113 = vmatpush1.msra.mxu0 %v8112
      %8114 = vmatprep.subr.mxu0 0.0
      %v8115 = vand.u32 %v8025, 4294901760
      %8116 = vmatpush1.msra.mxu0 %v8115
      %8117 = vmatprep.subr.mxu0 0.0
      %v8118 = vand.u32 %v8026, 4294901760
      %8119 = vmatpush1.msra.mxu0 %v8118
      %8120 = vmatprep.subr.mxu0 0.0
      %v8121 = vand.u32 %v8027, 4294901760
      %8122 = vmatpush1.msra.mxu0 %v8121
      %8123 = vmatprep.subr.mxu0 0.0
      %v8124 = vand.u32 %v8028, 4294901760
      %8125 = vmatpush1.msra.mxu0 %v8124
      %8126 = vmatprep.subr.mxu0 0.0
      %v8127 = vand.u32 %v8029, 4294901760
      %8128 = vmatpush1.msra.mxu0 %v8127
      %8129 = vmatprep.subr.mxu0 0.0
      %v8130 = vand.u32 %v8030, 4294901760
      %8131 = vmatpush1.msra.mxu0 %v8130
      %8132 = vmatprep.subr.mxu0 0.0
      %v8133 = vand.u32 %v8031, 4294901760
      %8134 = vmatpush1.msra.mxu0 %v8133
      %8135 = vmatprep.subr.mxu0 0.0
      %v8136 = vand.u32 %v8032, 4294901760
      %8137 = vmatpush1.msra.mxu0 %v8136
      %8138 = vmatprep.subr.mxu0 0.0
      %v8139 = vand.u32 %v8033, 4294901760
      %8140 = vmatpush1.msra.mxu0 %v8139
      %8141 = vmatprep.subr.mxu0 0.0
      %v8142 = vand.u32 %v8034, 4294901760
      %8143 = vmatpush1.msra.mxu0 %v8142
      %8144 = vmatprep.subr.mxu0 0.0
      %v8145 = vand.u32 %v8035, 4294901760
      %8146 = vmatpush1.msra.mxu0 %v8145
      %8147 = vmatprep.subr.mxu0 0.0
      %v8148 = vand.u32 %v8036, 4294901760
      %8149 = vmatpush1.msra.mxu0 %v8148
      %8150 = vmatprep.subr.mxu0 0.0
      %v8151 = vand.u32 %v8037, 4294901760
      %8152 = vmatpush1.msra.mxu0 %v8151
      %8153 = vmatprep.subr.mxu0 0.0
      %v8154 = vand.u32 %v8038, 4294901760
      %8155 = vmatpush1.msra.mxu0 %v8154
      %8156 = vmatprep.subr.mxu0 0.0
      %v8157 = vand.u32 %v8039, 4294901760
      %8158 = vmatpush1.msra.mxu0 %v8157
      %8159 = vmatprep.subr.mxu0 0.0
      %v8160 = vand.u32 %v8040, 4294901760
      %8161 = vmatpush1.msra.mxu0 %v8160
      %8162 = vmatprep.subr.mxu0 0.0
      %v8163 = vand.u32 %v8041, 4294901760
      %8164 = vmatpush1.msra.mxu0 %v8163
      %8165 = vmatprep.subr.mxu0 0.0
      %v8166 = vand.u32 %v8042, 4294901760
      %8167 = vmatpush1.msra.mxu0 %v8166
      %8168 = vmatprep.subr.mxu0 0.0
      %v8169 = vand.u32 %v8043, 4294901760
      %8170 = vmatpush1.msra.mxu0 %v8169
      %8171 = vmatprep.subr.mxu0 0.0
      %8172 = vmatpush1.msra.mxu0 0.0
      %8173 = vmatprep.subr.mxu0 0.0
      %8174 = vmatpush1.msra.mxu0 0.0
      %8175 = vmatprep.subr.mxu0 0.0
      %8176 = vmatpush1.msra.mxu0 0.0
      %8177 = vmatprep.subr.mxu0 0.0
      %8178 = vmatpush1.msra.mxu0 0.0
      %8179 = vmatprep.subr.mxu0 0.0
      %8180 = vmatpush1.msra.mxu0 0.0
      %8181 = vmatprep.subr.mxu0 0.0
      %8182 = vmatpush1.msra.mxu0 0.0
      %8183 = vmatprep.subr.mxu0 0.0
      %8184 = vmatpush1.msra.mxu0 0.0
      %8185 = vmatprep.subr.mxu0 0.0
      %8186 = vmatpush1.msra.mxu0 0.0
      %v8187 = vand.u32 %v8052, 4294901760
      %v8188 = vsub.f32 %v8052, %v8187
      %v8189 = vand.u32 %v8188, 4294901760
      %v8190 = vsub.f32 %v8188, %v8189
      %v8191 = vand.u32 %v8190, 4294901760
      %8192 = vmatprep.mubr.f32.mxu0 %v8191
      %v8193 = vand.u32 %v8004, 4294901760
      %v8194 = vsub.f32 %v8004, %v8193
      %v8195 = vand.u32 %v8194, 4294901760
      %v8196 = vsub.f32 %v8194, %v8195
      %v8197 = vand.u32 %v8196, 4294901760
      %8198 = vmatmul.mubr.f32.gmra.mrb[0].mxu0 %v8197
      %v8199 = vpop.f32.mrb[0].mxu0
      %v8200 = vpop.f32.mrb[0].mxu0
      %v8201 = vand.u32 %v8055, 4294901760
      %v8202 = vsub.f32 %v8055, %v8201
      %v8203 = vand.u32 %v8202, 4294901760
      %v8204 = vsub.f32 %v8202, %v8203
      %v8205 = vand.u32 %v8204, 4294901760
      %8206 = vmatprep.mubr.f32.mxu0 %v8205
      %v8207 = vand.u32 %v8005, 4294901760
      %v8208 = vsub.f32 %v8005, %v8207
      %v8209 = vand.u32 %v8208, 4294901760
      %v8210 = vsub.f32 %v8208, %v8209
      %v8211 = vand.u32 %v8210, 4294901760
      %8212 = vmatmul.mubr.f32.gmra.mrb[0].mxu0 %v8211
      %v8213 = vpop.f32.mrb[0].mxu0
      %v8214 = vpop.f32.mrb[0].mxu0
      %v8215 = vand.u32 %v8058, 4294901760
      %v8216 = vsub.f32 %v8058, %v8215
      %v8217 = vand.u32 %v8216, 4294901760
      %v8218 = vsub.f32 %v8216, %v8217
      %v8219 = vand.u32 %v8218, 4294901760
      %8220 = vmatprep.mubr.f32.mxu0 %v8219
      %v8221 = vand.u32 %v8006, 4294901760
      %v8222 = vsub.f32 %v8006, %v8221
      %v8223 = vand.u32 %v8222, 4294901760
      %v8224 = vsub.f32 %v8222, %v8223
      %v8225 = vand.u32 %v8224, 4294901760
      %8226 = vmatmul.mubr.f32.gmra.mrb[0].mxu0 %v8225
      %v8227 = vpop.f32.mrb[0].mxu0
      %v8228 = vpop.f32.mrb[0].mxu0
      %v8229 = vand.u32 %v8061, 4294901760
      %v8230 = vsub.f32 %v8061, %v8229
      %v8231 = vand.u32 %v8230, 4294901760
      %v8232 = vsub.f32 %v8230, %v8231
      %v8233 = vand.u32 %v8232, 4294901760
      %8234 = vmatprep.mubr.f32.mxu0 %v8233
      %v8235 = vand.u32 %v8007, 4294901760
      %v8236 = vsub.f32 %v8007, %v8235
      %v8237 = vand.u32 %v8236, 4294901760
      %v8238 = vsub.f32 %v8236, %v8237
      %v8239 = vand.u32 %v8238, 4294901760
      %8240 = vmatmul.mubr.f32.gmra.mrb[0].mxu0 %v8239
      %v8241 = vpop.f32.mrb[0].mxu0
      %v8242 = vpop.f32.mrb[0].mxu0
      %v8243 = vand.u32 %v8064, 4294901760
      %v8244 = vsub.f32 %v8064, %v8243
      %v8245 = vand.u32 %v8244, 4294901760
      %v8246 = vsub.f32 %v8244, %v8245
      %v8247 = vand.u32 %v8246, 4294901760
      %8248 = vmatprep.mubr.f32.mxu0 %v8247
      %v8249 = vand.u32 %v8008, 4294901760
      %v8250 = vsub.f32 %v8008, %v8249
      %v8251 = vand.u32 %v8250, 4294901760
      %v8252 = vsub.f32 %v8250, %v8251
      %v8253 = vand.u32 %v8252, 4294901760
      %8254 = vmatmul.mubr.f32.gmra.mrb[0].mxu0 %v8253
      %v8255 = vpop.f32.mrb[0].mxu0
      %v8256 = vpop.f32.mrb[0].mxu0
      %v8257 = vand.u32 %v8067, 4294901760
      %v8258 = vsub.f32 %v8067, %v8257
      %v8259 = vand.u32 %v8258, 4294901760
      %v8260 = vsub.f32 %v8258, %v8259
      %v8261 = vand.u32 %v8260, 4294901760
      %8262 = vmatprep.mubr.f32.mxu0 %v8261
      %v8263 = vand.u32 %v8009, 4294901760
      %v8264 = vsub.f32 %v8009, %v8263
      %v8265 = vand.u32 %v8264, 4294901760
      %v8266 = vsub.f32 %v8264, %v8265
      %v8267 = vand.u32 %v8266, 4294901760
      %8268 = vmatmul.mubr.f32.gmra.mrb[0].mxu0 %v8267
      %v8269 = vpop.f32.mrb[0].mxu0
      %v8270 = vpop.f32.mrb[0].mxu0
      %v8271 = vand.u32 %v8070, 4294901760
      %v8272 = vsub.f32 %v8070, %v8271
      %v8273 = vand.u32 %v8272, 4294901760
      %v8274 = vsub.f32 %v8272, %v8273
      %v8275 = vand.u32 %v8274, 4294901760
      %8276 = vmatprep.mubr.f32.mxu0 %v8275
      %v8277 = vand.u32 %v8010, 4294901760
      %v8278 = vsub.f32 %v8010, %v8277
      %v8279 = vand.u32 %v8278, 4294901760
      %v8280 = vsub.f32 %v8278, %v8279
      %v8281 = vand.u32 %v8280, 4294901760
      %8282 = vmatmul.mubr.f32.gmra.mrb[0].mxu0 %v8281
      %v8283 = vpop.f32.mrb[0].mxu0
      %v8284 = vpop.f32.mrb[0].mxu0
      %v8285 = vand.u32 %v8073, 4294901760
      %v8286 = vsub.f32 %v8073, %v8285
      %v8287 = vand.u32 %v8286, 4294901760
      %v8288 = vsub.f32 %v8286, %v8287
      %v8289 = vand.u32 %v8288, 4294901760
      %8290 = vmatprep.mubr.f32.mxu0 %v8289
      %v8291 = vand.u32 %v8011, 4294901760
      %v8292 = vsub.f32 %v8011, %v8291
      %v8293 = vand.u32 %v8292, 4294901760
      %v8294 = vsub.f32 %v8292, %v8293
      %v8295 = vand.u32 %v8294, 4294901760
      %8296 = vmatmul.mubr.f32.gmra.mrb[0].mxu0 %v8295
      %v8297 = vpop.f32.mrb[0].mxu0
      %v8298 = vpop.f32.mrb[0].mxu0
      %v8299 = vand.u32 %v8076, 4294901760
      %v8300 = vsub.f32 %v8076, %v8299
      %v8301 = vand.u32 %v8300, 4294901760
      %v8302 = vsub.f32 %v8300, %v8301
      %v8303 = vand.u32 %v8302, 4294901760
      %8304 = vmatprep.mubr.f32.mxu0 %v8303
      %v8305 = vand.u32 %v8012, 4294901760
      %v8306 = vsub.f32 %v8012, %v8305
      %v8307 = vand.u32 %v8306, 4294901760
      %v8308 = vsub.f32 %v8306, %v8307
      %v8309 = vand.u32 %v8308, 4294901760
      %8310 = vmatmul.mubr.f32.gmra.mrb[0].mxu0 %v8309
      %v8311 = vpop.f32.mrb[0].mxu0
      %v8312 = vpop.f32.mrb[0].mxu0
      %v8313 = vand.u32 %v8079, 4294901760
      %v8314 = vsub.f32 %v8079, %v8313
      %v8315 = vand.u32 %v8314, 4294901760
      %v8316 = vsub.f32 %v8314, %v8315
      %v8317 = vand.u32 %v8316, 4294901760
      %8318 = vmatprep.mubr.f32.mxu0 %v8317
      %v8319 = vand.u32 %v8013, 4294901760
      %v8320 = vsub.f32 %v8013, %v8319
      %v8321 = vand.u32 %v8320, 4294901760
      %v8322 = vsub.f32 %v8320, %v8321
      %v8323 = vand.u32 %v8322, 4294901760
      %8324 = vmatmul.mubr.f32.gmra.mrb[0].mxu0 %v8323
      %v8325 = vpop.f32.mrb[0].mxu0
      %v8326 = vpop.f32.mrb[0].mxu0
      %v8327 = vand.u32 %v8082, 4294901760
      %v8328 = vsub.f32 %v8082, %v8327
      %v8329 = vand.u32 %v8328, 4294901760
      %v8330 = vsub.f32 %v8328, %v8329
      %v8331 = vand.u32 %v8330, 4294901760
      %8332 = vmatprep.mubr.f32.mxu0 %v8331
      %v8333 = vand.u32 %v8014, 4294901760
      %v8334 = vsub.f32 %v8014, %v8333
      %v8335 = vand.u32 %v8334, 4294901760
      %v8336 = vsub.f32 %v8334, %v8335
      %v8337 = vand.u32 %v8336, 4294901760
      %8338 = vmatmul.mubr.f32.gmra.mrb[0].mxu0 %v8337
      %v8339 = vpop.f32.mrb[0].mxu0
      %v8340 = vpop.f32.mrb[0].mxu0
      %v8341 = vand.u32 %v8085, 4294901760
      %v8342 = vsub.f32 %v8085, %v8341
      %v8343 = vand.u32 %v8342, 4294901760
      %v8344 = vsub.f32 %v8342, %v8343
      %v8345 = vand.u32 %v8344, 4294901760
      %8346 = vmatprep.mubr.f32.mxu0 %v8345
      %v8347 = vand.u32 %v8015, 4294901760
      %v8348 = vsub.f32 %v8015, %v8347
      %v8349 = vand.u32 %v8348, 4294901760
      %v8350 = vsub.f32 %v8348, %v8349
      %v8351 = vand.u32 %v8350, 4294901760
      %8352 = vmatmul.mubr.f32.gmra.mrb[0].mxu0 %v8351
      %v8353 = vpop.f32.mrb[0].mxu0
      %v8354 = vpop.f32.mrb[0].mxu0
      %v8355 = vand.u32 %v8088, 4294901760
      %v8356 = vsub.f32 %v8088, %v8355
      %v8357 = vand.u32 %v8356, 4294901760
      %v8358 = vsub.f32 %v8356, %v8357
      %v8359 = vand.u32 %v8358, 4294901760
      %8360 = vmatprep.mubr.f32.mxu0 %v8359
      %v8361 = vand.u32 %v8016, 4294901760
      %v8362 = vsub.f32 %v8016, %v8361
      %v8363 = vand.u32 %v8362, 4294901760
      %v8364 = vsub.f32 %v8362, %v8363
      %v8365 = vand.u32 %v8364, 4294901760
      %8366 = vmatmul.mubr.f32.gmra.mrb[0].mxu0 %v8365
      %v8367 = vpop.f32.mrb[0].mxu0
      %v8368 = vpop.f32.mrb[0].mxu0
      %v8369 = vand.u32 %v8091, 4294901760
      %v8370 = vsub.f32 %v8091, %v8369
      %v8371 = vand.u32 %v8370, 4294901760
      %v8372 = vsub.f32 %v8370, %v8371
      %v8373 = vand.u32 %v8372, 4294901760
      %8374 = vmatprep.mubr.f32.mxu0 %v8373
      %v8375 = vand.u32 %v8017, 4294901760
      %v8376 = vsub.f32 %v8017, %v8375
      %v8377 = vand.u32 %v8376, 4294901760
      %v8378 = vsub.f32 %v8376, %v8377
      %v8379 = vand.u32 %v8378, 4294901760
      %8380 = vmatmul.mubr.f32.gmra.mrb[0].mxu0 %v8379
      %v8381 = vpop.f32.mrb[0].mxu0
      %v8382 = vpop.f32.mrb[0].mxu0
      %v8383 = vand.u32 %v8094, 4294901760
      %v8384 = vsub.f32 %v8094, %v8383
      %v8385 = vand.u32 %v8384, 4294901760
      %v8386 = vsub.f32 %v8384, %v8385
      %v8387 = vand.u32 %v8386, 4294901760
      %8388 = vmatprep.mubr.f32.mxu0 %v8387
      %v8389 = vand.u32 %v8018, 4294901760
      %v8390 = vsub.f32 %v8018, %v8389
      %v8391 = vand.u32 %v8390, 4294901760
      %v8392 = vsub.f32 %v8390, %v8391
      %v8393 = vand.u32 %v8392, 4294901760
      %8394 = vmatmul.mubr.f32.gmra.mrb[0].mxu0 %v8393
      %v8395 = vpop.f32.mrb[0].mxu0
      %v8396 = vadd.f32 %v8049, %v8395
      %v8397 = vpop.f32.mrb[0].mxu0
      %v8398 = vand.u32 %v8097, 4294901760
      %v8399 = vsub.f32 %v8097, %v8398
      %v8400 = vand.u32 %v8399, 4294901760
      %v8401 = vsub.f32 %v8399, %v8400
      %v8402 = vand.u32 %v8401, 4294901760
      %8403 = vmatprep.mubr.f32.mxu0 %v8402
      %v8404 = vand.u32 %v8019, 4294901760
      %v8405 = vsub.f32 %v8019, %v8404
      %v8406 = vand.u32 %v8405, 4294901760
      %v8407 = vsub.f32 %v8405, %v8406
      %v8408 = vand.u32 %v8407, 4294901760
      %8409 = vmatmul.mubr.f32.gmra.mrb[0].mxu0 %v8408
      %v8410 = vpop.f32.mrb[0].mxu0
      %v8411 = vadd.f32 %v8049, %v8410
      %v8412 = vpop.f32.mrb[0].mxu0
      %8413 = vdwg.mxu0
      %8414 = vmatprep.subr.mxu0 0.0
      %v8415 = vand.u32 %v8020, 4294901760
      %v8416 = vsub.f32 %v8020, %v8415
      %v8417 = vand.u32 %v8416, 4294901760
      %v8418 = vsub.f32 %v8416, %v8417
      %v8419 = vand.u32 %v8418, 4294901760
      %8420 = vmatpush1.msra.mxu0 %v8419
      %8421 = vmatprep.subr.mxu0 0.0
      %v8422 = vand.u32 %v8021, 4294901760
      %v8423 = vsub.f32 %v8021, %v8422
      %v8424 = vand.u32 %v8423, 4294901760
      %v8425 = vsub.f32 %v8423, %v8424
      %v8426 = vand.u32 %v8425, 4294901760
      %8427 = vmatpush1.msra.mxu0 %v8426
      %8428 = vmatprep.subr.mxu0 0.0
      %v8429 = vand.u32 %v8022, 4294901760
      %v8430 = vsub.f32 %v8022, %v8429
      %v8431 = vand.u32 %v8430, 4294901760
      %v8432 = vsub.f32 %v8430, %v8431
      %v8433 = vand.u32 %v8432, 4294901760
      %8434 = vmatpush1.msra.mxu0 %v8433
      %8435 = vmatprep.subr.mxu0 0.0
      %v8436 = vand.u32 %v8023, 4294901760
      %v8437 = vsub.f32 %v8023, %v8436
      %v8438 = vand.u32 %v8437, 4294901760
      %v8439 = vsub.f32 %v8437, %v8438
      %v8440 = vand.u32 %v8439, 4294901760
      %8441 = vmatpush1.msra.mxu0 %v8440
      %8442 = vmatprep.subr.mxu0 0.0
      %v8443 = vand.u32 %v8024, 4294901760
      %v8444 = vsub.f32 %v8024, %v8443
      %v8445 = vand.u32 %v8444, 4294901760
      %v8446 = vsub.f32 %v8444, %v8445
      %v8447 = vand.u32 %v8446, 4294901760
      %8448 = vmatpush1.msra.mxu0 %v8447
      %8449 = vmatprep.subr.mxu0 0.0
      %v8450 = vand.u32 %v8025, 4294901760
      %v8451 = vsub.f32 %v8025, %v8450
      %v8452 = vand.u32 %v8451, 4294901760
      %v8453 = vsub.f32 %v8451, %v8452
      %v8454 = vand.u32 %v8453, 4294901760
      %8455 = vmatpush1.msra.mxu0 %v8454
      %8456 = vmatprep.subr.mxu0 0.0
      %v8457 = vand.u32 %v8026, 4294901760
      %v8458 = vsub.f32 %v8026, %v8457
      %v8459 = vand.u32 %v8458, 4294901760
      %v8460 = vsub.f32 %v8458, %v8459
      %v8461 = vand.u32 %v8460, 4294901760
      %8462 = vmatpush1.msra.mxu0 %v8461
      %8463 = vmatprep.subr.mxu0 0.0
      %v8464 = vand.u32 %v8027, 4294901760
      %v8465 = vsub.f32 %v8027, %v8464
      %v8466 = vand.u32 %v8465, 4294901760
      %v8467 = vsub.f32 %v8465, %v8466
      %v8468 = vand.u32 %v8467, 4294901760
      %8469 = vmatpush1.msra.mxu0 %v8468
      %8470 = vmatprep.subr.mxu0 0.0
      %v8471 = vand.u32 %v8028, 4294901760
      %v8472 = vsub.f32 %v8028, %v8471
      %v8473 = vand.u32 %v8472, 4294901760
      %v8474 = vsub.f32 %v8472, %v8473
      %v8475 = vand.u32 %v8474, 4294901760
      %8476 = vmatpush1.msra.mxu0 %v8475
      %8477 = vmatprep.subr.mxu0 0.0
      %v8478 = vand.u32 %v8029, 4294901760
      %v8479 = vsub.f32 %v8029, %v8478
      %v8480 = vand.u32 %v8479, 4294901760
      %v8481 = vsub.f32 %v8479, %v8480
      %v8482 = vand.u32 %v8481, 4294901760
      %8483 = vmatpush1.msra.mxu0 %v8482
      %8484 = vmatprep.subr.mxu0 0.0
      %v8485 = vand.u32 %v8030, 4294901760
      %v8486 = vsub.f32 %v8030, %v8485
      %v8487 = vand.u32 %v8486, 4294901760
      %v8488 = vsub.f32 %v8486, %v8487
      %v8489 = vand.u32 %v8488, 4294901760
      %8490 = vmatpush1.msra.mxu0 %v8489
      %8491 = vmatprep.subr.mxu0 0.0
      %v8492 = vand.u32 %v8031, 4294901760
      %v8493 = vsub.f32 %v8031, %v8492
      %v8494 = vand.u32 %v8493, 4294901760
      %v8495 = vsub.f32 %v8493, %v8494
      %v8496 = vand.u32 %v8495, 4294901760
      %8497 = vmatpush1.msra.mxu0 %v8496
      %8498 = vmatprep.subr.mxu0 0.0
      %v8499 = vand.u32 %v8032, 4294901760
      %v8500 = vsub.f32 %v8032, %v8499
      %v8501 = vand.u32 %v8500, 4294901760
      %v8502 = vsub.f32 %v8500, %v8501
      %v8503 = vand.u32 %v8502, 4294901760
      %8504 = vmatpush1.msra.mxu0 %v8503
      %8505 = vmatprep.subr.mxu0 0.0
      %v8506 = vand.u32 %v8033, 4294901760
      %v8507 = vsub.f32 %v8033, %v8506
      %v8508 = vand.u32 %v8507, 4294901760
      %v8509 = vsub.f32 %v8507, %v8508
      %v8510 = vand.u32 %v8509, 4294901760
      %8511 = vmatpush1.msra.mxu0 %v8510
      %8512 = vmatprep.subr.mxu0 0.0
      %v8513 = vand.u32 %v8034, 4294901760
      %v8514 = vsub.f32 %v8034, %v8513
      %v8515 = vand.u32 %v8514, 4294901760
      %v8516 = vsub.f32 %v8514, %v8515
      %v8517 = vand.u32 %v8516, 4294901760
      %8518 = vmatpush1.msra.mxu0 %v8517
      %8519 = vmatprep.subr.mxu0 0.0
      %v8520 = vand.u32 %v8035, 4294901760
      %v8521 = vsub.f32 %v8035, %v8520
      %v8522 = vand.u32 %v8521, 4294901760
      %v8523 = vsub.f32 %v8521, %v8522
      %v8524 = vand.u32 %v8523, 4294901760
      %8525 = vmatpush1.msra.mxu0 %v8524
      %8526 = vmatprep.subr.mxu0 0.0
      %v8527 = vand.u32 %v8036, 4294901760
      %v8528 = vsub.f32 %v8036, %v8527
      %v8529 = vand.u32 %v8528, 4294901760
      %v8530 = vsub.f32 %v8528, %v8529
      %v8531 = vand.u32 %v8530, 4294901760
      %8532 = vmatpush1.msra.mxu0 %v8531
      %8533 = vmatprep.subr.mxu0 0.0
      %v8534 = vand.u32 %v8037, 4294901760
      %v8535 = vsub.f32 %v8037, %v8534
      %v8536 = vand.u32 %v8535, 4294901760
      %v8537 = vsub.f32 %v8535, %v8536
      %v8538 = vand.u32 %v8537, 4294901760
      %8539 = vmatpush1.msra.mxu0 %v8538
      %8540 = vmatprep.subr.mxu0 0.0
      %v8541 = vand.u32 %v8038, 4294901760
      %v8542 = vsub.f32 %v8038, %v8541
      %v8543 = vand.u32 %v8542, 4294901760
      %v8544 = vsub.f32 %v8542, %v8543
      %v8545 = vand.u32 %v8544, 4294901760
      %8546 = vmatpush1.msra.mxu0 %v8545
      %8547 = vmatprep.subr.mxu0 0.0
      %v8548 = vand.u32 %v8039, 4294901760
      %v8549 = vsub.f32 %v8039, %v8548
      %v8550 = vand.u32 %v8549, 4294901760
      %v8551 = vsub.f32 %v8549, %v8550
      %v8552 = vand.u32 %v8551, 4294901760
      %8553 = vmatpush1.msra.mxu0 %v8552
      %8554 = vmatprep.subr.mxu0 0.0
      %v8555 = vand.u32 %v8040, 4294901760
      %v8556 = vsub.f32 %v8040, %v8555
      %v8557 = vand.u32 %v8556, 4294901760
      %v8558 = vsub.f32 %v8556, %v8557
      %v8559 = vand.u32 %v8558, 4294901760
      %8560 = vmatpush1.msra.mxu0 %v8559
      %8561 = vmatprep.subr.mxu0 0.0
      %v8562 = vand.u32 %v8041, 4294901760
      %v8563 = vsub.f32 %v8041, %v8562
      %v8564 = vand.u32 %v8563, 4294901760
      %v8565 = vsub.f32 %v8563, %v8564
      %v8566 = vand.u32 %v8565, 4294901760
      %8567 = vmatpush1.msra.mxu0 %v8566
      %8568 = vmatprep.subr.mxu0 0.0
      %v8569 = vand.u32 %v8042, 4294901760
      %v8570 = vsub.f32 %v8042, %v8569
      %v8571 = vand.u32 %v8570, 4294901760
      %v8572 = vsub.f32 %v8570, %v8571
      %v8573 = vand.u32 %v8572, 4294901760
      %8574 = vmatpush1.msra.mxu0 %v8573
      %8575 = vmatprep.subr.mxu0 0.0
      %v8576 = vand.u32 %v8043, 4294901760
      %v8577 = vsub.f32 %v8043, %v8576
      %v8578 = vand.u32 %v8577, 4294901760
      %v8579 = vsub.f32 %v8577, %v8578
      %v8580 = vand.u32 %v8579, 4294901760
      %8581 = vmatpush1.msra.mxu0 %v8580
      %8582 = vmatprep.subr.mxu0 0.0
      %8583 = vmatpush1.msra.mxu0 0.0
      %8584 = vmatprep.subr.mxu0 0.0
      %8585 = vmatpush1.msra.mxu0 0.0
      %8586 = vmatprep.subr.mxu0 0.0
      %8587 = vmatpush1.msra.mxu0 0.0
      %8588 = vmatprep.subr.mxu0 0.0
      %8589 = vmatpush1.msra.mxu0 0.0
      %8590 = vmatprep.subr.mxu0 0.0
      %8591 = vmatpush1.msra.mxu0 0.0
      %8592 = vmatprep.subr.mxu0 0.0
      %8593 = vmatpush1.msra.mxu0 0.0
      %8594 = vmatprep.subr.mxu0 0.0
      %8595 = vmatpush1.msra.mxu0 0.0
      %8596 = vmatprep.subr.mxu0 0.0
      %8597 = vmatpush1.msra.mxu0 0.0
      %v8598 = vand.u32 %v8052, 4294901760
      %8599 = vmatprep.mubr.f32.mxu0 %v8598
      %v8600 = vand.u32 %v8004, 4294901760
      %8601 = vmatmul.mubr.f32.gmra.mrb[0].mxu0 %v8600
      %v8602 = vpop.f32.mrb[0].mxu0
      %v8603 = vpop.f32.mrb[0].mxu0
      %v8604 = vand.u32 %v8055, 4294901760
      %8605 = vmatprep.mubr.f32.mxu0 %v8604
      %v8606 = vand.u32 %v8005, 4294901760
      %8607 = vmatmul.mubr.f32.gmra.mrb[0].mxu0 %v8606
      %v8608 = vpop.f32.mrb[0].mxu0
      %v8609 = vpop.f32.mrb[0].mxu0
      %v8610 = vand.u32 %v8058, 4294901760
      %8611 = vmatprep.mubr.f32.mxu0 %v8610
      %v8612 = vand.u32 %v8006, 4294901760
      %8613 = vmatmul.mubr.f32.gmra.mrb[0].mxu0 %v8612
      %v8614 = vpop.f32.mrb[0].mxu0
      %v8615 = vpop.f32.mrb[0].mxu0
      %v8616 = vand.u32 %v8061, 4294901760
      %8617 = vmatprep.mubr.f32.mxu0 %v8616
      %v8618 = vand.u32 %v8007, 4294901760
      %8619 = vmatmul.mubr.f32.gmra.mrb[0].mxu0 %v8618
      %v8620 = vpop.f32.mrb[0].mxu0
      %v8621 = vpop.f32.mrb[0].mxu0
      %v8622 = vand.u32 %v8064, 4294901760
      %8623 = vmatprep.mubr.f32.mxu0 %v8622
      %v8624 = vand.u32 %v8008, 4294901760
      %8625 = vmatmul.mubr.f32.gmra.mrb[0].mxu0 %v8624
      %v8626 = vpop.f32.mrb[0].mxu0
      %v8627 = vpop.f32.mrb[0].mxu0
      %v8628 = vand.u32 %v8067, 4294901760
      %8629 = vmatprep.mubr.f32.mxu0 %v8628
      %v8630 = vand.u32 %v8009, 4294901760
      %8631 = vmatmul.mubr.f32.gmra.mrb[0].mxu0 %v8630
      %v8632 = vpop.f32.mrb[0].mxu0
      %v8633 = vpop.f32.mrb[0].mxu0
      %v8634 = vand.u32 %v8070, 4294901760
      %8635 = vmatprep.mubr.f32.mxu0 %v8634
      %v8636 = vand.u32 %v8010, 4294901760
      %8637 = vmatmul.mubr.f32.gmra.mrb[0].mxu0 %v8636
      %v8638 = vpop.f32.mrb[0].mxu0
      %v8639 = vpop.f32.mrb[0].mxu0
      %v8640 = vand.u32 %v8073, 4294901760
      %8641 = vmatprep.mubr.f32.mxu0 %v8640
      %v8642 = vand.u32 %v8011, 4294901760
      %8643 = vmatmul.mubr.f32.gmra.mrb[0].mxu0 %v8642
      %v8644 = vpop.f32.mrb[0].mxu0
      %v8645 = vpop.f32.mrb[0].mxu0
      %v8646 = vand.u32 %v8076, 4294901760
      %8647 = vmatprep.mubr.f32.mxu0 %v8646
      %v8648 = vand.u32 %v8012, 4294901760
      %8649 = vmatmul.mubr.f32.gmra.mrb[0].mxu0 %v8648
      %v8650 = vpop.f32.mrb[0].mxu0
      %v8651 = vpop.f32.mrb[0].mxu0
      %v8652 = vand.u32 %v8079, 4294901760
      %8653 = vmatprep.mubr.f32.mxu0 %v8652
      %v8654 = vand.u32 %v8013, 4294901760
      %8655 = vmatmul.mubr.f32.gmra.mrb[0].mxu0 %v8654
      %v8656 = vpop.f32.mrb[0].mxu0
      %v8657 = vpop.f32.mrb[0].mxu0
      %v8658 = vand.u32 %v8082, 4294901760
      %8659 = vmatprep.mubr.f32.mxu0 %v8658
      %v8660 = vand.u32 %v8014, 4294901760
      %8661 = vmatmul.mubr.f32.gmra.mrb[0].mxu0 %v8660
      %v8662 = vpop.f32.mrb[0].mxu0
      %v8663 = vpop.f32.mrb[0].mxu0
      %v8664 = vand.u32 %v8085, 4294901760
      %8665 = vmatprep.mubr.f32.mxu0 %v8664
      %v8666 = vand.u32 %v8015, 4294901760
      %8667 = vmatmul.mubr.f32.gmra.mrb[0].mxu0 %v8666
      %v8668 = vpop.f32.mrb[0].mxu0
      %v8669 = vpop.f32.mrb[0].mxu0
      %v8670 = vand.u32 %v8088, 4294901760
      %8671 = vmatprep.mubr.f32.mxu0 %v8670
      %v8672 = vand.u32 %v8016, 4294901760
      %8673 = vmatmul.mubr.f32.gmra.mrb[0].mxu0 %v8672
      %v8674 = vpop.f32.mrb[0].mxu0
      %v8675 = vpop.f32.mrb[0].mxu0
      %v8676 = vand.u32 %v8091, 4294901760
      %8677 = vmatprep.mubr.f32.mxu0 %v8676
      %v8678 = vand.u32 %v8017, 4294901760
      %8679 = vmatmul.mubr.f32.gmra.mrb[0].mxu0 %v8678
      %v8680 = vpop.f32.mrb[0].mxu0
      %v8681 = vpop.f32.mrb[0].mxu0
      %v8682 = vand.u32 %v8094, 4294901760
      %8683 = vmatprep.mubr.f32.mxu0 %v8682
      %v8684 = vand.u32 %v8018, 4294901760
      %8685 = vmatmul.mubr.f32.gmra.mrb[0].mxu0 %v8684
      %v8686 = vpop.f32.mrb[0].mxu0
      %v8687 = vadd.f32 %v8396, %v8686
      %v8688 = vpop.f32.mrb[0].mxu0
      %v8689 = vand.u32 %v8097, 4294901760
      %8690 = vmatprep.mubr.f32.mxu0 %v8689
      %v8691 = vand.u32 %v8019, 4294901760
      %8692 = vmatmul.mubr.f32.gmra.mrb[0].mxu0 %v8691
      %v8693 = vpop.f32.mrb[0].mxu0
      %v8694 = vadd.f32 %v8411, %v8693
      %v8695 = vpop.f32.mrb[0].mxu0
      %8696 = vdwg.mxu0
      %8697 = vmatprep.subr.mxu0 0.0
      %v8698 = vand.u32 %v8020, 4294901760
      %v8699 = vsub.f32 %v8020, %v8698
      %8700 = vmatpush1.msra.mxu0 %v8699
      %8701 = vmatprep.subr.mxu0 0.0
      %v8702 = vand.u32 %v8021, 4294901760
      %v8703 = vsub.f32 %v8021, %v8702
      %8704 = vmatpush1.msra.mxu0 %v8703
      %8705 = vmatprep.subr.mxu0 0.0
      %v8706 = vand.u32 %v8022, 4294901760
      %v8707 = vsub.f32 %v8022, %v8706
      %8708 = vmatpush1.msra.mxu0 %v8707
      %8709 = vmatprep.subr.mxu0 0.0
      %v8710 = vand.u32 %v8023, 4294901760
      %v8711 = vsub.f32 %v8023, %v8710
      %8712 = vmatpush1.msra.mxu0 %v8711
      %8713 = vmatprep.subr.mxu0 0.0
      %v8714 = vand.u32 %v8024, 4294901760
      %v8715 = vsub.f32 %v8024, %v8714
      %8716 = vmatpush1.msra.mxu0 %v8715
      %8717 = vmatprep.subr.mxu0 0.0
      %v8718 = vand.u32 %v8025, 4294901760
      %v8719 = vsub.f32 %v8025, %v8718
      %8720 = vmatpush1.msra.mxu0 %v8719
      %8721 = vmatprep.subr.mxu0 0.0
      %v8722 = vand.u32 %v8026, 4294901760
      %v8723 = vsub.f32 %v8026, %v8722
      %8724 = vmatpush1.msra.mxu0 %v8723
      %8725 = vmatprep.subr.mxu0 0.0
      %v8726 = vand.u32 %v8027, 4294901760
      %v8727 = vsub.f32 %v8027, %v8726
      %8728 = vmatpush1.msra.mxu0 %v8727
      %8729 = vmatprep.subr.mxu0 0.0
      %v8730 = vand.u32 %v8028, 4294901760
      %v8731 = vsub.f32 %v8028, %v8730
      %8732 = vmatpush1.msra.mxu0 %v8731
      %8733 = vmatprep.subr.mxu0 0.0
      %v8734 = vand.u32 %v8029, 4294901760
      %v8735 = vsub.f32 %v8029, %v8734
      %8736 = vmatpush1.msra.mxu0 %v8735
      %8737 = vmatprep.subr.mxu0 0.0
      %v8738 = vand.u32 %v8030, 4294901760
      %v8739 = vsub.f32 %v8030, %v8738
      %8740 = vmatpush1.msra.mxu0 %v8739
      %8741 = vmatprep.subr.mxu0 0.0
      %v8742 = vand.u32 %v8031, 4294901760
      %v8743 = vsub.f32 %v8031, %v8742
      %8744 = vmatpush1.msra.mxu0 %v8743
      %8745 = vmatprep.subr.mxu0 0.0
      %v8746 = vand.u32 %v8032, 4294901760
      %v8747 = vsub.f32 %v8032, %v8746
      %8748 = vmatpush1.msra.mxu0 %v8747
      %8749 = vmatprep.subr.mxu0 0.0
      %v8750 = vand.u32 %v8033, 4294901760
      %v8751 = vsub.f32 %v8033, %v8750
      %8752 = vmatpush1.msra.mxu0 %v8751
      %8753 = vmatprep.subr.mxu0 0.0
      %v8754 = vand.u32 %v8034, 4294901760
      %v8755 = vsub.f32 %v8034, %v8754
      %8756 = vmatpush1.msra.mxu0 %v8755
      %8757 = vmatprep.subr.mxu0 0.0
      %v8758 = vand.u32 %v8035, 4294901760
      %v8759 = vsub.f32 %v8035, %v8758
      %8760 = vmatpush1.msra.mxu0 %v8759
      %8761 = vmatprep.subr.mxu0 0.0
      %v8762 = vand.u32 %v8036, 4294901760
      %v8763 = vsub.f32 %v8036, %v8762
      %8764 = vmatpush1.msra.mxu0 %v8763
      %8765 = vmatprep.subr.mxu0 0.0
      %v8766 = vand.u32 %v8037, 4294901760
      %v8767 = vsub.f32 %v8037, %v8766
      %8768 = vmatpush1.msra.mxu0 %v8767
      %8769 = vmatprep.subr.mxu0 0.0
      %v8770 = vand.u32 %v8038, 4294901760
      %v8771 = vsub.f32 %v8038, %v8770
      %8772 = vmatpush1.msra.mxu0 %v8771
      %8773 = vmatprep.subr.mxu0 0.0
      %v8774 = vand.u32 %v8039, 4294901760
      %v8775 = vsub.f32 %v8039, %v8774
      %8776 = vmatpush1.msra.mxu0 %v8775
      %8777 = vmatprep.subr.mxu0 0.0
      %v8778 = vand.u32 %v8040, 4294901760
      %v8779 = vsub.f32 %v8040, %v8778
      %8780 = vmatpush1.msra.mxu0 %v8779
      %8781 = vmatprep.subr.mxu0 0.0
      %v8782 = vand.u32 %v8041, 4294901760
      %v8783 = vsub.f32 %v8041, %v8782
      %8784 = vmatpush1.msra.mxu0 %v8783
      %8785 = vmatprep.subr.mxu0 0.0
      %v8786 = vand.u32 %v8042, 4294901760
      %v8787 = vsub.f32 %v8042, %v8786
      %8788 = vmatpush1.msra.mxu0 %v8787
      %8789 = vmatprep.subr.mxu0 0.0
      %v8790 = vand.u32 %v8043, 4294901760
      %v8791 = vsub.f32 %v8043, %v8790
      %8792 = vmatpush1.msra.mxu0 %v8791
      %8793 = vmatprep.subr.mxu0 0.0
      %8794 = vmatpush1.msra.mxu0 0.0
      %8795 = vmatprep.subr.mxu0 0.0
      %8796 = vmatpush1.msra.mxu0 0.0
      %8797 = vmatprep.subr.mxu0 0.0
      %8798 = vmatpush1.msra.mxu0 0.0
      %8799 = vmatprep.subr.mxu0 0.0
      %8800 = vmatpush1.msra.mxu0 0.0
      %8801 = vmatprep.subr.mxu0 0.0
      %8802 = vmatpush1.msra.mxu0 0.0
      %8803 = vmatprep.subr.mxu0 0.0
      %8804 = vmatpush1.msra.mxu0 0.0
      %8805 = vmatprep.subr.mxu0 0.0
      %8806 = vmatpush1.msra.mxu0 0.0
      %8807 = vmatprep.subr.mxu0 0.0
      %8808 = vmatpush1.msra.mxu0 0.0
      %v8809 = vand.u32 %v8052, 4294901760
      %v8810 = vsub.f32 %v8052, %v8809
      %8811 = vmatprep.mubr.f32.mxu0 %v8810
      %v8812 = vand.u32 %v8004, 4294901760
      %v8813 = vsub.f32 %v8004, %v8812
      %8814 = vmatmul.mubr.f32.gmra.mrb[0].mxu0 %v8813
      %v8815 = vpop.f32.mrb[0].mxu0
      %v8816 = vpop.f32.mrb[0].mxu0
      %v8817 = vand.u32 %v8055, 4294901760
      %v8818 = vsub.f32 %v8055, %v8817
      %8819 = vmatprep.mubr.f32.mxu0 %v8818
      %v8820 = vand.u32 %v8005, 4294901760
      %v8821 = vsub.f32 %v8005, %v8820
      %8822 = vmatmul.mubr.f32.gmra.mrb[0].mxu0 %v8821
      %v8823 = vpop.f32.mrb[0].mxu0
      %v8824 = vpop.f32.mrb[0].mxu0
      %v8825 = vand.u32 %v8058, 4294901760
      %v8826 = vsub.f32 %v8058, %v8825
      %8827 = vmatprep.mubr.f32.mxu0 %v8826
      %v8828 = vand.u32 %v8006, 4294901760
      %v8829 = vsub.f32 %v8006, %v8828
      %8830 = vmatmul.mubr.f32.gmra.mrb[0].mxu0 %v8829
      %v8831 = vpop.f32.mrb[0].mxu0
      %v8832 = vpop.f32.mrb[0].mxu0
      %v8833 = vand.u32 %v8061, 4294901760
      %v8834 = vsub.f32 %v8061, %v8833
      %8835 = vmatprep.mubr.f32.mxu0 %v8834
      %v8836 = vand.u32 %v8007, 4294901760
      %v8837 = vsub.f32 %v8007, %v8836
      %8838 = vmatmul.mubr.f32.gmra.mrb[0].mxu0 %v8837
      %v8839 = vpop.f32.mrb[0].mxu0
      %v8840 = vpop.f32.mrb[0].mxu0
      %v8841 = vand.u32 %v8064, 4294901760
      %v8842 = vsub.f32 %v8064, %v8841
      %8843 = vmatprep.mubr.f32.mxu0 %v8842
      %v8844 = vand.u32 %v8008, 4294901760
      %v8845 = vsub.f32 %v8008, %v8844
      %8846 = vmatmul.mubr.f32.gmra.mrb[0].mxu0 %v8845
      %v8847 = vpop.f32.mrb[0].mxu0
      %v8848 = vpop.f32.mrb[0].mxu0
      %v8849 = vand.u32 %v8067, 4294901760
      %v8850 = vsub.f32 %v8067, %v8849
      %8851 = vmatprep.mubr.f32.mxu0 %v8850
      %v8852 = vand.u32 %v8009, 4294901760
      %v8853 = vsub.f32 %v8009, %v8852
      %8854 = vmatmul.mubr.f32.gmra.mrb[0].mxu0 %v8853
      %v8855 = vpop.f32.mrb[0].mxu0
      %v8856 = vpop.f32.mrb[0].mxu0
      %v8857 = vand.u32 %v8070, 4294901760
      %v8858 = vsub.f32 %v8070, %v8857
      %8859 = vmatprep.mubr.f32.mxu0 %v8858
      %v8860 = vand.u32 %v8010, 4294901760
      %v8861 = vsub.f32 %v8010, %v8860
      %8862 = vmatmul.mubr.f32.gmra.mrb[0].mxu0 %v8861
      %v8863 = vpop.f32.mrb[0].mxu0
      %v8864 = vpop.f32.mrb[0].mxu0
      %v8865 = vand.u32 %v8073, 4294901760
      %v8866 = vsub.f32 %v8073, %v8865
      %8867 = vmatprep.mubr.f32.mxu0 %v8866
      %v8868 = vand.u32 %v8011, 4294901760
      %v8869 = vsub.f32 %v8011, %v8868
      %8870 = vmatmul.mubr.f32.gmra.mrb[0].mxu0 %v8869
      %v8871 = vpop.f32.mrb[0].mxu0
      %v8872 = vpop.f32.mrb[0].mxu0
      %v8873 = vand.u32 %v8076, 4294901760
      %v8874 = vsub.f32 %v8076, %v8873
      %8875 = vmatprep.mubr.f32.mxu0 %v8874
      %v8876 = vand.u32 %v8012, 4294901760
      %v8877 = vsub.f32 %v8012, %v8876
      %8878 = vmatmul.mubr.f32.gmra.mrb[0].mxu0 %v8877
      %v8879 = vpop.f32.mrb[0].mxu0
      %v8880 = vpop.f32.mrb[0].mxu0
      %v8881 = vand.u32 %v8079, 4294901760
      %v8882 = vsub.f32 %v8079, %v8881
      %8883 = vmatprep.mubr.f32.mxu0 %v8882
      %v8884 = vand.u32 %v8013, 4294901760
      %v8885 = vsub.f32 %v8013, %v8884
      %8886 = vmatmul.mubr.f32.gmra.mrb[0].mxu0 %v8885
      %v8887 = vpop.f32.mrb[0].mxu0
      %v8888 = vpop.f32.mrb[0].mxu0
      %v8889 = vand.u32 %v8082, 4294901760
      %v8890 = vsub.f32 %v8082, %v8889
      %8891 = vmatprep.mubr.f32.mxu0 %v8890
      %v8892 = vand.u32 %v8014, 4294901760
      %v8893 = vsub.f32 %v8014, %v8892
      %8894 = vmatmul.mubr.f32.gmra.mrb[0].mxu0 %v8893
      %v8895 = vpop.f32.mrb[0].mxu0
      %v8896 = vpop.f32.mrb[0].mxu0
      %v8897 = vand.u32 %v8085, 4294901760
      %v8898 = vsub.f32 %v8085, %v8897
      %8899 = vmatprep.mubr.f32.mxu0 %v8898
      %v8900 = vand.u32 %v8015, 4294901760
      %v8901 = vsub.f32 %v8015, %v8900
      %8902 = vmatmul.mubr.f32.gmra.mrb[0].mxu0 %v8901
      %v8903 = vpop.f32.mrb[0].mxu0
      %v8904 = vpop.f32.mrb[0].mxu0
      %v8905 = vand.u32 %v8088, 4294901760
      %v8906 = vsub.f32 %v8088, %v8905
      %8907 = vmatprep.mubr.f32.mxu0 %v8906
      %v8908 = vand.u32 %v8016, 4294901760
      %v8909 = vsub.f32 %v8016, %v8908
      %8910 = vmatmul.mubr.f32.gmra.mrb[0].mxu0 %v8909
      %v8911 = vpop.f32.mrb[0].mxu0
      %v8912 = vpop.f32.mrb[0].mxu0
      %v8913 = vand.u32 %v8091, 4294901760
      %v8914 = vsub.f32 %v8091, %v8913
      %8915 = vmatprep.mubr.f32.mxu0 %v8914
      %v8916 = vand.u32 %v8017, 4294901760
      %v8917 = vsub.f32 %v8017, %v8916
      %8918 = vmatmul.mubr.f32.gmra.mrb[0].mxu0 %v8917
      %v8919 = vpop.f32.mrb[0].mxu0
      %v8920 = vpop.f32.mrb[0].mxu0
      %v8921 = vand.u32 %v8094, 4294901760
      %v8922 = vsub.f32 %v8094, %v8921
      %8923 = vmatprep.mubr.f32.mxu0 %v8922
      %v8924 = vand.u32 %v8018, 4294901760
      %v8925 = vsub.f32 %v8018, %v8924
      %8926 = vmatmul.mubr.f32.gmra.mrb[0].mxu0 %v8925
      %v8927 = vpop.f32.mrb[0].mxu0
      %v8928 = vadd.f32 %v8687, %v8927
      %v8929 = vpop.f32.mrb[0].mxu0
      %v8930 = vand.u32 %v8097, 4294901760
      %v8931 = vsub.f32 %v8097, %v8930
      %8932 = vmatprep.mubr.f32.mxu0 %v8931
      %v8933 = vand.u32 %v8019, 4294901760
      %v8934 = vsub.f32 %v8019, %v8933
      %8935 = vmatmul.mubr.f32.gmra.mrb[0].mxu0 %v8934
      %v8936 = vpop.f32.mrb[0].mxu0
      %v8937 = vadd.f32 %v8694, %v8936
      %v8938 = vpop.f32.mrb[0].mxu0
      %8939 = vdwg.mxu0
      %8940 = vmatprep.subr.mxu0 0.0
      %v8941 = vand.u32 %v8020, 4294901760
      %8942 = vmatpush1.msra.mxu0 %v8941
      %8943 = vmatprep.subr.mxu0 0.0
      %v8944 = vand.u32 %v8021, 4294901760
      %8945 = vmatpush1.msra.mxu0 %v8944
      %8946 = vmatprep.subr.mxu0 0.0
      %v8947 = vand.u32 %v8022, 4294901760
      %8948 = vmatpush1.msra.mxu0 %v8947
      %8949 = vmatprep.subr.mxu0 0.0
      %v8950 = vand.u32 %v8023, 4294901760
      %8951 = vmatpush1.msra.mxu0 %v8950
      %8952 = vmatprep.subr.mxu0 0.0
      %v8953 = vand.u32 %v8024, 4294901760
      %8954 = vmatpush1.msra.mxu0 %v8953
      %8955 = vmatprep.subr.mxu0 0.0
      %v8956 = vand.u32 %v8025, 4294901760
      %8957 = vmatpush1.msra.mxu0 %v8956
      %8958 = vmatprep.subr.mxu0 0.0
      %v8959 = vand.u32 %v8026, 4294901760
      %8960 = vmatpush1.msra.mxu0 %v8959
      %8961 = vmatprep.subr.mxu0 0.0
      %v8962 = vand.u32 %v8027, 4294901760
      %8963 = vmatpush1.msra.mxu0 %v8962
      %8964 = vmatprep.subr.mxu0 0.0
      %v8965 = vand.u32 %v8028, 4294901760
      %8966 = vmatpush1.msra.mxu0 %v8965
      %8967 = vmatprep.subr.mxu0 0.0
      %v8968 = vand.u32 %v8029, 4294901760
      %8969 = vmatpush1.msra.mxu0 %v8968
      %8970 = vmatprep.subr.mxu0 0.0
      %v8971 = vand.u32 %v8030, 4294901760
      %8972 = vmatpush1.msra.mxu0 %v8971
      %8973 = vmatprep.subr.mxu0 0.0
      %v8974 = vand.u32 %v8031, 4294901760
      %8975 = vmatpush1.msra.mxu0 %v8974
      %8976 = vmatprep.subr.mxu0 0.0
      %v8977 = vand.u32 %v8032, 4294901760
      %8978 = vmatpush1.msra.mxu0 %v8977
      %8979 = vmatprep.subr.mxu0 0.0
      %v8980 = vand.u32 %v8033, 4294901760
      %8981 = vmatpush1.msra.mxu0 %v8980
      %8982 = vmatprep.subr.mxu0 0.0
      %v8983 = vand.u32 %v8034, 4294901760
      %8984 = vmatpush1.msra.mxu0 %v8983
      %8985 = vmatprep.subr.mxu0 0.0
      %v8986 = vand.u32 %v8035, 4294901760
      %8987 = vmatpush1.msra.mxu0 %v8986
      %8988 = vmatprep.subr.mxu0 0.0
      %v8989 = vand.u32 %v8036, 4294901760
      %8990 = vmatpush1.msra.mxu0 %v8989
      %8991 = vmatprep.subr.mxu0 0.0
      %v8992 = vand.u32 %v8037, 4294901760
      %8993 = vmatpush1.msra.mxu0 %v8992
      %8994 = vmatprep.subr.mxu0 0.0
      %v8995 = vand.u32 %v8038, 4294901760
      %8996 = vmatpush1.msra.mxu0 %v8995
      %8997 = vmatprep.subr.mxu0 0.0
      %v8998 = vand.u32 %v8039, 4294901760
      %8999 = vmatpush1.msra.mxu0 %v8998
      %9000 = vmatprep.subr.mxu0 0.0
      %v9001 = vand.u32 %v8040, 4294901760
      %9002 = vmatpush1.msra.mxu0 %v9001
      %9003 = vmatprep.subr.mxu0 0.0
      %v9004 = vand.u32 %v8041, 4294901760
      %9005 = vmatpush1.msra.mxu0 %v9004
      %9006 = vmatprep.subr.mxu0 0.0
      %v9007 = vand.u32 %v8042, 4294901760
      %9008 = vmatpush1.msra.mxu0 %v9007
      %9009 = vmatprep.subr.mxu0 0.0
      %v9010 = vand.u32 %v8043, 4294901760
      %9011 = vmatpush1.msra.mxu0 %v9010
      %9012 = vmatprep.subr.mxu0 0.0
      %9013 = vmatpush1.msra.mxu0 0.0
      %9014 = vmatprep.subr.mxu0 0.0
      %9015 = vmatpush1.msra.mxu0 0.0
      %9016 = vmatprep.subr.mxu0 0.0
      %9017 = vmatpush1.msra.mxu0 0.0
      %9018 = vmatprep.subr.mxu0 0.0
      %9019 = vmatpush1.msra.mxu0 0.0
      %9020 = vmatprep.subr.mxu0 0.0
      %9021 = vmatpush1.msra.mxu0 0.0
      %9022 = vmatprep.subr.mxu0 0.0
      %9023 = vmatpush1.msra.mxu0 0.0
      %9024 = vmatprep.subr.mxu0 0.0
      %9025 = vmatpush1.msra.mxu0 0.0
      %9026 = vmatprep.subr.mxu0 0.0
      %9027 = vmatpush1.msra.mxu0 0.0
      %v9028 = vand.u32 %v8052, 4294901760
      %v9029 = vsub.f32 %v8052, %v9028
      %v9030 = vand.u32 %v9029, 4294901760
      %9031 = vmatprep.mubr.f32.mxu0 %v9030
      %v9032 = vand.u32 %v8004, 4294901760
      %v9033 = vsub.f32 %v8004, %v9032
      %v9034 = vand.u32 %v9033, 4294901760
      %9035 = vmatmul.mubr.f32.gmra.mrb[0].mxu0 %v9034
      %v9036 = vpop.f32.mrb[0].mxu0
      %v9037 = vpop.f32.mrb[0].mxu0
      %v9038 = vand.u32 %v8055, 4294901760
      %v9039 = vsub.f32 %v8055, %v9038
      %v9040 = vand.u32 %v9039, 4294901760
      %9041 = vmatprep.mubr.f32.mxu0 %v9040
      %v9042 = vand.u32 %v8005, 4294901760
      %v9043 = vsub.f32 %v8005, %v9042
      %v9044 = vand.u32 %v9043, 4294901760
      %9045 = vmatmul.mubr.f32.gmra.mrb[0].mxu0 %v9044
      %v9046 = vpop.f32.mrb[0].mxu0
      %v9047 = vpop.f32.mrb[0].mxu0
      %v9048 = vand.u32 %v8058, 4294901760
      %v9049 = vsub.f32 %v8058, %v9048
      %v9050 = vand.u32 %v9049, 4294901760
      %9051 = vmatprep.mubr.f32.mxu0 %v9050
      %v9052 = vand.u32 %v8006, 4294901760
      %v9053 = vsub.f32 %v8006, %v9052
      %v9054 = vand.u32 %v9053, 4294901760
      %9055 = vmatmul.mubr.f32.gmra.mrb[0].mxu0 %v9054
      %v9056 = vpop.f32.mrb[0].mxu0
      %v9057 = vpop.f32.mrb[0].mxu0
      %v9058 = vand.u32 %v8061, 4294901760
      %v9059 = vsub.f32 %v8061, %v9058
      %v9060 = vand.u32 %v9059, 4294901760
      %9061 = vmatprep.mubr.f32.mxu0 %v9060
      %v9062 = vand.u32 %v8007, 4294901760
      %v9063 = vsub.f32 %v8007, %v9062
      %v9064 = vand.u32 %v9063, 4294901760
      %9065 = vmatmul.mubr.f32.gmra.mrb[0].mxu0 %v9064
      %v9066 = vpop.f32.mrb[0].mxu0
      %v9067 = vpop.f32.mrb[0].mxu0
      %v9068 = vand.u32 %v8064, 4294901760
      %v9069 = vsub.f32 %v8064, %v9068
      %v9070 = vand.u32 %v9069, 4294901760
      %9071 = vmatprep.mubr.f32.mxu0 %v9070
      %v9072 = vand.u32 %v8008, 4294901760
      %v9073 = vsub.f32 %v8008, %v9072
      %v9074 = vand.u32 %v9073, 4294901760
      %9075 = vmatmul.mubr.f32.gmra.mrb[0].mxu0 %v9074
      %v9076 = vpop.f32.mrb[0].mxu0
      %v9077 = vpop.f32.mrb[0].mxu0
      %v9078 = vand.u32 %v8067, 4294901760
      %v9079 = vsub.f32 %v8067, %v9078
      %v9080 = vand.u32 %v9079, 4294901760
      %9081 = vmatprep.mubr.f32.mxu0 %v9080
      %v9082 = vand.u32 %v8009, 4294901760
      %v9083 = vsub.f32 %v8009, %v9082
      %v9084 = vand.u32 %v9083, 4294901760
      %9085 = vmatmul.mubr.f32.gmra.mrb[0].mxu0 %v9084
      %v9086 = vpop.f32.mrb[0].mxu0
      %v9087 = vpop.f32.mrb[0].mxu0
      %v9088 = vand.u32 %v8070, 4294901760
      %v9089 = vsub.f32 %v8070, %v9088
      %v9090 = vand.u32 %v9089, 4294901760
      %9091 = vmatprep.mubr.f32.mxu0 %v9090
      %v9092 = vand.u32 %v8010, 4294901760
      %v9093 = vsub.f32 %v8010, %v9092
      %v9094 = vand.u32 %v9093, 4294901760
      %9095 = vmatmul.mubr.f32.gmra.mrb[0].mxu0 %v9094
      %v9096 = vpop.f32.mrb[0].mxu0
      %v9097 = vpop.f32.mrb[0].mxu0
      %v9098 = vand.u32 %v8073, 4294901760
      %v9099 = vsub.f32 %v8073, %v9098
      %v9100 = vand.u32 %v9099, 4294901760
      %9101 = vmatprep.mubr.f32.mxu0 %v9100
      %v9102 = vand.u32 %v8011, 4294901760
      %v9103 = vsub.f32 %v8011, %v9102
      %v9104 = vand.u32 %v9103, 4294901760
      %9105 = vmatmul.mubr.f32.gmra.mrb[0].mxu0 %v9104
      %v9106 = vpop.f32.mrb[0].mxu0
      %v9107 = vpop.f32.mrb[0].mxu0
      %v9108 = vand.u32 %v8076, 4294901760
      %v9109 = vsub.f32 %v8076, %v9108
      %v9110 = vand.u32 %v9109, 4294901760
      %9111 = vmatprep.mubr.f32.mxu0 %v9110
      %v9112 = vand.u32 %v8012, 4294901760
      %v9113 = vsub.f32 %v8012, %v9112
      %v9114 = vand.u32 %v9113, 4294901760
      %9115 = vmatmul.mubr.f32.gmra.mrb[0].mxu0 %v9114
      %v9116 = vpop.f32.mrb[0].mxu0
      %v9117 = vpop.f32.mrb[0].mxu0
      %v9118 = vand.u32 %v8079, 4294901760
      %v9119 = vsub.f32 %v8079, %v9118
      %v9120 = vand.u32 %v9119, 4294901760
      %9121 = vmatprep.mubr.f32.mxu0 %v9120
      %v9122 = vand.u32 %v8013, 4294901760
      %v9123 = vsub.f32 %v8013, %v9122
      %v9124 = vand.u32 %v9123, 4294901760
      %9125 = vmatmul.mubr.f32.gmra.mrb[0].mxu0 %v9124
      %v9126 = vpop.f32.mrb[0].mxu0
      %v9127 = vpop.f32.mrb[0].mxu0
      %v9128 = vand.u32 %v8082, 4294901760
      %v9129 = vsub.f32 %v8082, %v9128
      %v9130 = vand.u32 %v9129, 4294901760
      %9131 = vmatprep.mubr.f32.mxu0 %v9130
      %v9132 = vand.u32 %v8014, 4294901760
      %v9133 = vsub.f32 %v8014, %v9132
      %v9134 = vand.u32 %v9133, 4294901760
      %9135 = vmatmul.mubr.f32.gmra.mrb[0].mxu0 %v9134
      %v9136 = vpop.f32.mrb[0].mxu0
      %v9137 = vpop.f32.mrb[0].mxu0
      %v9138 = vand.u32 %v8085, 4294901760
      %v9139 = vsub.f32 %v8085, %v9138
      %v9140 = vand.u32 %v9139, 4294901760
      %9141 = vmatprep.mubr.f32.mxu0 %v9140
      %v9142 = vand.u32 %v8015, 4294901760
      %v9143 = vsub.f32 %v8015, %v9142
      %v9144 = vand.u32 %v9143, 4294901760
      %9145 = vmatmul.mubr.f32.gmra.mrb[0].mxu0 %v9144
      %v9146 = vpop.f32.mrb[0].mxu0
      %v9147 = vpop.f32.mrb[0].mxu0
      %v9148 = vand.u32 %v8088, 4294901760
      %v9149 = vsub.f32 %v8088, %v9148
      %v9150 = vand.u32 %v9149, 4294901760
      %9151 = vmatprep.mubr.f32.mxu0 %v9150
      %v9152 = vand.u32 %v8016, 4294901760
      %v9153 = vsub.f32 %v8016, %v9152
      %v9154 = vand.u32 %v9153, 4294901760
      %9155 = vmatmul.mubr.f32.gmra.mrb[0].mxu0 %v9154
      %v9156 = vpop.f32.mrb[0].mxu0
      %v9157 = vpop.f32.mrb[0].mxu0
      %v9158 = vand.u32 %v8091, 4294901760
      %v9159 = vsub.f32 %v8091, %v9158
      %v9160 = vand.u32 %v9159, 4294901760
      %9161 = vmatprep.mubr.f32.mxu0 %v9160
      %v9162 = vand.u32 %v8017, 4294901760
      %v9163 = vsub.f32 %v8017, %v9162
      %v9164 = vand.u32 %v9163, 4294901760
      %9165 = vmatmul.mubr.f32.gmra.mrb[0].mxu0 %v9164
      %v9166 = vpop.f32.mrb[0].mxu0
      %v9167 = vpop.f32.mrb[0].mxu0
      %v9168 = vand.u32 %v8094, 4294901760
      %v9169 = vsub.f32 %v8094, %v9168
      %v9170 = vand.u32 %v9169, 4294901760
      %9171 = vmatprep.mubr.f32.mxu0 %v9170
      %v9172 = vand.u32 %v8018, 4294901760
      %v9173 = vsub.f32 %v8018, %v9172
      %v9174 = vand.u32 %v9173, 4294901760
      %9175 = vmatmul.mubr.f32.gmra.mrb[0].mxu0 %v9174
      %v9176 = vpop.f32.mrb[0].mxu0
      %v9177 = vadd.f32 %v8928, %v9176
      %v9178 = vpop.f32.mrb[0].mxu0
      %v9179 = vand.u32 %v8097, 4294901760
      %v9180 = vsub.f32 %v8097, %v9179
      %v9181 = vand.u32 %v9180, 4294901760
      %9182 = vmatprep.mubr.f32.mxu0 %v9181
      %v9183 = vand.u32 %v8019, 4294901760
      %v9184 = vsub.f32 %v8019, %v9183
      %v9185 = vand.u32 %v9184, 4294901760
      %9186 = vmatmul.mubr.f32.gmra.mrb[0].mxu0 %v9185
      %v9187 = vpop.f32.mrb[0].mxu0
      %v9188 = vadd.f32 %v8937, %v9187
      %v9189 = vpop.f32.mrb[0].mxu0
      %9190 = vdwg.mxu0
      %9191 = vmatprep.subr.mxu0 0.0
      %v9192 = vand.u32 %v8020, 4294901760
      %v9193 = vsub.f32 %v8020, %v9192
      %v9194 = vand.u32 %v9193, 4294901760
      %9195 = vmatpush1.msra.mxu0 %v9194
      %9196 = vmatprep.subr.mxu0 0.0
      %v9197 = vand.u32 %v8021, 4294901760
      %v9198 = vsub.f32 %v8021, %v9197
      %v9199 = vand.u32 %v9198, 4294901760
      %9200 = vmatpush1.msra.mxu0 %v9199
      %9201 = vmatprep.subr.mxu0 0.0
      %v9202 = vand.u32 %v8022, 4294901760
      %v9203 = vsub.f32 %v8022, %v9202
      %v9204 = vand.u32 %v9203, 4294901760
      %9205 = vmatpush1.msra.mxu0 %v9204
      %9206 = vmatprep.subr.mxu0 0.0
      %v9207 = vand.u32 %v8023, 4294901760
      %v9208 = vsub.f32 %v8023, %v9207
      %v9209 = vand.u32 %v9208, 4294901760
      %9210 = vmatpush1.msra.mxu0 %v9209
      %9211 = vmatprep.subr.mxu0 0.0
      %v9212 = vand.u32 %v8024, 4294901760
      %v9213 = vsub.f32 %v8024, %v9212
      %v9214 = vand.u32 %v9213, 4294901760
      %9215 = vmatpush1.msra.mxu0 %v9214
      %9216 = vmatprep.subr.mxu0 0.0
      %v9217 = vand.u32 %v8025, 4294901760
      %v9218 = vsub.f32 %v8025, %v9217
      %v9219 = vand.u32 %v9218, 4294901760
      %9220 = vmatpush1.msra.mxu0 %v9219
      %9221 = vmatprep.subr.mxu0 0.0
      %v9222 = vand.u32 %v8026, 4294901760
      %v9223 = vsub.f32 %v8026, %v9222
      %v9224 = vand.u32 %v9223, 4294901760
      %9225 = vmatpush1.msra.mxu0 %v9224
      %9226 = vmatprep.subr.mxu0 0.0
      %v9227 = vand.u32 %v8027, 4294901760
      %v9228 = vsub.f32 %v8027, %v9227
      %v9229 = vand.u32 %v9228, 4294901760
      %9230 = vmatpush1.msra.mxu0 %v9229
      %9231 = vmatprep.subr.mxu0 0.0
      %v9232 = vand.u32 %v8028, 4294901760
      %v9233 = vsub.f32 %v8028, %v9232
      %v9234 = vand.u32 %v9233, 4294901760
      %9235 = vmatpush1.msra.mxu0 %v9234
      %9236 = vmatprep.subr.mxu0 0.0
      %v9237 = vand.u32 %v8029, 4294901760
      %v9238 = vsub.f32 %v8029, %v9237
      %v9239 = vand.u32 %v9238, 4294901760
      %9240 = vmatpush1.msra.mxu0 %v9239
      %9241 = vmatprep.subr.mxu0 0.0
      %v9242 = vand.u32 %v8030, 4294901760
      %v9243 = vsub.f32 %v8030, %v9242
      %v9244 = vand.u32 %v9243, 4294901760
      %9245 = vmatpush1.msra.mxu0 %v9244
      %9246 = vmatprep.subr.mxu0 0.0
      %v9247 = vand.u32 %v8031, 4294901760
      %v9248 = vsub.f32 %v8031, %v9247
      %v9249 = vand.u32 %v9248, 4294901760
      %9250 = vmatpush1.msra.mxu0 %v9249
      %9251 = vmatprep.subr.mxu0 0.0
      %v9252 = vand.u32 %v8032, 4294901760
      %v9253 = vsub.f32 %v8032, %v9252
      %v9254 = vand.u32 %v9253, 4294901760
      %9255 = vmatpush1.msra.mxu0 %v9254
      %9256 = vmatprep.subr.mxu0 0.0
      %v9257 = vand.u32 %v8033, 4294901760
      %v9258 = vsub.f32 %v8033, %v9257
      %v9259 = vand.u32 %v9258, 4294901760
      %9260 = vmatpush1.msra.mxu0 %v9259
      %9261 = vmatprep.subr.mxu0 0.0
      %v9262 = vand.u32 %v8034, 4294901760
      %v9263 = vsub.f32 %v8034, %v9262
      %v9264 = vand.u32 %v9263, 4294901760
      %9265 = vmatpush1.msra.mxu0 %v9264
      %9266 = vmatprep.subr.mxu0 0.0
      %v9267 = vand.u32 %v8035, 4294901760
      %v9268 = vsub.f32 %v8035, %v9267
      %v9269 = vand.u32 %v9268, 4294901760
      %9270 = vmatpush1.msra.mxu0 %v9269
      %9271 = vmatprep.subr.mxu0 0.0
      %v9272 = vand.u32 %v8036, 4294901760
      %v9273 = vsub.f32 %v8036, %v9272
      %v9274 = vand.u32 %v9273, 4294901760
      %9275 = vmatpush1.msra.mxu0 %v9274
      %9276 = vmatprep.subr.mxu0 0.0
      %v9277 = vand.u32 %v8037, 4294901760
      %v9278 = vsub.f32 %v8037, %v9277
      %v9279 = vand.u32 %v9278, 4294901760
      %9280 = vmatpush1.msra.mxu0 %v9279
      %9281 = vmatprep.subr.mxu0 0.0
      %v9282 = vand.u32 %v8038, 4294901760
      %v9283 = vsub.f32 %v8038, %v9282
      %v9284 = vand.u32 %v9283, 4294901760
      %9285 = vmatpush1.msra.mxu0 %v9284
      %9286 = vmatprep.subr.mxu0 0.0
      %v9287 = vand.u32 %v8039, 4294901760
      %v9288 = vsub.f32 %v8039, %v9287
      %v9289 = vand.u32 %v9288, 4294901760
      %9290 = vmatpush1.msra.mxu0 %v9289
      %9291 = vmatprep.subr.mxu0 0.0
      %v9292 = vand.u32 %v8040, 4294901760
      %v9293 = vsub.f32 %v8040, %v9292
      %v9294 = vand.u32 %v9293, 4294901760
      %9295 = vmatpush1.msra.mxu0 %v9294
      %9296 = vmatprep.subr.mxu0 0.0
      %v9297 = vand.u32 %v8041, 4294901760
      %v9298 = vsub.f32 %v8041, %v9297
      %v9299 = vand.u32 %v9298, 4294901760
      %9300 = vmatpush1.msra.mxu0 %v9299
      %9301 = vmatprep.subr.mxu0 0.0
      %v9302 = vand.u32 %v8042, 4294901760
      %v9303 = vsub.f32 %v8042, %v9302
      %v9304 = vand.u32 %v9303, 4294901760
      %9305 = vmatpush1.msra.mxu0 %v9304
      %9306 = vmatprep.subr.mxu0 0.0
      %v9307 = vand.u32 %v8043, 4294901760
      %v9308 = vsub.f32 %v8043, %v9307
      %v9309 = vand.u32 %v9308, 4294901760
      %9310 = vmatpush1.msra.mxu0 %v9309
      %9311 = vmatprep.subr.mxu0 0.0
      %9312 = vmatpush1.msra.mxu0 0.0
      %9313 = vmatprep.subr.mxu0 0.0
      %9314 = vmatpush1.msra.mxu0 0.0
      %9315 = vmatprep.subr.mxu0 0.0
      %9316 = vmatpush1.msra.mxu0 0.0
      %9317 = vmatprep.subr.mxu0 0.0
      %9318 = vmatpush1.msra.mxu0 0.0
      %9319 = vmatprep.subr.mxu0 0.0
      %9320 = vmatpush1.msra.mxu0 0.0
      %9321 = vmatprep.subr.mxu0 0.0
      %9322 = vmatpush1.msra.mxu0 0.0
      %9323 = vmatprep.subr.mxu0 0.0
      %9324 = vmatpush1.msra.mxu0 0.0
      %9325 = vmatprep.subr.mxu0 0.0
      %9326 = vmatpush1.msra.mxu0 0.0
      %v9327 = vand.u32 %v8052, 4294901760
      %9328 = vmatprep.mubr.f32.mxu0 %v9327
      %v9329 = vand.u32 %v8004, 4294901760
      %9330 = vmatmul.mubr.f32.gmra.mrb[0].mxu0 %v9329
      %v9331 = vpop.f32.mrb[0].mxu0
      %v9332 = vpop.f32.mrb[0].mxu0
      %v9333 = vand.u32 %v8055, 4294901760
      %9334 = vmatprep.mubr.f32.mxu0 %v9333
      %v9335 = vand.u32 %v8005, 4294901760
      %9336 = vmatmul.mubr.f32.gmra.mrb[0].mxu0 %v9335
      %v9337 = vpop.f32.mrb[0].mxu0
      %v9338 = vpop.f32.mrb[0].mxu0
      %v9339 = vand.u32 %v8058, 4294901760
      %9340 = vmatprep.mubr.f32.mxu0 %v9339
      %v9341 = vand.u32 %v8006, 4294901760
      %9342 = vmatmul.mubr.f32.gmra.mrb[0].mxu0 %v9341
      %v9343 = vpop.f32.mrb[0].mxu0
      %v9344 = vpop.f32.mrb[0].mxu0
      %v9345 = vand.u32 %v8061, 4294901760
      %9346 = vmatprep.mubr.f32.mxu0 %v9345
      %v9347 = vand.u32 %v8007, 4294901760
      %9348 = vmatmul.mubr.f32.gmra.mrb[0].mxu0 %v9347
      %v9349 = vpop.f32.mrb[0].mxu0
      %v9350 = vpop.f32.mrb[0].mxu0
      %v9351 = vand.u32 %v8064, 4294901760
      %9352 = vmatprep.mubr.f32.mxu0 %v9351
      %v9353 = vand.u32 %v8008, 4294901760
      %9354 = vmatmul.mubr.f32.gmra.mrb[0].mxu0 %v9353
      %v9355 = vpop.f32.mrb[0].mxu0
      %v9356 = vpop.f32.mrb[0].mxu0
      %v9357 = vand.u32 %v8067, 4294901760
      %9358 = vmatprep.mubr.f32.mxu0 %v9357
      %v9359 = vand.u32 %v8009, 4294901760
      %9360 = vmatmul.mubr.f32.gmra.mrb[0].mxu0 %v9359
      %v9361 = vpop.f32.mrb[0].mxu0
      %v9362 = vpop.f32.mrb[0].mxu0
      %v9363 = vand.u32 %v8070, 4294901760
      %9364 = vmatprep.mubr.f32.mxu0 %v9363
      %v9365 = vand.u32 %v8010, 4294901760
      %9366 = vmatmul.mubr.f32.gmra.mrb[0].mxu0 %v9365
      %v9367 = vpop.f32.mrb[0].mxu0
      %v9368 = vpop.f32.mrb[0].mxu0
      %v9369 = vand.u32 %v8073, 4294901760
      %9370 = vmatprep.mubr.f32.mxu0 %v9369
      %v9371 = vand.u32 %v8011, 4294901760
      %9372 = vmatmul.mubr.f32.gmra.mrb[0].mxu0 %v9371
      %v9373 = vpop.f32.mrb[0].mxu0
      %v9374 = vpop.f32.mrb[0].mxu0
      %v9375 = vand.u32 %v8076, 4294901760
      %9376 = vmatprep.mubr.f32.mxu0 %v9375
      %v9377 = vand.u32 %v8012, 4294901760
      %9378 = vmatmul.mubr.f32.gmra.mrb[0].mxu0 %v9377
      %v9379 = vpop.f32.mrb[0].mxu0
      %v9380 = vpop.f32.mrb[0].mxu0
      %v9381 = vand.u32 %v8079, 4294901760
      %9382 = vmatprep.mubr.f32.mxu0 %v9381
      %v9383 = vand.u32 %v8013, 4294901760
      %9384 = vmatmul.mubr.f32.gmra.mrb[0].mxu0 %v9383
      %v9385 = vpop.f32.mrb[0].mxu0
      %v9386 = vpop.f32.mrb[0].mxu0
      %v9387 = vand.u32 %v8082, 4294901760
      %9388 = vmatprep.mubr.f32.mxu0 %v9387
      %v9389 = vand.u32 %v8014, 4294901760
      %9390 = vmatmul.mubr.f32.gmra.mrb[0].mxu0 %v9389
      %v9391 = vpop.f32.mrb[0].mxu0
      %v9392 = vpop.f32.mrb[0].mxu0
      %v9393 = vand.u32 %v8085, 4294901760
      %9394 = vmatprep.mubr.f32.mxu0 %v9393
      %v9395 = vand.u32 %v8015, 4294901760
      %9396 = vmatmul.mubr.f32.gmra.mrb[0].mxu0 %v9395
      %v9397 = vpop.f32.mrb[0].mxu0
      %v9398 = vpop.f32.mrb[0].mxu0
      %v9399 = vand.u32 %v8088, 4294901760
      %9400 = vmatprep.mubr.f32.mxu0 %v9399
      %v9401 = vand.u32 %v8016, 4294901760
      %9402 = vmatmul.mubr.f32.gmra.mrb[0].mxu0 %v9401
      %v9403 = vpop.f32.mrb[0].mxu0
      %v9404 = vpop.f32.mrb[0].mxu0
      %v9405 = vand.u32 %v8091, 4294901760
      %9406 = vmatprep.mubr.f32.mxu0 %v9405
      %v9407 = vand.u32 %v8017, 4294901760
      %9408 = vmatmul.mubr.f32.gmra.mrb[0].mxu0 %v9407
      %v9409 = vpop.f32.mrb[0].mxu0
      %v9410 = vpop.f32.mrb[0].mxu0
      %v9411 = vand.u32 %v8094, 4294901760
      %9412 = vmatprep.mubr.f32.mxu0 %v9411
      %v9413 = vand.u32 %v8018, 4294901760
      %9414 = vmatmul.mubr.f32.gmra.mrb[0].mxu0 %v9413
      %v9415 = vpop.f32.mrb[0].mxu0
      %v9416 = vadd.f32 %v9177, %v9415
      %v9417 = vpop.f32.mrb[0].mxu0
      %v9418 = vand.u32 %v8097, 4294901760
      %9419 = vmatprep.mubr.f32.mxu0 %v9418
      %v9420 = vand.u32 %v8019, 4294901760
      %9421 = vmatmul.mubr.f32.gmra.mrb[0].mxu0 %v9420
      %v9422 = vpop.f32.mrb[0].mxu0
      %v9423 = vadd.f32 %v9188, %v9422
      %v9424 = vpop.f32.mrb[0].mxu0
      %9425 = vdwg.mxu0
      %9426 = vmatprep.subr.mxu0 0.0
      %v9427 = vand.u32 %v8020, 4294901760
      %9428 = vmatpush1.msra.mxu0 %v9427
      %9429 = vmatprep.subr.mxu0 0.0
      %v9430 = vand.u32 %v8021, 4294901760
      %9431 = vmatpush1.msra.mxu0 %v9430
      %9432 = vmatprep.subr.mxu0 0.0
      %v9433 = vand.u32 %v8022, 4294901760
      %9434 = vmatpush1.msra.mxu0 %v9433
      %9435 = vmatprep.subr.mxu0 0.0
      %v9436 = vand.u32 %v8023, 4294901760
      %9437 = vmatpush1.msra.mxu0 %v9436
      %9438 = vmatprep.subr.mxu0 0.0
      %v9439 = vand.u32 %v8024, 4294901760
      %9440 = vmatpush1.msra.mxu0 %v9439
      %9441 = vmatprep.subr.mxu0 0.0
      %v9442 = vand.u32 %v8025, 4294901760
      %9443 = vmatpush1.msra.mxu0 %v9442
      %9444 = vmatprep.subr.mxu0 0.0
      %v9445 = vand.u32 %v8026, 4294901760
      %9446 = vmatpush1.msra.mxu0 %v9445
      %9447 = vmatprep.subr.mxu0 0.0
      %v9448 = vand.u32 %v8027, 4294901760
      %9449 = vmatpush1.msra.mxu0 %v9448
      %9450 = vmatprep.subr.mxu0 0.0
      %v9451 = vand.u32 %v8028, 4294901760
      %9452 = vmatpush1.msra.mxu0 %v9451
      %9453 = vmatprep.subr.mxu0 0.0
      %v9454 = vand.u32 %v8029, 4294901760
      %9455 = vmatpush1.msra.mxu0 %v9454
      %9456 = vmatprep.subr.mxu0 0.0
      %v9457 = vand.u32 %v8030, 4294901760
      %9458 = vmatpush1.msra.mxu0 %v9457
      %9459 = vmatprep.subr.mxu0 0.0
      %v9460 = vand.u32 %v8031, 4294901760
      %9461 = vmatpush1.msra.mxu0 %v9460
      %9462 = vmatprep.subr.mxu0 0.0
      %v9463 = vand.u32 %v8032, 4294901760
      %9464 = vmatpush1.msra.mxu0 %v9463
      %9465 = vmatprep.subr.mxu0 0.0
      %v9466 = vand.u32 %v8033, 4294901760
      %9467 = vmatpush1.msra.mxu0 %v9466
      %9468 = vmatprep.subr.mxu0 0.0
      %v9469 = vand.u32 %v8034, 4294901760
      %9470 = vmatpush1.msra.mxu0 %v9469
      %9471 = vmatprep.subr.mxu0 0.0
      %v9472 = vand.u32 %v8035, 4294901760
      %9473 = vmatpush1.msra.mxu0 %v9472
      %9474 = vmatprep.subr.mxu0 0.0
      %v9475 = vand.u32 %v8036, 4294901760
      %9476 = vmatpush1.msra.mxu0 %v9475
      %9477 = vmatprep.subr.mxu0 0.0
      %v9478 = vand.u32 %v8037, 4294901760
      %9479 = vmatpush1.msra.mxu0 %v9478
      %9480 = vmatprep.subr.mxu0 0.0
      %v9481 = vand.u32 %v8038, 4294901760
      %9482 = vmatpush1.msra.mxu0 %v9481
      %9483 = vmatprep.subr.mxu0 0.0
      %v9484 = vand.u32 %v8039, 4294901760
      %9485 = vmatpush1.msra.mxu0 %v9484
      %9486 = vmatprep.subr.mxu0 0.0
      %v9487 = vand.u32 %v8040, 4294901760
      %9488 = vmatpush1.msra.mxu0 %v9487
      %9489 = vmatprep.subr.mxu0 0.0
      %v9490 = vand.u32 %v8041, 4294901760
      %9491 = vmatpush1.msra.mxu0 %v9490
      %9492 = vmatprep.subr.mxu0 0.0
      %v9493 = vand.u32 %v8042, 4294901760
      %9494 = vmatpush1.msra.mxu0 %v9493
      %9495 = vmatprep.subr.mxu0 0.0
      %v9496 = vand.u32 %v8043, 4294901760
      %9497 = vmatpush1.msra.mxu0 %v9496
      %9498 = vmatprep.subr.mxu0 0.0
      %9499 = vmatpush1.msra.mxu0 0.0
      %9500 = vmatprep.subr.mxu0 0.0
      %9501 = vmatpush1.msra.mxu0 0.0
      %9502 = vmatprep.subr.mxu0 0.0
      %9503 = vmatpush1.msra.mxu0 0.0
      %9504 = vmatprep.subr.mxu0 0.0
      %9505 = vmatpush1.msra.mxu0 0.0
      %9506 = vmatprep.subr.mxu0 0.0
      %9507 = vmatpush1.msra.mxu0 0.0
      %9508 = vmatprep.subr.mxu0 0.0
      %9509 = vmatpush1.msra.mxu0 0.0
      %9510 = vmatprep.subr.mxu0 0.0
      %9511 = vmatpush1.msra.mxu0 0.0
      %9512 = vmatprep.subr.mxu0 0.0
      %9513 = vmatpush1.msra.mxu0 0.0
      %v9514 = vand.u32 %v8052, 4294901760
      %9515 = vmatprep.mubr.f32.mxu0 %v9514
      %v9516 = vand.u32 %v8004, 4294901760
      %9517 = vmatmul.mubr.f32.gmra.mrb[0].mxu0 %v9516
      %v9518 = vpop.f32.mrb[0].mxu0
      %v9519 = vpop.f32.mrb[0].mxu0
      %v9520 = vand.u32 %v8055, 4294901760
      %9521 = vmatprep.mubr.f32.mxu0 %v9520
      %v9522 = vand.u32 %v8005, 4294901760
      %9523 = vmatmul.mubr.f32.gmra.mrb[0].mxu0 %v9522
      %v9524 = vpop.f32.mrb[0].mxu0
      %v9525 = vpop.f32.mrb[0].mxu0
      %v9526 = vand.u32 %v8058, 4294901760
      %9527 = vmatprep.mubr.f32.mxu0 %v9526
      %v9528 = vand.u32 %v8006, 4294901760
      %9529 = vmatmul.mubr.f32.gmra.mrb[0].mxu0 %v9528
      %v9530 = vpop.f32.mrb[0].mxu0
      %v9531 = vpop.f32.mrb[0].mxu0
      %v9532 = vand.u32 %v8061, 4294901760
      %9533 = vmatprep.mubr.f32.mxu0 %v9532
      %v9534 = vand.u32 %v8007, 4294901760
      %9535 = vmatmul.mubr.f32.gmra.mrb[0].mxu0 %v9534
      %v9536 = vpop.f32.mrb[0].mxu0
      %v9537 = vpop.f32.mrb[0].mxu0
      %v9538 = vand.u32 %v8064, 4294901760
      %9539 = vmatprep.mubr.f32.mxu0 %v9538
      %v9540 = vand.u32 %v8008, 4294901760
      %9541 = vmatmul.mubr.f32.gmra.mrb[0].mxu0 %v9540
      %v9542 = vpop.f32.mrb[0].mxu0
      %v9543 = vpop.f32.mrb[0].mxu0
      %v9544 = vand.u32 %v8067, 4294901760
      %9545 = vmatprep.mubr.f32.mxu0 %v9544
      %v9546 = vand.u32 %v8009, 4294901760
      %9547 = vmatmul.mubr.f32.gmra.mrb[0].mxu0 %v9546
      %v9548 = vpop.f32.mrb[0].mxu0
      %v9549 = vpop.f32.mrb[0].mxu0
      %v9550 = vand.u32 %v8070, 4294901760
      %9551 = vmatprep.mubr.f32.mxu0 %v9550
      %v9552 = vand.u32 %v8010, 4294901760
      %9553 = vmatmul.mubr.f32.gmra.mrb[0].mxu0 %v9552
      %v9554 = vpop.f32.mrb[0].mxu0
      %v9555 = vpop.f32.mrb[0].mxu0
      %v9556 = vand.u32 %v8073, 4294901760
      %9557 = vmatprep.mubr.f32.mxu0 %v9556
      %v9558 = vand.u32 %v8011, 4294901760
      %9559 = vmatmul.mubr.f32.gmra.mrb[0].mxu0 %v9558
      %v9560 = vpop.f32.mrb[0].mxu0
      %v9561 = vpop.f32.mrb[0].mxu0
      %v9562 = vand.u32 %v8076, 4294901760
      %9563 = vmatprep.mubr.f32.mxu0 %v9562
      %v9564 = vand.u32 %v8012, 4294901760
      %9565 = vmatmul.mubr.f32.gmra.mrb[0].mxu0 %v9564
      %v9566 = vpop.f32.mrb[0].mxu0
      %v9567 = vpop.f32.mrb[0].mxu0
      %v9568 = vand.u32 %v8079, 4294901760
      %9569 = vmatprep.mubr.f32.mxu0 %v9568
      %v9570 = vand.u32 %v8013, 4294901760
      %9571 = vmatmul.mubr.f32.gmra.mrb[0].mxu0 %v9570
      %v9572 = vpop.f32.mrb[0].mxu0
      %v9573 = vpop.f32.mrb[0].mxu0
      %v9574 = vand.u32 %v8082, 4294901760
      %9575 = vmatprep.mubr.f32.mxu0 %v9574
      %v9576 = vand.u32 %v8014, 4294901760
      %9577 = vmatmul.mubr.f32.gmra.mrb[0].mxu0 %v9576
      %v9578 = vpop.f32.mrb[0].mxu0
      %v9579 = vpop.f32.mrb[0].mxu0
      %v9580 = vand.u32 %v8085, 4294901760
      %9581 = vmatprep.mubr.f32.mxu0 %v9580
      %v9582 = vand.u32 %v8015, 4294901760
      %9583 = vmatmul.mubr.f32.gmra.mrb[0].mxu0 %v9582
      %v9584 = vpop.f32.mrb[0].mxu0
      %v9585 = vpop.f32.mrb[0].mxu0
      %v9586 = vand.u32 %v8088, 4294901760
      %9587 = vmatprep.mubr.f32.mxu0 %v9586
      %v9588 = vand.u32 %v8016, 4294901760
      %9589 = vmatmul.mubr.f32.gmra.mrb[0].mxu0 %v9588
      %v9590 = vpop.f32.mrb[0].mxu0
      %v9591 = vpop.f32.mrb[0].mxu0
      %v9592 = vand.u32 %v8091, 4294901760
      %9593 = vmatprep.mubr.f32.mxu0 %v9592
      %v9594 = vand.u32 %v8017, 4294901760
      %9595 = vmatmul.mubr.f32.gmra.mrb[0].mxu0 %v9594
      %v9596 = vpop.f32.mrb[0].mxu0
      %v9597 = vpop.f32.mrb[0].mxu0
      %v9598 = vand.u32 %v8094, 4294901760
      %9599 = vmatprep.mubr.f32.mxu0 %v9598
      %v9600 = vand.u32 %v8018, 4294901760
      %9601 = vmatmul.mubr.f32.gmra.mrb[0].mxu0 %v9600
      %v9602 = vpop.f32.mrb[0].mxu0
      %v9603 = vadd.f32 %v9416, %v9602
      %v9604 = vpop.f32.mrb[0].mxu0
      %v9605 = vand.u32 %v8097, 4294901760
      %9606 = vmatprep.mubr.f32.mxu0 %v9605
      %v9607 = vand.u32 %v8019, 4294901760
      %9608 = vmatmul.mubr.f32.gmra.mrb[0].mxu0 %v9607
      %v9609 = vpop.f32.mrb[0].mxu0
      %v9610 = vadd.f32 %v9423, %v9609
      %v9611 = vpop.f32.mrb[0].mxu0
      %9612 = vdwg.mxu0
      %v9613 = vld [vmem:[%s10] sm:$0xff]
      %v9614 = vld [vmem:[%s10 + $0x8] sm:$0xff]
      %v9615 = vld [vmem:[%s10 + $0x10] sm:$0xff]
      %v9616 = vld [vmem:[%s10 + $0x18] sm:$0xff]
      %v9617 = vld [vmem:[%s10 + $0x20] sm:$0xff]
      %v9618 = vld [vmem:[%s10 + $0x28] sm:$0xff]
      %v9619 = vld [vmem:[%s10 + $0x30] sm:$0xff]
      %v9620 = vld [vmem:[%s10 + $0x38] sm:$0xff]
      %v9621 = vld [vmem:[%s11] sm:$0x1]
      %v9623 = vlaneseq
      %v9624 = vshrl.u32 %v9623, 7
      %v9625 = vsub.s32 0, %v9624
      %v9626 = vrot.slane %v9621, %v9625
      %v9629 = vsel %vm3123, %v9603, 0
      %v9632 = vsel %vm3123, %v9610, 0
      %9634 = vmatprep.subr.mxu0 0.0
      %v9635 = vand.u32 %v9613, 4294901760
      %9636 = vmatpush1.msra.mxu0 %v9635
      %9637 = vmatprep.subr.mxu0 0.0
      %v9638 = vand.u32 %v9614, 4294901760
      %9639 = vmatpush1.msra.mxu0 %v9638
      %9640 = vmatprep.subr.mxu0 0.0
      %v9641 = vand.u32 %v9615, 4294901760
      %9642 = vmatpush1.msra.mxu0 %v9641
      %9643 = vmatprep.subr.mxu0 0.0
      %v9644 = vand.u32 %v9616, 4294901760
      %9645 = vmatpush1.msra.mxu0 %v9644
      %9646 = vmatprep.subr.mxu0 0.0
      %v9647 = vand.u32 %v9617, 4294901760
      %9648 = vmatpush1.msra.mxu0 %v9647
      %9649 = vmatprep.subr.mxu0 0.0
      %v9650 = vand.u32 %v9618, 4294901760
      %9651 = vmatpush1.msra.mxu0 %v9650
      %9652 = vmatprep.subr.mxu0 0.0
      %v9653 = vand.u32 %v9619, 4294901760
      %9654 = vmatpush1.msra.mxu0 %v9653
      %9655 = vmatprep.subr.mxu0 0.0
      %v9656 = vand.u32 %v9620, 4294901760
      %9657 = vmatpush1.msra.mxu0 %v9656
      %9658 = vmatprep.subr.mxu0 0.0
      %9659 = vmatpush1.msra.mxu0 0.0
      %9660 = vmatprep.subr.mxu0 0.0
      %9661 = vmatpush1.msra.mxu0 0.0
      %9662 = vmatprep.subr.mxu0 0.0
      %9663 = vmatpush1.msra.mxu0 0.0
      %9664 = vmatprep.subr.mxu0 0.0
      %9665 = vmatpush1.msra.mxu0 0.0
      %9666 = vmatprep.subr.mxu0 0.0
      %9667 = vmatpush1.msra.mxu0 0.0
      %9668 = vmatprep.subr.mxu0 0.0
      %9669 = vmatpush1.msra.mxu0 0.0
      %9670 = vmatprep.subr.mxu0 0.0
      %9671 = vmatpush1.msra.mxu0 0.0
      %9672 = vmatprep.subr.mxu0 0.0
      %9673 = vmatpush1.msra.mxu0 0.0
      %9674 = vmatprep.subr.mxu0 0.0
      %9675 = vmatpush1.msra.mxu0 0.0
      %9676 = vmatprep.subr.mxu0 0.0
      %9677 = vmatpush1.msra.mxu0 0.0
      %9678 = vmatprep.subr.mxu0 0.0
      %9679 = vmatpush1.msra.mxu0 0.0
      %9680 = vmatprep.subr.mxu0 0.0
      %9681 = vmatpush1.msra.mxu0 0.0
      %9682 = vmatprep.subr.mxu0 0.0
      %9683 = vmatpush1.msra.mxu0 0.0
      %9684 = vmatprep.subr.mxu0 0.0
      %9685 = vmatpush1.msra.mxu0 0.0
      %9686 = vmatprep.subr.mxu0 0.0
      %9687 = vmatpush1.msra.mxu0 0.0
      %9688 = vmatprep.subr.mxu0 0.0
      %9689 = vmatpush1.msra.mxu0 0.0
      %9690 = vmatprep.subr.mxu0 0.0
      %9691 = vmatpush1.msra.mxu0 0.0
      %9692 = vmatprep.subr.mxu0 0.0
      %9693 = vmatpush1.msra.mxu0 0.0
      %9694 = vmatprep.subr.mxu0 0.0
      %9695 = vmatpush1.msra.mxu0 0.0
      %9696 = vmatprep.subr.mxu0 0.0
      %9697 = vmatpush1.msra.mxu0 0.0
      %9698 = vmatprep.subr.mxu0 0.0
      %9699 = vmatpush1.msra.mxu0 0.0
      %9700 = vmatprep.subr.mxu0 0.0
      %9701 = vmatpush1.msra.mxu0 0.0
      %9702 = vmatprep.subr.mxu0 0.0
      %9703 = vmatpush1.msra.mxu0 0.0
      %9704 = vmatprep.subr.mxu0 0.0
      %9705 = vmatpush1.msra.mxu0 0.0
      %9706 = vmatprep.mubr.f32.mxu0 0.0
      %v9707 = vand.u32 %v9629, 4294901760
      %v9708 = vsub.f32 %v9629, %v9707
      %v9709 = vand.u32 %v9708, 4294901760
      %v9710 = vsub.f32 %v9708, %v9709
      %v9711 = vand.u32 %v9710, 4294901760
      %9712 = vmatmul.mubr.f32.gmra.mrb[0].mxu0 %v9711
      %v9713 = vpop.f32.mrb[0].mxu0
      %v9714 = vadd.f32 %v9626, %v9713
      %v9715 = vpop.f32.mrb[0].mxu0
      %9716 = vmatprep.mubr.f32.mxu0 0.0
      %v9717 = vand.u32 %v9632, 4294901760
      %v9718 = vsub.f32 %v9632, %v9717
      %v9719 = vand.u32 %v9718, 4294901760
      %v9720 = vsub.f32 %v9718, %v9719
      %v9721 = vand.u32 %v9720, 4294901760
      %9722 = vmatmul.mubr.f32.gmra.mrb[0].mxu0 %v9721
      %v9723 = vpop.f32.mrb[0].mxu0
      %v9724 = vadd.f32 %v9626, %v9723
      %v9725 = vpop.f32.mrb[0].mxu0
      %9726 = vdwg.mxu0
      %9727 = vmatprep.subr.mxu0 0.0
      %v9728 = vand.u32 %v9613, 4294901760
      %v9729 = vsub.f32 %v9613, %v9728
      %v9730 = vand.u32 %v9729, 4294901760
      %v9731 = vsub.f32 %v9729, %v9730
      %v9732 = vand.u32 %v9731, 4294901760
      %9733 = vmatpush1.msra.mxu0 %v9732
      %9734 = vmatprep.subr.mxu0 0.0
      %v9735 = vand.u32 %v9614, 4294901760
      %v9736 = vsub.f32 %v9614, %v9735
      %v9737 = vand.u32 %v9736, 4294901760
      %v9738 = vsub.f32 %v9736, %v9737
      %v9739 = vand.u32 %v9738, 4294901760
      %9740 = vmatpush1.msra.mxu0 %v9739
      %9741 = vmatprep.subr.mxu0 0.0
      %v9742 = vand.u32 %v9615, 4294901760
      %v9743 = vsub.f32 %v9615, %v9742
      %v9744 = vand.u32 %v9743, 4294901760
      %v9745 = vsub.f32 %v9743, %v9744
      %v9746 = vand.u32 %v9745, 4294901760
      %9747 = vmatpush1.msra.mxu0 %v9746
      %9748 = vmatprep.subr.mxu0 0.0
      %v9749 = vand.u32 %v9616, 4294901760
      %v9750 = vsub.f32 %v9616, %v9749
      %v9751 = vand.u32 %v9750, 4294901760
      %v9752 = vsub.f32 %v9750, %v9751
      %v9753 = vand.u32 %v9752, 4294901760
      %9754 = vmatpush1.msra.mxu0 %v9753
      %9755 = vmatprep.subr.mxu0 0.0
      %v9756 = vand.u32 %v9617, 4294901760
      %v9757 = vsub.f32 %v9617, %v9756
      %v9758 = vand.u32 %v9757, 4294901760
      %v9759 = vsub.f32 %v9757, %v9758
      %v9760 = vand.u32 %v9759, 4294901760
      %9761 = vmatpush1.msra.mxu0 %v9760
      %9762 = vmatprep.subr.mxu0 0.0
      %v9763 = vand.u32 %v9618, 4294901760
      %v9764 = vsub.f32 %v9618, %v9763
      %v9765 = vand.u32 %v9764, 4294901760
      %v9766 = vsub.f32 %v9764, %v9765
      %v9767 = vand.u32 %v9766, 4294901760
      %9768 = vmatpush1.msra.mxu0 %v9767
      %9769 = vmatprep.subr.mxu0 0.0
      %v9770 = vand.u32 %v9619, 4294901760
      %v9771 = vsub.f32 %v9619, %v9770
      %v9772 = vand.u32 %v9771, 4294901760
      %v9773 = vsub.f32 %v9771, %v9772
      %v9774 = vand.u32 %v9773, 4294901760
      %9775 = vmatpush1.msra.mxu0 %v9774
      %9776 = vmatprep.subr.mxu0 0.0
      %v9777 = vand.u32 %v9620, 4294901760
      %v9778 = vsub.f32 %v9620, %v9777
      %v9779 = vand.u32 %v9778, 4294901760
      %v9780 = vsub.f32 %v9778, %v9779
      %v9781 = vand.u32 %v9780, 4294901760
      %9782 = vmatpush1.msra.mxu0 %v9781
      %9783 = vmatprep.subr.mxu0 0.0
      %9784 = vmatpush1.msra.mxu0 0.0
      %9785 = vmatprep.subr.mxu0 0.0
      %9786 = vmatpush1.msra.mxu0 0.0
      %9787 = vmatprep.subr.mxu0 0.0
      %9788 = vmatpush1.msra.mxu0 0.0
      %9789 = vmatprep.subr.mxu0 0.0
      %9790 = vmatpush1.msra.mxu0 0.0
      %9791 = vmatprep.subr.mxu0 0.0
      %9792 = vmatpush1.msra.mxu0 0.0
      %9793 = vmatprep.subr.mxu0 0.0
      %9794 = vmatpush1.msra.mxu0 0.0
      %9795 = vmatprep.subr.mxu0 0.0
      %9796 = vmatpush1.msra.mxu0 0.0
      %9797 = vmatprep.subr.mxu0 0.0
      %9798 = vmatpush1.msra.mxu0 0.0
      %9799 = vmatprep.subr.mxu0 0.0
      %9800 = vmatpush1.msra.mxu0 0.0
      %9801 = vmatprep.subr.mxu0 0.0
      %9802 = vmatpush1.msra.mxu0 0.0
      %9803 = vmatprep.subr.mxu0 0.0
      %9804 = vmatpush1.msra.mxu0 0.0
      %9805 = vmatprep.subr.mxu0 0.0
      %9806 = vmatpush1.msra.mxu0 0.0
      %9807 = vmatprep.subr.mxu0 0.0
      %9808 = vmatpush1.msra.mxu0 0.0
      %9809 = vmatprep.subr.mxu0 0.0
      %9810 = vmatpush1.msra.mxu0 0.0
      %9811 = vmatprep.subr.mxu0 0.0
      %9812 = vmatpush1.msra.mxu0 0.0
      %9813 = vmatprep.subr.mxu0 0.0
      %9814 = vmatpush1.msra.mxu0 0.0
      %9815 = vmatprep.subr.mxu0 0.0
      %9816 = vmatpush1.msra.mxu0 0.0
      %9817 = vmatprep.subr.mxu0 0.0
      %9818 = vmatpush1.msra.mxu0 0.0
      %9819 = vmatprep.subr.mxu0 0.0
      %9820 = vmatpush1.msra.mxu0 0.0
      %9821 = vmatprep.subr.mxu0 0.0
      %9822 = vmatpush1.msra.mxu0 0.0
      %9823 = vmatprep.subr.mxu0 0.0
      %9824 = vmatpush1.msra.mxu0 0.0
      %9825 = vmatprep.subr.mxu0 0.0
      %9826 = vmatpush1.msra.mxu0 0.0
      %9827 = vmatprep.subr.mxu0 0.0
      %9828 = vmatpush1.msra.mxu0 0.0
      %9829 = vmatprep.subr.mxu0 0.0
      %9830 = vmatpush1.msra.mxu0 0.0
      %9831 = vmatprep.mubr.f32.mxu0 0.0
      %v9832 = vand.u32 %v9629, 4294901760
      %9833 = vmatmul.mubr.f32.gmra.mrb[0].mxu0 %v9832
      %v9834 = vpop.f32.mrb[0].mxu0
      %v9835 = vadd.f32 %v9714, %v9834
      %v9836 = vpop.f32.mrb[0].mxu0
      %9837 = vmatprep.mubr.f32.mxu0 0.0
      %v9838 = vand.u32 %v9632, 4294901760
      %9839 = vmatmul.mubr.f32.gmra.mrb[0].mxu0 %v9838
      %v9840 = vpop.f32.mrb[0].mxu0
      %v9841 = vadd.f32 %v9724, %v9840
      %v9842 = vpop.f32.mrb[0].mxu0
      %9843 = vdwg.mxu0
      %9844 = vmatprep.subr.mxu0 0.0
      %v9845 = vand.u32 %v9613, 4294901760
      %v9846 = vsub.f32 %v9613, %v9845
      %9847 = vmatpush1.msra.mxu0 %v9846
      %9848 = vmatprep.subr.mxu0 0.0
      %v9849 = vand.u32 %v9614, 4294901760
      %v9850 = vsub.f32 %v9614, %v9849
      %9851 = vmatpush1.msra.mxu0 %v9850
      %9852 = vmatprep.subr.mxu0 0.0
      %v9853 = vand.u32 %v9615, 4294901760
      %v9854 = vsub.f32 %v9615, %v9853
      %9855 = vmatpush1.msra.mxu0 %v9854
      %9856 = vmatprep.subr.mxu0 0.0
      %v9857 = vand.u32 %v9616, 4294901760
      %v9858 = vsub.f32 %v9616, %v9857
      %9859 = vmatpush1.msra.mxu0 %v9858
      %9860 = vmatprep.subr.mxu0 0.0
      %v9861 = vand.u32 %v9617, 4294901760
      %v9862 = vsub.f32 %v9617, %v9861
      %9863 = vmatpush1.msra.mxu0 %v9862
      %9864 = vmatprep.subr.mxu0 0.0
      %v9865 = vand.u32 %v9618, 4294901760
      %v9866 = vsub.f32 %v9618, %v9865
      %9867 = vmatpush1.msra.mxu0 %v9866
      %9868 = vmatprep.subr.mxu0 0.0
      %v9869 = vand.u32 %v9619, 4294901760
      %v9870 = vsub.f32 %v9619, %v9869
      %9871 = vmatpush1.msra.mxu0 %v9870
      %9872 = vmatprep.subr.mxu0 0.0
      %v9873 = vand.u32 %v9620, 4294901760
      %v9874 = vsub.f32 %v9620, %v9873
      %9875 = vmatpush1.msra.mxu0 %v9874
      %9876 = vmatprep.subr.mxu0 0.0
      %9877 = vmatpush1.msra.mxu0 0.0
      %9878 = vmatprep.subr.mxu0 0.0
      %9879 = vmatpush1.msra.mxu0 0.0
      %9880 = vmatprep.subr.mxu0 0.0
      %9881 = vmatpush1.msra.mxu0 0.0
      %9882 = vmatprep.subr.mxu0 0.0
      %9883 = vmatpush1.msra.mxu0 0.0
      %9884 = vmatprep.subr.mxu0 0.0
      %9885 = vmatpush1.msra.mxu0 0.0
      %9886 = vmatprep.subr.mxu0 0.0
      %9887 = vmatpush1.msra.mxu0 0.0
      %9888 = vmatprep.subr.mxu0 0.0
      %9889 = vmatpush1.msra.mxu0 0.0
      %9890 = vmatprep.subr.mxu0 0.0
      %9891 = vmatpush1.msra.mxu0 0.0
      %9892 = vmatprep.subr.mxu0 0.0
      %9893 = vmatpush1.msra.mxu0 0.0
      %9894 = vmatprep.subr.mxu0 0.0
      %9895 = vmatpush1.msra.mxu0 0.0
      %9896 = vmatprep.subr.mxu0 0.0
      %9897 = vmatpush1.msra.mxu0 0.0
      %9898 = vmatprep.subr.mxu0 0.0
      %9899 = vmatpush1.msra.mxu0 0.0
      %9900 = vmatprep.subr.mxu0 0.0
      %9901 = vmatpush1.msra.mxu0 0.0
      %9902 = vmatprep.subr.mxu0 0.0
      %9903 = vmatpush1.msra.mxu0 0.0
      %9904 = vmatprep.subr.mxu0 0.0
      %9905 = vmatpush1.msra.mxu0 0.0
      %9906 = vmatprep.subr.mxu0 0.0
      %9907 = vmatpush1.msra.mxu0 0.0
      %9908 = vmatprep.subr.mxu0 0.0
      %9909 = vmatpush1.msra.mxu0 0.0
      %9910 = vmatprep.subr.mxu0 0.0
      %9911 = vmatpush1.msra.mxu0 0.0
      %9912 = vmatprep.subr.mxu0 0.0
      %9913 = vmatpush1.msra.mxu0 0.0
      %9914 = vmatprep.subr.mxu0 0.0
      %9915 = vmatpush1.msra.mxu0 0.0
      %9916 = vmatprep.subr.mxu0 0.0
      %9917 = vmatpush1.msra.mxu0 0.0
      %9918 = vmatprep.subr.mxu0 0.0
      %9919 = vmatpush1.msra.mxu0 0.0
      %9920 = vmatprep.subr.mxu0 0.0
      %9921 = vmatpush1.msra.mxu0 0.0
      %9922 = vmatprep.subr.mxu0 0.0
      %9923 = vmatpush1.msra.mxu0 0.0
      %9924 = vmatprep.mubr.f32.mxu0 0.0
      %v9925 = vand.u32 %v9629, 4294901760
      %v9926 = vsub.f32 %v9629, %v9925
      %9927 = vmatmul.mubr.f32.gmra.mrb[0].mxu0 %v9926
      %v9928 = vpop.f32.mrb[0].mxu0
      %v9929 = vadd.f32 %v9835, %v9928
      %v9930 = vpop.f32.mrb[0].mxu0
      %9931 = vmatprep.mubr.f32.mxu0 0.0
      %v9932 = vand.u32 %v9632, 4294901760
      %v9933 = vsub.f32 %v9632, %v9932
      %9934 = vmatmul.mubr.f32.gmra.mrb[0].mxu0 %v9933
      %v9935 = vpop.f32.mrb[0].mxu0
      %v9936 = vadd.f32 %v9841, %v9935
      %v9937 = vpop.f32.mrb[0].mxu0
      %9938 = vdwg.mxu0
      %9939 = vmatprep.subr.mxu0 0.0
      %v9940 = vand.u32 %v9613, 4294901760
      %9941 = vmatpush1.msra.mxu0 %v9940
      %9942 = vmatprep.subr.mxu0 0.0
      %v9943 = vand.u32 %v9614, 4294901760
      %9944 = vmatpush1.msra.mxu0 %v9943
      %9945 = vmatprep.subr.mxu0 0.0
      %v9946 = vand.u32 %v9615, 4294901760
      %9947 = vmatpush1.msra.mxu0 %v9946
      %9948 = vmatprep.subr.mxu0 0.0
      %v9949 = vand.u32 %v9616, 4294901760
      %9950 = vmatpush1.msra.mxu0 %v9949
      %9951 = vmatprep.subr.mxu0 0.0
      %v9952 = vand.u32 %v9617, 4294901760
      %9953 = vmatpush1.msra.mxu0 %v9952
      %9954 = vmatprep.subr.mxu0 0.0
      %v9955 = vand.u32 %v9618, 4294901760
      %9956 = vmatpush1.msra.mxu0 %v9955
      %9957 = vmatprep.subr.mxu0 0.0
      %v9958 = vand.u32 %v9619, 4294901760
      %9959 = vmatpush1.msra.mxu0 %v9958
      %9960 = vmatprep.subr.mxu0 0.0
      %v9961 = vand.u32 %v9620, 4294901760
      %9962 = vmatpush1.msra.mxu0 %v9961
      %9963 = vmatprep.subr.mxu0 0.0
      %9964 = vmatpush1.msra.mxu0 0.0
      %9965 = vmatprep.subr.mxu0 0.0
      %9966 = vmatpush1.msra.mxu0 0.0
      %9967 = vmatprep.subr.mxu0 0.0
      %9968 = vmatpush1.msra.mxu0 0.0
      %9969 = vmatprep.subr.mxu0 0.0
      %9970 = vmatpush1.msra.mxu0 0.0
      %9971 = vmatprep.subr.mxu0 0.0
      %9972 = vmatpush1.msra.mxu0 0.0
      %9973 = vmatprep.subr.mxu0 0.0
      %9974 = vmatpush1.msra.mxu0 0.0
      %9975 = vmatprep.subr.mxu0 0.0
      %9976 = vmatpush1.msra.mxu0 0.0
      %9977 = vmatprep.subr.mxu0 0.0
      %9978 = vmatpush1.msra.mxu0 0.0
      %9979 = vmatprep.subr.mxu0 0.0
      %9980 = vmatpush1.msra.mxu0 0.0
      %9981 = vmatprep.subr.mxu0 0.0
      %9982 = vmatpush1.msra.mxu0 0.0
      %9983 = vmatprep.subr.mxu0 0.0
      %9984 = vmatpush1.msra.mxu0 0.0
      %9985 = vmatprep.subr.mxu0 0.0
      %9986 = vmatpush1.msra.mxu0 0.0
      %9987 = vmatprep.subr.mxu0 0.0
      %9988 = vmatpush1.msra.mxu0 0.0
      %9989 = vmatprep.subr.mxu0 0.0
      %9990 = vmatpush1.msra.mxu0 0.0
      %9991 = vmatprep.subr.mxu0 0.0
      %9992 = vmatpush1.msra.mxu0 0.0
      %9993 = vmatprep.subr.mxu0 0.0
      %9994 = vmatpush1.msra.mxu0 0.0
      %9995 = vmatprep.subr.mxu0 0.0
      %9996 = vmatpush1.msra.mxu0 0.0
      %9997 = vmatprep.subr.mxu0 0.0
      %9998 = vmatpush1.msra.mxu0 0.0
      %9999 = vmatprep.subr.mxu0 0.0
      %10000 = vmatpush1.msra.mxu0 0.0
      %10001 = vmatprep.subr.mxu0 0.0
      %10002 = vmatpush1.msra.mxu0 0.0
      %10003 = vmatprep.subr.mxu0 0.0
      %10004 = vmatpush1.msra.mxu0 0.0
      %10005 = vmatprep.subr.mxu0 0.0
      %10006 = vmatpush1.msra.mxu0 0.0
      %10007 = vmatprep.subr.mxu0 0.0
      %10008 = vmatpush1.msra.mxu0 0.0
      %10009 = vmatprep.subr.mxu0 0.0
      %10010 = vmatpush1.msra.mxu0 0.0
      %10011 = vmatprep.mubr.f32.mxu0 0.0
      %v10012 = vand.u32 %v9629, 4294901760
      %v10013 = vsub.f32 %v9629, %v10012
      %v10014 = vand.u32 %v10013, 4294901760
      %10015 = vmatmul.mubr.f32.gmra.mrb[0].mxu0 %v10014
      %v10016 = vpop.f32.mrb[0].mxu0
      %v10017 = vadd.f32 %v9929, %v10016
      %v10018 = vpop.f32.mrb[0].mxu0
      %10019 = vmatprep.mubr.f32.mxu0 0.0
      %v10020 = vand.u32 %v9632, 4294901760
      %v10021 = vsub.f32 %v9632, %v10020
      %v10022 = vand.u32 %v10021, 4294901760
      %10023 = vmatmul.mubr.f32.gmra.mrb[0].mxu0 %v10022
      %v10024 = vpop.f32.mrb[0].mxu0
      %v10025 = vadd.f32 %v9936, %v10024
      %v10026 = vpop.f32.mrb[0].mxu0
      %10027 = vdwg.mxu0
      %10028 = vmatprep.subr.mxu0 0.0
      %v10029 = vand.u32 %v9613, 4294901760
      %v10030 = vsub.f32 %v9613, %v10029
      %v10031 = vand.u32 %v10030, 4294901760
      %10032 = vmatpush1.msra.mxu0 %v10031
      %10033 = vmatprep.subr.mxu0 0.0
      %v10034 = vand.u32 %v9614, 4294901760
      %v10035 = vsub.f32 %v9614, %v10034
      %v10036 = vand.u32 %v10035, 4294901760
      %10037 = vmatpush1.msra.mxu0 %v10036
      %10038 = vmatprep.subr.mxu0 0.0
      %v10039 = vand.u32 %v9615, 4294901760
      %v10040 = vsub.f32 %v9615, %v10039
      %v10041 = vand.u32 %v10040, 4294901760
      %10042 = vmatpush1.msra.mxu0 %v10041
      %10043 = vmatprep.subr.mxu0 0.0
      %v10044 = vand.u32 %v9616, 4294901760
      %v10045 = vsub.f32 %v9616, %v10044
      %v10046 = vand.u32 %v10045, 4294901760
      %10047 = vmatpush1.msra.mxu0 %v10046
      %10048 = vmatprep.subr.mxu0 0.0
      %v10049 = vand.u32 %v9617, 4294901760
      %v10050 = vsub.f32 %v9617, %v10049
      %v10051 = vand.u32 %v10050, 4294901760
      %10052 = vmatpush1.msra.mxu0 %v10051
      %10053 = vmatprep.subr.mxu0 0.0
      %v10054 = vand.u32 %v9618, 4294901760
      %v10055 = vsub.f32 %v9618, %v10054
      %v10056 = vand.u32 %v10055, 4294901760
      %10057 = vmatpush1.msra.mxu0 %v10056
      %10058 = vmatprep.subr.mxu0 0.0
      %v10059 = vand.u32 %v9619, 4294901760
      %v10060 = vsub.f32 %v9619, %v10059
      %v10061 = vand.u32 %v10060, 4294901760
      %10062 = vmatpush1.msra.mxu0 %v10061
      %10063 = vmatprep.subr.mxu0 0.0
      %v10064 = vand.u32 %v9620, 4294901760
      %v10065 = vsub.f32 %v9620, %v10064
      %v10066 = vand.u32 %v10065, 4294901760
      %10067 = vmatpush1.msra.mxu0 %v10066
      %10068 = vmatprep.subr.mxu0 0.0
      %10069 = vmatpush1.msra.mxu0 0.0
      %10070 = vmatprep.subr.mxu0 0.0
      %10071 = vmatpush1.msra.mxu0 0.0
      %10072 = vmatprep.subr.mxu0 0.0
      %10073 = vmatpush1.msra.mxu0 0.0
      %10074 = vmatprep.subr.mxu0 0.0
      %10075 = vmatpush1.msra.mxu0 0.0
      %10076 = vmatprep.subr.mxu0 0.0
      %10077 = vmatpush1.msra.mxu0 0.0
      %10078 = vmatprep.subr.mxu0 0.0
      %10079 = vmatpush1.msra.mxu0 0.0
      %10080 = vmatprep.subr.mxu0 0.0
      %10081 = vmatpush1.msra.mxu0 0.0
      %10082 = vmatprep.subr.mxu0 0.0
      %10083 = vmatpush1.msra.mxu0 0.0
      %10084 = vmatprep.subr.mxu0 0.0
      %10085 = vmatpush1.msra.mxu0 0.0
      %10086 = vmatprep.subr.mxu0 0.0
      %10087 = vmatpush1.msra.mxu0 0.0
      %10088 = vmatprep.subr.mxu0 0.0
      %10089 = vmatpush1.msra.mxu0 0.0
      %10090 = vmatprep.subr.mxu0 0.0
      %10091 = vmatpush1.msra.mxu0 0.0
      %10092 = vmatprep.subr.mxu0 0.0
      %10093 = vmatpush1.msra.mxu0 0.0
      %10094 = vmatprep.subr.mxu0 0.0
      %10095 = vmatpush1.msra.mxu0 0.0
      %10096 = vmatprep.subr.mxu0 0.0
      %10097 = vmatpush1.msra.mxu0 0.0
      %10098 = vmatprep.subr.mxu0 0.0
      %10099 = vmatpush1.msra.mxu0 0.0
      %10100 = vmatprep.subr.mxu0 0.0
      %10101 = vmatpush1.msra.mxu0 0.0
      %10102 = vmatprep.subr.mxu0 0.0
      %10103 = vmatpush1.msra.mxu0 0.0
      %10104 = vmatprep.subr.mxu0 0.0
      %10105 = vmatpush1.msra.mxu0 0.0
      %10106 = vmatprep.subr.mxu0 0.0
      %10107 = vmatpush1.msra.mxu0 0.0
      %10108 = vmatprep.subr.mxu0 0.0
      %10109 = vmatpush1.msra.mxu0 0.0
      %10110 = vmatprep.subr.mxu0 0.0
      %10111 = vmatpush1.msra.mxu0 0.0
      %10112 = vmatprep.subr.mxu0 0.0
      %10113 = vmatpush1.msra.mxu0 0.0
      %10114 = vmatprep.subr.mxu0 0.0
      %10115 = vmatpush1.msra.mxu0 0.0
      %10116 = vmatprep.mubr.f32.mxu0 0.0
      %v10117 = vand.u32 %v9629, 4294901760
      %10118 = vmatmul.mubr.f32.gmra.mrb[0].mxu0 %v10117
      %v10119 = vpop.f32.mrb[0].mxu0
      %v10120 = vadd.f32 %v10017, %v10119
      %v10121 = vpop.f32.mrb[0].mxu0
      %10122 = vmatprep.mubr.f32.mxu0 0.0
      %v10123 = vand.u32 %v9632, 4294901760
      %10124 = vmatmul.mubr.f32.gmra.mrb[0].mxu0 %v10123
      %v10125 = vpop.f32.mrb[0].mxu0
      %v10126 = vadd.f32 %v10025, %v10125
      %v10127 = vpop.f32.mrb[0].mxu0
      %10128 = vdwg.mxu0
      %10129 = vmatprep.subr.mxu0 0.0
      %v10130 = vand.u32 %v9613, 4294901760
      %10131 = vmatpush1.msra.mxu0 %v10130
      %10132 = vmatprep.subr.mxu0 0.0
      %v10133 = vand.u32 %v9614, 4294901760
      %10134 = vmatpush1.msra.mxu0 %v10133
      %10135 = vmatprep.subr.mxu0 0.0
      %v10136 = vand.u32 %v9615, 4294901760
      %10137 = vmatpush1.msra.mxu0 %v10136
      %10138 = vmatprep.subr.mxu0 0.0
      %v10139 = vand.u32 %v9616, 4294901760
      %10140 = vmatpush1.msra.mxu0 %v10139
      %10141 = vmatprep.subr.mxu0 0.0
      %v10142 = vand.u32 %v9617, 4294901760
      %10143 = vmatpush1.msra.mxu0 %v10142
      %10144 = vmatprep.subr.mxu0 0.0
      %v10145 = vand.u32 %v9618, 4294901760
      %10146 = vmatpush1.msra.mxu0 %v10145
      %10147 = vmatprep.subr.mxu0 0.0
      %v10148 = vand.u32 %v9619, 4294901760
      %10149 = vmatpush1.msra.mxu0 %v10148
      %10150 = vmatprep.subr.mxu0 0.0
      %v10151 = vand.u32 %v9620, 4294901760
      %10152 = vmatpush1.msra.mxu0 %v10151
      %10153 = vmatprep.subr.mxu0 0.0
      %10154 = vmatpush1.msra.mxu0 0.0
      %10155 = vmatprep.subr.mxu0 0.0
      %10156 = vmatpush1.msra.mxu0 0.0
      %10157 = vmatprep.subr.mxu0 0.0
      %10158 = vmatpush1.msra.mxu0 0.0
      %10159 = vmatprep.subr.mxu0 0.0
      %10160 = vmatpush1.msra.mxu0 0.0
      %10161 = vmatprep.subr.mxu0 0.0
      %10162 = vmatpush1.msra.mxu0 0.0
      %10163 = vmatprep.subr.mxu0 0.0
      %10164 = vmatpush1.msra.mxu0 0.0
      %10165 = vmatprep.subr.mxu0 0.0
      %10166 = vmatpush1.msra.mxu0 0.0
      %10167 = vmatprep.subr.mxu0 0.0
      %10168 = vmatpush1.msra.mxu0 0.0
      %10169 = vmatprep.subr.mxu0 0.0
      %10170 = vmatpush1.msra.mxu0 0.0
      %10171 = vmatprep.subr.mxu0 0.0
      %10172 = vmatpush1.msra.mxu0 0.0
      %10173 = vmatprep.subr.mxu0 0.0
      %10174 = vmatpush1.msra.mxu0 0.0
      %10175 = vmatprep.subr.mxu0 0.0
      %10176 = vmatpush1.msra.mxu0 0.0
      %10177 = vmatprep.subr.mxu0 0.0
      %10178 = vmatpush1.msra.mxu0 0.0
      %10179 = vmatprep.subr.mxu0 0.0
      %10180 = vmatpush1.msra.mxu0 0.0
      %10181 = vmatprep.subr.mxu0 0.0
      %10182 = vmatpush1.msra.mxu0 0.0
      %10183 = vmatprep.subr.mxu0 0.0
      %10184 = vmatpush1.msra.mxu0 0.0
      %10185 = vmatprep.subr.mxu0 0.0
      %10186 = vmatpush1.msra.mxu0 0.0
      %10187 = vmatprep.subr.mxu0 0.0
      %10188 = vmatpush1.msra.mxu0 0.0
      %10189 = vmatprep.subr.mxu0 0.0
      %10190 = vmatpush1.msra.mxu0 0.0
      %10191 = vmatprep.subr.mxu0 0.0
      %10192 = vmatpush1.msra.mxu0 0.0
      %10193 = vmatprep.subr.mxu0 0.0
      %10194 = vmatpush1.msra.mxu0 0.0
      %10195 = vmatprep.subr.mxu0 0.0
      %10196 = vmatpush1.msra.mxu0 0.0
      %10197 = vmatprep.subr.mxu0 0.0
      %10198 = vmatpush1.msra.mxu0 0.0
      %10199 = vmatprep.subr.mxu0 0.0
      %10200 = vmatpush1.msra.mxu0 0.0
      %10201 = vmatprep.mubr.f32.mxu0 0.0
      %v10202 = vand.u32 %v9629, 4294901760
      %10203 = vmatmul.mubr.f32.gmra.mrb[0].mxu0 %v10202
      %v10204 = vpop.f32.mrb[0].mxu0
      %v10205 = vadd.f32 %v10120, %v10204
      %v10206 = vpop.f32.mrb[0].mxu0
      %10207 = vmatprep.mubr.f32.mxu0 0.0
      %v10208 = vand.u32 %v9632, 4294901760
      %10209 = vmatmul.mubr.f32.gmra.mrb[0].mxu0 %v10208
      %v10210 = vpop.f32.mrb[0].mxu0
      %v10211 = vadd.f32 %v10126, %v10210
      %v10212 = vpop.f32.mrb[0].mxu0
      %10213 = vdwg.mxu0
      %vm10214 = vcmask 23552
      %10215 = vst.msk [vmem:[%s413] sm:$0xff] %vm10214, %v10205
      %10216 = vst.msk [vmem:[%s413 + $0x8] sm:$0xff] %vm10214, %v10211
      %p10217 = scmp.lt.s32.totalorder %s23, 1
      %s10218 = scalar_select %p10217, %s23, 1
      %s10219 = smul.addr %s10218, 2
      %s10220 = smul.addr %s10219, 8
      %s10221 = scalar_lea.vmem %s12, %s10220
      // Predicated region
      $region69: #{stgcn_forward.1} parent=67 // pred_check
        %p10222 = pneg %p298
      $region70: #{stgcn_forward.1} parent=67 // pred_check_branch
        %10224 = sbr.rel (%p10222) target = $region72
      $region71: #{stgcn_forward.1} parent=67 // pred_region
        _
      $region72: #{stgcn_forward.1} parent=67 // pred_fallthru
        _
    $region68: #{stgcn_forward.1} parent=5 // pred_fallthru
      _
    %p10225 = scmp.le.s32.totalorder 2, %s18
    // Predicated region
    $region73: #{stgcn_forward.1} parent=5 // pred_check
      %p10226 = pneg %p10225
    $region74: #{stgcn_forward.1} parent=5 // pred_check_branch
      %10228 = sbr.rel (%p10226) target = $region76
    $region75: #{stgcn_forward.1} parent=5 // pred_region
      %s10229 = ssub.s32 %s18, 2
      // Predicated region
      $region77: #{stgcn_forward.1} parent=75 // pred_check
        %p10230 = pneg %p304
      $region78: #{stgcn_forward.1} parent=75 // pred_check_branch
        %10232 = sbr.rel (%p10230) target = $region80
      $region79: #{stgcn_forward.1} parent=75 // pred_region
        %p10233 = scmp.lt.s32.totalorder %s24, 1
        %s10234 = scalar_select %p10233, %s24, 1
        %s10235 = smul.addr %s10234, 2
        %s10236 = smul.addr %s10235, 8
        %s10237 = scalar_lea.vmem %s12, %s10236
      $region80: #{stgcn_forward.1} parent=75 // pred_fallthru
        _
    $region76: #{stgcn_forward.1} parent=5 // pred_fallthru
      _
  $region6: #{stgcn_forward.1} parent=0 // loop_footer
    %s22 = sadd.s32 1, %s18
  $region7: #{stgcn_forward.1} parent=0 // loop_footer_branch
    %17 = sbr.rel target = $region3
  $region8: #{stgcn_forward.1} parent=0 // loop_exit
    _

</llo_original>
